<compile_context>
chip_gen: v5e
topology: v5e:2x2
jax: 0.10.0
libtpu: 0.0.40
codegen_flags: <defaults>
</compile_context>

<pallas_src>
import functools
import math

import jax
import jax.numpy as jnp
from jax.experimental import pallas as pl
from jax.experimental.pallas import tpu as pltpu

_MIB = 1024 * 1024


def _round_up(x, m):
    return ((x + m - 1) // m) * m


@functools.lru_cache(maxsize=None)
def _vmem_capacity_bytes():
    """Physical VMEM of the local chip (64 MiB on v7x, 128 MiB on v5e/v6e)."""
    try:
        cap = int(getattr(pltpu.get_tpu_info(), "vmem_capacity_bytes", 0))
        if cap > 0:
            return cap
    except Exception:
        pass
    return 64 * _MIB          # conservative fallback (v7x budget)


def _vmem_limit_bytes(streamed=(), resident=()):
    """Scoped-VMEM request: grid-streamed blocks are double-buffered, weight
    blocks with a constant index_map are single-buffered; clamp to 45% of
    physical VMEM so compiler-internal scratch always fits."""
    need = 2 * sum(int(b) for b in streamed) + sum(int(b) for b in resident)
    cap = max(int(0.45 * _vmem_capacity_bytes()), need + 4 * _MIB)
    return int(min(max(need + 4 * _MIB, 8 * _MIB), cap))


def _pick_block_m(m, block_m):
    """Largest multiple-of-8 row tile <= block_m that still yields >= 2 grid
    blocks (keeps both v7x TensorCores fed). Falls back to one full block when
    M is too small to split on a sublane-tile boundary."""
    if m <= 8:
        return m
    return max(8, min(block_m, _round_up(pl.cdiv(m, 2), 8)))


# ----------------------------------------------------------------------------
# Fused linear kernel: out = act(x @ w + b); bf16 inputs, f32 MXU accumulation.
# ----------------------------------------------------------------------------
def _linear_kernel(x_ref, w_ref, b_ref, o_ref, *, activation):
    acc = jnp.dot(x_ref[...], w_ref[...], preferred_element_type=jnp.float32)
    acc = acc + b_ref[...]
    if activation == "relu":
        acc = jnp.maximum(acc, 0.0)
    o_ref[...] = acc.astype(o_ref.dtype)


def linear_pallas(x, w, b_row, activation="none", out_dtype=jnp.bfloat16,
                  block_m=2048, fuse_input=False):
    """x: (M, K) bf16, w: (K, N) bf16, b_row: (1, N) f32. M tiled ("parallel")."""
    M, K = x.shape
    K2, N = w.shape
    assert K == K2, (K, K2)
    bm = _pick_block_m(M, block_m)
    grid_m = pl.cdiv(M, bm)
    xb = jnp.dtype(x.dtype).itemsize
    wb = jnp.dtype(w.dtype).itemsize
    ob = jnp.dtype(out_dtype).itemsize
    vmem = _vmem_limit_bytes(
        streamed=(bm * K * xb, bm * N * ob),
        resident=(K * N * wb, N * 4, bm * N * 4))
    kernel = functools.partial(_linear_kernel, activation=activation)
    return pl.pallas_call(
        kernel,
        out_shape=jax.ShapeDtypeStruct((M, N), out_dtype),
        grid=(grid_m,),
        in_specs=[
            pl.BlockSpec((bm, K), lambda i: (i, 0)),
            pl.BlockSpec((K, N), lambda i: (0, 0)),
            pl.BlockSpec((1, N), lambda i: (0, 0)),
        ],
        out_specs=pl.BlockSpec((bm, N), lambda i: (i, 0)),
        compiler_params=pltpu.CompilerParams(
            dimension_semantics=("parallel",),
            vmem_limit_bytes=vmem,
            allow_input_fusion=[True, False, False] if fuse_input else None,
        ),
    )(x, w, b_row)


# ----------------------------------------------------------------------------
# Conv2d (valid padding, square stride) = NHWC im2col + fused Pallas matmul.
# ----------------------------------------------------------------------------
def _im2col_nhwc(x, kh, kw, stride):
    """x: (B, H, W, C) -> (B*oh*ow, kh*kw*C); patch column order (kh, kw, C)."""
    B, H, W, C = x.shape
    oh = (H - kh) // stride + 1
    ow = (W - kw) // stride + 1
    cols = []
    for i in range(kh):
        for j in range(kw):
            cols.append(x[:, i:i + stride * oh:stride,
                             j:j + stride * ow:stride, :])     # (B, oh, ow, C)
    p = jnp.concatenate(cols, axis=-1)                          # (B, oh, ow, kh*kw*C)
    return p.reshape(B * oh * ow, kh * kw * C), oh, ow


def conv2d_pallas(x_nhwc, w_mat, b_row, *, kh, kw, stride, block_m=2048):
    """Valid-padding conv. Patch gather stays in XLA but is hinted into the
    input DMA via allow_input_fusion; matmul + bias + ReLU are one Pallas
    kernel. Activations stay NHWC bf16 end-to-end (no transposes)."""
    B = x_nhwc.shape[0]
    oc = w_mat.shape[1]
    cols, oh, ow = _im2col_nhwc(x_nhwc, kh, kw, stride)
    out = linear_pallas(cols, w_mat, b_row, activation="relu",
                        out_dtype=jnp.bfloat16, block_m=block_m,
                        fuse_input=True)
    # TODO(synk): OC = 32/64 < 128 lanes -> masked stores on v5e; a lane-dense
    # (bm/ow, ow*OC) out_spec or a conv2+conv3 VMEM fusion would remove them.
    return out.reshape(B, oh, ow, oc)


# ----------------------------------------------------------------------------
# Fused heads: feat = relu(x @ Wf + bf); [value | logits] = feat @ [Wc | Wa];
# mass = softmax(logits). One kernel, one HBM read of x, one MXU head pass.
# ----------------------------------------------------------------------------
def _head_kernel(x_ref, wf_ref, bf_ref, wh_ref, bh_ref, mass_ref, value_ref):
    feat = jnp.dot(x_ref[...], wf_ref[...], preferred_element_type=jnp.float32)
    feat = jnp.maximum(feat + bf_ref[...], 0.0)                 # (bm, H) f32
    # Single bf16 MXU pass for critic + actor: Wh = [Wc | Wa]  (H, 1 + A).
    z = jnp.dot(feat.astype(wh_ref.dtype), wh_ref[...],
                preferred_element_type=jnp.float32) + bh_ref[...]
    value_ref[...] = z[:, :1].astype(value_ref.dtype)
    logits = z[:, 1:]
    m = jnp.max(logits, axis=-1, keepdims=True)
    e = jnp.exp(logits - m)
    # Exact normalization (review note): rows sum to 1 at f32 precision so the
    # downstream A2C log-prob / entropy terms stay accurate.
    mass_ref[...] = (e / jnp.sum(e, axis=-1, keepdims=True)).astype(mass_ref.dtype)


def heads_pallas(x, wf, bf_row, wh, bh_row, block_m=512):
    """x: (B, K) bf16; wf: (K, H) bf16; wh: (H, 1+A) bf16; biases f32 rows."""
    M, K = x.shape
    K2, H = wf.shape
    assert K == K2, (K, K2)
    NH = wh.shape[1]                 # 1 (value) + action_size
    A = NH - 1
    bm = _pick_block_m(M, block_m)
    grid_m = pl.cdiv(M, bm)
    xb = jnp.dtype(x.dtype).itemsize
    vmem = _vmem_limit_bytes(
        streamed=(bm * K * xb, bm * A * 4, bm * 4),
        resident=(K * H * 2, H * 4, H * NH * 2, NH * 4, bm * H * 4))
    return pl.pallas_call(
        _head_kernel,
        out_shape=(jax.ShapeDtypeStruct((M, A), jnp.float32),
                   jax.ShapeDtypeStruct((M, 1), jnp.float32)),
        grid=(grid_m,),
        in_specs=[
            pl.BlockSpec((bm, K), lambda i: (i, 0)),
            pl.BlockSpec((K, H), lambda i: (0, 0)),
            pl.BlockSpec((1, H), lambda i: (0, 0)),
            pl.BlockSpec((H, NH), lambda i: (0, 0)),
            pl.BlockSpec((1, NH), lambda i: (0, 0)),
        ],
        out_specs=(pl.BlockSpec((bm, A), lambda i: (i, 0)),
                   pl.BlockSpec((bm, 1), lambda i: (i, 0))),
        compiler_params=pltpu.CompilerParams(
            dimension_semantics=("parallel",),
            vmem_limit_bytes=vmem,
        ),
    )(x, wf, bf_row, wh, bh_row)


# ----------------------------------------------------------------------------
# Parameters (deterministic in-script init, PyTorch-default-style uniform)
# ----------------------------------------------------------------------------
def _uniform(key, shape, bound):
    return jax.random.uniform(key, shape, jnp.float32, -bound, bound)


def init_params(key, action_size=6, hidden=512):
    ks = jax.random.split(key, 12)

    def conv_init(kw_, kb_, oc, ic, kh, kw):
        bound = 1.0 / math.sqrt(ic * kh * kw)
        return _uniform(kw_, (oc, ic, kh, kw), bound), _uniform(kb_, (oc,), bound)

    def lin_init(kw_, kb_, in_f, out_f):
        bound = 1.0 / math.sqrt(in_f)
        return _uniform(kw_, (in_f, out_f), bound), _uniform(kb_, (out_f,), bound)

    return {
        "conv1": conv_init(ks[0], ks[1], 32, 4, 8, 8),
        "conv2": conv_init(ks[2], ks[3], 64, 32, 4, 4),
        "conv3": conv_init(ks[4], ks[5], 64, 64, 3, 3),
        "fc":     lin_init(ks[6], ks[7], 64 * 7 * 7, hidden),   # NCHW-flatten rows
        "critic": lin_init(ks[8], ks[9], hidden, 1),
        "actor":  lin_init(ks[10], ks[11], hidden, action_size),
    }


def prepack_params(params):
    """One-time weight packing (outside the jitted forward): fold 1/255 into
    conv1, pack conv weights to im2col matmul layout in bf16, permute fc rows
    for the NHWC flatten, and concatenate critic|actor into one head matrix."""
    def pack_conv(w_oihw, b, scale=None):
        if scale is not None:
            w_oihw = w_oihw * scale
        oc, c, kh, kw = w_oihw.shape
        wm = (w_oihw.transpose(2, 3, 1, 0)          # (kh, kw, C, OC): matches cols
              .reshape(kh * kw * c, oc).astype(jnp.bfloat16))
        return wm, b.reshape(1, oc).astype(jnp.float32)

    w1, b1 = params["conv1"]
    w2, b2 = params["conv2"]
    w3, b3 = params["conv3"]
    wf, bf = params["fc"]
    wc, bc = params["critic"]
    wa, ba = params["actor"]
    hidden = wf.shape[1]

    # fc rows: PyTorch flattens NCHW (c*49 + h*7 + w); our activations flatten
    # NHWC (h*448 + w*64 + c) -> permute once so results match exactly.
    wf_nhwc = (wf.reshape(64, 7, 7, hidden).transpose(1, 2, 0, 3)
               .reshape(7 * 7 * 64, hidden).astype(jnp.bfloat16))
    wh = jnp.concatenate([wc, wa], axis=1).astype(jnp.bfloat16)       # (H, 1+A)
    bh = jnp.concatenate([bc, ba], axis=0).reshape(1, -1).astype(jnp.float32)

    return {
        "conv1": pack_conv(w1, b1, scale=1.0 / 255.0),   # fold .mul(1/255)
        "conv2": pack_conv(w2, b2),
        "conv3": pack_conv(w3, b3),
        "fc": (wf_nhwc, bf.reshape(1, hidden).astype(jnp.float32)),
        "heads": (wh, bh),
    }


# ----------------------------------------------------------------------------
# NatureCNN forward: (mass, value)
# ----------------------------------------------------------------------------
def nature_cnn_forward(packed, x):
    x = x.reshape(-1, 4, 84, 84)                        # torch .view(-1, 4, 84, 84)
    B = x.shape[0]
    x = x.transpose(0, 2, 3, 1).astype(jnp.bfloat16)    # NHWC once, bf16

    w1, b1 = packed["conv1"]
    h = conv2d_pallas(x, w1, b1, kh=8, kw=8, stride=4)  # (B, 20, 20, 32)
    w2, b2 = packed["conv2"]
    h = conv2d_pallas(h, w2, b2, kh=4, kw=4, stride=2)  # (B, 9, 9, 64)
    w3, b3 = packed["conv3"]
    h = conv2d_pallas(h, w3, b3, kh=3, kw=3, stride=1)  # (B, 7, 7, 64)

    feat = h.reshape(B, 7 * 7 * 64)                     # contiguous NHWC flatten
    wf, bf = packed["fc"]
    wh, bh = packed["heads"]
    mass, value = heads_pallas(feat, wf, bf, wh, bh)    # fused fc+critic+actor+softmax
    return mass, value


if __name__ == "__main__":
    key = jax.random.PRNGKey(0)
    k_in, k_par = jax.random.split(key)
    # Atari-style frames: float byte values in [0, 255), batch=2, 4x84x84.
    x = jax.random.uniform(k_in, (2, 4, 84, 84), jnp.float32, 0.0, 255.0)
    params = init_params(k_par, action_size=6, hidden=512)
    packed = prepack_params(params)                     # one-time weight packing

    fwd = jax.jit(nature_cnn_forward)
    mass, value = fwd(packed, x)
    jax.block_until_ready((mass, value))

    assert mass.shape == (2, 6) and value.shape == (2, 1)
    assert bool(jnp.all(jnp.isfinite(mass))) and bool(jnp.all(jnp.isfinite(value)))
    # exact softmax normalization -> rows sum to 1 at f32 precision
    assert bool(jnp.allclose(jnp.sum(mass, axis=-1), 1.0, atol=1e-3))
    print("KERNEL_OK")
</pallas_src>

<mosaic_0001>
module attributes {stable_mosaic.version = 11 : i64} {
  func.func @_linear_kernel(%arg0: i32, %arg1: memref<400x256xbf16, #tpu.memory_space<vmem>>, %arg2: memref<256x32xbf16, #tpu.memory_space<vmem>>, %arg3: memref<1x32xf32, #tpu.memory_space<vmem>>, %arg4: memref<400x32xbf16, #tpu.memory_space<vmem>>) attributes {dimension_semantics = [#tpu.dimension_semantics<parallel>], iteration_bounds = array<i64: 2>, scalar_prefetch = 0 : i64, scratch_operands = 0 : i64, tpu.core_type = #tpu.core_type<tc>, window_params = [{transform_indices = @transform_0, window_bounds = array<i64: 400, 256>}, {pipeline_mode = #tpu.pipeline_mode<synchronous>, transform_indices = @transform_1, window_bounds = array<i64: 256, 32>}, {pipeline_mode = #tpu.pipeline_mode<synchronous>, transform_indices = @transform_2, window_bounds = array<i64: 1, 32>}, {transform_indices = @transform_3, window_bounds = array<i64: 400, 32>}]} {
    %c0 = arith.constant 0 : index
    %c0_0 = arith.constant 0 : index
    %0 = vector.load %arg1[%c0, %c0_0] : memref<400x256xbf16, #tpu.memory_space<vmem>>, vector<400x256xbf16>
    %c0_1 = arith.constant 0 : index
    %c0_2 = arith.constant 0 : index
    %1 = vector.load %arg2[%c0_1, %c0_2] : memref<256x32xbf16, #tpu.memory_space<vmem>>, vector<256x32xbf16>
    %cst = arith.constant dense<0.000000e+00> : vector<400x32xf32>
    %2 = tpu.matmul %0, %1, %cst {dimension_numbers = #tpu.dot_dimension_numbers<[1], [0], [0], [1], [0, 0, 1, 1], [], []>} : vector<400x256xbf16>, vector<256x32xbf16>, vector<400x32xf32> -> vector<400x32xf32>
    %c0_3 = arith.constant 0 : index
    %c0_4 = arith.constant 0 : index
    %3 = vector.load %arg3[%c0_3, %c0_4] : memref<1x32xf32, #tpu.memory_space<vmem>>, vector<1x32xf32>
    %4 = vector.broadcast %3 : vector<1x32xf32> to vector<400x32xf32>
    %5 = arith.addf %2, %4 : vector<400x32xf32>
    %cst_5 = arith.constant 0.000000e+00 : f32
    %6 = vector.broadcast %cst_5 : f32 to vector<400x32xf32>
    %7 = arith.maximumf %5, %6 : vector<400x32xf32>
    %8 = arith.truncf %7 : vector<400x32xf32> to vector<400x32xbf16>
    %c0_6 = arith.constant 0 : index
    %c0_7 = arith.constant 0 : index
    %9 = vector.load %arg4[%c0_6, %c0_7] : memref<400x32xbf16, #tpu.memory_space<vmem>>, vector<400x32xbf16>
    tpu.vector_store %arg4[%c0_6, %c0_7], %8 {strides = array<i32>} : memref<400x32xbf16, #tpu.memory_space<vmem>>, vector<400x32xbf16>,
    return
  }
  func.func @transform_0(%arg0: i32) -> (i32, i32) {
    %c0_i32 = arith.constant 0 : i32
    %c0_i32_0 = arith.constant 0 : i32
    return %arg0, %c0_i32 : i32, i32
  }
  func.func @transform_1(%arg0: i32) -> (i32, i32) {
    %c0_i32 = arith.constant 0 : i32
    %c0_i32_0 = arith.constant 0 : i32
    %c0_i32_1 = arith.constant 0 : i32
    return %c0_i32, %c0_i32_0 : i32, i32
  }
  func.func @transform_2(%arg0: i32) -> (i32, i32) {
    %c0_i32 = arith.constant 0 : i32
    %c0_i32_0 = arith.constant 0 : i32
    %c0_i32_1 = arith.constant 0 : i32
    return %c0_i32, %c0_i32_0 : i32, i32
  }
  func.func @transform_3(%arg0: i32) -> (i32, i32) {
    %c0_i32 = arith.constant 0 : i32
    %c0_i32_0 = arith.constant 0 : i32
    return %arg0, %c0_i32 : i32, i32
  }
}

module attributes {stable_mosaic.version = 11 : i64} {
  func.func @_linear_kernel(%arg0: i32, %arg1: memref<88x512xbf16, #tpu.memory_space<vmem>>, %arg2: memref<512x64xbf16, #tpu.memory_space<vmem>>, %arg3: memref<1x64xf32, #tpu.memory_space<vmem>>, %arg4: memref<88x64xbf16, #tpu.memory_space<vmem>>) attributes {dimension_semantics = [#tpu.dimension_semantics<parallel>], iteration_bounds = array<i64: 2>, scalar_prefetch = 0 : i64, scratch_operands = 0 : i64, tpu.core_type = #tpu.core_type<tc>, window_params = [{transform_indices = @transform_0, window_bounds = array<i64: 88, 512>}, {pipeline_mode = #tpu.pipeline_mode<synchronous>, transform_indices = @transform_1, window_bounds = array<i64: 512, 64>}, {pipeline_mode = #tpu.pipeline_mode<synchronous>, transform_indices = @transform_2, window_bounds = array<i64: 1, 64>}, {transform_indices = @transform_3, window_bounds = array<i64: 88, 64>}]} {
    %c0 = arith.constant 0 : index
    %c0_0 = arith.constant 0 : index
    %0 = vector.load %arg1[%c0, %c0_0] : memref<88x512xbf16, #tpu.memory_space<vmem>>, vector<88x512xbf16>
    %c0_1 = arith.constant 0 : index
    %c0_2 = arith.constant 0 : index
    %1 = vector.load %arg2[%c0_1, %c0_2] : memref<512x64xbf16, #tpu.memory_space<vmem>>, vector<512x64xbf16>
    %cst = arith.constant dense<0.000000e+00> : vector<88x64xf32>
    %2 = tpu.matmul %0, %1, %cst {dimension_numbers = #tpu.dot_dimension_numbers<[1], [0], [0], [1], [0, 0, 1, 1], [], []>} : vector<88x512xbf16>, vector<512x64xbf16>, vector<88x64xf32> -> vector<88x64xf32>
    %c0_3 = arith.constant 0 : index
    %c0_4 = arith.constant 0 : index
    %3 = vector.load %arg3[%c0_3, %c0_4] : memref<1x64xf32, #tpu.memory_space<vmem>>, vector<1x64xf32>
    %4 = vector.broadcast %3 : vector<1x64xf32> to vector<88x64xf32>
    %5 = arith.addf %2, %4 : vector<88x64xf32>
    %cst_5 = arith.constant 0.000000e+00 : f32
    %6 = vector.broadcast %cst_5 : f32 to vector<88x64xf32>
    %7 = arith.maximumf %5, %6 : vector<88x64xf32>
    %8 = arith.truncf %7 : vector<88x64xf32> to vector<88x64xbf16>
    %c0_6 = arith.constant 0 : index
    %c0_7 = arith.constant 0 : index
    %9 = vector.load %arg4[%c0_6, %c0_7] : memref<88x64xbf16, #tpu.memory_space<vmem>>, vector<88x64xbf16>
    tpu.vector_store %arg4[%c0_6, %c0_7], %8 {strides = array<i32>} : memref<88x64xbf16, #tpu.memory_space<vmem>>, vector<88x64xbf16>,
    return
  }
  func.func @transform_0(%arg0: i32) -> (i32, i32) {
    %c0_i32 = arith.constant 0 : i32
    %c0_i32_0 = arith.constant 0 : i32
    return %arg0, %c0_i32 : i32, i32
  }
  func.func @transform_1(%arg0: i32) -> (i32, i32) {
    %c0_i32 = arith.constant 0 : i32
    %c0_i32_0 = arith.constant 0 : i32
    %c0_i32_1 = arith.constant 0 : i32
    return %c0_i32, %c0_i32_0 : i32, i32
  }
  func.func @transform_2(%arg0: i32) -> (i32, i32) {
    %c0_i32 = arith.constant 0 : i32
    %c0_i32_0 = arith.constant 0 : i32
    %c0_i32_1 = arith.constant 0 : i32
    return %c0_i32, %c0_i32_0 : i32, i32
  }
  func.func @transform_3(%arg0: i32) -> (i32, i32) {
    %c0_i32 = arith.constant 0 : i32
    %c0_i32_0 = arith.constant 0 : i32
    return %arg0, %c0_i32 : i32, i32
  }
}

module attributes {stable_mosaic.version = 11 : i64} {
  func.func @_linear_kernel(%arg0: i32, %arg1: memref<56x576xbf16, #tpu.memory_space<vmem>>, %arg2: memref<576x64xbf16, #tpu.memory_space<vmem>>, %arg3: memref<1x64xf32, #tpu.memory_space<vmem>>, %arg4: memref<56x64xbf16, #tpu.memory_space<vmem>>) attributes {dimension_semantics = [#tpu.dimension_semantics<parallel>], iteration_bounds = array<i64: 2>, scalar_prefetch = 0 : i64, scratch_operands = 0 : i64, tpu.core_type = #tpu.core_type<tc>, window_params = [{transform_indices = @transform_0, window_bounds = array<i64: 56, 576>}, {pipeline_mode = #tpu.pipeline_mode<synchronous>, transform_indices = @transform_1, window_bounds = array<i64: 576, 64>}, {pipeline_mode = #tpu.pipeline_mode<synchronous>, transform_indices = @transform_2, window_bounds = array<i64: 1, 64>}, {transform_indices = @transform_3, window_bounds = array<i64: 56, 64>}]} {
    %c0 = arith.constant 0 : index
    %c0_0 = arith.constant 0 : index
    %0 = vector.load %arg1[%c0, %c0_0] : memref<56x576xbf16, #tpu.memory_space<vmem>>, vector<56x576xbf16>
    %c0_1 = arith.constant 0 : index
    %c0_2 = arith.constant 0 : index
    %1 = vector.load %arg2[%c0_1, %c0_2] : memref<576x64xbf16, #tpu.memory_space<vmem>>, vector<576x64xbf16>
    %cst = arith.constant dense<0.000000e+00> : vector<56x64xf32>
    %2 = tpu.matmul %0, %1, %cst {dimension_numbers = #tpu.dot_dimension_numbers<[1], [0], [0], [1], [0, 0, 1, 1], [], []>} : vector<56x576xbf16>, vector<576x64xbf16>, vector<56x64xf32> -> vector<56x64xf32>
    %c0_3 = arith.constant 0 : index
    %c0_4 = arith.constant 0 : index
    %3 = vector.load %arg3[%c0_3, %c0_4] : memref<1x64xf32, #tpu.memory_space<vmem>>, vector<1x64xf32>
    %4 = vector.broadcast %3 : vector<1x64xf32> to vector<56x64xf32>
    %5 = arith.addf %2, %4 : vector<56x64xf32>
    %cst_5 = arith.constant 0.000000e+00 : f32
    %6 = vector.broadcast %cst_5 : f32 to vector<56x64xf32>
    %7 = arith.maximumf %5, %6 : vector<56x64xf32>
    %8 = arith.truncf %7 : vector<56x64xf32> to vector<56x64xbf16>
    %c0_6 = arith.constant 0 : index
    %c0_7 = arith.constant 0 : index
    %9 = vector.load %arg4[%c0_6, %c0_7] : memref<56x64xbf16, #tpu.memory_space<vmem>>, vector<56x64xbf16>
    tpu.vector_store %arg4[%c0_6, %c0_7], %8 {strides = array<i32>} : memref<56x64xbf16, #tpu.memory_space<vmem>>, vector<56x64xbf16>,
    return
  }
  func.func @transform_0(%arg0: i32) -> (i32, i32) {
    %c0_i32 = arith.constant 0 : i32
    %c0_i32_0 = arith.constant 0 : i32
    return %arg0, %c0_i32 : i32, i32
  }
  func.func @transform_1(%arg0: i32) -> (i32, i32) {
    %c0_i32 = arith.constant 0 : i32
    %c0_i32_0 = arith.constant 0 : i32
    %c0_i32_1 = arith.constant 0 : i32
    return %c0_i32, %c0_i32_0 : i32, i32
  }
  func.func @transform_2(%arg0: i32) -> (i32, i32) {
    %c0_i32 = arith.constant 0 : i32
    %c0_i32_0 = arith.constant 0 : i32
    %c0_i32_1 = arith.constant 0 : i32
    return %c0_i32, %c0_i32_0 : i32, i32
  }
  func.func @transform_3(%arg0: i32) -> (i32, i32) {
    %c0_i32 = arith.constant 0 : i32
    %c0_i32_0 = arith.constant 0 : i32
    return %arg0, %c0_i32 : i32, i32
  }
}

module attributes {stable_mosaic.version = 11 : i64} {
  func.func @_head_kernel(%arg0: i32, %arg1: memref<2x3136xbf16, #tpu.memory_space<vmem>>, %arg2: memref<3136x512xbf16, #tpu.memory_space<vmem>>, %arg3: memref<1x512xf32, #tpu.memory_space<vmem>>, %arg4: memref<512x7xbf16, #tpu.memory_space<vmem>>, %arg5: memref<1x7xf32, #tpu.memory_space<vmem>>, %arg6: memref<2x6xf32, #tpu.memory_space<vmem>>, %arg7: memref<2x1xf32, #tpu.memory_space<vmem>>) attributes {dimension_semantics = [#tpu.dimension_semantics<parallel>], iteration_bounds = array<i64: 1>, scalar_prefetch = 0 : i64, scratch_operands = 0 : i64, tpu.core_type = #tpu.core_type<tc>, window_params = [{transform_indices = @transform_0, window_bounds = array<i64: 2, 3136>}, {pipeline_mode = #tpu.pipeline_mode<synchronous>, transform_indices = @transform_1, window_bounds = array<i64: 3136, 512>}, {pipeline_mode = #tpu.pipeline_mode<synchronous>, transform_indices = @transform_2, window_bounds = array<i64: 1, 512>}, {pipeline_mode = #tpu.pipeline_mode<synchronous>, transform_indices = @transform_3, window_bounds = array<i64: 512, 7>}, {pipeline_mode = #tpu.pipeline_mode<synchronous>, transform_indices = @transform_4, window_bounds = array<i64: 1, 7>}, {transform_indices = @transform_5, window_bounds = array<i64: 2, 6>}, {transform_indices = @transform_6, window_bounds = array<i64: 2, 1>}]} {
    %c0 = arith.constant 0 : index
    %c0_0 = arith.constant 0 : index
    %0 = vector.load %arg1[%c0, %c0_0] : memref<2x3136xbf16, #tpu.memory_space<vmem>>, vector<2x3136xbf16>
    %c0_1 = arith.constant 0 : index
    %c0_2 = arith.constant 0 : index
    %1 = vector.load %arg2[%c0_1, %c0_2] : memref<3136x512xbf16, #tpu.memory_space<vmem>>, vector<3136x512xbf16>
    %cst = arith.constant dense<0.000000e+00> : vector<2x512xf32>
    %2 = tpu.matmul %0, %1, %cst {dimension_numbers = #tpu.dot_dimension_numbers<[1], [0], [0], [1], [0, 0, 1, 1], [], []>} : vector<2x3136xbf16>, vector<3136x512xbf16>, vector<2x512xf32> -> vector<2x512xf32>
    %c0_3 = arith.constant 0 : index
    %c0_4 = arith.constant 0 : index
    %3 = vector.load %arg3[%c0_3, %c0_4] : memref<1x512xf32, #tpu.memory_space<vmem>>, vector<1x512xf32>
    %4 = vector.broadcast %3 : vector<1x512xf32> to vector<2x512xf32>
    %5 = arith.addf %2, %4 : vector<2x512xf32>
    %cst_5 = arith.constant 0.000000e+00 : f32
    %6 = vector.broadcast %cst_5 : f32 to vector<2x512xf32>
    %7 = arith.maximumf %5, %6 : vector<2x512xf32>
    %8 = arith.truncf %7 : vector<2x512xf32> to vector<2x512xbf16>
    %c0_6 = arith.constant 0 : index
    %c0_7 = arith.constant 0 : index
    %9 = vector.load %arg4[%c0_6, %c0_7] : memref<512x7xbf16, #tpu.memory_space<vmem>>, vector<512x7xbf16>
    %cst_8 = arith.constant dense<0.000000e+00> : vector<2x7xf32>
    %10 = tpu.matmul %8, %9, %cst_8 {dimension_numbers = #tpu.dot_dimension_numbers<[1], [0], [0], [1], [0, 0, 1, 1], [], []>} : vector<2x512xbf16>, vector<512x7xbf16>, vector<2x7xf32> -> vector<2x7xf32>
    %c0_9 = arith.constant 0 : index
    %c0_10 = arith.constant 0 : index
    %11 = vector.load %arg5[%c0_9, %c0_10] : memref<1x7xf32, #tpu.memory_space<vmem>>, vector<1x7xf32>
    %12 = vector.broadcast %11 : vector<1x7xf32> to vector<2x7xf32>
    %13 = arith.addf %10, %12 : vector<2x7xf32>
    %14 = vector.extract_strided_slice %13 {offsets = [0, 0], sizes = [2, 1], strides = [1, 1]} : vector<2x7xf32> to vector<2x1xf32>
    %c0_11 = arith.constant 0 : index
    %c0_12 = arith.constant 0 : index
    %15 = vector.load %arg7[%c0_11, %c0_12] : memref<2x1xf32, #tpu.memory_space<vmem>>, vector<2x1xf32>
    tpu.vector_store %arg7[%c0_11, %c0_12], %14 {strides = array<i32>} : memref<2x1xf32, #tpu.memory_space<vmem>>, vector<2x1xf32>,
    %16 = vector.extract_strided_slice %13 {offsets = [0, 1], sizes = [2, 6], strides = [1, 1]} : vector<2x7xf32> to vector<2x6xf32>
    %cst_13 = arith.constant dense<0xFF800000> : vector<2xf32>
    %17 = vector.multi_reduction <maximumf>, %16, %cst_13 [1] : vector<2x6xf32> to vector<2xf32>
    %18 = vector.shape_cast %17 : vector<2xf32> to vector<2x1xf32>
    %19 = vector.broadcast %18 : vector<2x1xf32> to vector<2x6xf32>
    %20 = arith.subf %16, %19 : vector<2x6xf32>
    %21 = math.exp %20 : vector<2x6xf32>
    %cst_14 = arith.constant dense<0.000000e+00> : vector<2xf32>
    %22 = vector.multi_reduction <add>, %21, %cst_14 [1] : vector<2x6xf32> to vector<2xf32>
    %23 = vector.shape_cast %22 : vector<2xf32> to vector<2x1xf32>
    %24 = vector.broadcast %23 : vector<2x1xf32> to vector<2x6xf32>
    %25 = arith.divf %21, %24 : vector<2x6xf32>
    %c0_15 = arith.constant 0 : index
    %c0_16 = arith.constant 0 : index
    %26 = vector.load %arg6[%c0_15, %c0_16] : memref<2x6xf32, #tpu.memory_space<vmem>>, vector<2x6xf32>
    tpu.vector_store %arg6[%c0_15, %c0_16], %25 {strides = array<i32>} : memref<2x6xf32, #tpu.memory_space<vmem>>, vector<2x6xf32>,
    return
  }
  func.func @transform_0(%arg0: i32) -> (i32, i32) {
    %c0_i32 = arith.constant 0 : i32
    %c0_i32_0 = arith.constant 0 : i32
    return %arg0, %c0_i32 : i32, i32
  }
  func.func @transform_1(%arg0: i32) -> (i32, i32) {
    %c0_i32 = arith.constant 0 : i32
    %c0_i32_0 = arith.constant 0 : i32
    %c0_i32_1 = arith.constant 0 : i32
    return %c0_i32, %c0_i32_0 : i32, i32
  }
  func.func @transform_2(%arg0: i32) -> (i32, i32) {
    %c0_i32 = arith.constant 0 : i32
    %c0_i32_0 = arith.constant 0 : i32
    %c0_i32_1 = arith.constant 0 : i32
    return %c0_i32, %c0_i32_0 : i32, i32
  }
  func.func @transform_3(%arg0: i32) -> (i32, i32) {
    %c0_i32 = arith.constant 0 : i32
    %c0_i32_0 = arith.constant 0 : i32
    %c0_i32_1 = arith.constant 0 : i32
    return %c0_i32, %c0_i32_0 : i32, i32
  }
  func.func @transform_4(%arg0: i32) -> (i32, i32) {
    %c0_i32 = arith.constant 0 : i32
    %c0_i32_0 = arith.constant 0 : i32
    %c0_i32_1 = arith.constant 0 : i32
    return %c0_i32, %c0_i32_0 : i32, i32
  }
  func.func @transform_5(%arg0: i32) -> (i32, i32) {
    %c0_i32 = arith.constant 0 : i32
    %c0_i32_0 = arith.constant 0 : i32
    return %arg0, %c0_i32 : i32, i32
  }
  func.func @transform_6(%arg0: i32) -> (i32, i32) {
    %c0_i32 = arith.constant 0 : i32
    %c0_i32_0 = arith.constant 0 : i32
    return %arg0, %c0_i32 : i32, i32
  }
}

</mosaic_0001>

<llo_original>
// kernel: nature_cnn_forward.4
$region0: #{nature_cnn_forward.4}
  #allocation0 [shape = 'u32[]', space=smem, size = 0x4, offset = 0x4, fixed_abs, tag = 'smem constant byte address 0x4 - core index']
  #allocation1 [shape = 'u32[72,128]{1,0:T(1,128)}', space=vmem, size = 0x9000, scoped, tag = 'internal scratch']
  %s0 = inlined_call_operand.vmem [shape: bf16[800,256], index: 0, kind: input, shape index: {}]
  %s1 = inlined_call_operand.vmem [shape: bf16[256,32], index: 1, kind: input, shape index: {}]
  %s2 = inlined_call_operand.vmem [shape: f32[1,32], index: 2, kind: input, shape index: {}]
  %s3 = inlined_call_operand.vmem [shape: bf16[800,32], index: 3, kind: output, shape index: {}]
  %s4 = sld [smem:[#allocation0]]
  $region45: #{nature_cnn_forward.4} parent=0
    _
  %s6 = ssub.s32 1, %s4
  %s7 = scalar_select 0, %s6, %s4
  loop: start=0, step=1, limit=4
  $region2: #{nature_cnn_forward.4} parent=0 // loop_pre_header
    _
  $region3: #{nature_cnn_forward.4} parent=0 // loop_header
    %s9 = sphi 0, %s13
    %p10 = scmp.ge.s32.totalorder %s9, 4
    %s19 = sphi 0, %s21
    %s22 = sphi 0, %s19
    %s23 = sphi 0, %s22
    %s39 = sphi 0, %s23
    %s43 = sphi 0, %s43
    %s45 = sphi 0, %s43
    %s46 = sphi 0, %s45
    %s60 = sphi 0, %s46
    %s64 = sphi 0, %s64
    %s66 = sphi 0, %s64
    %s67 = sphi 0, %s66
    %s81 = sphi 0, %s67
    %s87 = sphi 0, %s89
    %s90 = sphi 0, %s87
    %s91 = sphi 0, %s90
    %s107 = sphi 0, %s91
  $region4: #{nature_cnn_forward.4} parent=0 // loop_header_branch
    %12 = sbr.rel (%p10) target = $region8
  $region5: #{nature_cnn_forward.4} parent=0 // loop_body
    %s14 = ssub.s32 %s9, 1
    %s15 = ssub.s32 %s9, 2
    %s16 = sadd.s32 %s9, 1
    %s17 = ssub.s32 %s9, %s16
    %p18 = scmp.eq.s32.totalorder %s17, 0
    %s20 = sadd.s32 %s19, 1
    %s21 = scalar_select %p18, %s19, %s20
    %p24 = pneg %p18
    %p25 = scmp.eq.s32.totalorder %s9, 1
    %p26 = por %p24, %p25
    %p27 = scmp.ne.s32.totalorder %s19, %s22
    %p28 = scmp.eq.s32.totalorder %s9, 0
    %p29 = por %p27, %p28
    %p30 = scmp.ne.s32.totalorder %s19, %s22
    %p31 = scmp.eq.s32.totalorder %s14, 1
    %p32 = por %p30, %p31
    %p33 = scmp.ne.s32.totalorder %s22, %s23
    %p34 = scmp.eq.s32.totalorder %s14, 0
    %p35 = por %p33, %p34
    %p36 = scmp.ne.s32.totalorder %s22, %s23
    %p37 = scmp.eq.s32.totalorder %s15, 1
    %p38 = por %p36, %p37
    %p40 = scmp.ne.s32.totalorder %s23, %s39
    %p41 = scmp.eq.s32.totalorder %s15, 0
    %p42 = por %p40, %p41
    %s44 = sadd.s32 %s43, 1
    %p47 = scmp.eq.s32.totalorder %s9, 1
    %p48 = scmp.ne.s32.totalorder %s43, %s45
    %p49 = scmp.eq.s32.totalorder %s9, 0
    %p50 = por %p48, %p49
    %p51 = scmp.ne.s32.totalorder %s43, %s45
    %p52 = scmp.eq.s32.totalorder %s14, 1
    %p53 = por %p51, %p52
    %p54 = scmp.ne.s32.totalorder %s45, %s46
    %p55 = scmp.eq.s32.totalorder %s14, 0
    %p56 = por %p54, %p55
    %p57 = scmp.ne.s32.totalorder %s45, %s46
    %p58 = scmp.eq.s32.totalorder %s15, 1
    %p59 = por %p57, %p58
    %p61 = scmp.ne.s32.totalorder %s46, %s60
    %p62 = scmp.eq.s32.totalorder %s15, 0
    %p63 = por %p61, %p62
    %s65 = sadd.s32 %s64, 1
    %p68 = scmp.eq.s32.totalorder %s9, 1
    %p69 = scmp.ne.s32.totalorder %s64, %s66
    %p70 = scmp.eq.s32.totalorder %s9, 0
    %p71 = por %p69, %p70
    %p72 = scmp.ne.s32.totalorder %s64, %s66
    %p73 = scmp.eq.s32.totalorder %s14, 1
    %p74 = por %p72, %p73
    %p75 = scmp.ne.s32.totalorder %s66, %s67
    %p76 = scmp.eq.s32.totalorder %s14, 0
    %p77 = por %p75, %p76
    %p78 = scmp.ne.s32.totalorder %s66, %s67
    %p79 = scmp.eq.s32.totalorder %s15, 1
    %p80 = por %p78, %p79
    %p82 = scmp.ne.s32.totalorder %s67, %s81
    %p83 = scmp.eq.s32.totalorder %s15, 0
    %p84 = por %p82, %p83
    %s85 = ssub.s32 %s9, %s16
    %p86 = scmp.eq.s32.totalorder %s85, 0
    %s88 = sadd.s32 %s87, 1
    %s89 = scalar_select %p86, %s87, %s88
    %p92 = pneg %p86
    %p93 = scmp.eq.s32.totalorder %s9, 1
    %p94 = por %p92, %p93
    %p95 = scmp.ne.s32.totalorder %s87, %s90
    %p96 = scmp.eq.s32.totalorder %s9, 0
    %p97 = por %p95, %p96
    %p98 = scmp.ne.s32.totalorder %s87, %s90
    %p99 = scmp.eq.s32.totalorder %s14, 1
    %p100 = por %p98, %p99
    %p101 = scmp.ne.s32.totalorder %s90, %s91
    %p102 = scmp.eq.s32.totalorder %s14, 0
    %p103 = por %p101, %p102
    %p104 = scmp.ne.s32.totalorder %s90, %s91
    %p105 = scmp.eq.s32.totalorder %s15, 1
    %p106 = por %p104, %p105
    %p108 = scmp.ne.s32.totalorder %s91, %s107
    %p109 = scmp.eq.s32.totalorder %s15, 0
    %p110 = por %p108, %p109
    %p111 = scmp.le.s32.totalorder 1, %s9
    %p112 = scmp.lt.s32.totalorder %s9, 3
    %p113 = pnand %p111, %p112
    %p114 = pneg %p113
    // Predicated region
    $region9: #{nature_cnn_forward.4} parent=5 // pred_check
      _
    $region10: #{nature_cnn_forward.4} parent=5 // pred_check_branch
      %116 = sbr.rel (%p113) target = $region12
    $region11: #{nature_cnn_forward.4} parent=5 // pred_region
      %s117 = ssub.s32 %s9, 1
      // Predicated region
      $region13: #{nature_cnn_forward.4} parent=11 // pred_check
        %p118 = pneg %p56
      $region14: #{nature_cnn_forward.4} parent=11 // pred_check_branch
        %120 = sbr.rel (%p118) target = $region16
      $region15: #{nature_cnn_forward.4} parent=11 // pred_region
        _
      $region16: #{nature_cnn_forward.4} parent=11 // pred_fallthru
        _
      // Predicated region
      $region17: #{nature_cnn_forward.4} parent=11 // pred_check
        %p121 = pneg %p77
      $region18: #{nature_cnn_forward.4} parent=11 // pred_check_branch
        %123 = sbr.rel (%p121) target = $region20
      $region19: #{nature_cnn_forward.4} parent=11 // pred_region
        _
      $region20: #{nature_cnn_forward.4} parent=11 // pred_fallthru
        _
    $region12: #{nature_cnn_forward.4} parent=5 // pred_fallthru
      _
    %p124 = scmp.lt.s32.totalorder %s9, 2
    // Predicated region
    $region21: #{nature_cnn_forward.4} parent=5 // pred_check
      %p125 = pneg %p124
    $region22: #{nature_cnn_forward.4} parent=5 // pred_check_branch
      %127 = sbr.rel (%p125) target = $region24
    $region23: #{nature_cnn_forward.4} parent=5 // pred_region
      // Predicated region
      $region25: #{nature_cnn_forward.4} parent=23 // pred_check
        %p128 = pneg %p29
      $region26: #{nature_cnn_forward.4} parent=23 // pred_check_branch
        %130 = sbr.rel (%p128) target = $region28
      $region27: #{nature_cnn_forward.4} parent=23 // pred_region
        %s131 = smul.u32 50, %s9
        %p132 = scmp.lt.s32.totalorder %s131, 99
        %s133 = scalar_select %p132, %s131, 99
        %s134 = smul.addr %s133, 2
        %s135 = smul.addr %s134, 4
        %s136 = scalar_lea.vmem %s0, %s135
        %s137 = smul.u32 50, %s9
      $region28: #{nature_cnn_forward.4} parent=23 // pred_fallthru
        _
    $region24: #{nature_cnn_forward.4} parent=5 // pred_fallthru
      _
    %p138 = scmp.le.s32.totalorder 1, %s9
    %p139 = scmp.lt.s32.totalorder %s9, 3
    %p140 = pnand %p138, %p139
    %p141 = pneg %p140
    // Predicated region
    $region29: #{nature_cnn_forward.4} parent=5 // pred_check
      _
    $region30: #{nature_cnn_forward.4} parent=5 // pred_check_branch
      %143 = sbr.rel (%p140) target = $region32
    $region31: #{nature_cnn_forward.4} parent=5 // pred_region
      %s144 = ssub.s32 %s9, 1
      %s145 = smul.u32 50, %s14
      %p146 = scmp.lt.s32.totalorder %s145, 99
      %s147 = scalar_select %p146, %s145, 99
      %s148 = smul.addr %s147, 2
      %s149 = smul.addr %s148, 4
      %s150 = scalar_lea.vmem %s0, %s149
      %p151 = pneg %p35
      %p152 = pneg %p32
      %p153 = pneg %p56
      %p154 = pneg %p53
      %p155 = pneg %p77
      %p156 = pneg %p74
      %p157 = pneg %p103
      %p158 = pneg %p100
      %s159 = smul.u32 50, %s14
      %p160 = scmp.lt.s32.totalorder %s159, 99
      %s161 = scalar_select %p160, %s159, 99
      %s162 = smul.addr %s161, 4
      %s163 = scalar_lea.vmem %s3, %s162
      %s164 = smul.u32 50, %s14
      %p165 = scmp.lt.s32.totalorder %s164, 99
      %s166 = scalar_select %p165, %s164, 99
      %s167 = smul.addr %s166, 2
      %s168 = smul.addr %s167, 4
      %s169 = scalar_lea.vmem %s0, %s168
      %s170 = smul.u32 50, %s14
      %s171 = smul.u32 50, %s14
      %p172 = scmp.lt.s32.totalorder %s171, 99
      %s173 = scalar_select %p172, %s171, 99
      %s174 = smul.addr %s173, 4
      %s175 = scalar_lea.vmem %s3, %s174
      %s176 = smul.u32 50, %s14
      %v177 = vld [vmem:[%s169] sm:$0xff]
      %v178 = vld [vmem:[%s169 + $0x8] sm:$0xff]
      %v179 = vld [vmem:[%s169 + $0x10] sm:$0xff]
      %v180 = vld [vmem:[%s169 + $0x18] sm:$0xff]
      %v181 = vld [vmem:[%s169 + $0x20] sm:$0xff]
      %v182 = vld [vmem:[%s169 + $0x28] sm:$0xff]
      %v183 = vld [vmem:[%s169 + $0x30] sm:$0xff]
      %v184 = vld [vmem:[%s169 + $0x38] sm:$0xff]
      %v185 = vld [vmem:[%s169 + $0x40] sm:$0xff]
      %v186 = vld [vmem:[%s169 + $0x48] sm:$0xff]
      %v187 = vld [vmem:[%s169 + $0x50] sm:$0xff]
      %v188 = vld [vmem:[%s169 + $0x58] sm:$0xff]
      %v189 = vld [vmem:[%s169 + $0x60] sm:$0xff]
      %v190 = vld [vmem:[%s169 + $0x68] sm:$0xff]
      %v191 = vld [vmem:[%s169 + $0x70] sm:$0xff]
      %v192 = vld [vmem:[%s169 + $0x78] sm:$0xff]
      %v193 = vld [vmem:[%s169 + $0x80] sm:$0xff]
      %v194 = vld [vmem:[%s169 + $0x88] sm:$0xff]
      %v195 = vld [vmem:[%s169 + $0x90] sm:$0xff]
      %v196 = vld [vmem:[%s169 + $0x98] sm:$0xff]
      %v197 = vld [vmem:[%s169 + $0xa0] sm:$0xff]
      %v198 = vld [vmem:[%s169 + $0xa8] sm:$0xff]
      %v199 = vld [vmem:[%s169 + $0xb0] sm:$0xff]
      %v200 = vld [vmem:[%s169 + $0xb8] sm:$0xff]
      %v201 = vld [vmem:[%s169 + $0xc0] sm:$0xff]
      %v202 = vld [vmem:[%s169 + $0xc8] sm:$0xff]
      %v203 = vld [vmem:[%s169 + $0xd0] sm:$0xff]
      %v204 = vld [vmem:[%s169 + $0xd8] sm:$0xff]
      %v205 = vld [vmem:[%s169 + $0xe0] sm:$0xff]
      %v206 = vld [vmem:[%s169 + $0xe8] sm:$0xff]
      %v207 = vld [vmem:[%s169 + $0xf0] sm:$0xff]
      %v208 = vld [vmem:[%s169 + $0xf8] sm:$0xff]
      %v209 = vld [vmem:[%s169 + $0x100] sm:$0xff]
      %v210 = vld [vmem:[%s169 + $0x108] sm:$0xff]
      %v211 = vld [vmem:[%s169 + $0x110] sm:$0xff]
      %v212 = vld [vmem:[%s169 + $0x118] sm:$0xff]
      %v213 = vld [vmem:[%s169 + $0x120] sm:$0xff]
      %v214 = vld [vmem:[%s169 + $0x128] sm:$0xff]
      %v215 = vld [vmem:[%s169 + $0x130] sm:$0xff]
      %v216 = vld [vmem:[%s169 + $0x138] sm:$0xff]
      %v217 = vld [vmem:[%s169 + $0x140] sm:$0xff]
      %v218 = vld [vmem:[%s169 + $0x148] sm:$0xff]
      %v219 = vld [vmem:[%s169 + $0x150] sm:$0xff]
      %v220 = vld [vmem:[%s169 + $0x158] sm:$0xff]
      %v221 = vld [vmem:[%s169 + $0x160] sm:$0xff]
      %v222 = vld [vmem:[%s169 + $0x168] sm:$0xff]
      %v223 = vld [vmem:[%s169 + $0x170] sm:$0xff]
      %v224 = vld [vmem:[%s169 + $0x178] sm:$0xff]
      %v225 = vld [vmem:[%s169 + $0x180] sm:$0xff]
      %v226 = vld [vmem:[%s169 + $0x188] sm:$0xff]
      %v227 = vld [vmem:[%s1] sm:$0xf]
      %v228 = vld [vmem:[%s1 + $0x4] sm:$0xf]
      %v229 = vld [vmem:[%s1 + $0x8] sm:$0xf]
      %v230 = vld [vmem:[%s1 + $0xc] sm:$0xf]
      %v231 = vld [vmem:[%s1 + $0x10] sm:$0xf]
      %v232 = vld [vmem:[%s1 + $0x14] sm:$0xf]
      %v233 = vld [vmem:[%s1 + $0x18] sm:$0xf]
      %v234 = vld [vmem:[%s1 + $0x1c] sm:$0xf]
      %v235 = vld [vmem:[%s1 + $0x20] sm:$0xf]
      %v236 = vld [vmem:[%s1 + $0x24] sm:$0xf]
      %v237 = vld [vmem:[%s1 + $0x28] sm:$0xf]
      %v238 = vld [vmem:[%s1 + $0x2c] sm:$0xf]
      %v239 = vld [vmem:[%s1 + $0x30] sm:$0xf]
      %v240 = vld [vmem:[%s1 + $0x34] sm:$0xf]
      %v241 = vld [vmem:[%s1 + $0x38] sm:$0xf]
      %v242 = vld [vmem:[%s1 + $0x3c] sm:$0xf]
      %v243 = vld [vmem:[%s1 + $0x40] sm:$0xf]
      %v244 = vld [vmem:[%s1 + $0x44] sm:$0xf]
      %v245 = vld [vmem:[%s1 + $0x48] sm:$0xf]
      %v246 = vld [vmem:[%s1 + $0x4c] sm:$0xf]
      %v247 = vld [vmem:[%s1 + $0x50] sm:$0xf]
      %v248 = vld [vmem:[%s1 + $0x54] sm:$0xf]
      %v249 = vld [vmem:[%s1 + $0x58] sm:$0xf]
      %v250 = vld [vmem:[%s1 + $0x5c] sm:$0xf]
      %v251 = vld [vmem:[%s1 + $0x60] sm:$0xf]
      %v252 = vld [vmem:[%s1 + $0x64] sm:$0xf]
      %v253 = vld [vmem:[%s1 + $0x68] sm:$0xf]
      %v254 = vld [vmem:[%s1 + $0x6c] sm:$0xf]
      %v255 = vld [vmem:[%s1 + $0x70] sm:$0xf]
      %v256 = vld [vmem:[%s1 + $0x74] sm:$0xf]
      %v257 = vld [vmem:[%s1 + $0x78] sm:$0xf]
      %v258 = vld [vmem:[%s1 + $0x7c] sm:$0xf]
      %v259 = vld [vmem:[%s2] sm:$0x1]
      %v261 = vperm.slane %v259, 0
      %v313 = vunpack.c.l.b16 %v177
      %v314 = vunpack.c.h.b16 %v177
      %v315 = vunpack.c.l.b16 %v178
      %v316 = vunpack.c.h.b16 %v178
      %v317 = vunpack.c.l.b16 %v179
      %v318 = vunpack.c.h.b16 %v179
      %v319 = vunpack.c.l.b16 %v180
      %v320 = vunpack.c.h.b16 %v180
      %v321 = vunpack.c.l.b16 %v181
      %v322 = vunpack.c.h.b16 %v181
      %v323 = vunpack.c.l.b16 %v182
      %v324 = vunpack.c.h.b16 %v182
      %v325 = vunpack.c.l.b16 %v183
      %v326 = vunpack.c.h.b16 %v183
      %v327 = vunpack.c.l.b16 %v184
      %v328 = vunpack.c.h.b16 %v184
      %v329 = vunpack.c.l.b16 %v185
      %v330 = vunpack.c.h.b16 %v185
      %v331 = vunpack.c.l.b16 %v186
      %v332 = vunpack.c.h.b16 %v186
      %v333 = vunpack.c.l.b16 %v187
      %v334 = vunpack.c.h.b16 %v187
      %v335 = vunpack.c.l.b16 %v188
      %v336 = vunpack.c.h.b16 %v188
      %v337 = vunpack.c.l.b16 %v189
      %v338 = vunpack.c.h.b16 %v189
      %v339 = vunpack.c.l.b16 %v190
      %v340 = vunpack.c.h.b16 %v190
      %v341 = vunpack.c.l.b16 %v191
      %v342 = vunpack.c.h.b16 %v191
      %v343 = vunpack.c.l.b16 %v192
      %v344 = vunpack.c.h.b16 %v192
      %v345 = vunpack.c.l.b16 %v193
      %v346 = vunpack.c.h.b16 %v193
      %v347 = vunpack.c.l.b16 %v194
      %v348 = vunpack.c.h.b16 %v194
      %v349 = vunpack.c.l.b16 %v195
      %v350 = vunpack.c.h.b16 %v195
      %v351 = vunpack.c.l.b16 %v196
      %v352 = vunpack.c.h.b16 %v196
      %v353 = vunpack.c.l.b16 %v197
      %v354 = vunpack.c.h.b16 %v197
      %v355 = vunpack.c.l.b16 %v198
      %v356 = vunpack.c.h.b16 %v198
      %v357 = vunpack.c.l.b16 %v199
      %v358 = vunpack.c.h.b16 %v199
      %v359 = vunpack.c.l.b16 %v200
      %v360 = vunpack.c.h.b16 %v200
      %v361 = vunpack.c.l.b16 %v201
      %v362 = vunpack.c.h.b16 %v201
      %v363 = vunpack.c.l.b16 %v202
      %v364 = vunpack.c.h.b16 %v202
      %v365 = vunpack.c.l.b16 %v203
      %v366 = vunpack.c.h.b16 %v203
      %v367 = vunpack.c.l.b16 %v204
      %v368 = vunpack.c.h.b16 %v204
      %v369 = vunpack.c.l.b16 %v205
      %v370 = vunpack.c.h.b16 %v205
      %v371 = vunpack.c.l.b16 %v206
      %v372 = vunpack.c.h.b16 %v206
      %v373 = vunpack.c.l.b16 %v207
      %v374 = vunpack.c.h.b16 %v207
      %v375 = vunpack.c.l.b16 %v208
      %v376 = vunpack.c.h.b16 %v208
      %v377 = vunpack.c.l.b16 %v209
      %v378 = vunpack.c.h.b16 %v209
      %v379 = vunpack.c.l.b16 %v210
      %v380 = vunpack.c.h.b16 %v210
      %v381 = vunpack.c.l.b16 %v211
      %v382 = vunpack.c.h.b16 %v211
      %v383 = vunpack.c.l.b16 %v212
      %v384 = vunpack.c.h.b16 %v212
      %v385 = vunpack.c.l.b16 %v213
      %v386 = vunpack.c.h.b16 %v213
      %v387 = vunpack.c.l.b16 %v214
      %v388 = vunpack.c.h.b16 %v214
      %v389 = vunpack.c.l.b16 %v215
      %v390 = vunpack.c.h.b16 %v215
      %v391 = vunpack.c.l.b16 %v216
      %v392 = vunpack.c.h.b16 %v216
      %v393 = vunpack.c.l.b16 %v217
      %v394 = vunpack.c.h.b16 %v217
      %v395 = vunpack.c.l.b16 %v218
      %v396 = vunpack.c.h.b16 %v218
      %v397 = vunpack.c.l.b16 %v219
      %v398 = vunpack.c.h.b16 %v219
      %v399 = vunpack.c.l.b16 %v220
      %v400 = vunpack.c.h.b16 %v220
      %v401 = vunpack.c.l.b16 %v221
      %v402 = vunpack.c.h.b16 %v221
      %v403 = vunpack.c.l.b16 %v222
      %v404 = vunpack.c.h.b16 %v222
      %v405 = vunpack.c.l.b16 %v223
      %v406 = vunpack.c.h.b16 %v223
      %v407 = vunpack.c.l.b16 %v224
      %v408 = vunpack.c.h.b16 %v224
      %v409 = vunpack.c.l.b16 %v225
      %v410 = vunpack.c.h.b16 %v225
      %v411 = vunpack.c.l.b16 %v226
      %v412 = vunpack.c.h.b16 %v226
      %v413 = vpack.c.b16 %v315, %v313
      %v414 = vpack.c.b16 %v316, %v314
      %v415 = vpack.c.b16 %v319, %v317
      %v416 = vpack.c.b16 %v320, %v318
      %v417 = vpack.c.b16 %v323, %v321
      %v418 = vpack.c.b16 %v324, %v322
      %v419 = vpack.c.b16 %v327, %v325
      %v420 = vpack.c.b16 %v328, %v326
      %v421 = vpack.c.b16 %v331, %v329
      %v422 = vpack.c.b16 %v332, %v330
      %v423 = vpack.c.b16 %v335, %v333
      %v424 = vpack.c.b16 %v336, %v334
      %v425 = vpack.c.b16 %v339, %v337
      %v426 = vpack.c.b16 %v340, %v338
      %v427 = vpack.c.b16 %v343, %v341
      %v428 = vpack.c.b16 %v344, %v342
      %v429 = vpack.c.b16 %v347, %v345
      %v430 = vpack.c.b16 %v348, %v346
      %v431 = vpack.c.b16 %v351, %v349
      %v432 = vpack.c.b16 %v352, %v350
      %v433 = vpack.c.b16 %v355, %v353
      %v434 = vpack.c.b16 %v356, %v354
      %v435 = vpack.c.b16 %v359, %v357
      %v436 = vpack.c.b16 %v360, %v358
      %v437 = vpack.c.b16 %v363, %v361
      %v438 = vpack.c.b16 %v364, %v362
      %v439 = vpack.c.b16 %v367, %v365
      %v440 = vpack.c.b16 %v368, %v366
      %v441 = vpack.c.b16 %v371, %v369
      %v442 = vpack.c.b16 %v372, %v370
      %v443 = vpack.c.b16 %v375, %v373
      %v444 = vpack.c.b16 %v376, %v374
      %v445 = vpack.c.b16 %v379, %v377
      %v446 = vpack.c.b16 %v380, %v378
      %v447 = vpack.c.b16 %v383, %v381
      %v448 = vpack.c.b16 %v384, %v382
      %v449 = vpack.c.b16 %v387, %v385
      %v450 = vpack.c.b16 %v388, %v386
      %v451 = vpack.c.b16 %v391, %v389
      %v452 = vpack.c.b16 %v392, %v390
      %v453 = vpack.c.b16 %v395, %v393
      %v454 = vpack.c.b16 %v396, %v394
      %v455 = vpack.c.b16 %v399, %v397
      %v456 = vpack.c.b16 %v400, %v398
      %v457 = vpack.c.b16 %v403, %v401
      %v458 = vpack.c.b16 %v404, %v402
      %v459 = vpack.c.b16 %v407, %v405
      %v460 = vpack.c.b16 %v408, %v406
      %v461 = vpack.c.b16 %v411, %v409
      %v462 = vpack.c.b16 %v412, %v410
      %v545 = vunpack.c.l.b16 %v227
      %v546 = vunpack.c.l.b16 %v228
      %v547 = vunpack.c.l.b16 %v229
      %v548 = vunpack.c.l.b16 %v230
      %v549 = vunpack.c.l.b16 %v231
      %v550 = vunpack.c.l.b16 %v232
      %v551 = vunpack.c.l.b16 %v233
      %v552 = vunpack.c.l.b16 %v234
      %v553 = vunpack.c.l.b16 %v235
      %v554 = vunpack.c.l.b16 %v236
      %v555 = vunpack.c.l.b16 %v237
      %v556 = vunpack.c.l.b16 %v238
      %v557 = vunpack.c.l.b16 %v239
      %v558 = vunpack.c.l.b16 %v240
      %v559 = vunpack.c.l.b16 %v241
      %v560 = vunpack.c.l.b16 %v242
      %v561 = vunpack.c.l.b16 %v243
      %v562 = vunpack.c.l.b16 %v244
      %v563 = vunpack.c.l.b16 %v245
      %v564 = vunpack.c.l.b16 %v246
      %v565 = vunpack.c.l.b16 %v247
      %v566 = vunpack.c.l.b16 %v248
      %v567 = vunpack.c.l.b16 %v249
      %v568 = vunpack.c.l.b16 %v250
      %v569 = vunpack.c.l.b16 %v251
      %v570 = vunpack.c.l.b16 %v252
      %v571 = vunpack.c.l.b16 %v253
      %v572 = vunpack.c.l.b16 %v254
      %v573 = vunpack.c.l.b16 %v255
      %v574 = vunpack.c.l.b16 %v256
      %v575 = vunpack.c.l.b16 %v257
      %v576 = vunpack.c.l.b16 %v258
      %v577 = vpack.c.b16 %v546, %v545
      %v578 = vpack.c.b16 %v548, %v547
      %v579 = vpack.c.b16 %v550, %v549
      %v580 = vpack.c.b16 %v552, %v551
      %v581 = vpack.c.b16 %v554, %v553
      %v582 = vpack.c.b16 %v556, %v555
      %v583 = vpack.c.b16 %v558, %v557
      %v584 = vpack.c.b16 %v560, %v559
      %v585 = vpack.c.b16 %v562, %v561
      %v586 = vpack.c.b16 %v564, %v563
      %v587 = vpack.c.b16 %v566, %v565
      %v588 = vpack.c.b16 %v568, %v567
      %v589 = vpack.c.b16 %v570, %v569
      %v590 = vpack.c.b16 %v572, %v571
      %v591 = vpack.c.b16 %v574, %v573
      %v592 = vpack.c.b16 %v576, %v575
      %609 = vmatpush.bf16.msra.mxu0 %v584
      %610 = vmatpush.bf16.msra.mxu0 %v583
      %611 = vmatpush.bf16.msra.mxu0 %v582
      %612 = vmatpush.bf16.msra.mxu0 %v581
      %613 = vmatpush.bf16.msra.mxu0 %v580
      %614 = vmatpush.bf16.msra.mxu0 %v579
      %615 = vmatpush.bf16.msra.mxu0 %v578
      %616 = vmatpush.bf16.msra.mxu0 %v577
      %617 = vmatmul.bf16.gmra.mxu0 %v413
      %v618 = vpop.f32.mrf.mxu0
      %v619 = vadd.f32 %v261, %v618
      %v620 = vpop.f32.mrf.mxu0
      %v621 = vadd.f32 %v261, %v620
      %622 = vmatmul.bf16.gmra.mxu0 %v415
      %v623 = vpop.f32.mrf.mxu0
      %v624 = vadd.f32 %v261, %v623
      %v625 = vpop.f32.mrf.mxu0
      %v626 = vadd.f32 %v261, %v625
      %627 = vmatmul.bf16.gmra.mxu0 %v417
      %v628 = vpop.f32.mrf.mxu0
      %v629 = vadd.f32 %v261, %v628
      %v630 = vpop.f32.mrf.mxu0
      %v631 = vadd.f32 %v261, %v630
      %632 = vmatmul.bf16.gmra.mxu0 %v419
      %v633 = vpop.f32.mrf.mxu0
      %v634 = vadd.f32 %v261, %v633
      %v635 = vpop.f32.mrf.mxu0
      %v636 = vadd.f32 %v261, %v635
      %637 = vmatmul.bf16.gmra.mxu0 %v421
      %v638 = vpop.f32.mrf.mxu0
      %v639 = vadd.f32 %v261, %v638
      %v640 = vpop.f32.mrf.mxu0
      %v641 = vadd.f32 %v261, %v640
      %642 = vmatmul.bf16.gmra.mxu0 %v423
      %v643 = vpop.f32.mrf.mxu0
      %v644 = vadd.f32 %v261, %v643
      %v645 = vpop.f32.mrf.mxu0
      %v646 = vadd.f32 %v261, %v645
      %647 = vmatmul.bf16.gmra.mxu0 %v425
      %v648 = vpop.f32.mrf.mxu0
      %v649 = vadd.f32 %v261, %v648
      %v650 = vpop.f32.mrf.mxu0
      %v651 = vadd.f32 %v261, %v650
      %652 = vmatmul.bf16.gmra.mxu0 %v427
      %v653 = vpop.f32.mrf.mxu0
      %v654 = vadd.f32 %v261, %v653
      %v655 = vpop.f32.mrf.mxu0
      %v656 = vadd.f32 %v261, %v655
      %657 = vmatmul.bf16.gmra.mxu0 %v429
      %v658 = vpop.f32.mrf.mxu0
      %v659 = vadd.f32 %v261, %v658
      %v660 = vpop.f32.mrf.mxu0
      %v661 = vadd.f32 %v261, %v660
      %662 = vmatmul.bf16.gmra.mxu0 %v431
      %v663 = vpop.f32.mrf.mxu0
      %v664 = vadd.f32 %v261, %v663
      %v665 = vpop.f32.mrf.mxu0
      %v666 = vadd.f32 %v261, %v665
      %667 = vmatmul.bf16.gmra.mxu0 %v433
      %v668 = vpop.f32.mrf.mxu0
      %v669 = vadd.f32 %v261, %v668
      %v670 = vpop.f32.mrf.mxu0
      %v671 = vadd.f32 %v261, %v670
      %672 = vmatmul.bf16.gmra.mxu0 %v435
      %v673 = vpop.f32.mrf.mxu0
      %v674 = vadd.f32 %v261, %v673
      %v675 = vpop.f32.mrf.mxu0
      %v676 = vadd.f32 %v261, %v675
      %677 = vmatmul.bf16.gmra.mxu0 %v437
      %v678 = vpop.f32.mrf.mxu0
      %v679 = vadd.f32 %v261, %v678
      %v680 = vpop.f32.mrf.mxu0
      %v681 = vadd.f32 %v261, %v680
      %682 = vmatmul.bf16.gmra.mxu0 %v439
      %v683 = vpop.f32.mrf.mxu0
      %v684 = vadd.f32 %v261, %v683
      %v685 = vpop.f32.mrf.mxu0
      %v686 = vadd.f32 %v261, %v685
      %687 = vmatmul.bf16.gmra.mxu0 %v441
      %v688 = vpop.f32.mrf.mxu0
      %v689 = vadd.f32 %v261, %v688
      %v690 = vpop.f32.mrf.mxu0
      %v691 = vadd.f32 %v261, %v690
      %692 = vmatmul.bf16.gmra.mxu0 %v443
      %v693 = vpop.f32.mrf.mxu0
      %v694 = vadd.f32 %v261, %v693
      %v695 = vpop.f32.mrf.mxu0
      %v696 = vadd.f32 %v261, %v695
      %697 = vmatmul.bf16.gmra.mxu0 %v445
      %v698 = vpop.f32.mrf.mxu0
      %v699 = vadd.f32 %v261, %v698
      %v700 = vpop.f32.mrf.mxu0
      %v701 = vadd.f32 %v261, %v700
      %702 = vmatmul.bf16.gmra.mxu0 %v447
      %v703 = vpop.f32.mrf.mxu0
      %v704 = vadd.f32 %v261, %v703
      %v705 = vpop.f32.mrf.mxu0
      %v706 = vadd.f32 %v261, %v705
      %707 = vmatmul.bf16.gmra.mxu0 %v449
      %v708 = vpop.f32.mrf.mxu0
      %v709 = vadd.f32 %v261, %v708
      %v710 = vpop.f32.mrf.mxu0
      %v711 = vadd.f32 %v261, %v710
      %712 = vmatmul.bf16.gmra.mxu0 %v451
      %v713 = vpop.f32.mrf.mxu0
      %v714 = vadd.f32 %v261, %v713
      %v715 = vpop.f32.mrf.mxu0
      %v716 = vadd.f32 %v261, %v715
      %717 = vmatmul.bf16.gmra.mxu0 %v453
      %v718 = vpop.f32.mrf.mxu0
      %v719 = vadd.f32 %v261, %v718
      %v720 = vpop.f32.mrf.mxu0
      %v721 = vadd.f32 %v261, %v720
      %722 = vmatmul.bf16.gmra.mxu0 %v455
      %v723 = vpop.f32.mrf.mxu0
      %v724 = vadd.f32 %v261, %v723
      %v725 = vpop.f32.mrf.mxu0
      %v726 = vadd.f32 %v261, %v725
      %727 = vmatmul.bf16.gmra.mxu0 %v457
      %v728 = vpop.f32.mrf.mxu0
      %v729 = vadd.f32 %v261, %v728
      %v730 = vpop.f32.mrf.mxu0
      %v731 = vadd.f32 %v261, %v730
      %732 = vmatmul.bf16.gmra.mxu0 %v459
      %v733 = vpop.f32.mrf.mxu0
      %v734 = vadd.f32 %v261, %v733
      %v735 = vpop.f32.mrf.mxu0
      %v736 = vadd.f32 %v261, %v735
      %737 = vmatmul.bf16.gmra.mxu0 %v461
      %v738 = vpop.f32.mrf.mxu0
      %v739 = vadd.f32 %v261, %v738
      %v740 = vpop.f32.mrf.mxu0
      %v741 = vadd.f32 %v261, %v740
      %742 = vdwg.mxu0
      %743 = vmatpush.bf16.msra.mxu0 %v592
      %744 = vmatpush.bf16.msra.mxu0 %v591
      %745 = vmatpush.bf16.msra.mxu0 %v590
      %746 = vmatpush.bf16.msra.mxu0 %v589
      %747 = vmatpush.bf16.msra.mxu0 %v588
      %748 = vmatpush.bf16.msra.mxu0 %v587
      %749 = vmatpush.bf16.msra.mxu0 %v586
      %750 = vmatpush.bf16.msra.mxu0 %v585
      %751 = vmatmul.bf16.gmra.mxu0 %v414
      %v752 = vpop.f32.mrf.mxu0
      %v753 = vadd.f32 %v619, %v752
      %v754 = vpop.f32.mrf.mxu0
      %v755 = vadd.f32 %v621, %v754
      %756 = vmatmul.bf16.gmra.mxu0 %v416
      %v757 = vpop.f32.mrf.mxu0
      %v758 = vadd.f32 %v624, %v757
      %v759 = vpop.f32.mrf.mxu0
      %v760 = vadd.f32 %v626, %v759
      %761 = vmatmul.bf16.gmra.mxu0 %v418
      %v762 = vpop.f32.mrf.mxu0
      %v763 = vadd.f32 %v629, %v762
      %v764 = vpop.f32.mrf.mxu0
      %v765 = vadd.f32 %v631, %v764
      %766 = vmatmul.bf16.gmra.mxu0 %v420
      %v767 = vpop.f32.mrf.mxu0
      %v768 = vadd.f32 %v634, %v767
      %v769 = vpop.f32.mrf.mxu0
      %v770 = vadd.f32 %v636, %v769
      %771 = vmatmul.bf16.gmra.mxu0 %v422
      %v772 = vpop.f32.mrf.mxu0
      %v773 = vadd.f32 %v639, %v772
      %v774 = vpop.f32.mrf.mxu0
      %v775 = vadd.f32 %v641, %v774
      %776 = vmatmul.bf16.gmra.mxu0 %v424
      %v777 = vpop.f32.mrf.mxu0
      %v778 = vadd.f32 %v644, %v777
      %v779 = vpop.f32.mrf.mxu0
      %v780 = vadd.f32 %v646, %v779
      %781 = vmatmul.bf16.gmra.mxu0 %v426
      %v782 = vpop.f32.mrf.mxu0
      %v783 = vadd.f32 %v649, %v782
      %v784 = vpop.f32.mrf.mxu0
      %v785 = vadd.f32 %v651, %v784
      %786 = vmatmul.bf16.gmra.mxu0 %v428
      %v787 = vpop.f32.mrf.mxu0
      %v788 = vadd.f32 %v654, %v787
      %v789 = vpop.f32.mrf.mxu0
      %v790 = vadd.f32 %v656, %v789
      %791 = vmatmul.bf16.gmra.mxu0 %v430
      %v792 = vpop.f32.mrf.mxu0
      %v793 = vadd.f32 %v659, %v792
      %v794 = vpop.f32.mrf.mxu0
      %v795 = vadd.f32 %v661, %v794
      %796 = vmatmul.bf16.gmra.mxu0 %v432
      %v797 = vpop.f32.mrf.mxu0
      %v798 = vadd.f32 %v664, %v797
      %v799 = vpop.f32.mrf.mxu0
      %v800 = vadd.f32 %v666, %v799
      %801 = vmatmul.bf16.gmra.mxu0 %v434
      %v802 = vpop.f32.mrf.mxu0
      %v803 = vadd.f32 %v669, %v802
      %v804 = vpop.f32.mrf.mxu0
      %v805 = vadd.f32 %v671, %v804
      %806 = vmatmul.bf16.gmra.mxu0 %v436
      %v807 = vpop.f32.mrf.mxu0
      %v808 = vadd.f32 %v674, %v807
      %v809 = vpop.f32.mrf.mxu0
      %v810 = vadd.f32 %v676, %v809
      %811 = vmatmul.bf16.gmra.mxu0 %v438
      %v812 = vpop.f32.mrf.mxu0
      %v813 = vadd.f32 %v679, %v812
      %v814 = vpop.f32.mrf.mxu0
      %v815 = vadd.f32 %v681, %v814
      %816 = vmatmul.bf16.gmra.mxu0 %v440
      %v817 = vpop.f32.mrf.mxu0
      %v818 = vadd.f32 %v684, %v817
      %v819 = vpop.f32.mrf.mxu0
      %v820 = vadd.f32 %v686, %v819
      %821 = vmatmul.bf16.gmra.mxu0 %v442
      %v822 = vpop.f32.mrf.mxu0
      %v823 = vadd.f32 %v689, %v822
      %v824 = vpop.f32.mrf.mxu0
      %v825 = vadd.f32 %v691, %v824
      %826 = vmatmul.bf16.gmra.mxu0 %v444
      %v827 = vpop.f32.mrf.mxu0
      %v828 = vadd.f32 %v694, %v827
      %v829 = vpop.f32.mrf.mxu0
      %v830 = vadd.f32 %v696, %v829
      %831 = vmatmul.bf16.gmra.mxu0 %v446
      %v832 = vpop.f32.mrf.mxu0
      %v833 = vadd.f32 %v699, %v832
      %v834 = vpop.f32.mrf.mxu0
      %v835 = vadd.f32 %v701, %v834
      %836 = vmatmul.bf16.gmra.mxu0 %v448
      %v837 = vpop.f32.mrf.mxu0
      %v838 = vadd.f32 %v704, %v837
      %v839 = vpop.f32.mrf.mxu0
      %v840 = vadd.f32 %v706, %v839
      %841 = vmatmul.bf16.gmra.mxu0 %v450
      %v842 = vpop.f32.mrf.mxu0
      %v843 = vadd.f32 %v709, %v842
      %v844 = vpop.f32.mrf.mxu0
      %v845 = vadd.f32 %v711, %v844
      %846 = vmatmul.bf16.gmra.mxu0 %v452
      %v847 = vpop.f32.mrf.mxu0
      %v848 = vadd.f32 %v714, %v847
      %v849 = vpop.f32.mrf.mxu0
      %v850 = vadd.f32 %v716, %v849
      %851 = vmatmul.bf16.gmra.mxu0 %v454
      %v852 = vpop.f32.mrf.mxu0
      %v853 = vadd.f32 %v719, %v852
      %v854 = vpop.f32.mrf.mxu0
      %v855 = vadd.f32 %v721, %v854
      %856 = vmatmul.bf16.gmra.mxu0 %v456
      %v857 = vpop.f32.mrf.mxu0
      %v858 = vadd.f32 %v724, %v857
      %v859 = vpop.f32.mrf.mxu0
      %v860 = vadd.f32 %v726, %v859
      %861 = vmatmul.bf16.gmra.mxu0 %v458
      %v862 = vpop.f32.mrf.mxu0
      %v863 = vadd.f32 %v729, %v862
      %v864 = vpop.f32.mrf.mxu0
      %v865 = vadd.f32 %v731, %v864
      %866 = vmatmul.bf16.gmra.mxu0 %v460
      %v867 = vpop.f32.mrf.mxu0
      %v868 = vadd.f32 %v734, %v867
      %v869 = vpop.f32.mrf.mxu0
      %v870 = vadd.f32 %v736, %v869
      %871 = vmatmul.bf16.gmra.mxu0 %v462
      %v872 = vpop.f32.mrf.mxu0
      %v873 = vadd.f32 %v739, %v872
      %v874 = vpop.f32.mrf.mxu0
      %v875 = vadd.f32 %v741, %v874
      %876 = vdwg.mxu0
      %v877 = vmax.f32 %v753, 0.0
      %v878 = vmax.f32 %v755, 0.0
      %v879 = vmax.f32 %v758, 0.0
      %v880 = vmax.f32 %v760, 0.0
      %v881 = vmax.f32 %v763, 0.0
      %v882 = vmax.f32 %v765, 0.0
      %v883 = vmax.f32 %v768, 0.0
      %v884 = vmax.f32 %v770, 0.0
      %v885 = vmax.f32 %v773, 0.0
      %v886 = vmax.f32 %v775, 0.0
      %v887 = vmax.f32 %v778, 0.0
      %v888 = vmax.f32 %v780, 0.0
      %v889 = vmax.f32 %v783, 0.0
      %v890 = vmax.f32 %v785, 0.0
      %v891 = vmax.f32 %v788, 0.0
      %v892 = vmax.f32 %v790, 0.0
      %v893 = vmax.f32 %v793, 0.0
      %v894 = vmax.f32 %v795, 0.0
      %v895 = vmax.f32 %v798, 0.0
      %v896 = vmax.f32 %v800, 0.0
      %v897 = vmax.f32 %v803, 0.0
      %v898 = vmax.f32 %v805, 0.0
      %v899 = vmax.f32 %v808, 0.0
      %v900 = vmax.f32 %v810, 0.0
      %v901 = vmax.f32 %v813, 0.0
      %v902 = vmax.f32 %v815, 0.0
      %v903 = vmax.f32 %v818, 0.0
      %v904 = vmax.f32 %v820, 0.0
      %v905 = vmax.f32 %v823, 0.0
      %v906 = vmax.f32 %v825, 0.0
      %v907 = vmax.f32 %v828, 0.0
      %v908 = vmax.f32 %v830, 0.0
      %v909 = vmax.f32 %v833, 0.0
      %v910 = vmax.f32 %v835, 0.0
      %v911 = vmax.f32 %v838, 0.0
      %v912 = vmax.f32 %v840, 0.0
      %v913 = vmax.f32 %v843, 0.0
      %v914 = vmax.f32 %v845, 0.0
      %v915 = vmax.f32 %v848, 0.0
      %v916 = vmax.f32 %v850, 0.0
      %v917 = vmax.f32 %v853, 0.0
      %v918 = vmax.f32 %v855, 0.0
      %v919 = vmax.f32 %v858, 0.0
      %v920 = vmax.f32 %v860, 0.0
      %v921 = vmax.f32 %v863, 0.0
      %v922 = vmax.f32 %v865, 0.0
      %v923 = vmax.f32 %v868, 0.0
      %v924 = vmax.f32 %v870, 0.0
      %v925 = vmax.f32 %v873, 0.0
      %v926 = vmax.f32 %v875, 0.0
      %v927 = vpack.c.bf16 %v877, %v877
      %v928 = vpack.c.bf16 %v878, %v878
      %v929 = vpack.c.bf16 %v879, %v879
      %v930 = vpack.c.bf16 %v880, %v880
      %v931 = vpack.c.bf16 %v881, %v881
      %v932 = vpack.c.bf16 %v882, %v882
      %v933 = vpack.c.bf16 %v883, %v883
      %v934 = vpack.c.bf16 %v884, %v884
      %v935 = vpack.c.bf16 %v885, %v885
      %v936 = vpack.c.bf16 %v886, %v886
      %v937 = vpack.c.bf16 %v887, %v887
      %v938 = vpack.c.bf16 %v888, %v888
      %v939 = vpack.c.bf16 %v889, %v889
      %v940 = vpack.c.bf16 %v890, %v890
      %v941 = vpack.c.bf16 %v891, %v891
      %v942 = vpack.c.bf16 %v892, %v892
      %v943 = vpack.c.bf16 %v893, %v893
      %v944 = vpack.c.bf16 %v894, %v894
      %v945 = vpack.c.bf16 %v895, %v895
      %v946 = vpack.c.bf16 %v896, %v896
      %v947 = vpack.c.bf16 %v897, %v897
      %v948 = vpack.c.bf16 %v898, %v898
      %v949 = vpack.c.bf16 %v899, %v899
      %v950 = vpack.c.bf16 %v900, %v900
      %v951 = vpack.c.bf16 %v901, %v901
      %v952 = vpack.c.bf16 %v902, %v902
      %v953 = vpack.c.bf16 %v903, %v903
      %v954 = vpack.c.bf16 %v904, %v904
      %v955 = vpack.c.bf16 %v905, %v905
      %v956 = vpack.c.bf16 %v906, %v906
      %v957 = vpack.c.bf16 %v907, %v907
      %v958 = vpack.c.bf16 %v908, %v908
      %v959 = vpack.c.bf16 %v909, %v909
      %v960 = vpack.c.bf16 %v910, %v910
      %v961 = vpack.c.bf16 %v911, %v911
      %v962 = vpack.c.bf16 %v912, %v912
      %v963 = vpack.c.bf16 %v913, %v913
      %v964 = vpack.c.bf16 %v914, %v914
      %v965 = vpack.c.bf16 %v915, %v915
      %v966 = vpack.c.bf16 %v916, %v916
      %v967 = vpack.c.bf16 %v917, %v917
      %v968 = vpack.c.bf16 %v918, %v918
      %v969 = vpack.c.bf16 %v919, %v919
      %v970 = vpack.c.bf16 %v920, %v920
      %v971 = vpack.c.bf16 %v921, %v921
      %v972 = vpack.c.bf16 %v922, %v922
      %v973 = vpack.c.bf16 %v923, %v923
      %v974 = vpack.c.bf16 %v924, %v924
      %v975 = vpack.c.bf16 %v925, %v925
      %v976 = vpack.c.bf16 %v926, %v926
      %vm977 = vcmask 257024
      %978 = vst.msk [vmem:[%s175] sm:$0xf] %vm977, %v927
      %979 = vst.msk [vmem:[%s175 + $0x4] sm:$0xf] %vm977, %v928
      %980 = vst.msk [vmem:[%s175 + $0x8] sm:$0xf] %vm977, %v929
      %981 = vst.msk [vmem:[%s175 + $0xc] sm:$0xf] %vm977, %v930
      %982 = vst.msk [vmem:[%s175 + $0x10] sm:$0xf] %vm977, %v931
      %983 = vst.msk [vmem:[%s175 + $0x14] sm:$0xf] %vm977, %v932
      %984 = vst.msk [vmem:[%s175 + $0x18] sm:$0xf] %vm977, %v933
      %985 = vst.msk [vmem:[%s175 + $0x1c] sm:$0xf] %vm977, %v934
      %986 = vst.msk [vmem:[%s175 + $0x20] sm:$0xf] %vm977, %v935
      %987 = vst.msk [vmem:[%s175 + $0x24] sm:$0xf] %vm977, %v936
      %988 = vst.msk [vmem:[%s175 + $0x28] sm:$0xf] %vm977, %v937
      %989 = vst.msk [vmem:[%s175 + $0x2c] sm:$0xf] %vm977, %v938
      %990 = vst.msk [vmem:[%s175 + $0x30] sm:$0xf] %vm977, %v939
      %991 = vst.msk [vmem:[%s175 + $0x34] sm:$0xf] %vm977, %v940
      %992 = vst.msk [vmem:[%s175 + $0x38] sm:$0xf] %vm977, %v941
      %993 = vst.msk [vmem:[%s175 + $0x3c] sm:$0xf] %vm977, %v942
      %994 = vst.msk [vmem:[%s175 + $0x40] sm:$0xf] %vm977, %v943
      %995 = vst.msk [vmem:[%s175 + $0x44] sm:$0xf] %vm977, %v944
      %996 = vst.msk [vmem:[%s175 + $0x48] sm:$0xf] %vm977, %v945
      %997 = vst.msk [vmem:[%s175 + $0x4c] sm:$0xf] %vm977, %v946
      %998 = vst.msk [vmem:[%s175 + $0x50] sm:$0xf] %vm977, %v947
      %999 = vst.msk [vmem:[%s175 + $0x54] sm:$0xf] %vm977, %v948
      %1000 = vst.msk [vmem:[%s175 + $0x58] sm:$0xf] %vm977, %v949
      %1001 = vst.msk [vmem:[%s175 + $0x5c] sm:$0xf] %vm977, %v950
      %1002 = vst.msk [vmem:[%s175 + $0x60] sm:$0xf] %vm977, %v951
      %1003 = vst.msk [vmem:[%s175 + $0x64] sm:$0xf] %vm977, %v952
      %1004 = vst.msk [vmem:[%s175 + $0x68] sm:$0xf] %vm977, %v953
      %1005 = vst.msk [vmem:[%s175 + $0x6c] sm:$0xf] %vm977, %v954
      %1006 = vst.msk [vmem:[%s175 + $0x70] sm:$0xf] %vm977, %v955
      %1007 = vst.msk [vmem:[%s175 + $0x74] sm:$0xf] %vm977, %v956
      %1008 = vst.msk [vmem:[%s175 + $0x78] sm:$0xf] %vm977, %v957
      %1009 = vst.msk [vmem:[%s175 + $0x7c] sm:$0xf] %vm977, %v958
      %1010 = vst.msk [vmem:[%s175 + $0x80] sm:$0xf] %vm977, %v959
      %1011 = vst.msk [vmem:[%s175 + $0x84] sm:$0xf] %vm977, %v960
      %1012 = vst.msk [vmem:[%s175 + $0x88] sm:$0xf] %vm977, %v961
      %1013 = vst.msk [vmem:[%s175 + $0x8c] sm:$0xf] %vm977, %v962
      %1014 = vst.msk [vmem:[%s175 + $0x90] sm:$0xf] %vm977, %v963
      %1015 = vst.msk [vmem:[%s175 + $0x94] sm:$0xf] %vm977, %v964
      %1016 = vst.msk [vmem:[%s175 + $0x98] sm:$0xf] %vm977, %v965
      %1017 = vst.msk [vmem:[%s175 + $0x9c] sm:$0xf] %vm977, %v966
      %1018 = vst.msk [vmem:[%s175 + $0xa0] sm:$0xf] %vm977, %v967
      %1019 = vst.msk [vmem:[%s175 + $0xa4] sm:$0xf] %vm977, %v968
      %1020 = vst.msk [vmem:[%s175 + $0xa8] sm:$0xf] %vm977, %v969
      %1021 = vst.msk [vmem:[%s175 + $0xac] sm:$0xf] %vm977, %v970
      %1022 = vst.msk [vmem:[%s175 + $0xb0] sm:$0xf] %vm977, %v971
      %1023 = vst.msk [vmem:[%s175 + $0xb4] sm:$0xf] %vm977, %v972
      %1024 = vst.msk [vmem:[%s175 + $0xb8] sm:$0xf] %vm977, %v973
      %1025 = vst.msk [vmem:[%s175 + $0xbc] sm:$0xf] %vm977, %v974
      %1026 = vst.msk [vmem:[%s175 + $0xc0] sm:$0xf] %vm977, %v975
      %1027 = vst.msk [vmem:[%s175 + $0xc4] sm:$0xf] %vm977, %v976
      %s1028 = smul.u32 50, %s14
      %p1029 = scmp.lt.s32.totalorder %s1028, 99
      %s1030 = scalar_select %p1029, %s1028, 99
      %s1031 = smul.addr %s1030, 4
      %s1032 = scalar_lea.vmem %s3, %s1031
      // Predicated region
      $region33: #{nature_cnn_forward.4} parent=31 // pred_check
        %p1033 = pneg %p100
      $region34: #{nature_cnn_forward.4} parent=31 // pred_check_branch
        %1035 = sbr.rel (%p1033) target = $region36
      $region35: #{nature_cnn_forward.4} parent=31 // pred_region
        %s1036 = smul.u32 50, %s14
      $region36: #{nature_cnn_forward.4} parent=31 // pred_fallthru
        _
    $region32: #{nature_cnn_forward.4} parent=5 // pred_fallthru
      _
    %p1037 = scmp.le.s32.totalorder 2, %s9
    // Predicated region
    $region37: #{nature_cnn_forward.4} parent=5 // pred_check
      %p1038 = pneg %p1037
    $region38: #{nature_cnn_forward.4} parent=5 // pred_check_branch
      %1040 = sbr.rel (%p1038) target = $region40
    $region39: #{nature_cnn_forward.4} parent=5 // pred_region
      %s1041 = ssub.s32 %s9, 2
      // Predicated region
      $region41: #{nature_cnn_forward.4} parent=39 // pred_check
        %p1042 = pneg %p106
      $region42: #{nature_cnn_forward.4} parent=39 // pred_check_branch
        %1044 = sbr.rel (%p1042) target = $region44
      $region43: #{nature_cnn_forward.4} parent=39 // pred_region
        %s1045 = smul.u32 50, %s15
        %p1046 = scmp.lt.s32.totalorder %s1045, 99
        %s1047 = scalar_select %p1046, %s1045, 99
        %s1048 = smul.addr %s1047, 4
        %s1049 = scalar_lea.vmem %s3, %s1048
      $region44: #{nature_cnn_forward.4} parent=39 // pred_fallthru
        _
    $region40: #{nature_cnn_forward.4} parent=5 // pred_fallthru
      _
  $region6: #{nature_cnn_forward.4} parent=0 // loop_footer
    %s13 = sadd.s32 1, %s9
  $region7: #{nature_cnn_forward.4} parent=0 // loop_footer_branch
    %8 = sbr.rel target = $region3
  $region8: #{nature_cnn_forward.4} parent=0 // loop_exit
    _

// kernel: nature_cnn_forward.5
$region0: #{nature_cnn_forward.5}
  #allocation0 [shape = 'u32[]', space=smem, size = 0x4, offset = 0x4, fixed_abs, tag = 'smem constant byte address 0x4 - core index']
  #allocation1 [shape = 'u32[72,128]{1,0:T(1,128)}', space=vmem, size = 0x9000, scoped, tag = 'internal scratch']
  %s0 = inlined_call_operand.vmem [shape: bf16[162,512], index: 0, kind: input, shape index: {}]
  %s1 = inlined_call_operand.vmem [shape: bf16[512,64], index: 1, kind: input, shape index: {}]
  %s2 = inlined_call_operand.vmem [shape: f32[1,64], index: 2, kind: input, shape index: {}]
  %s3 = inlined_call_operand.vmem [shape: bf16[162,64], index: 3, kind: output, shape index: {}]
  %s4 = sld [smem:[#allocation0]]
  $region89: #{nature_cnn_forward.5} parent=0
    _
  %s6 = ssub.s32 1, %s4
  %s7 = scalar_select 0, %s6, %s4
  $region1: #{nature_cnn_forward.5} parent=0
    #allocation2 [shape = 'u8[45056]{0}', space=vmem, size = 0xb000, scoped, tag = 'output window, operand 0']
    loop: start=0, step=1, limit=4
    $region2: #{nature_cnn_forward.5} parent=1 // loop_pre_header
      _
    $region3: #{nature_cnn_forward.5} parent=1 // loop_header
      %s9 = sphi 0, %s13
      %p10 = scmp.ge.s32.totalorder %s9, 4
      %s19 = sphi 0, %s21
      %s22 = sphi 0, %s19
      %s23 = sphi 0, %s22
      %s39 = sphi 0, %s23
      %s43 = sphi 0, %s43
      %s45 = sphi 0, %s43
      %s46 = sphi 0, %s45
      %s60 = sphi 0, %s46
      %s64 = sphi 0, %s64
      %s66 = sphi 0, %s64
      %s67 = sphi 0, %s66
      %s81 = sphi 0, %s67
      %s87 = sphi 0, %s89
      %s90 = sphi 0, %s87
      %s91 = sphi 0, %s90
      %s107 = sphi 0, %s91
    $region4: #{nature_cnn_forward.5} parent=1 // loop_header_branch
      %12 = sbr.rel (%p10) target = $region8
    $region5: #{nature_cnn_forward.5} parent=1 // loop_body
      %s14 = ssub.s32 %s9, 1
      %s15 = ssub.s32 %s9, 2
      %s16 = sadd.s32 %s9, 1
      %s17 = ssub.s32 %s9, %s16
      %p18 = scmp.eq.s32.totalorder %s17, 0
      %s20 = sadd.s32 %s19, 1
      %s21 = scalar_select %p18, %s19, %s20
      %p24 = pneg %p18
      %p25 = scmp.eq.s32.totalorder %s9, 1
      %p26 = por %p24, %p25
      %p27 = scmp.ne.s32.totalorder %s19, %s22
      %p28 = scmp.eq.s32.totalorder %s9, 0
      %p29 = por %p27, %p28
      %p30 = scmp.ne.s32.totalorder %s19, %s22
      %p31 = scmp.eq.s32.totalorder %s14, 1
      %p32 = por %p30, %p31
      %p33 = scmp.ne.s32.totalorder %s22, %s23
      %p34 = scmp.eq.s32.totalorder %s14, 0
      %p35 = por %p33, %p34
      %p36 = scmp.ne.s32.totalorder %s22, %s23
      %p37 = scmp.eq.s32.totalorder %s15, 1
      %p38 = por %p36, %p37
      %p40 = scmp.ne.s32.totalorder %s23, %s39
      %p41 = scmp.eq.s32.totalorder %s15, 0
      %p42 = por %p40, %p41
      %s44 = sadd.s32 %s43, 1
      %p47 = scmp.eq.s32.totalorder %s9, 1
      %p48 = scmp.ne.s32.totalorder %s43, %s45
      %p49 = scmp.eq.s32.totalorder %s9, 0
      %p50 = por %p48, %p49
      %p51 = scmp.ne.s32.totalorder %s43, %s45
      %p52 = scmp.eq.s32.totalorder %s14, 1
      %p53 = por %p51, %p52
      %p54 = scmp.ne.s32.totalorder %s45, %s46
      %p55 = scmp.eq.s32.totalorder %s14, 0
      %p56 = por %p54, %p55
      %p57 = scmp.ne.s32.totalorder %s45, %s46
      %p58 = scmp.eq.s32.totalorder %s15, 1
      %p59 = por %p57, %p58
      %p61 = scmp.ne.s32.totalorder %s46, %s60
      %p62 = scmp.eq.s32.totalorder %s15, 0
      %p63 = por %p61, %p62
      %s65 = sadd.s32 %s64, 1
      %p68 = scmp.eq.s32.totalorder %s9, 1
      %p69 = scmp.ne.s32.totalorder %s64, %s66
      %p70 = scmp.eq.s32.totalorder %s9, 0
      %p71 = por %p69, %p70
      %p72 = scmp.ne.s32.totalorder %s64, %s66
      %p73 = scmp.eq.s32.totalorder %s14, 1
      %p74 = por %p72, %p73
      %p75 = scmp.ne.s32.totalorder %s66, %s67
      %p76 = scmp.eq.s32.totalorder %s14, 0
      %p77 = por %p75, %p76
      %p78 = scmp.ne.s32.totalorder %s66, %s67
      %p79 = scmp.eq.s32.totalorder %s15, 1
      %p80 = por %p78, %p79
      %p82 = scmp.ne.s32.totalorder %s67, %s81
      %p83 = scmp.eq.s32.totalorder %s15, 0
      %p84 = por %p82, %p83
      %s85 = ssub.s32 %s9, %s16
      %p86 = scmp.eq.s32.totalorder %s85, 0
      %s88 = sadd.s32 %s87, 1
      %s89 = scalar_select %p86, %s87, %s88
      %p92 = pneg %p86
      %p93 = scmp.eq.s32.totalorder %s9, 1
      %p94 = por %p92, %p93
      %p95 = scmp.ne.s32.totalorder %s87, %s90
      %p96 = scmp.eq.s32.totalorder %s9, 0
      %p97 = por %p95, %p96
      %p98 = scmp.ne.s32.totalorder %s87, %s90
      %p99 = scmp.eq.s32.totalorder %s14, 1
      %p100 = por %p98, %p99
      %p101 = scmp.ne.s32.totalorder %s90, %s91
      %p102 = scmp.eq.s32.totalorder %s14, 0
      %p103 = por %p101, %p102
      %p104 = scmp.ne.s32.totalorder %s90, %s91
      %p105 = scmp.eq.s32.totalorder %s15, 1
      %p106 = por %p104, %p105
      %p108 = scmp.ne.s32.totalorder %s91, %s107
      %p109 = scmp.eq.s32.totalorder %s15, 0
      %p110 = por %p108, %p109
      %p111 = scmp.le.s32.totalorder 1, %s9
      %p112 = scmp.lt.s32.totalorder %s9, 3
      %p113 = pnand %p111, %p112
      %p114 = pneg %p113
      // Predicated region
      $region9: #{nature_cnn_forward.5} parent=5 // pred_check
        _
      $region10: #{nature_cnn_forward.5} parent=5 // pred_check_branch
        %116 = sbr.rel (%p113) target = $region12
      $region11: #{nature_cnn_forward.5} parent=5 // pred_region
        %s117 = ssub.s32 %s9, 1
        // Predicated region
        $region13: #{nature_cnn_forward.5} parent=11 // pred_check
          %p118 = pneg %p56
        $region14: #{nature_cnn_forward.5} parent=11 // pred_check_branch
          %120 = sbr.rel (%p118) target = $region16
        $region15: #{nature_cnn_forward.5} parent=11 // pred_region
          _
        $region16: #{nature_cnn_forward.5} parent=11 // pred_fallthru
          _
        // Predicated region
        $region17: #{nature_cnn_forward.5} parent=11 // pred_check
          %p121 = pneg %p77
        $region18: #{nature_cnn_forward.5} parent=11 // pred_check_branch
          %123 = sbr.rel (%p121) target = $region20
        $region19: #{nature_cnn_forward.5} parent=11 // pred_region
          _
        $region20: #{nature_cnn_forward.5} parent=11 // pred_fallthru
          _
      $region12: #{nature_cnn_forward.5} parent=5 // pred_fallthru
        _
      %p124 = scmp.lt.s32.totalorder %s9, 2
      // Predicated region
      $region21: #{nature_cnn_forward.5} parent=5 // pred_check
        %p125 = pneg %p124
      $region22: #{nature_cnn_forward.5} parent=5 // pred_check_branch
        %127 = sbr.rel (%p125) target = $region24
      $region23: #{nature_cnn_forward.5} parent=5 // pred_region
        // Predicated region
        $region25: #{nature_cnn_forward.5} parent=23 // pred_check
          %p128 = pneg %p29
        $region26: #{nature_cnn_forward.5} parent=23 // pred_check_branch
          %130 = sbr.rel (%p128) target = $region28
        $region27: #{nature_cnn_forward.5} parent=23 // pred_region
          %s131 = smul.u32 11, %s9
          %s132 = ssub.s32 21, %s131
          %p133 = scmp.lt.s32.totalorder %s132, 11
          %s134 = scalar_select %p133, %s132, 11
          %s135 = smul.u32 4, %s134
          %s136 = smul.u32 %s135, 4
          %p137 = scmp.lt.s32.totalorder %s131, 20
          %s138 = scalar_select %p137, %s131, 20
          %s139 = smul.addr %s138, 4
          %s140 = smul.addr %s139, 4
          %s141 = scalar_lea.vmem %s0, %s140
          %s142 = smul.u32 11, %s9
          %s143 = ssub.s32 21, %s142
          %p144 = scmp.lt.s32.totalorder %s143, 11
          %s145 = scalar_select %p144, %s143, 11
          %s146 = smul.u32 4, %s145
          %s147 = smul.u32 %s146, 4
        $region28: #{nature_cnn_forward.5} parent=23 // pred_fallthru
          _
      $region24: #{nature_cnn_forward.5} parent=5 // pred_fallthru
        _
      %p148 = scmp.le.s32.totalorder 1, %s9
      %p149 = scmp.lt.s32.totalorder %s9, 3
      %p150 = pnand %p148, %p149
      %p151 = pneg %p150
      // Predicated region
      $region29: #{nature_cnn_forward.5} parent=5 // pred_check
        _
      $region30: #{nature_cnn_forward.5} parent=5 // pred_check_branch
        %153 = sbr.rel (%p150) target = $region32
      $region31: #{nature_cnn_forward.5} parent=5 // pred_region
        %s154 = ssub.s32 %s9, 1
        %s155 = smul.u32 11, %s14
        %s156 = ssub.s32 21, %s155
        %p157 = scmp.lt.s32.totalorder %s156, 11
        %s158 = scalar_select %p157, %s156, 11
        %s159 = smul.u32 4, %s158
        %s160 = smul.u32 %s159, 4
        %p161 = scmp.lt.s32.totalorder %s155, 20
        %s162 = scalar_select %p161, %s155, 20
        %s163 = smul.addr %s162, 4
        %s164 = smul.addr %s163, 4
        %s165 = scalar_lea.vmem %s0, %s164
        %p166 = pneg %p35
        %p167 = pneg %p32
        %p168 = pneg %p56
        %p169 = pneg %p53
        %p170 = pneg %p77
        %p171 = pneg %p74
        %p172 = pneg %p103
        %p173 = pneg %p100
        %s174 = sand.u32 %s90, 1
        %s175 = sand.u32 %s90, 1
        %s176 = smul.addr %s175, 44
        %s177 = scalar_lea.vmem [#allocation2], %s176
        %s178 = smul.u32 11, %s14
        %s179 = ssub.s32 21, %s178
        %p180 = scmp.lt.s32.totalorder %s179, 11
        %s181 = scalar_select %p180, %s179, 11
        %s182 = smul.u32 4, %s181
        %s183 = smul.u32 %s182, 4
        %p184 = scmp.lt.s32.totalorder %s178, 20
        %s185 = scalar_select %p184, %s178, 20
        %s186 = smul.addr %s185, 4
        %s187 = smul.addr %s186, 4
        %s188 = scalar_lea.vmem %s0, %s187
        %s189 = smul.u32 11, %s14
        %s190 = ssub.s32 21, %s189
        %p191 = scmp.lt.s32.totalorder %s190, 11
        %s192 = scalar_select %p191, %s190, 11
        %s193 = smul.u32 4, %s192
        %s194 = smul.u32 %s193, 4
        %s195 = smul.u32 11, %s14
        %s196 = ssub.s32 21, %s195
        %p197 = scmp.lt.s32.totalorder %s196, 11
        %s198 = scalar_select %p197, %s196, 11
        %s199 = smul.u32 4, %s198
        %v200 = vld [vmem:[%s188] sm:$0xff]
        %v201 = vld [vmem:[%s188 + $0x8] sm:$0xff]
        %v202 = vld [vmem:[%s188 + $0x10] sm:$0xff]
        %v203 = vld [vmem:[%s188 + $0x18] sm:$0xff]
        %v204 = vld [vmem:[%s188 + $0x20] sm:$0xff]
        %v205 = vld [vmem:[%s188 + $0x28] sm:$0xff]
        %v206 = vld [vmem:[%s188 + $0x30] sm:$0xff]
        %v207 = vld [vmem:[%s188 + $0x38] sm:$0xff]
        %v208 = vld [vmem:[%s188 + $0x40] sm:$0xff]
        %v209 = vld [vmem:[%s188 + $0x48] sm:$0xff]
        %v210 = vld [vmem:[%s188 + $0x50] sm:$0xff]
        %v211 = vld [vmem:[%s188 + $0x58] sm:$0xff]
        %v212 = vld [vmem:[%s188 + $0x60] sm:$0xff]
        %v213 = vld [vmem:[%s188 + $0x68] sm:$0xff]
        %v214 = vld [vmem:[%s188 + $0x70] sm:$0xff]
        %v215 = vld [vmem:[%s188 + $0x78] sm:$0xff]
        %v216 = vld [vmem:[%s188 + $0x80] sm:$0xff]
        %v217 = vld [vmem:[%s188 + $0x88] sm:$0xff]
        %v218 = vld [vmem:[%s188 + $0x90] sm:$0xff]
        %v219 = vld [vmem:[%s188 + $0x98] sm:$0xff]
        %v220 = vld [vmem:[%s188 + $0xa0] sm:$0xff]
        %v221 = vld [vmem:[%s188 + $0xa8] sm:$0xff]
        %v222 = vld [vmem:[%s1] sm:$0xf]
        %v223 = vld [vmem:[%s1 + $0x4] sm:$0xf]
        %v224 = vld [vmem:[%s1 + $0x8] sm:$0xf]
        %v225 = vld [vmem:[%s1 + $0xc] sm:$0xf]
        %v226 = vld [vmem:[%s1 + $0x10] sm:$0xf]
        %v227 = vld [vmem:[%s1 + $0x14] sm:$0xf]
        %v228 = vld [vmem:[%s1 + $0x18] sm:$0xf]
        %v229 = vld [vmem:[%s1 + $0x1c] sm:$0xf]
        %v230 = vld [vmem:[%s1 + $0x20] sm:$0xf]
        %v231 = vld [vmem:[%s1 + $0x24] sm:$0xf]
        %v232 = vld [vmem:[%s1 + $0x28] sm:$0xf]
        %v233 = vld [vmem:[%s1 + $0x2c] sm:$0xf]
        %v234 = vld [vmem:[%s1 + $0x30] sm:$0xf]
        %v235 = vld [vmem:[%s1 + $0x34] sm:$0xf]
        %v236 = vld [vmem:[%s1 + $0x38] sm:$0xf]
        %v237 = vld [vmem:[%s1 + $0x3c] sm:$0xf]
        %v238 = vld [vmem:[%s1 + $0x40] sm:$0xf]
        %v239 = vld [vmem:[%s1 + $0x44] sm:$0xf]
        %v240 = vld [vmem:[%s1 + $0x48] sm:$0xf]
        %v241 = vld [vmem:[%s1 + $0x4c] sm:$0xf]
        %v242 = vld [vmem:[%s1 + $0x50] sm:$0xf]
        %v243 = vld [vmem:[%s1 + $0x54] sm:$0xf]
        %v244 = vld [vmem:[%s1 + $0x58] sm:$0xf]
        %v245 = vld [vmem:[%s1 + $0x5c] sm:$0xf]
        %v246 = vld [vmem:[%s1 + $0x60] sm:$0xf]
        %v247 = vld [vmem:[%s1 + $0x64] sm:$0xf]
        %v248 = vld [vmem:[%s1 + $0x68] sm:$0xf]
        %v249 = vld [vmem:[%s1 + $0x6c] sm:$0xf]
        %v250 = vld [vmem:[%s1 + $0x70] sm:$0xf]
        %v251 = vld [vmem:[%s1 + $0x74] sm:$0xf]
        %v252 = vld [vmem:[%s1 + $0x78] sm:$0xf]
        %v253 = vld [vmem:[%s1 + $0x7c] sm:$0xf]
        %v254 = vld [vmem:[%s1 + $0x80] sm:$0xf]
        %v255 = vld [vmem:[%s1 + $0x84] sm:$0xf]
        %v256 = vld [vmem:[%s1 + $0x88] sm:$0xf]
        %v257 = vld [vmem:[%s1 + $0x8c] sm:$0xf]
        %v258 = vld [vmem:[%s1 + $0x90] sm:$0xf]
        %v259 = vld [vmem:[%s1 + $0x94] sm:$0xf]
        %v260 = vld [vmem:[%s1 + $0x98] sm:$0xf]
        %v261 = vld [vmem:[%s1 + $0x9c] sm:$0xf]
        %v262 = vld [vmem:[%s1 + $0xa0] sm:$0xf]
        %v263 = vld [vmem:[%s1 + $0xa4] sm:$0xf]
        %v264 = vld [vmem:[%s1 + $0xa8] sm:$0xf]
        %v265 = vld [vmem:[%s1 + $0xac] sm:$0xf]
        %v266 = vld [vmem:[%s1 + $0xb0] sm:$0xf]
        %v267 = vld [vmem:[%s1 + $0xb4] sm:$0xf]
        %v268 = vld [vmem:[%s1 + $0xb8] sm:$0xf]
        %v269 = vld [vmem:[%s1 + $0xbc] sm:$0xf]
        %v270 = vld [vmem:[%s1 + $0xc0] sm:$0xf]
        %v271 = vld [vmem:[%s1 + $0xc4] sm:$0xf]
        %v272 = vld [vmem:[%s1 + $0xc8] sm:$0xf]
        %v273 = vld [vmem:[%s1 + $0xcc] sm:$0xf]
        %v274 = vld [vmem:[%s1 + $0xd0] sm:$0xf]
        %v275 = vld [vmem:[%s1 + $0xd4] sm:$0xf]
        %v276 = vld [vmem:[%s1 + $0xd8] sm:$0xf]
        %v277 = vld [vmem:[%s1 + $0xdc] sm:$0xf]
        %v278 = vld [vmem:[%s1 + $0xe0] sm:$0xf]
        %v279 = vld [vmem:[%s1 + $0xe4] sm:$0xf]
        %v280 = vld [vmem:[%s1 + $0xe8] sm:$0xf]
        %v281 = vld [vmem:[%s1 + $0xec] sm:$0xf]
        %v282 = vld [vmem:[%s1 + $0xf0] sm:$0xf]
        %v283 = vld [vmem:[%s1 + $0xf4] sm:$0xf]
        %v284 = vld [vmem:[%s1 + $0xf8] sm:$0xf]
        %v285 = vld [vmem:[%s1 + $0xfc] sm:$0xf]
        %v286 = vld [vmem:[%s2] sm:$0x1]
        %v288 = vperm.slane %v286, 0
        %v312 = vunpack.c.l.b16 %v200
        %v313 = vunpack.c.h.b16 %v200
        %v314 = vunpack.c.l.b16 %v201
        %v315 = vunpack.c.h.b16 %v201
        %v316 = vunpack.c.l.b16 %v202
        %v317 = vunpack.c.h.b16 %v202
        %v318 = vunpack.c.l.b16 %v203
        %v319 = vunpack.c.h.b16 %v203
        %v320 = vunpack.c.l.b16 %v204
        %v321 = vunpack.c.h.b16 %v204
        %v322 = vunpack.c.l.b16 %v205
        %v323 = vunpack.c.h.b16 %v205
        %v324 = vunpack.c.l.b16 %v206
        %v325 = vunpack.c.h.b16 %v206
        %v326 = vunpack.c.l.b16 %v207
        %v327 = vunpack.c.h.b16 %v207
        %v328 = vunpack.c.l.b16 %v208
        %v329 = vunpack.c.h.b16 %v208
        %v330 = vunpack.c.l.b16 %v209
        %v331 = vunpack.c.h.b16 %v209
        %v332 = vunpack.c.l.b16 %v210
        %v333 = vunpack.c.h.b16 %v210
        %v334 = vunpack.c.l.b16 %v211
        %v335 = vunpack.c.h.b16 %v211
        %v336 = vunpack.c.l.b16 %v212
        %v337 = vunpack.c.h.b16 %v212
        %v338 = vunpack.c.l.b16 %v213
        %v339 = vunpack.c.h.b16 %v213
        %v340 = vunpack.c.l.b16 %v214
        %v341 = vunpack.c.h.b16 %v214
        %v342 = vunpack.c.l.b16 %v215
        %v343 = vunpack.c.h.b16 %v215
        %v344 = vunpack.c.l.b16 %v216
        %v345 = vunpack.c.h.b16 %v216
        %v346 = vunpack.c.l.b16 %v217
        %v347 = vunpack.c.h.b16 %v217
        %v348 = vunpack.c.l.b16 %v218
        %v349 = vunpack.c.h.b16 %v218
        %v350 = vunpack.c.l.b16 %v219
        %v351 = vunpack.c.h.b16 %v219
        %v352 = vunpack.c.l.b16 %v220
        %v353 = vunpack.c.h.b16 %v220
        %v354 = vunpack.c.l.b16 %v221
        %v355 = vunpack.c.h.b16 %v221
        %v356 = vpack.c.b16 %v316, %v312
        %v357 = vpack.c.b16 %v317, %v313
        %v358 = vpack.c.b16 %v318, %v314
        %v359 = vpack.c.b16 %v319, %v315
        %v360 = vpack.c.b16 %v324, %v320
        %v361 = vpack.c.b16 %v325, %v321
        %v362 = vpack.c.b16 %v326, %v322
        %v363 = vpack.c.b16 %v327, %v323
        %v364 = vpack.c.b16 %v332, %v328
        %v365 = vpack.c.b16 %v333, %v329
        %v366 = vpack.c.b16 %v334, %v330
        %v367 = vpack.c.b16 %v335, %v331
        %v368 = vpack.c.b16 %v340, %v336
        %v369 = vpack.c.b16 %v341, %v337
        %v370 = vpack.c.b16 %v342, %v338
        %v371 = vpack.c.b16 %v343, %v339
        %v372 = vpack.c.b16 %v348, %v344
        %v373 = vpack.c.b16 %v349, %v345
        %v374 = vpack.c.b16 %v350, %v346
        %v375 = vpack.c.b16 %v351, %v347
        %v376 = vpack.c.b16 %v352, %v352
        %v377 = vpack.c.b16 %v353, %v353
        %v378 = vpack.c.b16 %v354, %v354
        %v379 = vpack.c.b16 %v355, %v355
        %v468 = vunpack.c.l.b16 %v222
        %v469 = vunpack.c.l.b16 %v223
        %v470 = vunpack.c.l.b16 %v224
        %v471 = vunpack.c.l.b16 %v225
        %v472 = vunpack.c.l.b16 %v226
        %v473 = vunpack.c.l.b16 %v227
        %v474 = vunpack.c.l.b16 %v228
        %v475 = vunpack.c.l.b16 %v229
        %v476 = vunpack.c.l.b16 %v230
        %v477 = vunpack.c.l.b16 %v231
        %v478 = vunpack.c.l.b16 %v232
        %v479 = vunpack.c.l.b16 %v233
        %v480 = vunpack.c.l.b16 %v234
        %v481 = vunpack.c.l.b16 %v235
        %v482 = vunpack.c.l.b16 %v236
        %v483 = vunpack.c.l.b16 %v237
        %v484 = vunpack.c.l.b16 %v238
        %v485 = vunpack.c.l.b16 %v239
        %v486 = vunpack.c.l.b16 %v240
        %v487 = vunpack.c.l.b16 %v241
        %v488 = vunpack.c.l.b16 %v242
        %v489 = vunpack.c.l.b16 %v243
        %v490 = vunpack.c.l.b16 %v244
        %v491 = vunpack.c.l.b16 %v245
        %v492 = vunpack.c.l.b16 %v246
        %v493 = vunpack.c.l.b16 %v247
        %v494 = vunpack.c.l.b16 %v248
        %v495 = vunpack.c.l.b16 %v249
        %v496 = vunpack.c.l.b16 %v250
        %v497 = vunpack.c.l.b16 %v251
        %v498 = vunpack.c.l.b16 %v252
        %v499 = vunpack.c.l.b16 %v253
        %v500 = vunpack.c.l.b16 %v254
        %v501 = vunpack.c.l.b16 %v255
        %v502 = vunpack.c.l.b16 %v256
        %v503 = vunpack.c.l.b16 %v257
        %v504 = vunpack.c.l.b16 %v258
        %v505 = vunpack.c.l.b16 %v259
        %v506 = vunpack.c.l.b16 %v260
        %v507 = vunpack.c.l.b16 %v261
        %v508 = vunpack.c.l.b16 %v262
        %v509 = vunpack.c.l.b16 %v263
        %v510 = vunpack.c.l.b16 %v264
        %v511 = vunpack.c.l.b16 %v265
        %v512 = vunpack.c.l.b16 %v266
        %v513 = vunpack.c.l.b16 %v267
        %v514 = vunpack.c.l.b16 %v268
        %v515 = vunpack.c.l.b16 %v269
        %v516 = vunpack.c.l.b16 %v270
        %v517 = vunpack.c.l.b16 %v271
        %v518 = vunpack.c.l.b16 %v272
        %v519 = vunpack.c.l.b16 %v273
        %v520 = vunpack.c.l.b16 %v274
        %v521 = vunpack.c.l.b16 %v275
        %v522 = vunpack.c.l.b16 %v276
        %v523 = vunpack.c.l.b16 %v277
        %v524 = vunpack.c.l.b16 %v278
        %v525 = vunpack.c.l.b16 %v279
        %v526 = vunpack.c.l.b16 %v280
        %v527 = vunpack.c.l.b16 %v281
        %v528 = vunpack.c.l.b16 %v282
        %v529 = vunpack.c.l.b16 %v283
        %v530 = vunpack.c.l.b16 %v284
        %v531 = vunpack.c.l.b16 %v285
        %v532 = vpack.c.b16 %v469, %v468
        %v533 = vpack.c.b16 %v471, %v470
        %v534 = vpack.c.b16 %v473, %v472
        %v535 = vpack.c.b16 %v475, %v474
        %v536 = vpack.c.b16 %v477, %v476
        %v537 = vpack.c.b16 %v479, %v478
        %v538 = vpack.c.b16 %v481, %v480
        %v539 = vpack.c.b16 %v483, %v482
        %v540 = vpack.c.b16 %v485, %v484
        %v541 = vpack.c.b16 %v487, %v486
        %v542 = vpack.c.b16 %v489, %v488
        %v543 = vpack.c.b16 %v491, %v490
        %v544 = vpack.c.b16 %v493, %v492
        %v545 = vpack.c.b16 %v495, %v494
        %v546 = vpack.c.b16 %v497, %v496
        %v547 = vpack.c.b16 %v499, %v498
        %v548 = vpack.c.b16 %v501, %v500
        %v549 = vpack.c.b16 %v503, %v502
        %v550 = vpack.c.b16 %v505, %v504
        %v551 = vpack.c.b16 %v507, %v506
        %v552 = vpack.c.b16 %v509, %v508
        %v553 = vpack.c.b16 %v511, %v510
        %v554 = vpack.c.b16 %v513, %v512
        %v555 = vpack.c.b16 %v515, %v514
        %v556 = vpack.c.b16 %v517, %v516
        %v557 = vpack.c.b16 %v519, %v518
        %v558 = vpack.c.b16 %v521, %v520
        %v559 = vpack.c.b16 %v523, %v522
        %v560 = vpack.c.b16 %v525, %v524
        %v561 = vpack.c.b16 %v527, %v526
        %v562 = vpack.c.b16 %v529, %v528
        %v563 = vpack.c.b16 %v531, %v530
        %596 = vmatpush.bf16.msra.mxu0 %v539
        %597 = vmatpush.bf16.msra.mxu0 %v538
        %598 = vmatpush.bf16.msra.mxu0 %v537
        %599 = vmatpush.bf16.msra.mxu0 %v536
        %600 = vmatpush.bf16.msra.mxu0 %v535
        %601 = vmatpush.bf16.msra.mxu0 %v534
        %602 = vmatpush.bf16.msra.mxu0 %v533
        %603 = vmatpush.bf16.msra.mxu0 %v532
        %604 = vmatmul.bf16.gmra.mxu0 %v356
        %v605 = vpop.f32.mrf.mxu0
        %v606 = vadd.f32 %v288, %v605
        %v607 = vpop.f32.mrf.mxu0
        %v608 = vadd.f32 %v288, %v607
        %609 = vmatmul.bf16.gmra.mxu0 %v360
        %v610 = vpop.f32.mrf.mxu0
        %v611 = vadd.f32 %v288, %v610
        %v612 = vpop.f32.mrf.mxu0
        %v613 = vadd.f32 %v288, %v612
        %614 = vmatmul.bf16.gmra.mxu0 %v364
        %v615 = vpop.f32.mrf.mxu0
        %v616 = vadd.f32 %v288, %v615
        %v617 = vpop.f32.mrf.mxu0
        %v618 = vadd.f32 %v288, %v617
        %619 = vmatmul.bf16.gmra.mxu0 %v368
        %v620 = vpop.f32.mrf.mxu0
        %v621 = vadd.f32 %v288, %v620
        %v622 = vpop.f32.mrf.mxu0
        %v623 = vadd.f32 %v288, %v622
        %624 = vmatmul.bf16.gmra.mxu0 %v372
        %v625 = vpop.f32.mrf.mxu0
        %v626 = vadd.f32 %v288, %v625
        %v627 = vpop.f32.mrf.mxu0
        %v628 = vadd.f32 %v288, %v627
        %629 = vmatmul.bf16.gmra.mxu0 %v376
        %v630 = vpop.f32.mrf.mxu0
        %v631 = vadd.f32 %v288, %v630
        %v632 = vpop.f32.mrf.mxu0
        %633 = vdwg.mxu0
        %634 = vmatpush.bf16.msra.mxu0 %v547
        %635 = vmatpush.bf16.msra.mxu0 %v546
        %636 = vmatpush.bf16.msra.mxu0 %v545
        %637 = vmatpush.bf16.msra.mxu0 %v544
        %638 = vmatpush.bf16.msra.mxu0 %v543
        %639 = vmatpush.bf16.msra.mxu0 %v542
        %640 = vmatpush.bf16.msra.mxu0 %v541
        %641 = vmatpush.bf16.msra.mxu0 %v540
        %642 = vmatmul.bf16.gmra.mxu0 %v357
        %v643 = vpop.f32.mrf.mxu0
        %v644 = vadd.f32 %v606, %v643
        %v645 = vpop.f32.mrf.mxu0
        %v646 = vadd.f32 %v608, %v645
        %647 = vmatmul.bf16.gmra.mxu0 %v361
        %v648 = vpop.f32.mrf.mxu0
        %v649 = vadd.f32 %v611, %v648
        %v650 = vpop.f32.mrf.mxu0
        %v651 = vadd.f32 %v613, %v650
        %652 = vmatmul.bf16.gmra.mxu0 %v365
        %v653 = vpop.f32.mrf.mxu0
        %v654 = vadd.f32 %v616, %v653
        %v655 = vpop.f32.mrf.mxu0
        %v656 = vadd.f32 %v618, %v655
        %657 = vmatmul.bf16.gmra.mxu0 %v369
        %v658 = vpop.f32.mrf.mxu0
        %v659 = vadd.f32 %v621, %v658
        %v660 = vpop.f32.mrf.mxu0
        %v661 = vadd.f32 %v623, %v660
        %662 = vmatmul.bf16.gmra.mxu0 %v373
        %v663 = vpop.f32.mrf.mxu0
        %v664 = vadd.f32 %v626, %v663
        %v665 = vpop.f32.mrf.mxu0
        %v666 = vadd.f32 %v628, %v665
        %667 = vmatmul.bf16.gmra.mxu0 %v377
        %v668 = vpop.f32.mrf.mxu0
        %v669 = vadd.f32 %v631, %v668
        %v670 = vpop.f32.mrf.mxu0
        %671 = vdwg.mxu0
        %672 = vmatpush.bf16.msra.mxu0 %v555
        %673 = vmatpush.bf16.msra.mxu0 %v554
        %674 = vmatpush.bf16.msra.mxu0 %v553
        %675 = vmatpush.bf16.msra.mxu0 %v552
        %676 = vmatpush.bf16.msra.mxu0 %v551
        %677 = vmatpush.bf16.msra.mxu0 %v550
        %678 = vmatpush.bf16.msra.mxu0 %v549
        %679 = vmatpush.bf16.msra.mxu0 %v548
        %680 = vmatmul.bf16.gmra.mxu0 %v358
        %v681 = vpop.f32.mrf.mxu0
        %v682 = vadd.f32 %v644, %v681
        %v683 = vpop.f32.mrf.mxu0
        %v684 = vadd.f32 %v646, %v683
        %685 = vmatmul.bf16.gmra.mxu0 %v362
        %v686 = vpop.f32.mrf.mxu0
        %v687 = vadd.f32 %v649, %v686
        %v688 = vpop.f32.mrf.mxu0
        %v689 = vadd.f32 %v651, %v688
        %690 = vmatmul.bf16.gmra.mxu0 %v366
        %v691 = vpop.f32.mrf.mxu0
        %v692 = vadd.f32 %v654, %v691
        %v693 = vpop.f32.mrf.mxu0
        %v694 = vadd.f32 %v656, %v693
        %695 = vmatmul.bf16.gmra.mxu0 %v370
        %v696 = vpop.f32.mrf.mxu0
        %v697 = vadd.f32 %v659, %v696
        %v698 = vpop.f32.mrf.mxu0
        %v699 = vadd.f32 %v661, %v698
        %700 = vmatmul.bf16.gmra.mxu0 %v374
        %v701 = vpop.f32.mrf.mxu0
        %v702 = vadd.f32 %v664, %v701
        %v703 = vpop.f32.mrf.mxu0
        %v704 = vadd.f32 %v666, %v703
        %705 = vmatmul.bf16.gmra.mxu0 %v378
        %v706 = vpop.f32.mrf.mxu0
        %v707 = vadd.f32 %v669, %v706
        %v708 = vpop.f32.mrf.mxu0
        %709 = vdwg.mxu0
        %710 = vmatpush.bf16.msra.mxu0 %v563
        %711 = vmatpush.bf16.msra.mxu0 %v562
        %712 = vmatpush.bf16.msra.mxu0 %v561
        %713 = vmatpush.bf16.msra.mxu0 %v560
        %714 = vmatpush.bf16.msra.mxu0 %v559
        %715 = vmatpush.bf16.msra.mxu0 %v558
        %716 = vmatpush.bf16.msra.mxu0 %v557
        %717 = vmatpush.bf16.msra.mxu0 %v556
        %718 = vmatmul.bf16.gmra.mxu0 %v359
        %v719 = vpop.f32.mrf.mxu0
        %v720 = vadd.f32 %v682, %v719
        %v721 = vpop.f32.mrf.mxu0
        %v722 = vadd.f32 %v684, %v721
        %723 = vmatmul.bf16.gmra.mxu0 %v363
        %v724 = vpop.f32.mrf.mxu0
        %v725 = vadd.f32 %v687, %v724
        %v726 = vpop.f32.mrf.mxu0
        %v727 = vadd.f32 %v689, %v726
        %728 = vmatmul.bf16.gmra.mxu0 %v367
        %v729 = vpop.f32.mrf.mxu0
        %v730 = vadd.f32 %v692, %v729
        %v731 = vpop.f32.mrf.mxu0
        %v732 = vadd.f32 %v694, %v731
        %733 = vmatmul.bf16.gmra.mxu0 %v371
        %v734 = vpop.f32.mrf.mxu0
        %v735 = vadd.f32 %v697, %v734
        %v736 = vpop.f32.mrf.mxu0
        %v737 = vadd.f32 %v699, %v736
        %738 = vmatmul.bf16.gmra.mxu0 %v375
        %v739 = vpop.f32.mrf.mxu0
        %v740 = vadd.f32 %v702, %v739
        %v741 = vpop.f32.mrf.mxu0
        %v742 = vadd.f32 %v704, %v741
        %743 = vmatmul.bf16.gmra.mxu0 %v379
        %v744 = vpop.f32.mrf.mxu0
        %v745 = vadd.f32 %v707, %v744
        %v746 = vpop.f32.mrf.mxu0
        %747 = vdwg.mxu0
        %v748 = vmax.f32 %v720, 0.0
        %v749 = vmax.f32 %v722, 0.0
        %v750 = vmax.f32 %v725, 0.0
        %v751 = vmax.f32 %v727, 0.0
        %v752 = vmax.f32 %v730, 0.0
        %v753 = vmax.f32 %v732, 0.0
        %v754 = vmax.f32 %v735, 0.0
        %v755 = vmax.f32 %v737, 0.0
        %v756 = vmax.f32 %v740, 0.0
        %v757 = vmax.f32 %v742, 0.0
        %v758 = vmax.f32 %v745, 0.0
        %v759 = vpack.c.bf16 %v748, %v748
        %v760 = vpack.c.bf16 %v749, %v749
        %v761 = vpack.c.bf16 %v750, %v750
        %v762 = vpack.c.bf16 %v751, %v751
        %v763 = vpack.c.bf16 %v752, %v752
        %v764 = vpack.c.bf16 %v753, %v753
        %v765 = vpack.c.bf16 %v754, %v754
        %v766 = vpack.c.bf16 %v755, %v755
        %v767 = vpack.c.bf16 %v756, %v756
        %v768 = vpack.c.bf16 %v757, %v757
        %v769 = vpack.c.bf16 %v758, %v758
        %vm770 = vcmask 519168
        %771 = vst.msk [vmem:[%s177] sm:$0xf] %vm770, %v759
        %772 = vst.msk [vmem:[%s177 + $0x4] sm:$0xf] %vm770, %v760
        %773 = vst.msk [vmem:[%s177 + $0x8] sm:$0xf] %vm770, %v761
        %774 = vst.msk [vmem:[%s177 + $0xc] sm:$0xf] %vm770, %v762
        %775 = vst.msk [vmem:[%s177 + $0x10] sm:$0xf] %vm770, %v763
        %776 = vst.msk [vmem:[%s177 + $0x14] sm:$0xf] %vm770, %v764
        %777 = vst.msk [vmem:[%s177 + $0x18] sm:$0xf] %vm770, %v765
        %778 = vst.msk [vmem:[%s177 + $0x1c] sm:$0xf] %vm770, %v766
        %779 = vst.msk [vmem:[%s177 + $0x20] sm:$0xf] %vm770, %v767
        %780 = vst.msk [vmem:[%s177 + $0x24] sm:$0xf] %vm770, %v768
        %781 = vst.msk [vmem:[%s177 + $0x28] sm:$0xf] %vm770, %v769
        %s782 = sand.u32 %s90, 1
        %s783 = sand.u32 %s90, 1
        %s784 = smul.addr %s783, 44
        %s785 = scalar_lea.vmem [#allocation2], %s784
        // Predicated region
        $region33: #{nature_cnn_forward.5} parent=31 // pred_check
          %p786 = pneg %p100
        $region34: #{nature_cnn_forward.5} parent=31 // pred_check_branch
          %788 = sbr.rel (%p786) target = $region36
        $region35: #{nature_cnn_forward.5} parent=31 // pred_region
          %s789 = smul.u32 11, %s14
          %s790 = ssub.s32 21, %s789
          %p791 = scmp.lt.s32.totalorder %s790, 11
          %s792 = scalar_select %p791, %s790, 11
          %s793 = smul.u32 4, %s792
          %p794 = scmp.ne.s32.totalorder 0, %s793
          %s795 = smul.addr %s789, 4
          %s796 = scalar_lea.vmem %s3, %s795
          // Predicated region
          $region37: #{nature_cnn_forward.5} parent=35 // pred_check
            %p797 = pneg %p794
          $region38: #{nature_cnn_forward.5} parent=35 // pred_check_branch
            %799 = sbr.rel (%p797) target = $region40
          $region39: #{nature_cnn_forward.5} parent=35 // pred_region
            // Predicated region
            $region41: #{nature_cnn_forward.5} parent=39 // pred_check
              _
            $region42: #{nature_cnn_forward.5} parent=39 // pred_check_branch
              %801 = sbr.rel target = $region44
            $region43: #{nature_cnn_forward.5} parent=39 // pred_region
              // Predicated region
              $region63: #{nature_cnn_forward.5} parent=43 // pred_check
                _
              $region64: #{nature_cnn_forward.5} parent=43 // pred_check_branch
                %872 = sbr.rel (0) target = $region66
              $region65: #{nature_cnn_forward.5} parent=43 // pred_region
                %s874 = ssub.s32 16, 1
                %s875 = sdiv.u32.pop %s792, 11
                %s876 = srem.u32.pop %s792, 11
                // While loop
                $region67: #{nature_cnn_forward.5} parent=65 // loop_pre_header
                  _
                $region68: #{nature_cnn_forward.5} parent=65 // loop_header
                  %s878 = sphi 0, %s880
                  %p879 = scmp.ge.s32.totalorder %s878, %s875
                  %s883 = sphi 0, %s910
                  %s884 = sphi %s785, %s913
                  %s885 = sphi %s796, %s914
                $region69: #{nature_cnn_forward.5} parent=65 // loop_header_branch
                  %882 = sbr.rel (%p879) target = $region73
                $region70: #{nature_cnn_forward.5} parent=65 // loop_body
                  %v886 = vld [vmem:[%s884] sm:%s874]
                  %887 = vst [vmem:[%s885] sm:%s874] %v886
                  %v888 = vld [vmem:[%s884 + $0x4] sm:%s874]
                  %889 = vst [vmem:[%s885 + $0x4] sm:%s874] %v888
                  %v890 = vld [vmem:[%s884 + $0x8] sm:%s874]
                  %891 = vst [vmem:[%s885 + $0x8] sm:%s874] %v890
                  %v892 = vld [vmem:[%s884 + $0xc] sm:%s874]
                  %893 = vst [vmem:[%s885 + $0xc] sm:%s874] %v892
                  %v894 = vld [vmem:[%s884 + $0x10] sm:%s874]
                  %895 = vst [vmem:[%s885 + $0x10] sm:%s874] %v894
                  %v896 = vld [vmem:[%s884 + $0x14] sm:%s874]
                  %897 = vst [vmem:[%s885 + $0x14] sm:%s874] %v896
                  %v898 = vld [vmem:[%s884 + $0x18] sm:%s874]
                  %899 = vst [vmem:[%s885 + $0x18] sm:%s874] %v898
                  %v900 = vld [vmem:[%s884 + $0x1c] sm:%s874]
                  %901 = vst [vmem:[%s885 + $0x1c] sm:%s874] %v900
                  %v902 = vld [vmem:[%s884 + $0x20] sm:%s874]
                  %903 = vst [vmem:[%s885 + $0x20] sm:%s874] %v902
                  %v904 = vld [vmem:[%s884 + $0x24] sm:%s874]
                  %905 = vst [vmem:[%s885 + $0x24] sm:%s874] %v904
                  %v906 = vld [vmem:[%s884 + $0x28] sm:%s874]
                  %907 = vst [vmem:[%s885 + $0x28] sm:%s874] %v906
                  %s908 = sadd.s32 1, %s883
                  %p909 = scmp.ge.s32.totalorder %s908, %s875
                  %s910 = scalar_select %p909, 0, %s908
                  %s911 = smul.u32 %s910, 44
                  %s912 = smul.u32 %s910, 44
                  %s913 = scalar_lea.vmem %s785, %s911 [#allocation2]
                  %s914 = scalar_lea.vmem %s796, %s912
                $region71: #{nature_cnn_forward.5} parent=65 // loop_footer
                  %s880 = sadd.s32 %s878, 1
                $region72: #{nature_cnn_forward.5} parent=65 // loop_footer_branch
                  %877 = sbr.rel target = $region68
                $region73: #{nature_cnn_forward.5} parent=65 // loop_exit
                  _
                %s915 = sdiv.u32.pop %s792, 11
                %s916 = srem.u32.pop %s792, 11
                %s917 = smul.u32 %s915, 11
                %s918 = smul.u32 4, %s917
                %s919 = scalar_lea.vmem %s785, %s918 [#allocation2]
                %s920 = smul.u32 4, %s917
                %s921 = scalar_lea.vmem %s796, %s920
                // While loop
                $region74: #{nature_cnn_forward.5} parent=65 // loop_pre_header
                  _
                $region75: #{nature_cnn_forward.5} parent=65 // loop_header
                  %s923 = sphi 0, %s925
                  %p924 = scmp.ge.s32.totalorder %s923, %s916
                  %s928 = sphi 0, %s935
                  %s929 = sphi %s919, %s938
                  %s930 = sphi %s921, %s939
                $region76: #{nature_cnn_forward.5} parent=65 // loop_header_branch
                  %927 = sbr.rel (%p924) target = $region80
                $region77: #{nature_cnn_forward.5} parent=65 // loop_body
                  %v931 = vld [vmem:[%s929] sm:%s874]
                  %932 = vst [vmem:[%s930] sm:%s874] %v931
                  %s933 = sadd.s32 1, %s928
                  %p934 = scmp.ge.s32.totalorder %s933, %s916
                  %s935 = scalar_select %p934, 0, %s933
                  %s936 = smul.u32 %s935, 4
                  %s937 = smul.u32 %s935, 4
                  %s938 = scalar_lea.vmem %s919, %s936 [#allocation2]
                  %s939 = scalar_lea.vmem %s921, %s937
                $region78: #{nature_cnn_forward.5} parent=65 // loop_footer
                  %s925 = sadd.s32 %s923, 1
                $region79: #{nature_cnn_forward.5} parent=65 // loop_footer_branch
                  %922 = sbr.rel target = $region75
                $region80: #{nature_cnn_forward.5} parent=65 // loop_exit
                  _
              $region66: #{nature_cnn_forward.5} parent=43 // pred_fallthru
                _
            $region44: #{nature_cnn_forward.5} parent=39 // pred_fallthru
              _
            // Predicated region
            $region45: #{nature_cnn_forward.5} parent=39 // pred_check
              _
            $region46: #{nature_cnn_forward.5} parent=39 // pred_check_branch
              %803 = sbr.rel (0) target = $region48
            $region47: #{nature_cnn_forward.5} parent=39 // pred_region
              %s805 = ssub.s32 16, 1
              %s806 = sdiv.u32.pop %s792, 11
              %s807 = srem.u32.pop %s792, 11
              // While loop
              $region49: #{nature_cnn_forward.5} parent=47 // loop_pre_header
                _
              $region50: #{nature_cnn_forward.5} parent=47 // loop_header
                %s809 = sphi 0, %s811
                %p810 = scmp.ge.s32.totalorder %s809, %s806
                %s814 = sphi 0, %s841
                %s815 = sphi %s785, %s844
                %s816 = sphi %s796, %s845
              $region51: #{nature_cnn_forward.5} parent=47 // loop_header_branch
                %813 = sbr.rel (%p810) target = $region55
              $region52: #{nature_cnn_forward.5} parent=47 // loop_body
                %v817 = vld [vmem:[%s815] sm:%s805]
                %818 = vst [vmem:[%s816] sm:%s805] %v817
                %v819 = vld [vmem:[%s815 + $0x4] sm:%s805]
                %820 = vst [vmem:[%s816 + $0x4] sm:%s805] %v819
                %v821 = vld [vmem:[%s815 + $0x8] sm:%s805]
                %822 = vst [vmem:[%s816 + $0x8] sm:%s805] %v821
                %v823 = vld [vmem:[%s815 + $0xc] sm:%s805]
                %824 = vst [vmem:[%s816 + $0xc] sm:%s805] %v823
                %v825 = vld [vmem:[%s815 + $0x10] sm:%s805]
                %826 = vst [vmem:[%s816 + $0x10] sm:%s805] %v825
                %v827 = vld [vmem:[%s815 + $0x14] sm:%s805]
                %828 = vst [vmem:[%s816 + $0x14] sm:%s805] %v827
                %v829 = vld [vmem:[%s815 + $0x18] sm:%s805]
                %830 = vst [vmem:[%s816 + $0x18] sm:%s805] %v829
                %v831 = vld [vmem:[%s815 + $0x1c] sm:%s805]
                %832 = vst [vmem:[%s816 + $0x1c] sm:%s805] %v831
                %v833 = vld [vmem:[%s815 + $0x20] sm:%s805]
                %834 = vst [vmem:[%s816 + $0x20] sm:%s805] %v833
                %v835 = vld [vmem:[%s815 + $0x24] sm:%s805]
                %836 = vst [vmem:[%s816 + $0x24] sm:%s805] %v835
                %v837 = vld [vmem:[%s815 + $0x28] sm:%s805]
                %838 = vst [vmem:[%s816 + $0x28] sm:%s805] %v837
                %s839 = sadd.s32 1, %s814
                %p840 = scmp.ge.s32.totalorder %s839, %s806
                %s841 = scalar_select %p840, 0, %s839
                %s842 = smul.u32 %s841, 44
                %s843 = smul.u32 %s841, 44
                %s844 = scalar_lea.vmem %s785, %s842 [#allocation2]
                %s845 = scalar_lea.vmem %s796, %s843
              $region53: #{nature_cnn_forward.5} parent=47 // loop_footer
                %s811 = sadd.s32 %s809, 1
              $region54: #{nature_cnn_forward.5} parent=47 // loop_footer_branch
                %808 = sbr.rel target = $region50
              $region55: #{nature_cnn_forward.5} parent=47 // loop_exit
                _
              %s846 = sdiv.u32.pop %s792, 11
              %s847 = srem.u32.pop %s792, 11
              %s848 = smul.u32 %s846, 11
              %s849 = smul.u32 4, %s848
              %s850 = scalar_lea.vmem %s785, %s849 [#allocation2]
              %s851 = smul.u32 4, %s848
              %s852 = scalar_lea.vmem %s796, %s851
              // While loop
              $region56: #{nature_cnn_forward.5} parent=47 // loop_pre_header
                _
              $region57: #{nature_cnn_forward.5} parent=47 // loop_header
                %s854 = sphi 0, %s856
                %p855 = scmp.ge.s32.totalorder %s854, %s847
                %s859 = sphi 0, %s866
                %s860 = sphi %s850, %s869
                %s861 = sphi %s852, %s870
              $region58: #{nature_cnn_forward.5} parent=47 // loop_header_branch
                %858 = sbr.rel (%p855) target = $region62
              $region59: #{nature_cnn_forward.5} parent=47 // loop_body
                %v862 = vld [vmem:[%s860] sm:%s805]
                %863 = vst [vmem:[%s861] sm:%s805] %v862
                %s864 = sadd.s32 1, %s859
                %p865 = scmp.ge.s32.totalorder %s864, %s847
                %s866 = scalar_select %p865, 0, %s864
                %s867 = smul.u32 %s866, 4
                %s868 = smul.u32 %s866, 4
                %s869 = scalar_lea.vmem %s850, %s867 [#allocation2]
                %s870 = scalar_lea.vmem %s852, %s868
              $region60: #{nature_cnn_forward.5} parent=47 // loop_footer
                %s856 = sadd.s32 %s854, 1
              $region61: #{nature_cnn_forward.5} parent=47 // loop_footer_branch
                %853 = sbr.rel target = $region57
              $region62: #{nature_cnn_forward.5} parent=47 // loop_exit
                _
            $region48: #{nature_cnn_forward.5} parent=39 // pred_fallthru
              _
          $region40: #{nature_cnn_forward.5} parent=35 // pred_fallthru
            _
          %940 = vnop
        $region36: #{nature_cnn_forward.5} parent=31 // pred_fallthru
          _
      $region32: #{nature_cnn_forward.5} parent=5 // pred_fallthru
        _
      %p941 = scmp.le.s32.totalorder 2, %s9
      // Predicated region
      $region81: #{nature_cnn_forward.5} parent=5 // pred_check
        %p942 = pneg %p941
      $region82: #{nature_cnn_forward.5} parent=5 // pred_check_branch
        %944 = sbr.rel (%p942) target = $region84
      $region83: #{nature_cnn_forward.5} parent=5 // pred_region
        %s945 = ssub.s32 %s9, 2
        // Predicated region
        $region85: #{nature_cnn_forward.5} parent=83 // pred_check
          %p946 = pneg %p106
        $region86: #{nature_cnn_forward.5} parent=83 // pred_check_branch
          %948 = sbr.rel (%p946) target = $region88
        $region87: #{nature_cnn_forward.5} parent=83 // pred_region
          %s949 = sand.u32 %s91, 1
          %s950 = sand.u32 %s91, 1
          %s951 = smul.addr %s950, 44
          %s952 = scalar_lea.vmem [#allocation2], %s951
        $region88: #{nature_cnn_forward.5} parent=83 // pred_fallthru
          _
      $region84: #{nature_cnn_forward.5} parent=5 // pred_fallthru
        _
    $region6: #{nature_cnn_forward.5} parent=1 // loop_footer
      %s13 = sadd.s32 1, %s9
    $region7: #{nature_cnn_forward.5} parent=1 // loop_footer_branch
      %8 = sbr.rel target = $region3
    $region8: #{nature_cnn_forward.5} parent=1 // loop_exit
      _

// kernel: nature_cnn_forward.6
$region0: #{nature_cnn_forward.6}
  #allocation0 [shape = 'u32[]', space=smem, size = 0x4, offset = 0x4, fixed_abs, tag = 'smem constant byte address 0x4 - core index']
  #allocation1 [shape = 'u32[72,128]{1,0:T(1,128)}', space=vmem, size = 0x9000, scoped, tag = 'internal scratch']
  %s0 = inlined_call_operand.vmem [shape: bf16[98,576], index: 0, kind: input, shape index: {}]
  %s1 = inlined_call_operand.vmem [shape: bf16[576,64], index: 1, kind: input, shape index: {}]
  %s2 = inlined_call_operand.vmem [shape: f32[1,64], index: 2, kind: input, shape index: {}]
  %s3 = inlined_call_operand.vmem [shape: bf16[98,64], index: 3, kind: output, shape index: {}]
  %s4 = sld [smem:[#allocation0]]
  $region89: #{nature_cnn_forward.6} parent=0
    _
  %s6 = ssub.s32 1, %s4
  %s7 = scalar_select 0, %s6, %s4
  $region1: #{nature_cnn_forward.6} parent=0
    #allocation2 [shape = 'u8[28672]{0}', space=vmem, size = 0x7000, scoped, tag = 'output window, operand 0']
    loop: start=0, step=1, limit=4
    $region2: #{nature_cnn_forward.6} parent=1 // loop_pre_header
      _
    $region3: #{nature_cnn_forward.6} parent=1 // loop_header
      %s9 = sphi 0, %s13
      %p10 = scmp.ge.s32.totalorder %s9, 4
      %s19 = sphi 0, %s21
      %s22 = sphi 0, %s19
      %s23 = sphi 0, %s22
      %s39 = sphi 0, %s23
      %s43 = sphi 0, %s43
      %s45 = sphi 0, %s43
      %s46 = sphi 0, %s45
      %s60 = sphi 0, %s46
      %s64 = sphi 0, %s64
      %s66 = sphi 0, %s64
      %s67 = sphi 0, %s66
      %s81 = sphi 0, %s67
      %s87 = sphi 0, %s89
      %s90 = sphi 0, %s87
      %s91 = sphi 0, %s90
      %s107 = sphi 0, %s91
    $region4: #{nature_cnn_forward.6} parent=1 // loop_header_branch
      %12 = sbr.rel (%p10) target = $region8
    $region5: #{nature_cnn_forward.6} parent=1 // loop_body
      %s14 = ssub.s32 %s9, 1
      %s15 = ssub.s32 %s9, 2
      %s16 = sadd.s32 %s9, 1
      %s17 = ssub.s32 %s9, %s16
      %p18 = scmp.eq.s32.totalorder %s17, 0
      %s20 = sadd.s32 %s19, 1
      %s21 = scalar_select %p18, %s19, %s20
      %p24 = pneg %p18
      %p25 = scmp.eq.s32.totalorder %s9, 1
      %p26 = por %p24, %p25
      %p27 = scmp.ne.s32.totalorder %s19, %s22
      %p28 = scmp.eq.s32.totalorder %s9, 0
      %p29 = por %p27, %p28
      %p30 = scmp.ne.s32.totalorder %s19, %s22
      %p31 = scmp.eq.s32.totalorder %s14, 1
      %p32 = por %p30, %p31
      %p33 = scmp.ne.s32.totalorder %s22, %s23
      %p34 = scmp.eq.s32.totalorder %s14, 0
      %p35 = por %p33, %p34
      %p36 = scmp.ne.s32.totalorder %s22, %s23
      %p37 = scmp.eq.s32.totalorder %s15, 1
      %p38 = por %p36, %p37
      %p40 = scmp.ne.s32.totalorder %s23, %s39
      %p41 = scmp.eq.s32.totalorder %s15, 0
      %p42 = por %p40, %p41
      %s44 = sadd.s32 %s43, 1
      %p47 = scmp.eq.s32.totalorder %s9, 1
      %p48 = scmp.ne.s32.totalorder %s43, %s45
      %p49 = scmp.eq.s32.totalorder %s9, 0
      %p50 = por %p48, %p49
      %p51 = scmp.ne.s32.totalorder %s43, %s45
      %p52 = scmp.eq.s32.totalorder %s14, 1
      %p53 = por %p51, %p52
      %p54 = scmp.ne.s32.totalorder %s45, %s46
      %p55 = scmp.eq.s32.totalorder %s14, 0
      %p56 = por %p54, %p55
      %p57 = scmp.ne.s32.totalorder %s45, %s46
      %p58 = scmp.eq.s32.totalorder %s15, 1
      %p59 = por %p57, %p58
      %p61 = scmp.ne.s32.totalorder %s46, %s60
      %p62 = scmp.eq.s32.totalorder %s15, 0
      %p63 = por %p61, %p62
      %s65 = sadd.s32 %s64, 1
      %p68 = scmp.eq.s32.totalorder %s9, 1
      %p69 = scmp.ne.s32.totalorder %s64, %s66
      %p70 = scmp.eq.s32.totalorder %s9, 0
      %p71 = por %p69, %p70
      %p72 = scmp.ne.s32.totalorder %s64, %s66
      %p73 = scmp.eq.s32.totalorder %s14, 1
      %p74 = por %p72, %p73
      %p75 = scmp.ne.s32.totalorder %s66, %s67
      %p76 = scmp.eq.s32.totalorder %s14, 0
      %p77 = por %p75, %p76
      %p78 = scmp.ne.s32.totalorder %s66, %s67
      %p79 = scmp.eq.s32.totalorder %s15, 1
      %p80 = por %p78, %p79
      %p82 = scmp.ne.s32.totalorder %s67, %s81
      %p83 = scmp.eq.s32.totalorder %s15, 0
      %p84 = por %p82, %p83
      %s85 = ssub.s32 %s9, %s16
      %p86 = scmp.eq.s32.totalorder %s85, 0
      %s88 = sadd.s32 %s87, 1
      %s89 = scalar_select %p86, %s87, %s88
      %p92 = pneg %p86
      %p93 = scmp.eq.s32.totalorder %s9, 1
      %p94 = por %p92, %p93
      %p95 = scmp.ne.s32.totalorder %s87, %s90
      %p96 = scmp.eq.s32.totalorder %s9, 0
      %p97 = por %p95, %p96
      %p98 = scmp.ne.s32.totalorder %s87, %s90
      %p99 = scmp.eq.s32.totalorder %s14, 1
      %p100 = por %p98, %p99
      %p101 = scmp.ne.s32.totalorder %s90, %s91
      %p102 = scmp.eq.s32.totalorder %s14, 0
      %p103 = por %p101, %p102
      %p104 = scmp.ne.s32.totalorder %s90, %s91
      %p105 = scmp.eq.s32.totalorder %s15, 1
      %p106 = por %p104, %p105
      %p108 = scmp.ne.s32.totalorder %s91, %s107
      %p109 = scmp.eq.s32.totalorder %s15, 0
      %p110 = por %p108, %p109
      %p111 = scmp.le.s32.totalorder 1, %s9
      %p112 = scmp.lt.s32.totalorder %s9, 3
      %p113 = pnand %p111, %p112
      %p114 = pneg %p113
      // Predicated region
      $region9: #{nature_cnn_forward.6} parent=5 // pred_check
        _
      $region10: #{nature_cnn_forward.6} parent=5 // pred_check_branch
        %116 = sbr.rel (%p113) target = $region12
      $region11: #{nature_cnn_forward.6} parent=5 // pred_region
        %s117 = ssub.s32 %s9, 1
        // Predicated region
        $region13: #{nature_cnn_forward.6} parent=11 // pred_check
          %p118 = pneg %p56
        $region14: #{nature_cnn_forward.6} parent=11 // pred_check_branch
          %120 = sbr.rel (%p118) target = $region16
        $region15: #{nature_cnn_forward.6} parent=11 // pred_region
          _
        $region16: #{nature_cnn_forward.6} parent=11 // pred_fallthru
          _
        // Predicated region
        $region17: #{nature_cnn_forward.6} parent=11 // pred_check
          %p121 = pneg %p77
        $region18: #{nature_cnn_forward.6} parent=11 // pred_check_branch
          %123 = sbr.rel (%p121) target = $region20
        $region19: #{nature_cnn_forward.6} parent=11 // pred_region
          _
        $region20: #{nature_cnn_forward.6} parent=11 // pred_fallthru
          _
      $region12: #{nature_cnn_forward.6} parent=5 // pred_fallthru
        _
      %p124 = scmp.lt.s32.totalorder %s9, 2
      // Predicated region
      $region21: #{nature_cnn_forward.6} parent=5 // pred_check
        %p125 = pneg %p124
      $region22: #{nature_cnn_forward.6} parent=5 // pred_check_branch
        %127 = sbr.rel (%p125) target = $region24
      $region23: #{nature_cnn_forward.6} parent=5 // pred_region
        // Predicated region
        $region25: #{nature_cnn_forward.6} parent=23 // pred_check
          %p128 = pneg %p29
        $region26: #{nature_cnn_forward.6} parent=23 // pred_check_branch
          %130 = sbr.rel (%p128) target = $region28
        $region27: #{nature_cnn_forward.6} parent=23 // pred_region
          %s131 = smul.u32 7, %s9
          %s132 = ssub.s32 13, %s131
          %p133 = scmp.lt.s32.totalorder %s132, 7
          %s134 = scalar_select %p133, %s132, 7
          %s135 = smul.u32 4, %s134
          %s136 = smul.u32 %s135, 5
          %p137 = scmp.lt.s32.totalorder %s131, 12
          %s138 = scalar_select %p137, %s131, 12
          %s139 = smul.addr %s138, 5
          %s140 = smul.addr %s139, 4
          %s141 = scalar_lea.vmem %s0, %s140
          %s142 = smul.u32 7, %s9
          %s143 = ssub.s32 13, %s142
          %p144 = scmp.lt.s32.totalorder %s143, 7
          %s145 = scalar_select %p144, %s143, 7
          %s146 = smul.u32 4, %s145
          %s147 = smul.u32 %s146, 5
        $region28: #{nature_cnn_forward.6} parent=23 // pred_fallthru
          _
      $region24: #{nature_cnn_forward.6} parent=5 // pred_fallthru
        _
      %p148 = scmp.le.s32.totalorder 1, %s9
      %p149 = scmp.lt.s32.totalorder %s9, 3
      %p150 = pnand %p148, %p149
      %p151 = pneg %p150
      // Predicated region
      $region29: #{nature_cnn_forward.6} parent=5 // pred_check
        _
      $region30: #{nature_cnn_forward.6} parent=5 // pred_check_branch
        %153 = sbr.rel (%p150) target = $region32
      $region31: #{nature_cnn_forward.6} parent=5 // pred_region
        %s154 = ssub.s32 %s9, 1
        %s155 = smul.u32 7, %s14
        %s156 = ssub.s32 13, %s155
        %p157 = scmp.lt.s32.totalorder %s156, 7
        %s158 = scalar_select %p157, %s156, 7
        %s159 = smul.u32 4, %s158
        %s160 = smul.u32 %s159, 5
        %p161 = scmp.lt.s32.totalorder %s155, 12
        %s162 = scalar_select %p161, %s155, 12
        %s163 = smul.addr %s162, 5
        %s164 = smul.addr %s163, 4
        %s165 = scalar_lea.vmem %s0, %s164
        %p166 = pneg %p35
        %p167 = pneg %p32
        %p168 = pneg %p56
        %p169 = pneg %p53
        %p170 = pneg %p77
        %p171 = pneg %p74
        %p172 = pneg %p103
        %p173 = pneg %p100
        %s174 = sand.u32 %s90, 1
        %s175 = sand.u32 %s90, 1
        %s176 = smul.addr %s175, 28
        %s177 = scalar_lea.vmem [#allocation2], %s176
        %s178 = smul.u32 7, %s14
        %s179 = ssub.s32 13, %s178
        %p180 = scmp.lt.s32.totalorder %s179, 7
        %s181 = scalar_select %p180, %s179, 7
        %s182 = smul.u32 4, %s181
        %s183 = smul.u32 %s182, 5
        %p184 = scmp.lt.s32.totalorder %s178, 12
        %s185 = scalar_select %p184, %s178, 12
        %s186 = smul.addr %s185, 5
        %s187 = smul.addr %s186, 4
        %s188 = scalar_lea.vmem %s0, %s187
        %s189 = smul.u32 7, %s14
        %s190 = ssub.s32 13, %s189
        %p191 = scmp.lt.s32.totalorder %s190, 7
        %s192 = scalar_select %p191, %s190, 7
        %s193 = smul.u32 4, %s192
        %s194 = smul.u32 %s193, 5
        %s195 = smul.u32 7, %s14
        %s196 = ssub.s32 13, %s195
        %p197 = scmp.lt.s32.totalorder %s196, 7
        %s198 = scalar_select %p197, %s196, 7
        %s199 = smul.u32 4, %s198
        %v201 = vld [vmem:[%s188] sm:$0xff]
        %v202 = vld [vmem:[%s188 + $0x8] sm:$0xff]
        %v203 = vld [vmem:[%s188 + $0x10] sm:$0xf]
        %v204 = vld [vmem:[%s188 + $0x14] sm:$0xff]
        %v205 = vld [vmem:[%s188 + $0x1c] sm:$0xff]
        %v206 = vld [vmem:[%s188 + $0x24] sm:$0xf]
        %v207 = vld [vmem:[%s188 + $0x28] sm:$0xff]
        %v208 = vld [vmem:[%s188 + $0x30] sm:$0xff]
        %v209 = vld [vmem:[%s188 + $0x38] sm:$0xf]
        %v210 = vld [vmem:[%s188 + $0x3c] sm:$0xff]
        %v211 = vld [vmem:[%s188 + $0x44] sm:$0xff]
        %v212 = vld [vmem:[%s188 + $0x4c] sm:$0xf]
        %v213 = vld [vmem:[%s188 + $0x50] sm:$0xff]
        %v214 = vld [vmem:[%s188 + $0x58] sm:$0xff]
        %v215 = vld [vmem:[%s188 + $0x60] sm:$0xf]
        %v216 = vld [vmem:[%s188 + $0x64] sm:$0xff]
        %v217 = vld [vmem:[%s188 + $0x6c] sm:$0xff]
        %v218 = vld [vmem:[%s188 + $0x74] sm:$0xf]
        %v219 = vld [vmem:[%s188 + $0x78] sm:$0xff]
        %v220 = vld [vmem:[%s188 + $0x80] sm:$0xff]
        %v221 = vld [vmem:[%s188 + $0x88] sm:$0xf]
        %v222 = vld [vmem:[%s1] sm:$0xf]
        %v223 = vld [vmem:[%s1 + $0x4] sm:$0xf]
        %v224 = vld [vmem:[%s1 + $0x8] sm:$0xf]
        %v225 = vld [vmem:[%s1 + $0xc] sm:$0xf]
        %v226 = vld [vmem:[%s1 + $0x10] sm:$0xf]
        %v227 = vld [vmem:[%s1 + $0x14] sm:$0xf]
        %v228 = vld [vmem:[%s1 + $0x18] sm:$0xf]
        %v229 = vld [vmem:[%s1 + $0x1c] sm:$0xf]
        %v230 = vld [vmem:[%s1 + $0x20] sm:$0xf]
        %v231 = vld [vmem:[%s1 + $0x24] sm:$0xf]
        %v232 = vld [vmem:[%s1 + $0x28] sm:$0xf]
        %v233 = vld [vmem:[%s1 + $0x2c] sm:$0xf]
        %v234 = vld [vmem:[%s1 + $0x30] sm:$0xf]
        %v235 = vld [vmem:[%s1 + $0x34] sm:$0xf]
        %v236 = vld [vmem:[%s1 + $0x38] sm:$0xf]
        %v237 = vld [vmem:[%s1 + $0x3c] sm:$0xf]
        %v238 = vld [vmem:[%s1 + $0x40] sm:$0xf]
        %v239 = vld [vmem:[%s1 + $0x44] sm:$0xf]
        %v240 = vld [vmem:[%s1 + $0x48] sm:$0xf]
        %v241 = vld [vmem:[%s1 + $0x4c] sm:$0xf]
        %v242 = vld [vmem:[%s1 + $0x50] sm:$0xf]
        %v243 = vld [vmem:[%s1 + $0x54] sm:$0xf]
        %v244 = vld [vmem:[%s1 + $0x58] sm:$0xf]
        %v245 = vld [vmem:[%s1 + $0x5c] sm:$0xf]
        %v246 = vld [vmem:[%s1 + $0x60] sm:$0xf]
        %v247 = vld [vmem:[%s1 + $0x64] sm:$0xf]
        %v248 = vld [vmem:[%s1 + $0x68] sm:$0xf]
        %v249 = vld [vmem:[%s1 + $0x6c] sm:$0xf]
        %v250 = vld [vmem:[%s1 + $0x70] sm:$0xf]
        %v251 = vld [vmem:[%s1 + $0x74] sm:$0xf]
        %v252 = vld [vmem:[%s1 + $0x78] sm:$0xf]
        %v253 = vld [vmem:[%s1 + $0x7c] sm:$0xf]
        %v254 = vld [vmem:[%s1 + $0x80] sm:$0xf]
        %v255 = vld [vmem:[%s1 + $0x84] sm:$0xf]
        %v256 = vld [vmem:[%s1 + $0x88] sm:$0xf]
        %v257 = vld [vmem:[%s1 + $0x8c] sm:$0xf]
        %v258 = vld [vmem:[%s1 + $0x90] sm:$0xf]
        %v259 = vld [vmem:[%s1 + $0x94] sm:$0xf]
        %v260 = vld [vmem:[%s1 + $0x98] sm:$0xf]
        %v261 = vld [vmem:[%s1 + $0x9c] sm:$0xf]
        %v262 = vld [vmem:[%s1 + $0xa0] sm:$0xf]
        %v263 = vld [vmem:[%s1 + $0xa4] sm:$0xf]
        %v264 = vld [vmem:[%s1 + $0xa8] sm:$0xf]
        %v265 = vld [vmem:[%s1 + $0xac] sm:$0xf]
        %v266 = vld [vmem:[%s1 + $0xb0] sm:$0xf]
        %v267 = vld [vmem:[%s1 + $0xb4] sm:$0xf]
        %v268 = vld [vmem:[%s1 + $0xb8] sm:$0xf]
        %v269 = vld [vmem:[%s1 + $0xbc] sm:$0xf]
        %v270 = vld [vmem:[%s1 + $0xc0] sm:$0xf]
        %v271 = vld [vmem:[%s1 + $0xc4] sm:$0xf]
        %v272 = vld [vmem:[%s1 + $0xc8] sm:$0xf]
        %v273 = vld [vmem:[%s1 + $0xcc] sm:$0xf]
        %v274 = vld [vmem:[%s1 + $0xd0] sm:$0xf]
        %v275 = vld [vmem:[%s1 + $0xd4] sm:$0xf]
        %v276 = vld [vmem:[%s1 + $0xd8] sm:$0xf]
        %v277 = vld [vmem:[%s1 + $0xdc] sm:$0xf]
        %v278 = vld [vmem:[%s1 + $0xe0] sm:$0xf]
        %v279 = vld [vmem:[%s1 + $0xe4] sm:$0xf]
        %v280 = vld [vmem:[%s1 + $0xe8] sm:$0xf]
        %v281 = vld [vmem:[%s1 + $0xec] sm:$0xf]
        %v282 = vld [vmem:[%s1 + $0xf0] sm:$0xf]
        %v283 = vld [vmem:[%s1 + $0xf4] sm:$0xf]
        %v284 = vld [vmem:[%s1 + $0xf8] sm:$0xf]
        %v285 = vld [vmem:[%s1 + $0xfc] sm:$0xf]
        %v286 = vld [vmem:[%s1 + $0x100] sm:$0xf]
        %v287 = vld [vmem:[%s1 + $0x104] sm:$0xf]
        %v288 = vld [vmem:[%s1 + $0x108] sm:$0xf]
        %v289 = vld [vmem:[%s1 + $0x10c] sm:$0xf]
        %v290 = vld [vmem:[%s1 + $0x110] sm:$0xf]
        %v291 = vld [vmem:[%s1 + $0x114] sm:$0xf]
        %v292 = vld [vmem:[%s1 + $0x118] sm:$0xf]
        %v293 = vld [vmem:[%s1 + $0x11c] sm:$0xf]
        %v294 = vld [vmem:[%s2] sm:$0x1]
        %v296 = vperm.slane %v294, 0
        %v319 = vunpack.c.l.b16 %v201
        %v320 = vunpack.c.h.b16 %v201
        %v321 = vunpack.c.l.b16 %v202
        %v322 = vunpack.c.h.b16 %v202
        %v323 = vunpack.c.l.b16 %v203
        %v324 = vunpack.c.l.b16 %v204
        %v325 = vunpack.c.h.b16 %v204
        %v326 = vunpack.c.l.b16 %v205
        %v327 = vunpack.c.h.b16 %v205
        %v328 = vunpack.c.l.b16 %v206
        %v329 = vunpack.c.l.b16 %v207
        %v330 = vunpack.c.h.b16 %v207
        %v331 = vunpack.c.l.b16 %v208
        %v332 = vunpack.c.h.b16 %v208
        %v333 = vunpack.c.l.b16 %v209
        %v334 = vunpack.c.l.b16 %v210
        %v335 = vunpack.c.h.b16 %v210
        %v336 = vunpack.c.l.b16 %v211
        %v337 = vunpack.c.h.b16 %v211
        %v338 = vunpack.c.l.b16 %v212
        %v339 = vunpack.c.l.b16 %v213
        %v340 = vunpack.c.h.b16 %v213
        %v341 = vunpack.c.l.b16 %v214
        %v342 = vunpack.c.h.b16 %v214
        %v343 = vunpack.c.l.b16 %v215
        %v344 = vunpack.c.l.b16 %v216
        %v345 = vunpack.c.h.b16 %v216
        %v346 = vunpack.c.l.b16 %v217
        %v347 = vunpack.c.h.b16 %v217
        %v348 = vunpack.c.l.b16 %v218
        %v349 = vunpack.c.l.b16 %v219
        %v350 = vunpack.c.h.b16 %v219
        %v351 = vunpack.c.l.b16 %v220
        %v352 = vunpack.c.h.b16 %v220
        %v353 = vunpack.c.l.b16 %v221
        %v354 = vpack.c.b16 %v324, %v319
        %v355 = vpack.c.b16 %v325, %v320
        %v356 = vpack.c.b16 %v326, %v321
        %v357 = vpack.c.b16 %v327, %v322
        %v358 = vpack.c.b16 %v328, %v323
        %v359 = vpack.c.b16 %v334, %v329
        %v360 = vpack.c.b16 %v335, %v330
        %v361 = vpack.c.b16 %v336, %v331
        %v362 = vpack.c.b16 %v337, %v332
        %v363 = vpack.c.b16 %v338, %v333
        %v364 = vpack.c.b16 %v344, %v339
        %v365 = vpack.c.b16 %v345, %v340
        %v366 = vpack.c.b16 %v346, %v341
        %v367 = vpack.c.b16 %v347, %v342
        %v368 = vpack.c.b16 %v348, %v343
        %v369 = vpack.c.b16 %v349, %v349
        %v370 = vpack.c.b16 %v350, %v350
        %v371 = vpack.c.b16 %v351, %v351
        %v372 = vpack.c.b16 %v352, %v352
        %v373 = vpack.c.b16 %v353, %v353
        %v462 = vunpack.c.l.b16 %v222
        %v463 = vunpack.c.l.b16 %v223
        %v464 = vunpack.c.l.b16 %v224
        %v465 = vunpack.c.l.b16 %v225
        %v466 = vunpack.c.l.b16 %v226
        %v467 = vunpack.c.l.b16 %v227
        %v468 = vunpack.c.l.b16 %v228
        %v469 = vunpack.c.l.b16 %v229
        %v470 = vunpack.c.l.b16 %v230
        %v471 = vunpack.c.l.b16 %v231
        %v472 = vunpack.c.l.b16 %v232
        %v473 = vunpack.c.l.b16 %v233
        %v474 = vunpack.c.l.b16 %v234
        %v475 = vunpack.c.l.b16 %v235
        %v476 = vunpack.c.l.b16 %v236
        %v477 = vunpack.c.l.b16 %v237
        %v478 = vunpack.c.l.b16 %v238
        %v479 = vunpack.c.l.b16 %v239
        %v480 = vunpack.c.l.b16 %v240
        %v481 = vunpack.c.l.b16 %v241
        %v482 = vunpack.c.l.b16 %v242
        %v483 = vunpack.c.l.b16 %v243
        %v484 = vunpack.c.l.b16 %v244
        %v485 = vunpack.c.l.b16 %v245
        %v486 = vunpack.c.l.b16 %v246
        %v487 = vunpack.c.l.b16 %v247
        %v488 = vunpack.c.l.b16 %v248
        %v489 = vunpack.c.l.b16 %v249
        %v490 = vunpack.c.l.b16 %v250
        %v491 = vunpack.c.l.b16 %v251
        %v492 = vunpack.c.l.b16 %v252
        %v493 = vunpack.c.l.b16 %v253
        %v494 = vunpack.c.l.b16 %v254
        %v495 = vunpack.c.l.b16 %v255
        %v496 = vunpack.c.l.b16 %v256
        %v497 = vunpack.c.l.b16 %v257
        %v498 = vunpack.c.l.b16 %v258
        %v499 = vunpack.c.l.b16 %v259
        %v500 = vunpack.c.l.b16 %v260
        %v501 = vunpack.c.l.b16 %v261
        %v502 = vunpack.c.l.b16 %v262
        %v503 = vunpack.c.l.b16 %v263
        %v504 = vunpack.c.l.b16 %v264
        %v505 = vunpack.c.l.b16 %v265
        %v506 = vunpack.c.l.b16 %v266
        %v507 = vunpack.c.l.b16 %v267
        %v508 = vunpack.c.l.b16 %v268
        %v509 = vunpack.c.l.b16 %v269
        %v510 = vunpack.c.l.b16 %v270
        %v511 = vunpack.c.l.b16 %v271
        %v512 = vunpack.c.l.b16 %v272
        %v513 = vunpack.c.l.b16 %v273
        %v514 = vunpack.c.l.b16 %v274
        %v515 = vunpack.c.l.b16 %v275
        %v516 = vunpack.c.l.b16 %v276
        %v517 = vunpack.c.l.b16 %v277
        %v518 = vunpack.c.l.b16 %v278
        %v519 = vunpack.c.l.b16 %v279
        %v520 = vunpack.c.l.b16 %v280
        %v521 = vunpack.c.l.b16 %v281
        %v522 = vunpack.c.l.b16 %v282
        %v523 = vunpack.c.l.b16 %v283
        %v524 = vunpack.c.l.b16 %v284
        %v525 = vunpack.c.l.b16 %v285
        %v526 = vunpack.c.l.b16 %v286
        %v527 = vunpack.c.l.b16 %v287
        %v528 = vunpack.c.l.b16 %v288
        %v529 = vunpack.c.l.b16 %v289
        %v530 = vunpack.c.l.b16 %v290
        %v531 = vunpack.c.l.b16 %v291
        %v532 = vunpack.c.l.b16 %v292
        %v533 = vunpack.c.l.b16 %v293
        %v534 = vpack.c.b16 %v463, %v462
        %v535 = vpack.c.b16 %v465, %v464
        %v536 = vpack.c.b16 %v467, %v466
        %v537 = vpack.c.b16 %v469, %v468
        %v538 = vpack.c.b16 %v471, %v470
        %v539 = vpack.c.b16 %v473, %v472
        %v540 = vpack.c.b16 %v475, %v474
        %v541 = vpack.c.b16 %v477, %v476
        %v542 = vpack.c.b16 %v479, %v478
        %v543 = vpack.c.b16 %v481, %v480
        %v544 = vpack.c.b16 %v483, %v482
        %v545 = vpack.c.b16 %v485, %v484
        %v546 = vpack.c.b16 %v487, %v486
        %v547 = vpack.c.b16 %v489, %v488
        %v548 = vpack.c.b16 %v491, %v490
        %v549 = vpack.c.b16 %v493, %v492
        %v550 = vpack.c.b16 %v495, %v494
        %v551 = vpack.c.b16 %v497, %v496
        %v552 = vpack.c.b16 %v499, %v498
        %v553 = vpack.c.b16 %v501, %v500
        %v554 = vpack.c.b16 %v503, %v502
        %v555 = vpack.c.b16 %v505, %v504
        %v556 = vpack.c.b16 %v507, %v506
        %v557 = vpack.c.b16 %v509, %v508
        %v558 = vpack.c.b16 %v511, %v510
        %v559 = vpack.c.b16 %v513, %v512
        %v560 = vpack.c.b16 %v515, %v514
        %v561 = vpack.c.b16 %v517, %v516
        %v562 = vpack.c.b16 %v519, %v518
        %v563 = vpack.c.b16 %v521, %v520
        %v564 = vpack.c.b16 %v523, %v522
        %v565 = vpack.c.b16 %v525, %v524
        %v566 = vpack.c.b16 %v527, %v526
        %v567 = vpack.c.b16 %v529, %v528
        %v568 = vpack.c.b16 %v531, %v530
        %v569 = vpack.c.b16 %v533, %v532
        %vm606 = vcmask 523264
        %v608 = vsel %vm606, %v358, 0
        %v611 = vsel %vm606, %v363, 0
        %v614 = vsel %vm606, %v368, 0
        %v617 = vsel %vm606, %v373, 0
        %619 = vmatpush.bf16.msra.mxu0 %v541
        %620 = vmatpush.bf16.msra.mxu0 %v540
        %621 = vmatpush.bf16.msra.mxu0 %v539
        %622 = vmatpush.bf16.msra.mxu0 %v538
        %623 = vmatpush.bf16.msra.mxu0 %v537
        %624 = vmatpush.bf16.msra.mxu0 %v536
        %625 = vmatpush.bf16.msra.mxu0 %v535
        %626 = vmatpush.bf16.msra.mxu0 %v534
        %627 = vmatmul.bf16.gmra.mxu0 %v354
        %v628 = vpop.f32.mrf.mxu0
        %v629 = vadd.f32 %v296, %v628
        %v630 = vpop.f32.mrf.mxu0
        %v631 = vadd.f32 %v296, %v630
        %632 = vmatmul.bf16.gmra.mxu0 %v359
        %v633 = vpop.f32.mrf.mxu0
        %v634 = vadd.f32 %v296, %v633
        %v635 = vpop.f32.mrf.mxu0
        %v636 = vadd.f32 %v296, %v635
        %637 = vmatmul.bf16.gmra.mxu0 %v364
        %v638 = vpop.f32.mrf.mxu0
        %v639 = vadd.f32 %v296, %v638
        %v640 = vpop.f32.mrf.mxu0
        %v641 = vadd.f32 %v296, %v640
        %642 = vmatmul.bf16.gmra.mxu0 %v369
        %v643 = vpop.f32.mrf.mxu0
        %v644 = vadd.f32 %v296, %v643
        %v645 = vpop.f32.mrf.mxu0
        %646 = vdwg.mxu0
        %647 = vmatpush.bf16.msra.mxu0 %v549
        %648 = vmatpush.bf16.msra.mxu0 %v548
        %649 = vmatpush.bf16.msra.mxu0 %v547
        %650 = vmatpush.bf16.msra.mxu0 %v546
        %651 = vmatpush.bf16.msra.mxu0 %v545
        %652 = vmatpush.bf16.msra.mxu0 %v544
        %653 = vmatpush.bf16.msra.mxu0 %v543
        %654 = vmatpush.bf16.msra.mxu0 %v542
        %655 = vmatmul.bf16.gmra.mxu0 %v355
        %v656 = vpop.f32.mrf.mxu0
        %v657 = vadd.f32 %v629, %v656
        %v658 = vpop.f32.mrf.mxu0
        %v659 = vadd.f32 %v631, %v658
        %660 = vmatmul.bf16.gmra.mxu0 %v360
        %v661 = vpop.f32.mrf.mxu0
        %v662 = vadd.f32 %v634, %v661
        %v663 = vpop.f32.mrf.mxu0
        %v664 = vadd.f32 %v636, %v663
        %665 = vmatmul.bf16.gmra.mxu0 %v365
        %v666 = vpop.f32.mrf.mxu0
        %v667 = vadd.f32 %v639, %v666
        %v668 = vpop.f32.mrf.mxu0
        %v669 = vadd.f32 %v641, %v668
        %670 = vmatmul.bf16.gmra.mxu0 %v370
        %v671 = vpop.f32.mrf.mxu0
        %v672 = vadd.f32 %v644, %v671
        %v673 = vpop.f32.mrf.mxu0
        %674 = vdwg.mxu0
        %675 = vmatpush.bf16.msra.mxu0 %v557
        %676 = vmatpush.bf16.msra.mxu0 %v556
        %677 = vmatpush.bf16.msra.mxu0 %v555
        %678 = vmatpush.bf16.msra.mxu0 %v554
        %679 = vmatpush.bf16.msra.mxu0 %v553
        %680 = vmatpush.bf16.msra.mxu0 %v552
        %681 = vmatpush.bf16.msra.mxu0 %v551
        %682 = vmatpush.bf16.msra.mxu0 %v550
        %683 = vmatmul.bf16.gmra.mxu0 %v356
        %v684 = vpop.f32.mrf.mxu0
        %v685 = vadd.f32 %v657, %v684
        %v686 = vpop.f32.mrf.mxu0
        %v687 = vadd.f32 %v659, %v686
        %688 = vmatmul.bf16.gmra.mxu0 %v361
        %v689 = vpop.f32.mrf.mxu0
        %v690 = vadd.f32 %v662, %v689
        %v691 = vpop.f32.mrf.mxu0
        %v692 = vadd.f32 %v664, %v691
        %693 = vmatmul.bf16.gmra.mxu0 %v366
        %v694 = vpop.f32.mrf.mxu0
        %v695 = vadd.f32 %v667, %v694
        %v696 = vpop.f32.mrf.mxu0
        %v697 = vadd.f32 %v669, %v696
        %698 = vmatmul.bf16.gmra.mxu0 %v371
        %v699 = vpop.f32.mrf.mxu0
        %v700 = vadd.f32 %v672, %v699
        %v701 = vpop.f32.mrf.mxu0
        %702 = vdwg.mxu0
        %703 = vmatpush.bf16.msra.mxu0 %v565
        %704 = vmatpush.bf16.msra.mxu0 %v564
        %705 = vmatpush.bf16.msra.mxu0 %v563
        %706 = vmatpush.bf16.msra.mxu0 %v562
        %707 = vmatpush.bf16.msra.mxu0 %v561
        %708 = vmatpush.bf16.msra.mxu0 %v560
        %709 = vmatpush.bf16.msra.mxu0 %v559
        %710 = vmatpush.bf16.msra.mxu0 %v558
        %711 = vmatmul.bf16.gmra.mxu0 %v357
        %v712 = vpop.f32.mrf.mxu0
        %v713 = vadd.f32 %v685, %v712
        %v714 = vpop.f32.mrf.mxu0
        %v715 = vadd.f32 %v687, %v714
        %716 = vmatmul.bf16.gmra.mxu0 %v362
        %v717 = vpop.f32.mrf.mxu0
        %v718 = vadd.f32 %v690, %v717
        %v719 = vpop.f32.mrf.mxu0
        %v720 = vadd.f32 %v692, %v719
        %721 = vmatmul.bf16.gmra.mxu0 %v367
        %v722 = vpop.f32.mrf.mxu0
        %v723 = vadd.f32 %v695, %v722
        %v724 = vpop.f32.mrf.mxu0
        %v725 = vadd.f32 %v697, %v724
        %726 = vmatmul.bf16.gmra.mxu0 %v372
        %v727 = vpop.f32.mrf.mxu0
        %v728 = vadd.f32 %v700, %v727
        %v729 = vpop.f32.mrf.mxu0
        %730 = vdwg.mxu0
        %731 = vmatpush.bf16.msra.mxu0 0
        %732 = vmatpush.bf16.msra.mxu0 0
        %733 = vmatpush.bf16.msra.mxu0 0
        %734 = vmatpush.bf16.msra.mxu0 0
        %735 = vmatpush.bf16.msra.mxu0 %v569
        %736 = vmatpush.bf16.msra.mxu0 %v568
        %737 = vmatpush.bf16.msra.mxu0 %v567
        %738 = vmatpush.bf16.msra.mxu0 %v566
        %739 = vmatmul.bf16.gmra.mxu0 %v608
        %v740 = vpop.f32.mrf.mxu0
        %v741 = vadd.f32 %v713, %v740
        %v742 = vpop.f32.mrf.mxu0
        %v743 = vadd.f32 %v715, %v742
        %744 = vmatmul.bf16.gmra.mxu0 %v611
        %v745 = vpop.f32.mrf.mxu0
        %v746 = vadd.f32 %v718, %v745
        %v747 = vpop.f32.mrf.mxu0
        %v748 = vadd.f32 %v720, %v747
        %749 = vmatmul.bf16.gmra.mxu0 %v614
        %v750 = vpop.f32.mrf.mxu0
        %v751 = vadd.f32 %v723, %v750
        %v752 = vpop.f32.mrf.mxu0
        %v753 = vadd.f32 %v725, %v752
        %754 = vmatmul.bf16.gmra.mxu0 %v617
        %v755 = vpop.f32.mrf.mxu0
        %v756 = vadd.f32 %v728, %v755
        %v757 = vpop.f32.mrf.mxu0
        %758 = vdwg.mxu0
        %v759 = vmax.f32 %v741, 0.0
        %v760 = vmax.f32 %v743, 0.0
        %v761 = vmax.f32 %v746, 0.0
        %v762 = vmax.f32 %v748, 0.0
        %v763 = vmax.f32 %v751, 0.0
        %v764 = vmax.f32 %v753, 0.0
        %v765 = vmax.f32 %v756, 0.0
        %v766 = vpack.c.bf16 %v759, %v759
        %v767 = vpack.c.bf16 %v760, %v760
        %v768 = vpack.c.bf16 %v761, %v761
        %v769 = vpack.c.bf16 %v762, %v762
        %v770 = vpack.c.bf16 %v763, %v763
        %v771 = vpack.c.bf16 %v764, %v764
        %v772 = vpack.c.bf16 %v765, %v765
        %vm773 = vcmask 519168
        %774 = vst.msk [vmem:[%s177] sm:$0xf] %vm773, %v766
        %775 = vst.msk [vmem:[%s177 + $0x4] sm:$0xf] %vm773, %v767
        %776 = vst.msk [vmem:[%s177 + $0x8] sm:$0xf] %vm773, %v768
        %777 = vst.msk [vmem:[%s177 + $0xc] sm:$0xf] %vm773, %v769
        %778 = vst.msk [vmem:[%s177 + $0x10] sm:$0xf] %vm773, %v770
        %779 = vst.msk [vmem:[%s177 + $0x14] sm:$0xf] %vm773, %v771
        %780 = vst.msk [vmem:[%s177 + $0x18] sm:$0xf] %vm773, %v772
        %s781 = sand.u32 %s90, 1
        %s782 = sand.u32 %s90, 1
        %s783 = smul.addr %s782, 28
        %s784 = scalar_lea.vmem [#allocation2], %s783
        // Predicated region
        $region33: #{nature_cnn_forward.6} parent=31 // pred_check
          %p785 = pneg %p100
        $region34: #{nature_cnn_forward.6} parent=31 // pred_check_branch
          %787 = sbr.rel (%p785) target = $region36
        $region35: #{nature_cnn_forward.6} parent=31 // pred_region
          %s788 = smul.u32 7, %s14
          %s789 = ssub.s32 13, %s788
          %p790 = scmp.lt.s32.totalorder %s789, 7
          %s791 = scalar_select %p790, %s789, 7
          %s792 = smul.u32 4, %s791
          %p793 = scmp.ne.s32.totalorder 0, %s792
          %s794 = smul.addr %s788, 4
          %s795 = scalar_lea.vmem %s3, %s794
          // Predicated region
          $region37: #{nature_cnn_forward.6} parent=35 // pred_check
            %p796 = pneg %p793
          $region38: #{nature_cnn_forward.6} parent=35 // pred_check_branch
            %798 = sbr.rel (%p796) target = $region40
          $region39: #{nature_cnn_forward.6} parent=35 // pred_region
            // Predicated region
            $region41: #{nature_cnn_forward.6} parent=39 // pred_check
              _
            $region42: #{nature_cnn_forward.6} parent=39 // pred_check_branch
              %800 = sbr.rel target = $region44
            $region43: #{nature_cnn_forward.6} parent=39 // pred_region
              // Predicated region
              $region63: #{nature_cnn_forward.6} parent=43 // pred_check
                _
              $region64: #{nature_cnn_forward.6} parent=43 // pred_check_branch
                %863 = sbr.rel (0) target = $region66
              $region65: #{nature_cnn_forward.6} parent=43 // pred_region
                %s865 = ssub.s32 16, 1
                %s866 = sdiv.u32.pop %s791, 7
                %s867 = srem.u32.pop %s791, 7
                // While loop
                $region67: #{nature_cnn_forward.6} parent=65 // loop_pre_header
                  _
                $region68: #{nature_cnn_forward.6} parent=65 // loop_header
                  %s869 = sphi 0, %s871
                  %p870 = scmp.ge.s32.totalorder %s869, %s866
                  %s874 = sphi 0, %s893
                  %s875 = sphi %s784, %s896
                  %s876 = sphi %s795, %s897
                $region69: #{nature_cnn_forward.6} parent=65 // loop_header_branch
                  %873 = sbr.rel (%p870) target = $region73
                $region70: #{nature_cnn_forward.6} parent=65 // loop_body
                  %v877 = vld [vmem:[%s875] sm:%s865]
                  %878 = vst [vmem:[%s876] sm:%s865] %v877
                  %v879 = vld [vmem:[%s875 + $0x4] sm:%s865]
                  %880 = vst [vmem:[%s876 + $0x4] sm:%s865] %v879
                  %v881 = vld [vmem:[%s875 + $0x8] sm:%s865]
                  %882 = vst [vmem:[%s876 + $0x8] sm:%s865] %v881
                  %v883 = vld [vmem:[%s875 + $0xc] sm:%s865]
                  %884 = vst [vmem:[%s876 + $0xc] sm:%s865] %v883
                  %v885 = vld [vmem:[%s875 + $0x10] sm:%s865]
                  %886 = vst [vmem:[%s876 + $0x10] sm:%s865] %v885
                  %v887 = vld [vmem:[%s875 + $0x14] sm:%s865]
                  %888 = vst [vmem:[%s876 + $0x14] sm:%s865] %v887
                  %v889 = vld [vmem:[%s875 + $0x18] sm:%s865]
                  %890 = vst [vmem:[%s876 + $0x18] sm:%s865] %v889
                  %s891 = sadd.s32 1, %s874
                  %p892 = scmp.ge.s32.totalorder %s891, %s866
                  %s893 = scalar_select %p892, 0, %s891
                  %s894 = smul.u32 %s893, 28
                  %s895 = smul.u32 %s893, 28
                  %s896 = scalar_lea.vmem %s784, %s894 [#allocation2]
                  %s897 = scalar_lea.vmem %s795, %s895
                $region71: #{nature_cnn_forward.6} parent=65 // loop_footer
                  %s871 = sadd.s32 %s869, 1
                $region72: #{nature_cnn_forward.6} parent=65 // loop_footer_branch
                  %868 = sbr.rel target = $region68
                $region73: #{nature_cnn_forward.6} parent=65 // loop_exit
                  _
                %s898 = sdiv.u32.pop %s791, 7
                %s899 = srem.u32.pop %s791, 7
                %s900 = smul.u32 %s898, 7
                %s901 = smul.u32 4, %s900
                %s902 = scalar_lea.vmem %s784, %s901 [#allocation2]
                %s903 = smul.u32 4, %s900
                %s904 = scalar_lea.vmem %s795, %s903
                // While loop
                $region74: #{nature_cnn_forward.6} parent=65 // loop_pre_header
                  _
                $region75: #{nature_cnn_forward.6} parent=65 // loop_header
                  %s906 = sphi 0, %s908
                  %p907 = scmp.ge.s32.totalorder %s906, %s899
                  %s911 = sphi 0, %s918
                  %s912 = sphi %s902, %s921
                  %s913 = sphi %s904, %s922
                $region76: #{nature_cnn_forward.6} parent=65 // loop_header_branch
                  %910 = sbr.rel (%p907) target = $region80
                $region77: #{nature_cnn_forward.6} parent=65 // loop_body
                  %v914 = vld [vmem:[%s912] sm:%s865]
                  %915 = vst [vmem:[%s913] sm:%s865] %v914
                  %s916 = sadd.s32 1, %s911
                  %p917 = scmp.ge.s32.totalorder %s916, %s899
                  %s918 = scalar_select %p917, 0, %s916
                  %s919 = smul.u32 %s918, 4
                  %s920 = smul.u32 %s918, 4
                  %s921 = scalar_lea.vmem %s902, %s919 [#allocation2]
                  %s922 = scalar_lea.vmem %s904, %s920
                $region78: #{nature_cnn_forward.6} parent=65 // loop_footer
                  %s908 = sadd.s32 %s906, 1
                $region79: #{nature_cnn_forward.6} parent=65 // loop_footer_branch
                  %905 = sbr.rel target = $region75
                $region80: #{nature_cnn_forward.6} parent=65 // loop_exit
                  _
              $region66: #{nature_cnn_forward.6} parent=43 // pred_fallthru
                _
            $region44: #{nature_cnn_forward.6} parent=39 // pred_fallthru
              _
            // Predicated region
            $region45: #{nature_cnn_forward.6} parent=39 // pred_check
              _
            $region46: #{nature_cnn_forward.6} parent=39 // pred_check_branch
              %802 = sbr.rel (0) target = $region48
            $region47: #{nature_cnn_forward.6} parent=39 // pred_region
              %s804 = ssub.s32 16, 1
              %s805 = sdiv.u32.pop %s791, 7
              %s806 = srem.u32.pop %s791, 7
              // While loop
              $region49: #{nature_cnn_forward.6} parent=47 // loop_pre_header
                _
              $region50: #{nature_cnn_forward.6} parent=47 // loop_header
                %s808 = sphi 0, %s810
                %p809 = scmp.ge.s32.totalorder %s808, %s805
                %s813 = sphi 0, %s832
                %s814 = sphi %s784, %s835
                %s815 = sphi %s795, %s836
              $region51: #{nature_cnn_forward.6} parent=47 // loop_header_branch
                %812 = sbr.rel (%p809) target = $region55
              $region52: #{nature_cnn_forward.6} parent=47 // loop_body
                %v816 = vld [vmem:[%s814] sm:%s804]
                %817 = vst [vmem:[%s815] sm:%s804] %v816
                %v818 = vld [vmem:[%s814 + $0x4] sm:%s804]
                %819 = vst [vmem:[%s815 + $0x4] sm:%s804] %v818
                %v820 = vld [vmem:[%s814 + $0x8] sm:%s804]
                %821 = vst [vmem:[%s815 + $0x8] sm:%s804] %v820
                %v822 = vld [vmem:[%s814 + $0xc] sm:%s804]
                %823 = vst [vmem:[%s815 + $0xc] sm:%s804] %v822
                %v824 = vld [vmem:[%s814 + $0x10] sm:%s804]
                %825 = vst [vmem:[%s815 + $0x10] sm:%s804] %v824
                %v826 = vld [vmem:[%s814 + $0x14] sm:%s804]
                %827 = vst [vmem:[%s815 + $0x14] sm:%s804] %v826
                %v828 = vld [vmem:[%s814 + $0x18] sm:%s804]
                %829 = vst [vmem:[%s815 + $0x18] sm:%s804] %v828
                %s830 = sadd.s32 1, %s813
                %p831 = scmp.ge.s32.totalorder %s830, %s805
                %s832 = scalar_select %p831, 0, %s830
                %s833 = smul.u32 %s832, 28
                %s834 = smul.u32 %s832, 28
                %s835 = scalar_lea.vmem %s784, %s833 [#allocation2]
                %s836 = scalar_lea.vmem %s795, %s834
              $region53: #{nature_cnn_forward.6} parent=47 // loop_footer
                %s810 = sadd.s32 %s808, 1
              $region54: #{nature_cnn_forward.6} parent=47 // loop_footer_branch
                %807 = sbr.rel target = $region50
              $region55: #{nature_cnn_forward.6} parent=47 // loop_exit
                _
              %s837 = sdiv.u32.pop %s791, 7
              %s838 = srem.u32.pop %s791, 7
              %s839 = smul.u32 %s837, 7
              %s840 = smul.u32 4, %s839
              %s841 = scalar_lea.vmem %s784, %s840 [#allocation2]
              %s842 = smul.u32 4, %s839
              %s843 = scalar_lea.vmem %s795, %s842
              // While loop
              $region56: #{nature_cnn_forward.6} parent=47 // loop_pre_header
                _
              $region57: #{nature_cnn_forward.6} parent=47 // loop_header
                %s845 = sphi 0, %s847
                %p846 = scmp.ge.s32.totalorder %s845, %s838
                %s850 = sphi 0, %s857
                %s851 = sphi %s841, %s860
                %s852 = sphi %s843, %s861
              $region58: #{nature_cnn_forward.6} parent=47 // loop_header_branch
                %849 = sbr.rel (%p846) target = $region62
              $region59: #{nature_cnn_forward.6} parent=47 // loop_body
                %v853 = vld [vmem:[%s851] sm:%s804]
                %854 = vst [vmem:[%s852] sm:%s804] %v853
                %s855 = sadd.s32 1, %s850
                %p856 = scmp.ge.s32.totalorder %s855, %s838
                %s857 = scalar_select %p856, 0, %s855
                %s858 = smul.u32 %s857, 4
                %s859 = smul.u32 %s857, 4
                %s860 = scalar_lea.vmem %s841, %s858 [#allocation2]
                %s861 = scalar_lea.vmem %s843, %s859
              $region60: #{nature_cnn_forward.6} parent=47 // loop_footer
                %s847 = sadd.s32 %s845, 1
              $region61: #{nature_cnn_forward.6} parent=47 // loop_footer_branch
                %844 = sbr.rel target = $region57
              $region62: #{nature_cnn_forward.6} parent=47 // loop_exit
                _
            $region48: #{nature_cnn_forward.6} parent=39 // pred_fallthru
              _
          $region40: #{nature_cnn_forward.6} parent=35 // pred_fallthru
            _
          %923 = vnop
        $region36: #{nature_cnn_forward.6} parent=31 // pred_fallthru
          _
      $region32: #{nature_cnn_forward.6} parent=5 // pred_fallthru
        _
      %p924 = scmp.le.s32.totalorder 2, %s9
      // Predicated region
      $region81: #{nature_cnn_forward.6} parent=5 // pred_check
        %p925 = pneg %p924
      $region82: #{nature_cnn_forward.6} parent=5 // pred_check_branch
        %927 = sbr.rel (%p925) target = $region84
      $region83: #{nature_cnn_forward.6} parent=5 // pred_region
        %s928 = ssub.s32 %s9, 2
        // Predicated region
        $region85: #{nature_cnn_forward.6} parent=83 // pred_check
          %p929 = pneg %p106
        $region86: #{nature_cnn_forward.6} parent=83 // pred_check_branch
          %931 = sbr.rel (%p929) target = $region88
        $region87: #{nature_cnn_forward.6} parent=83 // pred_region
          %s932 = sand.u32 %s91, 1
          %s933 = sand.u32 %s91, 1
          %s934 = smul.addr %s933, 28
          %s935 = scalar_lea.vmem [#allocation2], %s934
        $region88: #{nature_cnn_forward.6} parent=83 // pred_fallthru
          _
      $region84: #{nature_cnn_forward.6} parent=5 // pred_fallthru
        _
    $region6: #{nature_cnn_forward.6} parent=1 // loop_footer
      %s13 = sadd.s32 1, %s9
    $region7: #{nature_cnn_forward.6} parent=1 // loop_footer_branch
      %8 = sbr.rel target = $region3
    $region8: #{nature_cnn_forward.6} parent=1 // loop_exit
      _

// kernel: nature_cnn_forward.7
$region0: #{nature_cnn_forward.7}
  #allocation0 [shape = 'u32[]', space=smem, size = 0x4, offset = 0x4, fixed_abs, tag = 'smem constant byte address 0x4 - core index']
  #allocation1 [shape = 'u32[72,128]{1,0:T(1,128)}', space=vmem, size = 0x9000, scoped, tag = 'internal scratch']
  %s0 = inlined_call_operand.vmem [shape: bf16[2,3136], index: 0, kind: input, shape index: {}]
  %s1 = inlined_call_operand.vmem [shape: bf16[3136,512], index: 1, kind: input, shape index: {}]
  %s2 = inlined_call_operand.vmem [shape: f32[1,512], index: 2, kind: input, shape index: {}]
  %s3 = inlined_call_operand.vmem [shape: bf16[512,7], index: 3, kind: input, shape index: {}]
  %s4 = inlined_call_operand.vmem [shape: f32[1,7], index: 4, kind: input, shape index: {}]
  %s5 = inlined_call_operand.hbm [shape: f32[2,6], index: 5, kind: output, shape index: {0}]
  %s6 = inlined_call_operand.vmem [shape: f32[2,1], index: 6, kind: output, shape index: {1}]
  %7 = xla_tuple %s5, %s6
  %s8 = sld [smem:[#allocation0]]
  $region38: #{nature_cnn_forward.7} parent=0
    _
  %s10 = ssub.s32 1, %s8
  %s11 = scalar_select 0, %s10, %s8
  $region1: #{nature_cnn_forward.7} parent=0
    #allocation2 [shape = 'u8[1024]{0}', space=vmem, size = 0x400, scoped, tag = 'output window, operand 0, single buffered']
    #allocation3 [shape = 's32[1]{0}', space=sflag, size = 0x4, scoped, tag = 'scoped memory for nature_cnn_forward.7']
    %12 = vsyncpa [#allocation3], 0
    // Predicated region
    $region2: #{nature_cnn_forward.7} parent=1 // pred_check
      _
    $region3: #{nature_cnn_forward.7} parent=1 // pred_check_branch
      %14 = sbr.rel (0) target = $region5
    $region4: #{nature_cnn_forward.7} parent=1 // pred_region
      _
    $region5: #{nature_cnn_forward.7} parent=1 // pred_fallthru
      _
    // Predicated region
    $region6: #{nature_cnn_forward.7} parent=1 // pred_check
      _
    $region7: #{nature_cnn_forward.7} parent=1 // pred_check_branch
      %16 = sbr.rel (0) target = $region9
    $region8: #{nature_cnn_forward.7} parent=1 // pred_region
      _
    $region9: #{nature_cnn_forward.7} parent=1 // pred_fallthru
      _
    // Predicated region
    $region10: #{nature_cnn_forward.7} parent=1 // pred_check
      _
    $region11: #{nature_cnn_forward.7} parent=1 // pred_check_branch
      %18 = sbr.rel (0) target = $region13
    $region12: #{nature_cnn_forward.7} parent=1 // pred_region
      _
    $region13: #{nature_cnn_forward.7} parent=1 // pred_fallthru
      _
    // Predicated region
    $region14: #{nature_cnn_forward.7} parent=1 // pred_check
      _
    $region15: #{nature_cnn_forward.7} parent=1 // pred_check_branch
      %20 = sbr.rel (0) target = $region17
    $region16: #{nature_cnn_forward.7} parent=1 // pred_region
      _
    $region17: #{nature_cnn_forward.7} parent=1 // pred_fallthru
      _
    // Predicated region
    $region18: #{nature_cnn_forward.7} parent=1 // pred_check
      _
    $region19: #{nature_cnn_forward.7} parent=1 // pred_check_branch
      %22 = sbr.rel (0) target = $region21
    $region20: #{nature_cnn_forward.7} parent=1 // pred_region
      _
    $region21: #{nature_cnn_forward.7} parent=1 // pred_fallthru
      _
    %v24 = vld [vmem:[%s0] sm:$0xff]
    %v25 = vld [vmem:[%s0 + $0x8] sm:$0xff]
    %v26 = vld [vmem:[%s0 + $0x10] sm:$0xff]
    %v27 = vld [vmem:[%s0 + $0x18] sm:$0x1]
    %v28 = vld [vmem:[%s1] sm:$0xff]
    %v29 = vld [vmem:[%s1 + $0x8] sm:$0xff]
    %v30 = vld [vmem:[%s1 + $0x10] sm:$0xff]
    %v31 = vld [vmem:[%s1 + $0x18] sm:$0xff]
    %v32 = vld [vmem:[%s1 + $0x20] sm:$0xff]
    %v33 = vld [vmem:[%s1 + $0x28] sm:$0xff]
    %v34 = vld [vmem:[%s1 + $0x30] sm:$0xff]
    %v35 = vld [vmem:[%s1 + $0x38] sm:$0xff]
    %v36 = vld [vmem:[%s1 + $0x40] sm:$0xff]
    %v37 = vld [vmem:[%s1 + $0x48] sm:$0xff]
    %v38 = vld [vmem:[%s1 + $0x50] sm:$0xff]
    %v39 = vld [vmem:[%s1 + $0x58] sm:$0xff]
    %v40 = vld [vmem:[%s1 + $0x60] sm:$0xff]
    %v41 = vld [vmem:[%s1 + $0x68] sm:$0xff]
    %v42 = vld [vmem:[%s1 + $0x70] sm:$0xff]
    %v43 = vld [vmem:[%s1 + $0x78] sm:$0xff]
    %v44 = vld [vmem:[%s1 + $0x80] sm:$0xff]
    %v45 = vld [vmem:[%s1 + $0x88] sm:$0xff]
    %v46 = vld [vmem:[%s1 + $0x90] sm:$0xff]
    %v47 = vld [vmem:[%s1 + $0x98] sm:$0xff]
    %v48 = vld [vmem:[%s1 + $0xa0] sm:$0xff]
    %v49 = vld [vmem:[%s1 + $0xa8] sm:$0xff]
    %v50 = vld [vmem:[%s1 + $0xb0] sm:$0xff]
    %v51 = vld [vmem:[%s1 + $0xb8] sm:$0xff]
    %v52 = vld [vmem:[%s1 + $0xc0] sm:$0xff]
    %v53 = vld [vmem:[%s1 + $0xc8] sm:$0xff]
    %v54 = vld [vmem:[%s1 + $0xd0] sm:$0xff]
    %v55 = vld [vmem:[%s1 + $0xd8] sm:$0xff]
    %v56 = vld [vmem:[%s1 + $0xe0] sm:$0xff]
    %v57 = vld [vmem:[%s1 + $0xe8] sm:$0xff]
    %v58 = vld [vmem:[%s1 + $0xf0] sm:$0xff]
    %v59 = vld [vmem:[%s1 + $0xf8] sm:$0xff]
    %v60 = vld [vmem:[%s1 + $0x100] sm:$0xff]
    %v61 = vld [vmem:[%s1 + $0x108] sm:$0xff]
    %v62 = vld [vmem:[%s1 + $0x110] sm:$0xff]
    %v63 = vld [vmem:[%s1 + $0x118] sm:$0xff]
    %v64 = vld [vmem:[%s1 + $0x120] sm:$0xff]
    %v65 = vld [vmem:[%s1 + $0x128] sm:$0xff]
    %v66 = vld [vmem:[%s1 + $0x130] sm:$0xff]
    %v67 = vld [vmem:[%s1 + $0x138] sm:$0xff]
    %v68 = vld [vmem:[%s1 + $0x140] sm:$0xff]
    %v69 = vld [vmem:[%s1 + $0x148] sm:$0xff]
    %v70 = vld [vmem:[%s1 + $0x150] sm:$0xff]
    %v71 = vld [vmem:[%s1 + $0x158] sm:$0xff]
    %v72 = vld [vmem:[%s1 + $0x160] sm:$0xff]
    %v73 = vld [vmem:[%s1 + $0x168] sm:$0xff]
    %v74 = vld [vmem:[%s1 + $0x170] sm:$0xff]
    %v75 = vld [vmem:[%s1 + $0x178] sm:$0xff]
    %v76 = vld [vmem:[%s1 + $0x180] sm:$0xff]
    %v77 = vld [vmem:[%s1 + $0x188] sm:$0xff]
    %v78 = vld [vmem:[%s1 + $0x190] sm:$0xff]
    %v79 = vld [vmem:[%s1 + $0x198] sm:$0xff]
    %v80 = vld [vmem:[%s1 + $0x1a0] sm:$0xff]
    %v81 = vld [vmem:[%s1 + $0x1a8] sm:$0xff]
    %v82 = vld [vmem:[%s1 + $0x1b0] sm:$0xff]
    %v83 = vld [vmem:[%s1 + $0x1b8] sm:$0xff]
    %v84 = vld [vmem:[%s1 + $0x1c0] sm:$0xff]
    %v85 = vld [vmem:[%s1 + $0x1c8] sm:$0xff]
    %v86 = vld [vmem:[%s1 + $0x1d0] sm:$0xff]
    %v87 = vld [vmem:[%s1 + $0x1d8] sm:$0xff]
    %v88 = vld [vmem:[%s1 + $0x1e0] sm:$0xff]
    %v89 = vld [vmem:[%s1 + $0x1e8] sm:$0xff]
    %v90 = vld [vmem:[%s1 + $0x1f0] sm:$0xff]
    %v91 = vld [vmem:[%s1 + $0x1f8] sm:$0xff]
    %v92 = vld [vmem:[%s1 + $0x200] sm:$0xff]
    %v93 = vld [vmem:[%s1 + $0x208] sm:$0xff]
    %v94 = vld [vmem:[%s1 + $0x210] sm:$0xff]
    %v95 = vld [vmem:[%s1 + $0x218] sm:$0xff]
    %v96 = vld [vmem:[%s1 + $0x220] sm:$0xff]
    %v97 = vld [vmem:[%s1 + $0x228] sm:$0xff]
    %v98 = vld [vmem:[%s1 + $0x230] sm:$0xff]
    %v99 = vld [vmem:[%s1 + $0x238] sm:$0xff]
    %v100 = vld [vmem:[%s1 + $0x240] sm:$0xff]
    %v101 = vld [vmem:[%s1 + $0x248] sm:$0xff]
    %v102 = vld [vmem:[%s1 + $0x250] sm:$0xff]
    %v103 = vld [vmem:[%s1 + $0x258] sm:$0xff]
    %v104 = vld [vmem:[%s1 + $0x260] sm:$0xff]
    %v105 = vld [vmem:[%s1 + $0x268] sm:$0xff]
    %v106 = vld [vmem:[%s1 + $0x270] sm:$0xff]
    %v107 = vld [vmem:[%s1 + $0x278] sm:$0xff]
    %v108 = vld [vmem:[%s1 + $0x280] sm:$0xff]
    %v109 = vld [vmem:[%s1 + $0x288] sm:$0xff]
    %v110 = vld [vmem:[%s1 + $0x290] sm:$0xff]
    %v111 = vld [vmem:[%s1 + $0x298] sm:$0xff]
    %v112 = vld [vmem:[%s1 + $0x2a0] sm:$0xff]
    %v113 = vld [vmem:[%s1 + $0x2a8] sm:$0xff]
    %v114 = vld [vmem:[%s1 + $0x2b0] sm:$0xff]
    %v115 = vld [vmem:[%s1 + $0x2b8] sm:$0xff]
    %v116 = vld [vmem:[%s1 + $0x2c0] sm:$0xff]
    %v117 = vld [vmem:[%s1 + $0x2c8] sm:$0xff]
    %v118 = vld [vmem:[%s1 + $0x2d0] sm:$0xff]
    %v119 = vld [vmem:[%s1 + $0x2d8] sm:$0xff]
    %v120 = vld [vmem:[%s1 + $0x2e0] sm:$0xff]
    %v121 = vld [vmem:[%s1 + $0x2e8] sm:$0xff]
    %v122 = vld [vmem:[%s1 + $0x2f0] sm:$0xff]
    %v123 = vld [vmem:[%s1 + $0x2f8] sm:$0xff]
    %v124 = vld [vmem:[%s1 + $0x300] sm:$0xff]
    %v125 = vld [vmem:[%s1 + $0x308] sm:$0xff]
    %v126 = vld [vmem:[%s1 + $0x310] sm:$0xff]
    %v127 = vld [vmem:[%s1 + $0x318] sm:$0xff]
    %v128 = vld [vmem:[%s1 + $0x320] sm:$0xff]
    %v129 = vld [vmem:[%s1 + $0x328] sm:$0xff]
    %v130 = vld [vmem:[%s1 + $0x330] sm:$0xff]
    %v131 = vld [vmem:[%s1 + $0x338] sm:$0xff]
    %v132 = vld [vmem:[%s1 + $0x340] sm:$0xff]
    %v133 = vld [vmem:[%s1 + $0x348] sm:$0xff]
    %v134 = vld [vmem:[%s1 + $0x350] sm:$0xff]
    %v135 = vld [vmem:[%s1 + $0x358] sm:$0xff]
    %v136 = vld [vmem:[%s1 + $0x360] sm:$0xff]
    %v137 = vld [vmem:[%s1 + $0x368] sm:$0xff]
    %v138 = vld [vmem:[%s1 + $0x370] sm:$0xff]
    %v139 = vld [vmem:[%s1 + $0x378] sm:$0xff]
    %v140 = vld [vmem:[%s1 + $0x380] sm:$0xff]
    %v141 = vld [vmem:[%s1 + $0x388] sm:$0xff]
    %v142 = vld [vmem:[%s1 + $0x390] sm:$0xff]
    %v143 = vld [vmem:[%s1 + $0x398] sm:$0xff]
    %v144 = vld [vmem:[%s1 + $0x3a0] sm:$0xff]
    %v145 = vld [vmem:[%s1 + $0x3a8] sm:$0xff]
    %v146 = vld [vmem:[%s1 + $0x3b0] sm:$0xff]
    %v147 = vld [vmem:[%s1 + $0x3b8] sm:$0xff]
    %v148 = vld [vmem:[%s1 + $0x3c0] sm:$0xff]
    %v149 = vld [vmem:[%s1 + $0x3c8] sm:$0xff]
    %v150 = vld [vmem:[%s1 + $0x3d0] sm:$0xff]
    %v151 = vld [vmem:[%s1 + $0x3d8] sm:$0xff]
    %v152 = vld [vmem:[%s1 + $0x3e0] sm:$0xff]
    %v153 = vld [vmem:[%s1 + $0x3e8] sm:$0xff]
    %v154 = vld [vmem:[%s1 + $0x3f0] sm:$0xff]
    %v155 = vld [vmem:[%s1 + $0x3f8] sm:$0xff]
    %v156 = vld [vmem:[%s1 + $0x400] sm:$0xff]
    %v157 = vld [vmem:[%s1 + $0x408] sm:$0xff]
    %v158 = vld [vmem:[%s1 + $0x410] sm:$0xff]
    %v159 = vld [vmem:[%s1 + $0x418] sm:$0xff]
    %v160 = vld [vmem:[%s1 + $0x420] sm:$0xff]
    %v161 = vld [vmem:[%s1 + $0x428] sm:$0xff]
    %v162 = vld [vmem:[%s1 + $0x430] sm:$0xff]
    %v163 = vld [vmem:[%s1 + $0x438] sm:$0xff]
    %v164 = vld [vmem:[%s1 + $0x440] sm:$0xff]
    %v165 = vld [vmem:[%s1 + $0x448] sm:$0xff]
    %v166 = vld [vmem:[%s1 + $0x450] sm:$0xff]
    %v167 = vld [vmem:[%s1 + $0x458] sm:$0xff]
    %v168 = vld [vmem:[%s1 + $0x460] sm:$0xff]
    %v169 = vld [vmem:[%s1 + $0x468] sm:$0xff]
    %v170 = vld [vmem:[%s1 + $0x470] sm:$0xff]
    %v171 = vld [vmem:[%s1 + $0x478] sm:$0xff]
    %v172 = vld [vmem:[%s1 + $0x480] sm:$0xff]
    %v173 = vld [vmem:[%s1 + $0x488] sm:$0xff]
    %v174 = vld [vmem:[%s1 + $0x490] sm:$0xff]
    %v175 = vld [vmem:[%s1 + $0x498] sm:$0xff]
    %v176 = vld [vmem:[%s1 + $0x4a0] sm:$0xff]
    %v177 = vld [vmem:[%s1 + $0x4a8] sm:$0xff]
    %v178 = vld [vmem:[%s1 + $0x4b0] sm:$0xff]
    %v179 = vld [vmem:[%s1 + $0x4b8] sm:$0xff]
    %v180 = vld [vmem:[%s1 + $0x4c0] sm:$0xff]
    %v181 = vld [vmem:[%s1 + $0x4c8] sm:$0xff]
    %v182 = vld [vmem:[%s1 + $0x4d0] sm:$0xff]
    %v183 = vld [vmem:[%s1 + $0x4d8] sm:$0xff]
    %v184 = vld [vmem:[%s1 + $0x4e0] sm:$0xff]
    %v185 = vld [vmem:[%s1 + $0x4e8] sm:$0xff]
    %v186 = vld [vmem:[%s1 + $0x4f0] sm:$0xff]
    %v187 = vld [vmem:[%s1 + $0x4f8] sm:$0xff]
    %v188 = vld [vmem:[%s1 + $0x500] sm:$0xff]
    %v189 = vld [vmem:[%s1 + $0x508] sm:$0xff]
    %v190 = vld [vmem:[%s1 + $0x510] sm:$0xff]
    %v191 = vld [vmem:[%s1 + $0x518] sm:$0xff]
    %v192 = vld [vmem:[%s1 + $0x520] sm:$0xff]
    %v193 = vld [vmem:[%s1 + $0x528] sm:$0xff]
    %v194 = vld [vmem:[%s1 + $0x530] sm:$0xff]
    %v195 = vld [vmem:[%s1 + $0x538] sm:$0xff]
    %v196 = vld [vmem:[%s1 + $0x540] sm:$0xff]
    %v197 = vld [vmem:[%s1 + $0x548] sm:$0xff]
    %v198 = vld [vmem:[%s1 + $0x550] sm:$0xff]
    %v199 = vld [vmem:[%s1 + $0x558] sm:$0xff]
    %v200 = vld [vmem:[%s1 + $0x560] sm:$0xff]
    %v201 = vld [vmem:[%s1 + $0x568] sm:$0xff]
    %v202 = vld [vmem:[%s1 + $0x570] sm:$0xff]
    %v203 = vld [vmem:[%s1 + $0x578] sm:$0xff]
    %v204 = vld [vmem:[%s1 + $0x580] sm:$0xff]
    %v205 = vld [vmem:[%s1 + $0x588] sm:$0xff]
    %v206 = vld [vmem:[%s1 + $0x590] sm:$0xff]
    %v207 = vld [vmem:[%s1 + $0x598] sm:$0xff]
    %v208 = vld [vmem:[%s1 + $0x5a0] sm:$0xff]
    %v209 = vld [vmem:[%s1 + $0x5a8] sm:$0xff]
    %v210 = vld [vmem:[%s1 + $0x5b0] sm:$0xff]
    %v211 = vld [vmem:[%s1 + $0x5b8] sm:$0xff]
    %v212 = vld [vmem:[%s1 + $0x5c0] sm:$0xff]
    %v213 = vld [vmem:[%s1 + $0x5c8] sm:$0xff]
    %v214 = vld [vmem:[%s1 + $0x5d0] sm:$0xff]
    %v215 = vld [vmem:[%s1 + $0x5d8] sm:$0xff]
    %v216 = vld [vmem:[%s1 + $0x5e0] sm:$0xff]
    %v217 = vld [vmem:[%s1 + $0x5e8] sm:$0xff]
    %v218 = vld [vmem:[%s1 + $0x5f0] sm:$0xff]
    %v219 = vld [vmem:[%s1 + $0x5f8] sm:$0xff]
    %v220 = vld [vmem:[%s1 + $0x600] sm:$0xff]
    %v221 = vld [vmem:[%s1 + $0x608] sm:$0xff]
    %v222 = vld [vmem:[%s1 + $0x610] sm:$0xff]
    %v223 = vld [vmem:[%s1 + $0x618] sm:$0xff]
    %v224 = vld [vmem:[%s1 + $0x620] sm:$0xff]
    %v225 = vld [vmem:[%s1 + $0x628] sm:$0xff]
    %v226 = vld [vmem:[%s1 + $0x630] sm:$0xff]
    %v227 = vld [vmem:[%s1 + $0x638] sm:$0xff]
    %v228 = vld [vmem:[%s1 + $0x640] sm:$0xff]
    %v229 = vld [vmem:[%s1 + $0x648] sm:$0xff]
    %v230 = vld [vmem:[%s1 + $0x650] sm:$0xff]
    %v231 = vld [vmem:[%s1 + $0x658] sm:$0xff]
    %v232 = vld [vmem:[%s1 + $0x660] sm:$0xff]
    %v233 = vld [vmem:[%s1 + $0x668] sm:$0xff]
    %v234 = vld [vmem:[%s1 + $0x670] sm:$0xff]
    %v235 = vld [vmem:[%s1 + $0x678] sm:$0xff]
    %v236 = vld [vmem:[%s1 + $0x680] sm:$0xff]
    %v237 = vld [vmem:[%s1 + $0x688] sm:$0xff]
    %v238 = vld [vmem:[%s1 + $0x690] sm:$0xff]
    %v239 = vld [vmem:[%s1 + $0x698] sm:$0xff]
    %v240 = vld [vmem:[%s1 + $0x6a0] sm:$0xff]
    %v241 = vld [vmem:[%s1 + $0x6a8] sm:$0xff]
    %v242 = vld [vmem:[%s1 + $0x6b0] sm:$0xff]
    %v243 = vld [vmem:[%s1 + $0x6b8] sm:$0xff]
    %v244 = vld [vmem:[%s1 + $0x6c0] sm:$0xff]
    %v245 = vld [vmem:[%s1 + $0x6c8] sm:$0xff]
    %v246 = vld [vmem:[%s1 + $0x6d0] sm:$0xff]
    %v247 = vld [vmem:[%s1 + $0x6d8] sm:$0xff]
    %v248 = vld [vmem:[%s1 + $0x6e0] sm:$0xff]
    %v249 = vld [vmem:[%s1 + $0x6e8] sm:$0xff]
    %v250 = vld [vmem:[%s1 + $0x6f0] sm:$0xff]
    %v251 = vld [vmem:[%s1 + $0x6f8] sm:$0xff]
    %v252 = vld [vmem:[%s1 + $0x700] sm:$0xff]
    %v253 = vld [vmem:[%s1 + $0x708] sm:$0xff]
    %v254 = vld [vmem:[%s1 + $0x710] sm:$0xff]
    %v255 = vld [vmem:[%s1 + $0x718] sm:$0xff]
    %v256 = vld [vmem:[%s1 + $0x720] sm:$0xff]
    %v257 = vld [vmem:[%s1 + $0x728] sm:$0xff]
    %v258 = vld [vmem:[%s1 + $0x730] sm:$0xff]
    %v259 = vld [vmem:[%s1 + $0x738] sm:$0xff]
    %v260 = vld [vmem:[%s1 + $0x740] sm:$0xff]
    %v261 = vld [vmem:[%s1 + $0x748] sm:$0xff]
    %v262 = vld [vmem:[%s1 + $0x750] sm:$0xff]
    %v263 = vld [vmem:[%s1 + $0x758] sm:$0xff]
    %v264 = vld [vmem:[%s1 + $0x760] sm:$0xff]
    %v265 = vld [vmem:[%s1 + $0x768] sm:$0xff]
    %v266 = vld [vmem:[%s1 + $0x770] sm:$0xff]
    %v267 = vld [vmem:[%s1 + $0x778] sm:$0xff]
    %v268 = vld [vmem:[%s1 + $0x780] sm:$0xff]
    %v269 = vld [vmem:[%s1 + $0x788] sm:$0xff]
    %v270 = vld [vmem:[%s1 + $0x790] sm:$0xff]
    %v271 = vld [vmem:[%s1 + $0x798] sm:$0xff]
    %v272 = vld [vmem:[%s1 + $0x7a0] sm:$0xff]
    %v273 = vld [vmem:[%s1 + $0x7a8] sm:$0xff]
    %v274 = vld [vmem:[%s1 + $0x7b0] sm:$0xff]
    %v275 = vld [vmem:[%s1 + $0x7b8] sm:$0xff]
    %v276 = vld [vmem:[%s1 + $0x7c0] sm:$0xff]
    %v277 = vld [vmem:[%s1 + $0x7c8] sm:$0xff]
    %v278 = vld [vmem:[%s1 + $0x7d0] sm:$0xff]
    %v279 = vld [vmem:[%s1 + $0x7d8] sm:$0xff]
    %v280 = vld [vmem:[%s1 + $0x7e0] sm:$0xff]
    %v281 = vld [vmem:[%s1 + $0x7e8] sm:$0xff]
    %v282 = vld [vmem:[%s1 + $0x7f0] sm:$0xff]
    %v283 = vld [vmem:[%s1 + $0x7f8] sm:$0xff]
    %v284 = vld [vmem:[%s1 + $0x800] sm:$0xff]
    %v285 = vld [vmem:[%s1 + $0x808] sm:$0xff]
    %v286 = vld [vmem:[%s1 + $0x810] sm:$0xff]
    %v287 = vld [vmem:[%s1 + $0x818] sm:$0xff]
    %v288 = vld [vmem:[%s1 + $0x820] sm:$0xff]
    %v289 = vld [vmem:[%s1 + $0x828] sm:$0xff]
    %v290 = vld [vmem:[%s1 + $0x830] sm:$0xff]
    %v291 = vld [vmem:[%s1 + $0x838] sm:$0xff]
    %v292 = vld [vmem:[%s1 + $0x840] sm:$0xff]
    %v293 = vld [vmem:[%s1 + $0x848] sm:$0xff]
    %v294 = vld [vmem:[%s1 + $0x850] sm:$0xff]
    %v295 = vld [vmem:[%s1 + $0x858] sm:$0xff]
    %v296 = vld [vmem:[%s1 + $0x860] sm:$0xff]
    %v297 = vld [vmem:[%s1 + $0x868] sm:$0xff]
    %v298 = vld [vmem:[%s1 + $0x870] sm:$0xff]
    %v299 = vld [vmem:[%s1 + $0x878] sm:$0xff]
    %v300 = vld [vmem:[%s1 + $0x880] sm:$0xff]
    %v301 = vld [vmem:[%s1 + $0x888] sm:$0xff]
    %v302 = vld [vmem:[%s1 + $0x890] sm:$0xff]
    %v303 = vld [vmem:[%s1 + $0x898] sm:$0xff]
    %v304 = vld [vmem:[%s1 + $0x8a0] sm:$0xff]
    %v305 = vld [vmem:[%s1 + $0x8a8] sm:$0xff]
    %v306 = vld [vmem:[%s1 + $0x8b0] sm:$0xff]
    %v307 = vld [vmem:[%s1 + $0x8b8] sm:$0xff]
    %v308 = vld [vmem:[%s1 + $0x8c0] sm:$0xff]
    %v309 = vld [vmem:[%s1 + $0x8c8] sm:$0xff]
    %v310 = vld [vmem:[%s1 + $0x8d0] sm:$0xff]
    %v311 = vld [vmem:[%s1 + $0x8d8] sm:$0xff]
    %v312 = vld [vmem:[%s1 + $0x8e0] sm:$0xff]
    %v313 = vld [vmem:[%s1 + $0x8e8] sm:$0xff]
    %v314 = vld [vmem:[%s1 + $0x8f0] sm:$0xff]
    %v315 = vld [vmem:[%s1 + $0x8f8] sm:$0xff]
    %v316 = vld [vmem:[%s1 + $0x900] sm:$0xff]
    %v317 = vld [vmem:[%s1 + $0x908] sm:$0xff]
    %v318 = vld [vmem:[%s1 + $0x910] sm:$0xff]
    %v319 = vld [vmem:[%s1 + $0x918] sm:$0xff]
    %v320 = vld [vmem:[%s1 + $0x920] sm:$0xff]
    %v321 = vld [vmem:[%s1 + $0x928] sm:$0xff]
    %v322 = vld [vmem:[%s1 + $0x930] sm:$0xff]
    %v323 = vld [vmem:[%s1 + $0x938] sm:$0xff]
    %v324 = vld [vmem:[%s1 + $0x940] sm:$0xff]
    %v325 = vld [vmem:[%s1 + $0x948] sm:$0xff]
    %v326 = vld [vmem:[%s1 + $0x950] sm:$0xff]
    %v327 = vld [vmem:[%s1 + $0x958] sm:$0xff]
    %v328 = vld [vmem:[%s1 + $0x960] sm:$0xff]
    %v329 = vld [vmem:[%s1 + $0x968] sm:$0xff]
    %v330 = vld [vmem:[%s1 + $0x970] sm:$0xff]
    %v331 = vld [vmem:[%s1 + $0x978] sm:$0xff]
    %v332 = vld [vmem:[%s1 + $0x980] sm:$0xff]
    %v333 = vld [vmem:[%s1 + $0x988] sm:$0xff]
    %v334 = vld [vmem:[%s1 + $0x990] sm:$0xff]
    %v335 = vld [vmem:[%s1 + $0x998] sm:$0xff]
    %v336 = vld [vmem:[%s1 + $0x9a0] sm:$0xff]
    %v337 = vld [vmem:[%s1 + $0x9a8] sm:$0xff]
    %v338 = vld [vmem:[%s1 + $0x9b0] sm:$0xff]
    %v339 = vld [vmem:[%s1 + $0x9b8] sm:$0xff]
    %v340 = vld [vmem:[%s1 + $0x9c0] sm:$0xff]
    %v341 = vld [vmem:[%s1 + $0x9c8] sm:$0xff]
    %v342 = vld [vmem:[%s1 + $0x9d0] sm:$0xff]
    %v343 = vld [vmem:[%s1 + $0x9d8] sm:$0xff]
    %v344 = vld [vmem:[%s1 + $0x9e0] sm:$0xff]
    %v345 = vld [vmem:[%s1 + $0x9e8] sm:$0xff]
    %v346 = vld [vmem:[%s1 + $0x9f0] sm:$0xff]
    %v347 = vld [vmem:[%s1 + $0x9f8] sm:$0xff]
    %v348 = vld [vmem:[%s1 + $0xa00] sm:$0xff]
    %v349 = vld [vmem:[%s1 + $0xa08] sm:$0xff]
    %v350 = vld [vmem:[%s1 + $0xa10] sm:$0xff]
    %v351 = vld [vmem:[%s1 + $0xa18] sm:$0xff]
    %v352 = vld [vmem:[%s1 + $0xa20] sm:$0xff]
    %v353 = vld [vmem:[%s1 + $0xa28] sm:$0xff]
    %v354 = vld [vmem:[%s1 + $0xa30] sm:$0xff]
    %v355 = vld [vmem:[%s1 + $0xa38] sm:$0xff]
    %v356 = vld [vmem:[%s1 + $0xa40] sm:$0xff]
    %v357 = vld [vmem:[%s1 + $0xa48] sm:$0xff]
    %v358 = vld [vmem:[%s1 + $0xa50] sm:$0xff]
    %v359 = vld [vmem:[%s1 + $0xa58] sm:$0xff]
    %v360 = vld [vmem:[%s1 + $0xa60] sm:$0xff]
    %v361 = vld [vmem:[%s1 + $0xa68] sm:$0xff]
    %v362 = vld [vmem:[%s1 + $0xa70] sm:$0xff]
    %v363 = vld [vmem:[%s1 + $0xa78] sm:$0xff]
    %v364 = vld [vmem:[%s1 + $0xa80] sm:$0xff]
    %v365 = vld [vmem:[%s1 + $0xa88] sm:$0xff]
    %v366 = vld [vmem:[%s1 + $0xa90] sm:$0xff]
    %v367 = vld [vmem:[%s1 + $0xa98] sm:$0xff]
    %v368 = vld [vmem:[%s1 + $0xaa0] sm:$0xff]
    %v369 = vld [vmem:[%s1 + $0xaa8] sm:$0xff]
    %v370 = vld [vmem:[%s1 + $0xab0] sm:$0xff]
    %v371 = vld [vmem:[%s1 + $0xab8] sm:$0xff]
    %v372 = vld [vmem:[%s1 + $0xac0] sm:$0xff]
    %v373 = vld [vmem:[%s1 + $0xac8] sm:$0xff]
    %v374 = vld [vmem:[%s1 + $0xad0] sm:$0xff]
    %v375 = vld [vmem:[%s1 + $0xad8] sm:$0xff]
    %v376 = vld [vmem:[%s1 + $0xae0] sm:$0xff]
    %v377 = vld [vmem:[%s1 + $0xae8] sm:$0xff]
    %v378 = vld [vmem:[%s1 + $0xaf0] sm:$0xff]
    %v379 = vld [vmem:[%s1 + $0xaf8] sm:$0xff]
    %v380 = vld [vmem:[%s1 + $0xb00] sm:$0xff]
    %v381 = vld [vmem:[%s1 + $0xb08] sm:$0xff]
    %v382 = vld [vmem:[%s1 + $0xb10] sm:$0xff]
    %v383 = vld [vmem:[%s1 + $0xb18] sm:$0xff]
    %v384 = vld [vmem:[%s1 + $0xb20] sm:$0xff]
    %v385 = vld [vmem:[%s1 + $0xb28] sm:$0xff]
    %v386 = vld [vmem:[%s1 + $0xb30] sm:$0xff]
    %v387 = vld [vmem:[%s1 + $0xb38] sm:$0xff]
    %v388 = vld [vmem:[%s1 + $0xb40] sm:$0xff]
    %v389 = vld [vmem:[%s1 + $0xb48] sm:$0xff]
    %v390 = vld [vmem:[%s1 + $0xb50] sm:$0xff]
    %v391 = vld [vmem:[%s1 + $0xb58] sm:$0xff]
    %v392 = vld [vmem:[%s1 + $0xb60] sm:$0xff]
    %v393 = vld [vmem:[%s1 + $0xb68] sm:$0xff]
    %v394 = vld [vmem:[%s1 + $0xb70] sm:$0xff]
    %v395 = vld [vmem:[%s1 + $0xb78] sm:$0xff]
    %v396 = vld [vmem:[%s1 + $0xb80] sm:$0xff]
    %v397 = vld [vmem:[%s1 + $0xb88] sm:$0xff]
    %v398 = vld [vmem:[%s1 + $0xb90] sm:$0xff]
    %v399 = vld [vmem:[%s1 + $0xb98] sm:$0xff]
    %v400 = vld [vmem:[%s1 + $0xba0] sm:$0xff]
    %v401 = vld [vmem:[%s1 + $0xba8] sm:$0xff]
    %v402 = vld [vmem:[%s1 + $0xbb0] sm:$0xff]
    %v403 = vld [vmem:[%s1 + $0xbb8] sm:$0xff]
    %v404 = vld [vmem:[%s1 + $0xbc0] sm:$0xff]
    %v405 = vld [vmem:[%s1 + $0xbc8] sm:$0xff]
    %v406 = vld [vmem:[%s1 + $0xbd0] sm:$0xff]
    %v407 = vld [vmem:[%s1 + $0xbd8] sm:$0xff]
    %v408 = vld [vmem:[%s1 + $0xbe0] sm:$0xff]
    %v409 = vld [vmem:[%s1 + $0xbe8] sm:$0xff]
    %v410 = vld [vmem:[%s1 + $0xbf0] sm:$0xff]
    %v411 = vld [vmem:[%s1 + $0xbf8] sm:$0xff]
    %v412 = vld [vmem:[%s1 + $0xc00] sm:$0xff]
    %v413 = vld [vmem:[%s1 + $0xc08] sm:$0xff]
    %v414 = vld [vmem:[%s1 + $0xc10] sm:$0xff]
    %v415 = vld [vmem:[%s1 + $0xc18] sm:$0xff]
    %v416 = vld [vmem:[%s1 + $0xc20] sm:$0xff]
    %v417 = vld [vmem:[%s1 + $0xc28] sm:$0xff]
    %v418 = vld [vmem:[%s1 + $0xc30] sm:$0xff]
    %v419 = vld [vmem:[%s1 + $0xc38] sm:$0xff]
    %v420 = vld [vmem:[%s1 + $0xc40] sm:$0xff]
    %v421 = vld [vmem:[%s1 + $0xc48] sm:$0xff]
    %v422 = vld [vmem:[%s1 + $0xc50] sm:$0xff]
    %v423 = vld [vmem:[%s1 + $0xc58] sm:$0xff]
    %v424 = vld [vmem:[%s1 + $0xc60] sm:$0xff]
    %v425 = vld [vmem:[%s1 + $0xc68] sm:$0xff]
    %v426 = vld [vmem:[%s1 + $0xc70] sm:$0xff]
    %v427 = vld [vmem:[%s1 + $0xc78] sm:$0xff]
    %v428 = vld [vmem:[%s1 + $0xc80] sm:$0xff]
    %v429 = vld [vmem:[%s1 + $0xc88] sm:$0xff]
    %v430 = vld [vmem:[%s1 + $0xc90] sm:$0xff]
    %v431 = vld [vmem:[%s1 + $0xc98] sm:$0xff]
    %v432 = vld [vmem:[%s1 + $0xca0] sm:$0xff]
    %v433 = vld [vmem:[%s1 + $0xca8] sm:$0xff]
    %v434 = vld [vmem:[%s1 + $0xcb0] sm:$0xff]
    %v435 = vld [vmem:[%s1 + $0xcb8] sm:$0xff]
    %v436 = vld [vmem:[%s1 + $0xcc0] sm:$0xff]
    %v437 = vld [vmem:[%s1 + $0xcc8] sm:$0xff]
    %v438 = vld [vmem:[%s1 + $0xcd0] sm:$0xff]
    %v439 = vld [vmem:[%s1 + $0xcd8] sm:$0xff]
    %v440 = vld [vmem:[%s1 + $0xce0] sm:$0xff]
    %v441 = vld [vmem:[%s1 + $0xce8] sm:$0xff]
    %v442 = vld [vmem:[%s1 + $0xcf0] sm:$0xff]
    %v443 = vld [vmem:[%s1 + $0xcf8] sm:$0xff]
    %v444 = vld [vmem:[%s1 + $0xd00] sm:$0xff]
    %v445 = vld [vmem:[%s1 + $0xd08] sm:$0xff]
    %v446 = vld [vmem:[%s1 + $0xd10] sm:$0xff]
    %v447 = vld [vmem:[%s1 + $0xd18] sm:$0xff]
    %v448 = vld [vmem:[%s1 + $0xd20] sm:$0xff]
    %v449 = vld [vmem:[%s1 + $0xd28] sm:$0xff]
    %v450 = vld [vmem:[%s1 + $0xd30] sm:$0xff]
    %v451 = vld [vmem:[%s1 + $0xd38] sm:$0xff]
    %v452 = vld [vmem:[%s1 + $0xd40] sm:$0xff]
    %v453 = vld [vmem:[%s1 + $0xd48] sm:$0xff]
    %v454 = vld [vmem:[%s1 + $0xd50] sm:$0xff]
    %v455 = vld [vmem:[%s1 + $0xd58] sm:$0xff]
    %v456 = vld [vmem:[%s1 + $0xd60] sm:$0xff]
    %v457 = vld [vmem:[%s1 + $0xd68] sm:$0xff]
    %v458 = vld [vmem:[%s1 + $0xd70] sm:$0xff]
    %v459 = vld [vmem:[%s1 + $0xd78] sm:$0xff]
    %v460 = vld [vmem:[%s1 + $0xd80] sm:$0xff]
    %v461 = vld [vmem:[%s1 + $0xd88] sm:$0xff]
    %v462 = vld [vmem:[%s1 + $0xd90] sm:$0xff]
    %v463 = vld [vmem:[%s1 + $0xd98] sm:$0xff]
    %v464 = vld [vmem:[%s1 + $0xda0] sm:$0xff]
    %v465 = vld [vmem:[%s1 + $0xda8] sm:$0xff]
    %v466 = vld [vmem:[%s1 + $0xdb0] sm:$0xff]
    %v467 = vld [vmem:[%s1 + $0xdb8] sm:$0xff]
    %v468 = vld [vmem:[%s1 + $0xdc0] sm:$0xff]
    %v469 = vld [vmem:[%s1 + $0xdc8] sm:$0xff]
    %v470 = vld [vmem:[%s1 + $0xdd0] sm:$0xff]
    %v471 = vld [vmem:[%s1 + $0xdd8] sm:$0xff]
    %v472 = vld [vmem:[%s1 + $0xde0] sm:$0xff]
    %v473 = vld [vmem:[%s1 + $0xde8] sm:$0xff]
    %v474 = vld [vmem:[%s1 + $0xdf0] sm:$0xff]
    %v475 = vld [vmem:[%s1 + $0xdf8] sm:$0xff]
    %v476 = vld [vmem:[%s1 + $0xe00] sm:$0xff]
    %v477 = vld [vmem:[%s1 + $0xe08] sm:$0xff]
    %v478 = vld [vmem:[%s1 + $0xe10] sm:$0xff]
    %v479 = vld [vmem:[%s1 + $0xe18] sm:$0xff]
    %v480 = vld [vmem:[%s1 + $0xe20] sm:$0xff]
    %v481 = vld [vmem:[%s1 + $0xe28] sm:$0xff]
    %v482 = vld [vmem:[%s1 + $0xe30] sm:$0xff]
    %v483 = vld [vmem:[%s1 + $0xe38] sm:$0xff]
    %v484 = vld [vmem:[%s1 + $0xe40] sm:$0xff]
    %v485 = vld [vmem:[%s1 + $0xe48] sm:$0xff]
    %v486 = vld [vmem:[%s1 + $0xe50] sm:$0xff]
    %v487 = vld [vmem:[%s1 + $0xe58] sm:$0xff]
    %v488 = vld [vmem:[%s1 + $0xe60] sm:$0xff]
    %v489 = vld [vmem:[%s1 + $0xe68] sm:$0xff]
    %v490 = vld [vmem:[%s1 + $0xe70] sm:$0xff]
    %v491 = vld [vmem:[%s1 + $0xe78] sm:$0xff]
    %v492 = vld [vmem:[%s1 + $0xe80] sm:$0xff]
    %v493 = vld [vmem:[%s1 + $0xe88] sm:$0xff]
    %v494 = vld [vmem:[%s1 + $0xe90] sm:$0xff]
    %v495 = vld [vmem:[%s1 + $0xe98] sm:$0xff]
    %v496 = vld [vmem:[%s1 + $0xea0] sm:$0xff]
    %v497 = vld [vmem:[%s1 + $0xea8] sm:$0xff]
    %v498 = vld [vmem:[%s1 + $0xeb0] sm:$0xff]
    %v499 = vld [vmem:[%s1 + $0xeb8] sm:$0xff]
    %v500 = vld [vmem:[%s1 + $0xec0] sm:$0xff]
    %v501 = vld [vmem:[%s1 + $0xec8] sm:$0xff]
    %v502 = vld [vmem:[%s1 + $0xed0] sm:$0xff]
    %v503 = vld [vmem:[%s1 + $0xed8] sm:$0xff]
    %v504 = vld [vmem:[%s1 + $0xee0] sm:$0xff]
    %v505 = vld [vmem:[%s1 + $0xee8] sm:$0xff]
    %v506 = vld [vmem:[%s1 + $0xef0] sm:$0xff]
    %v507 = vld [vmem:[%s1 + $0xef8] sm:$0xff]
    %v508 = vld [vmem:[%s1 + $0xf00] sm:$0xff]
    %v509 = vld [vmem:[%s1 + $0xf08] sm:$0xff]
    %v510 = vld [vmem:[%s1 + $0xf10] sm:$0xff]
    %v511 = vld [vmem:[%s1 + $0xf18] sm:$0xff]
    %v512 = vld [vmem:[%s1 + $0xf20] sm:$0xff]
    %v513 = vld [vmem:[%s1 + $0xf28] sm:$0xff]
    %v514 = vld [vmem:[%s1 + $0xf30] sm:$0xff]
    %v515 = vld [vmem:[%s1 + $0xf38] sm:$0xff]
    %v516 = vld [vmem:[%s1 + $0xf40] sm:$0xff]
    %v517 = vld [vmem:[%s1 + $0xf48] sm:$0xff]
    %v518 = vld [vmem:[%s1 + $0xf50] sm:$0xff]
    %v519 = vld [vmem:[%s1 + $0xf58] sm:$0xff]
    %v520 = vld [vmem:[%s1 + $0xf60] sm:$0xff]
    %v521 = vld [vmem:[%s1 + $0xf68] sm:$0xff]
    %v522 = vld [vmem:[%s1 + $0xf70] sm:$0xff]
    %v523 = vld [vmem:[%s1 + $0xf78] sm:$0xff]
    %v524 = vld [vmem:[%s1 + $0xf80] sm:$0xff]
    %v525 = vld [vmem:[%s1 + $0xf88] sm:$0xff]
    %v526 = vld [vmem:[%s1 + $0xf90] sm:$0xff]
    %v527 = vld [vmem:[%s1 + $0xf98] sm:$0xff]
    %v528 = vld [vmem:[%s1 + $0xfa0] sm:$0xff]
    %v529 = vld [vmem:[%s1 + $0xfa8] sm:$0xff]
    %v530 = vld [vmem:[%s1 + $0xfb0] sm:$0xff]
    %v531 = vld [vmem:[%s1 + $0xfb8] sm:$0xff]
    %v532 = vld [vmem:[%s1 + $0xfc0] sm:$0xff]
    %v533 = vld [vmem:[%s1 + $0xfc8] sm:$0xff]
    %v534 = vld [vmem:[%s1 + $0xfd0] sm:$0xff]
    %v535 = vld [vmem:[%s1 + $0xfd8] sm:$0xff]
    %v536 = vld [vmem:[%s1 + $0xfe0] sm:$0xff]
    %v537 = vld [vmem:[%s1 + $0xfe8] sm:$0xff]
    %v538 = vld [vmem:[%s1 + $0xff0] sm:$0xff]
    %v539 = vld [vmem:[%s1 + $0xff8] sm:$0xff]
    %v540 = vld [vmem:[%s1 + $0x1000] sm:$0xff]
    %v541 = vld [vmem:[%s1 + $0x1008] sm:$0xff]
    %v542 = vld [vmem:[%s1 + $0x1010] sm:$0xff]
    %v543 = vld [vmem:[%s1 + $0x1018] sm:$0xff]
    %v544 = vld [vmem:[%s1 + $0x1020] sm:$0xff]
    %v545 = vld [vmem:[%s1 + $0x1028] sm:$0xff]
    %v546 = vld [vmem:[%s1 + $0x1030] sm:$0xff]
    %v547 = vld [vmem:[%s1 + $0x1038] sm:$0xff]
    %v548 = vld [vmem:[%s1 + $0x1040] sm:$0xff]
    %v549 = vld [vmem:[%s1 + $0x1048] sm:$0xff]
    %v550 = vld [vmem:[%s1 + $0x1050] sm:$0xff]
    %v551 = vld [vmem:[%s1 + $0x1058] sm:$0xff]
    %v552 = vld [vmem:[%s1 + $0x1060] sm:$0xff]
    %v553 = vld [vmem:[%s1 + $0x1068] sm:$0xff]
    %v554 = vld [vmem:[%s1 + $0x1070] sm:$0xff]
    %v555 = vld [vmem:[%s1 + $0x1078] sm:$0xff]
    %v556 = vld [vmem:[%s1 + $0x1080] sm:$0xff]
    %v557 = vld [vmem:[%s1 + $0x1088] sm:$0xff]
    %v558 = vld [vmem:[%s1 + $0x1090] sm:$0xff]
    %v559 = vld [vmem:[%s1 + $0x1098] sm:$0xff]
    %v560 = vld [vmem:[%s1 + $0x10a0] sm:$0xff]
    %v561 = vld [vmem:[%s1 + $0x10a8] sm:$0xff]
    %v562 = vld [vmem:[%s1 + $0x10b0] sm:$0xff]
    %v563 = vld [vmem:[%s1 + $0x10b8] sm:$0xff]
    %v564 = vld [vmem:[%s1 + $0x10c0] sm:$0xff]
    %v565 = vld [vmem:[%s1 + $0x10c8] sm:$0xff]
    %v566 = vld [vmem:[%s1 + $0x10d0] sm:$0xff]
    %v567 = vld [vmem:[%s1 + $0x10d8] sm:$0xff]
    %v568 = vld [vmem:[%s1 + $0x10e0] sm:$0xff]
    %v569 = vld [vmem:[%s1 + $0x10e8] sm:$0xff]
    %v570 = vld [vmem:[%s1 + $0x10f0] sm:$0xff]
    %v571 = vld [vmem:[%s1 + $0x10f8] sm:$0xff]
    %v572 = vld [vmem:[%s1 + $0x1100] sm:$0xff]
    %v573 = vld [vmem:[%s1 + $0x1108] sm:$0xff]
    %v574 = vld [vmem:[%s1 + $0x1110] sm:$0xff]
    %v575 = vld [vmem:[%s1 + $0x1118] sm:$0xff]
    %v576 = vld [vmem:[%s1 + $0x1120] sm:$0xff]
    %v577 = vld [vmem:[%s1 + $0x1128] sm:$0xff]
    %v578 = vld [vmem:[%s1 + $0x1130] sm:$0xff]
    %v579 = vld [vmem:[%s1 + $0x1138] sm:$0xff]
    %v580 = vld [vmem:[%s1 + $0x1140] sm:$0xff]
    %v581 = vld [vmem:[%s1 + $0x1148] sm:$0xff]
    %v582 = vld [vmem:[%s1 + $0x1150] sm:$0xff]
    %v583 = vld [vmem:[%s1 + $0x1158] sm:$0xff]
    %v584 = vld [vmem:[%s1 + $0x1160] sm:$0xff]
    %v585 = vld [vmem:[%s1 + $0x1168] sm:$0xff]
    %v586 = vld [vmem:[%s1 + $0x1170] sm:$0xff]
    %v587 = vld [vmem:[%s1 + $0x1178] sm:$0xff]
    %v588 = vld [vmem:[%s1 + $0x1180] sm:$0xff]
    %v589 = vld [vmem:[%s1 + $0x1188] sm:$0xff]
    %v590 = vld [vmem:[%s1 + $0x1190] sm:$0xff]
    %v591 = vld [vmem:[%s1 + $0x1198] sm:$0xff]
    %v592 = vld [vmem:[%s1 + $0x11a0] sm:$0xff]
    %v593 = vld [vmem:[%s1 + $0x11a8] sm:$0xff]
    %v594 = vld [vmem:[%s1 + $0x11b0] sm:$0xff]
    %v595 = vld [vmem:[%s1 + $0x11b8] sm:$0xff]
    %v596 = vld [vmem:[%s1 + $0x11c0] sm:$0xff]
    %v597 = vld [vmem:[%s1 + $0x11c8] sm:$0xff]
    %v598 = vld [vmem:[%s1 + $0x11d0] sm:$0xff]
    %v599 = vld [vmem:[%s1 + $0x11d8] sm:$0xff]
    %v600 = vld [vmem:[%s1 + $0x11e0] sm:$0xff]
    %v601 = vld [vmem:[%s1 + $0x11e8] sm:$0xff]
    %v602 = vld [vmem:[%s1 + $0x11f0] sm:$0xff]
    %v603 = vld [vmem:[%s1 + $0x11f8] sm:$0xff]
    %v604 = vld [vmem:[%s1 + $0x1200] sm:$0xff]
    %v605 = vld [vmem:[%s1 + $0x1208] sm:$0xff]
    %v606 = vld [vmem:[%s1 + $0x1210] sm:$0xff]
    %v607 = vld [vmem:[%s1 + $0x1218] sm:$0xff]
    %v608 = vld [vmem:[%s1 + $0x1220] sm:$0xff]
    %v609 = vld [vmem:[%s1 + $0x1228] sm:$0xff]
    %v610 = vld [vmem:[%s1 + $0x1230] sm:$0xff]
    %v611 = vld [vmem:[%s1 + $0x1238] sm:$0xff]
    %v612 = vld [vmem:[%s1 + $0x1240] sm:$0xff]
    %v613 = vld [vmem:[%s1 + $0x1248] sm:$0xff]
    %v614 = vld [vmem:[%s1 + $0x1250] sm:$0xff]
    %v615 = vld [vmem:[%s1 + $0x1258] sm:$0xff]
    %v616 = vld [vmem:[%s1 + $0x1260] sm:$0xff]
    %v617 = vld [vmem:[%s1 + $0x1268] sm:$0xff]
    %v618 = vld [vmem:[%s1 + $0x1270] sm:$0xff]
    %v619 = vld [vmem:[%s1 + $0x1278] sm:$0xff]
    %v620 = vld [vmem:[%s1 + $0x1280] sm:$0xff]
    %v621 = vld [vmem:[%s1 + $0x1288] sm:$0xff]
    %v622 = vld [vmem:[%s1 + $0x1290] sm:$0xff]
    %v623 = vld [vmem:[%s1 + $0x1298] sm:$0xff]
    %v624 = vld [vmem:[%s1 + $0x12a0] sm:$0xff]
    %v625 = vld [vmem:[%s1 + $0x12a8] sm:$0xff]
    %v626 = vld [vmem:[%s1 + $0x12b0] sm:$0xff]
    %v627 = vld [vmem:[%s1 + $0x12b8] sm:$0xff]
    %v628 = vld [vmem:[%s1 + $0x12c0] sm:$0xff]
    %v629 = vld [vmem:[%s1 + $0x12c8] sm:$0xff]
    %v630 = vld [vmem:[%s1 + $0x12d0] sm:$0xff]
    %v631 = vld [vmem:[%s1 + $0x12d8] sm:$0xff]
    %v632 = vld [vmem:[%s1 + $0x12e0] sm:$0xff]
    %v633 = vld [vmem:[%s1 + $0x12e8] sm:$0xff]
    %v634 = vld [vmem:[%s1 + $0x12f0] sm:$0xff]
    %v635 = vld [vmem:[%s1 + $0x12f8] sm:$0xff]
    %v636 = vld [vmem:[%s1 + $0x1300] sm:$0xff]
    %v637 = vld [vmem:[%s1 + $0x1308] sm:$0xff]
    %v638 = vld [vmem:[%s1 + $0x1310] sm:$0xff]
    %v639 = vld [vmem:[%s1 + $0x1318] sm:$0xff]
    %v640 = vld [vmem:[%s1 + $0x1320] sm:$0xff]
    %v641 = vld [vmem:[%s1 + $0x1328] sm:$0xff]
    %v642 = vld [vmem:[%s1 + $0x1330] sm:$0xff]
    %v643 = vld [vmem:[%s1 + $0x1338] sm:$0xff]
    %v644 = vld [vmem:[%s1 + $0x1340] sm:$0xff]
    %v645 = vld [vmem:[%s1 + $0x1348] sm:$0xff]
    %v646 = vld [vmem:[%s1 + $0x1350] sm:$0xff]
    %v647 = vld [vmem:[%s1 + $0x1358] sm:$0xff]
    %v648 = vld [vmem:[%s1 + $0x1360] sm:$0xff]
    %v649 = vld [vmem:[%s1 + $0x1368] sm:$0xff]
    %v650 = vld [vmem:[%s1 + $0x1370] sm:$0xff]
    %v651 = vld [vmem:[%s1 + $0x1378] sm:$0xff]
    %v652 = vld [vmem:[%s1 + $0x1380] sm:$0xff]
    %v653 = vld [vmem:[%s1 + $0x1388] sm:$0xff]
    %v654 = vld [vmem:[%s1 + $0x1390] sm:$0xff]
    %v655 = vld [vmem:[%s1 + $0x1398] sm:$0xff]
    %v656 = vld [vmem:[%s1 + $0x13a0] sm:$0xff]
    %v657 = vld [vmem:[%s1 + $0x13a8] sm:$0xff]
    %v658 = vld [vmem:[%s1 + $0x13b0] sm:$0xff]
    %v659 = vld [vmem:[%s1 + $0x13b8] sm:$0xff]
    %v660 = vld [vmem:[%s1 + $0x13c0] sm:$0xff]
    %v661 = vld [vmem:[%s1 + $0x13c8] sm:$0xff]
    %v662 = vld [vmem:[%s1 + $0x13d0] sm:$0xff]
    %v663 = vld [vmem:[%s1 + $0x13d8] sm:$0xff]
    %v664 = vld [vmem:[%s1 + $0x13e0] sm:$0xff]
    %v665 = vld [vmem:[%s1 + $0x13e8] sm:$0xff]
    %v666 = vld [vmem:[%s1 + $0x13f0] sm:$0xff]
    %v667 = vld [vmem:[%s1 + $0x13f8] sm:$0xff]
    %v668 = vld [vmem:[%s1 + $0x1400] sm:$0xff]
    %v669 = vld [vmem:[%s1 + $0x1408] sm:$0xff]
    %v670 = vld [vmem:[%s1 + $0x1410] sm:$0xff]
    %v671 = vld [vmem:[%s1 + $0x1418] sm:$0xff]
    %v672 = vld [vmem:[%s1 + $0x1420] sm:$0xff]
    %v673 = vld [vmem:[%s1 + $0x1428] sm:$0xff]
    %v674 = vld [vmem:[%s1 + $0x1430] sm:$0xff]
    %v675 = vld [vmem:[%s1 + $0x1438] sm:$0xff]
    %v676 = vld [vmem:[%s1 + $0x1440] sm:$0xff]
    %v677 = vld [vmem:[%s1 + $0x1448] sm:$0xff]
    %v678 = vld [vmem:[%s1 + $0x1450] sm:$0xff]
    %v679 = vld [vmem:[%s1 + $0x1458] sm:$0xff]
    %v680 = vld [vmem:[%s1 + $0x1460] sm:$0xff]
    %v681 = vld [vmem:[%s1 + $0x1468] sm:$0xff]
    %v682 = vld [vmem:[%s1 + $0x1470] sm:$0xff]
    %v683 = vld [vmem:[%s1 + $0x1478] sm:$0xff]
    %v684 = vld [vmem:[%s1 + $0x1480] sm:$0xff]
    %v685 = vld [vmem:[%s1 + $0x1488] sm:$0xff]
    %v686 = vld [vmem:[%s1 + $0x1490] sm:$0xff]
    %v687 = vld [vmem:[%s1 + $0x1498] sm:$0xff]
    %v688 = vld [vmem:[%s1 + $0x14a0] sm:$0xff]
    %v689 = vld [vmem:[%s1 + $0x14a8] sm:$0xff]
    %v690 = vld [vmem:[%s1 + $0x14b0] sm:$0xff]
    %v691 = vld [vmem:[%s1 + $0x14b8] sm:$0xff]
    %v692 = vld [vmem:[%s1 + $0x14c0] sm:$0xff]
    %v693 = vld [vmem:[%s1 + $0x14c8] sm:$0xff]
    %v694 = vld [vmem:[%s1 + $0x14d0] sm:$0xff]
    %v695 = vld [vmem:[%s1 + $0x14d8] sm:$0xff]
    %v696 = vld [vmem:[%s1 + $0x14e0] sm:$0xff]
    %v697 = vld [vmem:[%s1 + $0x14e8] sm:$0xff]
    %v698 = vld [vmem:[%s1 + $0x14f0] sm:$0xff]
    %v699 = vld [vmem:[%s1 + $0x14f8] sm:$0xff]
    %v700 = vld [vmem:[%s1 + $0x1500] sm:$0xff]
    %v701 = vld [vmem:[%s1 + $0x1508] sm:$0xff]
    %v702 = vld [vmem:[%s1 + $0x1510] sm:$0xff]
    %v703 = vld [vmem:[%s1 + $0x1518] sm:$0xff]
    %v704 = vld [vmem:[%s1 + $0x1520] sm:$0xff]
    %v705 = vld [vmem:[%s1 + $0x1528] sm:$0xff]
    %v706 = vld [vmem:[%s1 + $0x1530] sm:$0xff]
    %v707 = vld [vmem:[%s1 + $0x1538] sm:$0xff]
    %v708 = vld [vmem:[%s1 + $0x1540] sm:$0xff]
    %v709 = vld [vmem:[%s1 + $0x1548] sm:$0xff]
    %v710 = vld [vmem:[%s1 + $0x1550] sm:$0xff]
    %v711 = vld [vmem:[%s1 + $0x1558] sm:$0xff]
    %v712 = vld [vmem:[%s1 + $0x1560] sm:$0xff]
    %v713 = vld [vmem:[%s1 + $0x1568] sm:$0xff]
    %v714 = vld [vmem:[%s1 + $0x1570] sm:$0xff]
    %v715 = vld [vmem:[%s1 + $0x1578] sm:$0xff]
    %v716 = vld [vmem:[%s1 + $0x1580] sm:$0xff]
    %v717 = vld [vmem:[%s1 + $0x1588] sm:$0xff]
    %v718 = vld [vmem:[%s1 + $0x1590] sm:$0xff]
    %v719 = vld [vmem:[%s1 + $0x1598] sm:$0xff]
    %v720 = vld [vmem:[%s1 + $0x15a0] sm:$0xff]
    %v721 = vld [vmem:[%s1 + $0x15a8] sm:$0xff]
    %v722 = vld [vmem:[%s1 + $0x15b0] sm:$0xff]
    %v723 = vld [vmem:[%s1 + $0x15b8] sm:$0xff]
    %v724 = vld [vmem:[%s1 + $0x15c0] sm:$0xff]
    %v725 = vld [vmem:[%s1 + $0x15c8] sm:$0xff]
    %v726 = vld [vmem:[%s1 + $0x15d0] sm:$0xff]
    %v727 = vld [vmem:[%s1 + $0x15d8] sm:$0xff]
    %v728 = vld [vmem:[%s1 + $0x15e0] sm:$0xff]
    %v729 = vld [vmem:[%s1 + $0x15e8] sm:$0xff]
    %v730 = vld [vmem:[%s1 + $0x15f0] sm:$0xff]
    %v731 = vld [vmem:[%s1 + $0x15f8] sm:$0xff]
    %v732 = vld [vmem:[%s1 + $0x1600] sm:$0xff]
    %v733 = vld [vmem:[%s1 + $0x1608] sm:$0xff]
    %v734 = vld [vmem:[%s1 + $0x1610] sm:$0xff]
    %v735 = vld [vmem:[%s1 + $0x1618] sm:$0xff]
    %v736 = vld [vmem:[%s1 + $0x1620] sm:$0xff]
    %v737 = vld [vmem:[%s1 + $0x1628] sm:$0xff]
    %v738 = vld [vmem:[%s1 + $0x1630] sm:$0xff]
    %v739 = vld [vmem:[%s1 + $0x1638] sm:$0xff]
    %v740 = vld [vmem:[%s1 + $0x1640] sm:$0xff]
    %v741 = vld [vmem:[%s1 + $0x1648] sm:$0xff]
    %v742 = vld [vmem:[%s1 + $0x1650] sm:$0xff]
    %v743 = vld [vmem:[%s1 + $0x1658] sm:$0xff]
    %v744 = vld [vmem:[%s1 + $0x1660] sm:$0xff]
    %v745 = vld [vmem:[%s1 + $0x1668] sm:$0xff]
    %v746 = vld [vmem:[%s1 + $0x1670] sm:$0xff]
    %v747 = vld [vmem:[%s1 + $0x1678] sm:$0xff]
    %v748 = vld [vmem:[%s1 + $0x1680] sm:$0xff]
    %v749 = vld [vmem:[%s1 + $0x1688] sm:$0xff]
    %v750 = vld [vmem:[%s1 + $0x1690] sm:$0xff]
    %v751 = vld [vmem:[%s1 + $0x1698] sm:$0xff]
    %v752 = vld [vmem:[%s1 + $0x16a0] sm:$0xff]
    %v753 = vld [vmem:[%s1 + $0x16a8] sm:$0xff]
    %v754 = vld [vmem:[%s1 + $0x16b0] sm:$0xff]
    %v755 = vld [vmem:[%s1 + $0x16b8] sm:$0xff]
    %v756 = vld [vmem:[%s1 + $0x16c0] sm:$0xff]
    %v757 = vld [vmem:[%s1 + $0x16c8] sm:$0xff]
    %v758 = vld [vmem:[%s1 + $0x16d0] sm:$0xff]
    %v759 = vld [vmem:[%s1 + $0x16d8] sm:$0xff]
    %v760 = vld [vmem:[%s1 + $0x16e0] sm:$0xff]
    %v761 = vld [vmem:[%s1 + $0x16e8] sm:$0xff]
    %v762 = vld [vmem:[%s1 + $0x16f0] sm:$0xff]
    %v763 = vld [vmem:[%s1 + $0x16f8] sm:$0xff]
    %v764 = vld [vmem:[%s1 + $0x1700] sm:$0xff]
    %v765 = vld [vmem:[%s1 + $0x1708] sm:$0xff]
    %v766 = vld [vmem:[%s1 + $0x1710] sm:$0xff]
    %v767 = vld [vmem:[%s1 + $0x1718] sm:$0xff]
    %v768 = vld [vmem:[%s1 + $0x1720] sm:$0xff]
    %v769 = vld [vmem:[%s1 + $0x1728] sm:$0xff]
    %v770 = vld [vmem:[%s1 + $0x1730] sm:$0xff]
    %v771 = vld [vmem:[%s1 + $0x1738] sm:$0xff]
    %v772 = vld [vmem:[%s1 + $0x1740] sm:$0xff]
    %v773 = vld [vmem:[%s1 + $0x1748] sm:$0xff]
    %v774 = vld [vmem:[%s1 + $0x1750] sm:$0xff]
    %v775 = vld [vmem:[%s1 + $0x1758] sm:$0xff]
    %v776 = vld [vmem:[%s1 + $0x1760] sm:$0xff]
    %v777 = vld [vmem:[%s1 + $0x1768] sm:$0xff]
    %v778 = vld [vmem:[%s1 + $0x1770] sm:$0xff]
    %v779 = vld [vmem:[%s1 + $0x1778] sm:$0xff]
    %v780 = vld [vmem:[%s1 + $0x1780] sm:$0xff]
    %v781 = vld [vmem:[%s1 + $0x1788] sm:$0xff]
    %v782 = vld [vmem:[%s1 + $0x1790] sm:$0xff]
    %v783 = vld [vmem:[%s1 + $0x1798] sm:$0xff]
    %v784 = vld [vmem:[%s1 + $0x17a0] sm:$0xff]
    %v785 = vld [vmem:[%s1 + $0x17a8] sm:$0xff]
    %v786 = vld [vmem:[%s1 + $0x17b0] sm:$0xff]
    %v787 = vld [vmem:[%s1 + $0x17b8] sm:$0xff]
    %v788 = vld [vmem:[%s1 + $0x17c0] sm:$0xff]
    %v789 = vld [vmem:[%s1 + $0x17c8] sm:$0xff]
    %v790 = vld [vmem:[%s1 + $0x17d0] sm:$0xff]
    %v791 = vld [vmem:[%s1 + $0x17d8] sm:$0xff]
    %v792 = vld [vmem:[%s1 + $0x17e0] sm:$0xff]
    %v793 = vld [vmem:[%s1 + $0x17e8] sm:$0xff]
    %v794 = vld [vmem:[%s1 + $0x17f0] sm:$0xff]
    %v795 = vld [vmem:[%s1 + $0x17f8] sm:$0xff]
    %v796 = vld [vmem:[%s1 + $0x1800] sm:$0xff]
    %v797 = vld [vmem:[%s1 + $0x1808] sm:$0xff]
    %v798 = vld [vmem:[%s1 + $0x1810] sm:$0xff]
    %v799 = vld [vmem:[%s1 + $0x1818] sm:$0xff]
    %v800 = vld [vmem:[%s1 + $0x1820] sm:$0xff]
    %v801 = vld [vmem:[%s1 + $0x1828] sm:$0xff]
    %v802 = vld [vmem:[%s1 + $0x1830] sm:$0xff]
    %v803 = vld [vmem:[%s1 + $0x1838] sm:$0xff]
    %v804 = vld [vmem:[%s1 + $0x1840] sm:$0xff]
    %v805 = vld [vmem:[%s1 + $0x1848] sm:$0xff]
    %v806 = vld [vmem:[%s1 + $0x1850] sm:$0xff]
    %v807 = vld [vmem:[%s1 + $0x1858] sm:$0xff]
    %v808 = vld [vmem:[%s1 + $0x1860] sm:$0xff]
    %v809 = vld [vmem:[%s1 + $0x1868] sm:$0xff]
    %v810 = vld [vmem:[%s1 + $0x1870] sm:$0xff]
    %v811 = vld [vmem:[%s1 + $0x1878] sm:$0xff]
    %v812 = vld [vmem:[%s2] sm:$0xf]
    %v814 = vperm.slane %v812, 0
    %v815 = vperm.slane %v812, 1
    %v816 = vperm.slane %v812, 2
    %v817 = vperm.slane %v812, 3
    %823 = vst [vmem:[#allocation1] ss:$9 sm:$0xff] %v24
    %v824 = vld [vmem:[#allocation1] sm:$0xff]
    %v825 = vld [vmem:[#allocation1 + $0x9] sm:$0xff]
    %v826 = vld [vmem:[#allocation1 + $0x12] sm:$0xff]
    %v827 = vld [vmem:[#allocation1 + $0x1b] sm:$0xff]
    %v828 = vld [vmem:[#allocation1 + $0x24] sm:$0xff]
    %v829 = vld [vmem:[#allocation1 + $0x2d] sm:$0xff]
    %v830 = vld [vmem:[#allocation1 + $0x36] sm:$0xff]
    %v831 = vld [vmem:[#allocation1 + $0x3f] sm:$0xff]
    %833 = vst [vmem:[#allocation1] ss:$9 sm:$0xff] %v25
    %v834 = vld [vmem:[#allocation1] sm:$0xff]
    %v835 = vld [vmem:[#allocation1 + $0x9] sm:$0xff]
    %v836 = vld [vmem:[#allocation1 + $0x12] sm:$0xff]
    %v837 = vld [vmem:[#allocation1 + $0x1b] sm:$0xff]
    %v838 = vld [vmem:[#allocation1 + $0x24] sm:$0xff]
    %v839 = vld [vmem:[#allocation1 + $0x2d] sm:$0xff]
    %v840 = vld [vmem:[#allocation1 + $0x36] sm:$0xff]
    %v841 = vld [vmem:[#allocation1 + $0x3f] sm:$0xff]
    %843 = vst [vmem:[#allocation1] ss:$9 sm:$0xff] %v26
    %v844 = vld [vmem:[#allocation1] sm:$0xff]
    %v845 = vld [vmem:[#allocation1 + $0x9] sm:$0xff]
    %v846 = vld [vmem:[#allocation1 + $0x12] sm:$0xff]
    %v847 = vld [vmem:[#allocation1 + $0x1b] sm:$0xff]
    %v848 = vld [vmem:[#allocation1 + $0x24] sm:$0xff]
    %v849 = vld [vmem:[#allocation1 + $0x2d] sm:$0xff]
    %v850 = vld [vmem:[#allocation1 + $0x36] sm:$0xff]
    %v851 = vld [vmem:[#allocation1 + $0x3f] sm:$0xff]
    %853 = vst [vmem:[#allocation1] ss:$9 sm:$0xff] %v27
    %v854 = vld [vmem:[#allocation1] sm:$0xff]
    %v1663 = vunpack.c.l.b16 %v28
    %v1664 = vunpack.c.h.b16 %v28
    %v1665 = vunpack.c.l.b16 %v29
    %v1666 = vunpack.c.h.b16 %v29
    %v1667 = vunpack.c.l.b16 %v30
    %v1668 = vunpack.c.h.b16 %v30
    %v1669 = vunpack.c.l.b16 %v31
    %v1670 = vunpack.c.h.b16 %v31
    %v1671 = vunpack.c.l.b16 %v32
    %v1672 = vunpack.c.h.b16 %v32
    %v1673 = vunpack.c.l.b16 %v33
    %v1674 = vunpack.c.h.b16 %v33
    %v1675 = vunpack.c.l.b16 %v34
    %v1676 = vunpack.c.h.b16 %v34
    %v1677 = vunpack.c.l.b16 %v35
    %v1678 = vunpack.c.h.b16 %v35
    %v1679 = vunpack.c.l.b16 %v36
    %v1680 = vunpack.c.h.b16 %v36
    %v1681 = vunpack.c.l.b16 %v37
    %v1682 = vunpack.c.h.b16 %v37
    %v1683 = vunpack.c.l.b16 %v38
    %v1684 = vunpack.c.h.b16 %v38
    %v1685 = vunpack.c.l.b16 %v39
    %v1686 = vunpack.c.h.b16 %v39
    %v1687 = vunpack.c.l.b16 %v40
    %v1688 = vunpack.c.h.b16 %v40
    %v1689 = vunpack.c.l.b16 %v41
    %v1690 = vunpack.c.h.b16 %v41
    %v1691 = vunpack.c.l.b16 %v42
    %v1692 = vunpack.c.h.b16 %v42
    %v1693 = vunpack.c.l.b16 %v43
    %v1694 = vunpack.c.h.b16 %v43
    %v1695 = vunpack.c.l.b16 %v44
    %v1696 = vunpack.c.h.b16 %v44
    %v1697 = vunpack.c.l.b16 %v45
    %v1698 = vunpack.c.h.b16 %v45
    %v1699 = vunpack.c.l.b16 %v46
    %v1700 = vunpack.c.h.b16 %v46
    %v1701 = vunpack.c.l.b16 %v47
    %v1702 = vunpack.c.h.b16 %v47
    %v1703 = vunpack.c.l.b16 %v48
    %v1704 = vunpack.c.h.b16 %v48
    %v1705 = vunpack.c.l.b16 %v49
    %v1706 = vunpack.c.h.b16 %v49
    %v1707 = vunpack.c.l.b16 %v50
    %v1708 = vunpack.c.h.b16 %v50
    %v1709 = vunpack.c.l.b16 %v51
    %v1710 = vunpack.c.h.b16 %v51
    %v1711 = vunpack.c.l.b16 %v52
    %v1712 = vunpack.c.h.b16 %v52
    %v1713 = vunpack.c.l.b16 %v53
    %v1714 = vunpack.c.h.b16 %v53
    %v1715 = vunpack.c.l.b16 %v54
    %v1716 = vunpack.c.h.b16 %v54
    %v1717 = vunpack.c.l.b16 %v55
    %v1718 = vunpack.c.h.b16 %v55
    %v1719 = vunpack.c.l.b16 %v56
    %v1720 = vunpack.c.h.b16 %v56
    %v1721 = vunpack.c.l.b16 %v57
    %v1722 = vunpack.c.h.b16 %v57
    %v1723 = vunpack.c.l.b16 %v58
    %v1724 = vunpack.c.h.b16 %v58
    %v1725 = vunpack.c.l.b16 %v59
    %v1726 = vunpack.c.h.b16 %v59
    %v1727 = vunpack.c.l.b16 %v60
    %v1728 = vunpack.c.h.b16 %v60
    %v1729 = vunpack.c.l.b16 %v61
    %v1730 = vunpack.c.h.b16 %v61
    %v1731 = vunpack.c.l.b16 %v62
    %v1732 = vunpack.c.h.b16 %v62
    %v1733 = vunpack.c.l.b16 %v63
    %v1734 = vunpack.c.h.b16 %v63
    %v1735 = vunpack.c.l.b16 %v64
    %v1736 = vunpack.c.h.b16 %v64
    %v1737 = vunpack.c.l.b16 %v65
    %v1738 = vunpack.c.h.b16 %v65
    %v1739 = vunpack.c.l.b16 %v66
    %v1740 = vunpack.c.h.b16 %v66
    %v1741 = vunpack.c.l.b16 %v67
    %v1742 = vunpack.c.h.b16 %v67
    %v1743 = vunpack.c.l.b16 %v68
    %v1744 = vunpack.c.h.b16 %v68
    %v1745 = vunpack.c.l.b16 %v69
    %v1746 = vunpack.c.h.b16 %v69
    %v1747 = vunpack.c.l.b16 %v70
    %v1748 = vunpack.c.h.b16 %v70
    %v1749 = vunpack.c.l.b16 %v71
    %v1750 = vunpack.c.h.b16 %v71
    %v1751 = vunpack.c.l.b16 %v72
    %v1752 = vunpack.c.h.b16 %v72
    %v1753 = vunpack.c.l.b16 %v73
    %v1754 = vunpack.c.h.b16 %v73
    %v1755 = vunpack.c.l.b16 %v74
    %v1756 = vunpack.c.h.b16 %v74
    %v1757 = vunpack.c.l.b16 %v75
    %v1758 = vunpack.c.h.b16 %v75
    %v1759 = vunpack.c.l.b16 %v76
    %v1760 = vunpack.c.h.b16 %v76
    %v1761 = vunpack.c.l.b16 %v77
    %v1762 = vunpack.c.h.b16 %v77
    %v1763 = vunpack.c.l.b16 %v78
    %v1764 = vunpack.c.h.b16 %v78
    %v1765 = vunpack.c.l.b16 %v79
    %v1766 = vunpack.c.h.b16 %v79
    %v1767 = vunpack.c.l.b16 %v80
    %v1768 = vunpack.c.h.b16 %v80
    %v1769 = vunpack.c.l.b16 %v81
    %v1770 = vunpack.c.h.b16 %v81
    %v1771 = vunpack.c.l.b16 %v82
    %v1772 = vunpack.c.h.b16 %v82
    %v1773 = vunpack.c.l.b16 %v83
    %v1774 = vunpack.c.h.b16 %v83
    %v1775 = vunpack.c.l.b16 %v84
    %v1776 = vunpack.c.h.b16 %v84
    %v1777 = vunpack.c.l.b16 %v85
    %v1778 = vunpack.c.h.b16 %v85
    %v1779 = vunpack.c.l.b16 %v86
    %v1780 = vunpack.c.h.b16 %v86
    %v1781 = vunpack.c.l.b16 %v87
    %v1782 = vunpack.c.h.b16 %v87
    %v1783 = vunpack.c.l.b16 %v88
    %v1784 = vunpack.c.h.b16 %v88
    %v1785 = vunpack.c.l.b16 %v89
    %v1786 = vunpack.c.h.b16 %v89
    %v1787 = vunpack.c.l.b16 %v90
    %v1788 = vunpack.c.h.b16 %v90
    %v1789 = vunpack.c.l.b16 %v91
    %v1790 = vunpack.c.h.b16 %v91
    %v1791 = vunpack.c.l.b16 %v92
    %v1792 = vunpack.c.h.b16 %v92
    %v1793 = vunpack.c.l.b16 %v93
    %v1794 = vunpack.c.h.b16 %v93
    %v1795 = vunpack.c.l.b16 %v94
    %v1796 = vunpack.c.h.b16 %v94
    %v1797 = vunpack.c.l.b16 %v95
    %v1798 = vunpack.c.h.b16 %v95
    %v1799 = vunpack.c.l.b16 %v96
    %v1800 = vunpack.c.h.b16 %v96
    %v1801 = vunpack.c.l.b16 %v97
    %v1802 = vunpack.c.h.b16 %v97
    %v1803 = vunpack.c.l.b16 %v98
    %v1804 = vunpack.c.h.b16 %v98
    %v1805 = vunpack.c.l.b16 %v99
    %v1806 = vunpack.c.h.b16 %v99
    %v1807 = vunpack.c.l.b16 %v100
    %v1808 = vunpack.c.h.b16 %v100
    %v1809 = vunpack.c.l.b16 %v101
    %v1810 = vunpack.c.h.b16 %v101
    %v1811 = vunpack.c.l.b16 %v102
    %v1812 = vunpack.c.h.b16 %v102
    %v1813 = vunpack.c.l.b16 %v103
    %v1814 = vunpack.c.h.b16 %v103
    %v1815 = vunpack.c.l.b16 %v104
    %v1816 = vunpack.c.h.b16 %v104
    %v1817 = vunpack.c.l.b16 %v105
    %v1818 = vunpack.c.h.b16 %v105
    %v1819 = vunpack.c.l.b16 %v106
    %v1820 = vunpack.c.h.b16 %v106
    %v1821 = vunpack.c.l.b16 %v107
    %v1822 = vunpack.c.h.b16 %v107
    %v1823 = vunpack.c.l.b16 %v108
    %v1824 = vunpack.c.h.b16 %v108
    %v1825 = vunpack.c.l.b16 %v109
    %v1826 = vunpack.c.h.b16 %v109
    %v1827 = vunpack.c.l.b16 %v110
    %v1828 = vunpack.c.h.b16 %v110
    %v1829 = vunpack.c.l.b16 %v111
    %v1830 = vunpack.c.h.b16 %v111
    %v1831 = vunpack.c.l.b16 %v112
    %v1832 = vunpack.c.h.b16 %v112
    %v1833 = vunpack.c.l.b16 %v113
    %v1834 = vunpack.c.h.b16 %v113
    %v1835 = vunpack.c.l.b16 %v114
    %v1836 = vunpack.c.h.b16 %v114
    %v1837 = vunpack.c.l.b16 %v115
    %v1838 = vunpack.c.h.b16 %v115
    %v1839 = vunpack.c.l.b16 %v116
    %v1840 = vunpack.c.h.b16 %v116
    %v1841 = vunpack.c.l.b16 %v117
    %v1842 = vunpack.c.h.b16 %v117
    %v1843 = vunpack.c.l.b16 %v118
    %v1844 = vunpack.c.h.b16 %v118
    %v1845 = vunpack.c.l.b16 %v119
    %v1846 = vunpack.c.h.b16 %v119
    %v1847 = vunpack.c.l.b16 %v120
    %v1848 = vunpack.c.h.b16 %v120
    %v1849 = vunpack.c.l.b16 %v121
    %v1850 = vunpack.c.h.b16 %v121
    %v1851 = vunpack.c.l.b16 %v122
    %v1852 = vunpack.c.h.b16 %v122
    %v1853 = vunpack.c.l.b16 %v123
    %v1854 = vunpack.c.h.b16 %v123
    %v1855 = vunpack.c.l.b16 %v124
    %v1856 = vunpack.c.h.b16 %v124
    %v1857 = vunpack.c.l.b16 %v125
    %v1858 = vunpack.c.h.b16 %v125
    %v1859 = vunpack.c.l.b16 %v126
    %v1860 = vunpack.c.h.b16 %v126
    %v1861 = vunpack.c.l.b16 %v127
    %v1862 = vunpack.c.h.b16 %v127
    %v1863 = vunpack.c.l.b16 %v128
    %v1864 = vunpack.c.h.b16 %v128
    %v1865 = vunpack.c.l.b16 %v129
    %v1866 = vunpack.c.h.b16 %v129
    %v1867 = vunpack.c.l.b16 %v130
    %v1868 = vunpack.c.h.b16 %v130
    %v1869 = vunpack.c.l.b16 %v131
    %v1870 = vunpack.c.h.b16 %v131
    %v1871 = vunpack.c.l.b16 %v132
    %v1872 = vunpack.c.h.b16 %v132
    %v1873 = vunpack.c.l.b16 %v133
    %v1874 = vunpack.c.h.b16 %v133
    %v1875 = vunpack.c.l.b16 %v134
    %v1876 = vunpack.c.h.b16 %v134
    %v1877 = vunpack.c.l.b16 %v135
    %v1878 = vunpack.c.h.b16 %v135
    %v1879 = vunpack.c.l.b16 %v136
    %v1880 = vunpack.c.h.b16 %v136
    %v1881 = vunpack.c.l.b16 %v137
    %v1882 = vunpack.c.h.b16 %v137
    %v1883 = vunpack.c.l.b16 %v138
    %v1884 = vunpack.c.h.b16 %v138
    %v1885 = vunpack.c.l.b16 %v139
    %v1886 = vunpack.c.h.b16 %v139
    %v1887 = vunpack.c.l.b16 %v140
    %v1888 = vunpack.c.h.b16 %v140
    %v1889 = vunpack.c.l.b16 %v141
    %v1890 = vunpack.c.h.b16 %v141
    %v1891 = vunpack.c.l.b16 %v142
    %v1892 = vunpack.c.h.b16 %v142
    %v1893 = vunpack.c.l.b16 %v143
    %v1894 = vunpack.c.h.b16 %v143
    %v1895 = vunpack.c.l.b16 %v144
    %v1896 = vunpack.c.h.b16 %v144
    %v1897 = vunpack.c.l.b16 %v145
    %v1898 = vunpack.c.h.b16 %v145
    %v1899 = vunpack.c.l.b16 %v146
    %v1900 = vunpack.c.h.b16 %v146
    %v1901 = vunpack.c.l.b16 %v147
    %v1902 = vunpack.c.h.b16 %v147
    %v1903 = vunpack.c.l.b16 %v148
    %v1904 = vunpack.c.h.b16 %v148
    %v1905 = vunpack.c.l.b16 %v149
    %v1906 = vunpack.c.h.b16 %v149
    %v1907 = vunpack.c.l.b16 %v150
    %v1908 = vunpack.c.h.b16 %v150
    %v1909 = vunpack.c.l.b16 %v151
    %v1910 = vunpack.c.h.b16 %v151
    %v1911 = vunpack.c.l.b16 %v152
    %v1912 = vunpack.c.h.b16 %v152
    %v1913 = vunpack.c.l.b16 %v153
    %v1914 = vunpack.c.h.b16 %v153
    %v1915 = vunpack.c.l.b16 %v154
    %v1916 = vunpack.c.h.b16 %v154
    %v1917 = vunpack.c.l.b16 %v155
    %v1918 = vunpack.c.h.b16 %v155
    %v1919 = vunpack.c.l.b16 %v156
    %v1920 = vunpack.c.h.b16 %v156
    %v1921 = vunpack.c.l.b16 %v157
    %v1922 = vunpack.c.h.b16 %v157
    %v1923 = vunpack.c.l.b16 %v158
    %v1924 = vunpack.c.h.b16 %v158
    %v1925 = vunpack.c.l.b16 %v159
    %v1926 = vunpack.c.h.b16 %v159
    %v1927 = vunpack.c.l.b16 %v160
    %v1928 = vunpack.c.h.b16 %v160
    %v1929 = vunpack.c.l.b16 %v161
    %v1930 = vunpack.c.h.b16 %v161
    %v1931 = vunpack.c.l.b16 %v162
    %v1932 = vunpack.c.h.b16 %v162
    %v1933 = vunpack.c.l.b16 %v163
    %v1934 = vunpack.c.h.b16 %v163
    %v1935 = vunpack.c.l.b16 %v164
    %v1936 = vunpack.c.h.b16 %v164
    %v1937 = vunpack.c.l.b16 %v165
    %v1938 = vunpack.c.h.b16 %v165
    %v1939 = vunpack.c.l.b16 %v166
    %v1940 = vunpack.c.h.b16 %v166
    %v1941 = vunpack.c.l.b16 %v167
    %v1942 = vunpack.c.h.b16 %v167
    %v1943 = vunpack.c.l.b16 %v168
    %v1944 = vunpack.c.h.b16 %v168
    %v1945 = vunpack.c.l.b16 %v169
    %v1946 = vunpack.c.h.b16 %v169
    %v1947 = vunpack.c.l.b16 %v170
    %v1948 = vunpack.c.h.b16 %v170
    %v1949 = vunpack.c.l.b16 %v171
    %v1950 = vunpack.c.h.b16 %v171
    %v1951 = vunpack.c.l.b16 %v172
    %v1952 = vunpack.c.h.b16 %v172
    %v1953 = vunpack.c.l.b16 %v173
    %v1954 = vunpack.c.h.b16 %v173
    %v1955 = vunpack.c.l.b16 %v174
    %v1956 = vunpack.c.h.b16 %v174
    %v1957 = vunpack.c.l.b16 %v175
    %v1958 = vunpack.c.h.b16 %v175
    %v1959 = vunpack.c.l.b16 %v176
    %v1960 = vunpack.c.h.b16 %v176
    %v1961 = vunpack.c.l.b16 %v177
    %v1962 = vunpack.c.h.b16 %v177
    %v1963 = vunpack.c.l.b16 %v178
    %v1964 = vunpack.c.h.b16 %v178
    %v1965 = vunpack.c.l.b16 %v179
    %v1966 = vunpack.c.h.b16 %v179
    %v1967 = vunpack.c.l.b16 %v180
    %v1968 = vunpack.c.h.b16 %v180
    %v1969 = vunpack.c.l.b16 %v181
    %v1970 = vunpack.c.h.b16 %v181
    %v1971 = vunpack.c.l.b16 %v182
    %v1972 = vunpack.c.h.b16 %v182
    %v1973 = vunpack.c.l.b16 %v183
    %v1974 = vunpack.c.h.b16 %v183
    %v1975 = vunpack.c.l.b16 %v184
    %v1976 = vunpack.c.h.b16 %v184
    %v1977 = vunpack.c.l.b16 %v185
    %v1978 = vunpack.c.h.b16 %v185
    %v1979 = vunpack.c.l.b16 %v186
    %v1980 = vunpack.c.h.b16 %v186
    %v1981 = vunpack.c.l.b16 %v187
    %v1982 = vunpack.c.h.b16 %v187
    %v1983 = vunpack.c.l.b16 %v188
    %v1984 = vunpack.c.h.b16 %v188
    %v1985 = vunpack.c.l.b16 %v189
    %v1986 = vunpack.c.h.b16 %v189
    %v1987 = vunpack.c.l.b16 %v190
    %v1988 = vunpack.c.h.b16 %v190
    %v1989 = vunpack.c.l.b16 %v191
    %v1990 = vunpack.c.h.b16 %v191
    %v1991 = vunpack.c.l.b16 %v192
    %v1992 = vunpack.c.h.b16 %v192
    %v1993 = vunpack.c.l.b16 %v193
    %v1994 = vunpack.c.h.b16 %v193
    %v1995 = vunpack.c.l.b16 %v194
    %v1996 = vunpack.c.h.b16 %v194
    %v1997 = vunpack.c.l.b16 %v195
    %v1998 = vunpack.c.h.b16 %v195
    %v1999 = vunpack.c.l.b16 %v196
    %v2000 = vunpack.c.h.b16 %v196
    %v2001 = vunpack.c.l.b16 %v197
    %v2002 = vunpack.c.h.b16 %v197
    %v2003 = vunpack.c.l.b16 %v198
    %v2004 = vunpack.c.h.b16 %v198
    %v2005 = vunpack.c.l.b16 %v199
    %v2006 = vunpack.c.h.b16 %v199
    %v2007 = vunpack.c.l.b16 %v200
    %v2008 = vunpack.c.h.b16 %v200
    %v2009 = vunpack.c.l.b16 %v201
    %v2010 = vunpack.c.h.b16 %v201
    %v2011 = vunpack.c.l.b16 %v202
    %v2012 = vunpack.c.h.b16 %v202
    %v2013 = vunpack.c.l.b16 %v203
    %v2014 = vunpack.c.h.b16 %v203
    %v2015 = vunpack.c.l.b16 %v204
    %v2016 = vunpack.c.h.b16 %v204
    %v2017 = vunpack.c.l.b16 %v205
    %v2018 = vunpack.c.h.b16 %v205
    %v2019 = vunpack.c.l.b16 %v206
    %v2020 = vunpack.c.h.b16 %v206
    %v2021 = vunpack.c.l.b16 %v207
    %v2022 = vunpack.c.h.b16 %v207
    %v2023 = vunpack.c.l.b16 %v208
    %v2024 = vunpack.c.h.b16 %v208
    %v2025 = vunpack.c.l.b16 %v209
    %v2026 = vunpack.c.h.b16 %v209
    %v2027 = vunpack.c.l.b16 %v210
    %v2028 = vunpack.c.h.b16 %v210
    %v2029 = vunpack.c.l.b16 %v211
    %v2030 = vunpack.c.h.b16 %v211
    %v2031 = vunpack.c.l.b16 %v212
    %v2032 = vunpack.c.h.b16 %v212
    %v2033 = vunpack.c.l.b16 %v213
    %v2034 = vunpack.c.h.b16 %v213
    %v2035 = vunpack.c.l.b16 %v214
    %v2036 = vunpack.c.h.b16 %v214
    %v2037 = vunpack.c.l.b16 %v215
    %v2038 = vunpack.c.h.b16 %v215
    %v2039 = vunpack.c.l.b16 %v216
    %v2040 = vunpack.c.h.b16 %v216
    %v2041 = vunpack.c.l.b16 %v217
    %v2042 = vunpack.c.h.b16 %v217
    %v2043 = vunpack.c.l.b16 %v218
    %v2044 = vunpack.c.h.b16 %v218
    %v2045 = vunpack.c.l.b16 %v219
    %v2046 = vunpack.c.h.b16 %v219
    %v2047 = vunpack.c.l.b16 %v220
    %v2048 = vunpack.c.h.b16 %v220
    %v2049 = vunpack.c.l.b16 %v221
    %v2050 = vunpack.c.h.b16 %v221
    %v2051 = vunpack.c.l.b16 %v222
    %v2052 = vunpack.c.h.b16 %v222
    %v2053 = vunpack.c.l.b16 %v223
    %v2054 = vunpack.c.h.b16 %v223
    %v2055 = vunpack.c.l.b16 %v224
    %v2056 = vunpack.c.h.b16 %v224
    %v2057 = vunpack.c.l.b16 %v225
    %v2058 = vunpack.c.h.b16 %v225
    %v2059 = vunpack.c.l.b16 %v226
    %v2060 = vunpack.c.h.b16 %v226
    %v2061 = vunpack.c.l.b16 %v227
    %v2062 = vunpack.c.h.b16 %v227
    %v2063 = vunpack.c.l.b16 %v228
    %v2064 = vunpack.c.h.b16 %v228
    %v2065 = vunpack.c.l.b16 %v229
    %v2066 = vunpack.c.h.b16 %v229
    %v2067 = vunpack.c.l.b16 %v230
    %v2068 = vunpack.c.h.b16 %v230
    %v2069 = vunpack.c.l.b16 %v231
    %v2070 = vunpack.c.h.b16 %v231
    %v2071 = vunpack.c.l.b16 %v232
    %v2072 = vunpack.c.h.b16 %v232
    %v2073 = vunpack.c.l.b16 %v233
    %v2074 = vunpack.c.h.b16 %v233
    %v2075 = vunpack.c.l.b16 %v234
    %v2076 = vunpack.c.h.b16 %v234
    %v2077 = vunpack.c.l.b16 %v235
    %v2078 = vunpack.c.h.b16 %v235
    %v2079 = vunpack.c.l.b16 %v236
    %v2080 = vunpack.c.h.b16 %v236
    %v2081 = vunpack.c.l.b16 %v237
    %v2082 = vunpack.c.h.b16 %v237
    %v2083 = vunpack.c.l.b16 %v238
    %v2084 = vunpack.c.h.b16 %v238
    %v2085 = vunpack.c.l.b16 %v239
    %v2086 = vunpack.c.h.b16 %v239
    %v2087 = vunpack.c.l.b16 %v240
    %v2088 = vunpack.c.h.b16 %v240
    %v2089 = vunpack.c.l.b16 %v241
    %v2090 = vunpack.c.h.b16 %v241
    %v2091 = vunpack.c.l.b16 %v242
    %v2092 = vunpack.c.h.b16 %v242
    %v2093 = vunpack.c.l.b16 %v243
    %v2094 = vunpack.c.h.b16 %v243
    %v2095 = vunpack.c.l.b16 %v244
    %v2096 = vunpack.c.h.b16 %v244
    %v2097 = vunpack.c.l.b16 %v245
    %v2098 = vunpack.c.h.b16 %v245
    %v2099 = vunpack.c.l.b16 %v246
    %v2100 = vunpack.c.h.b16 %v246
    %v2101 = vunpack.c.l.b16 %v247
    %v2102 = vunpack.c.h.b16 %v247
    %v2103 = vunpack.c.l.b16 %v248
    %v2104 = vunpack.c.h.b16 %v248
    %v2105 = vunpack.c.l.b16 %v249
    %v2106 = vunpack.c.h.b16 %v249
    %v2107 = vunpack.c.l.b16 %v250
    %v2108 = vunpack.c.h.b16 %v250
    %v2109 = vunpack.c.l.b16 %v251
    %v2110 = vunpack.c.h.b16 %v251
    %v2111 = vunpack.c.l.b16 %v252
    %v2112 = vunpack.c.h.b16 %v252
    %v2113 = vunpack.c.l.b16 %v253
    %v2114 = vunpack.c.h.b16 %v253
    %v2115 = vunpack.c.l.b16 %v254
    %v2116 = vunpack.c.h.b16 %v254
    %v2117 = vunpack.c.l.b16 %v255
    %v2118 = vunpack.c.h.b16 %v255
    %v2119 = vunpack.c.l.b16 %v256
    %v2120 = vunpack.c.h.b16 %v256
    %v2121 = vunpack.c.l.b16 %v257
    %v2122 = vunpack.c.h.b16 %v257
    %v2123 = vunpack.c.l.b16 %v258
    %v2124 = vunpack.c.h.b16 %v258
    %v2125 = vunpack.c.l.b16 %v259
    %v2126 = vunpack.c.h.b16 %v259
    %v2127 = vunpack.c.l.b16 %v260
    %v2128 = vunpack.c.h.b16 %v260
    %v2129 = vunpack.c.l.b16 %v261
    %v2130 = vunpack.c.h.b16 %v261
    %v2131 = vunpack.c.l.b16 %v262
    %v2132 = vunpack.c.h.b16 %v262
    %v2133 = vunpack.c.l.b16 %v263
    %v2134 = vunpack.c.h.b16 %v263
    %v2135 = vunpack.c.l.b16 %v264
    %v2136 = vunpack.c.h.b16 %v264
    %v2137 = vunpack.c.l.b16 %v265
    %v2138 = vunpack.c.h.b16 %v265
    %v2139 = vunpack.c.l.b16 %v266
    %v2140 = vunpack.c.h.b16 %v266
    %v2141 = vunpack.c.l.b16 %v267
    %v2142 = vunpack.c.h.b16 %v267
    %v2143 = vunpack.c.l.b16 %v268
    %v2144 = vunpack.c.h.b16 %v268
    %v2145 = vunpack.c.l.b16 %v269
    %v2146 = vunpack.c.h.b16 %v269
    %v2147 = vunpack.c.l.b16 %v270
    %v2148 = vunpack.c.h.b16 %v270
    %v2149 = vunpack.c.l.b16 %v271
    %v2150 = vunpack.c.h.b16 %v271
    %v2151 = vunpack.c.l.b16 %v272
    %v2152 = vunpack.c.h.b16 %v272
    %v2153 = vunpack.c.l.b16 %v273
    %v2154 = vunpack.c.h.b16 %v273
    %v2155 = vunpack.c.l.b16 %v274
    %v2156 = vunpack.c.h.b16 %v274
    %v2157 = vunpack.c.l.b16 %v275
    %v2158 = vunpack.c.h.b16 %v275
    %v2159 = vunpack.c.l.b16 %v276
    %v2160 = vunpack.c.h.b16 %v276
    %v2161 = vunpack.c.l.b16 %v277
    %v2162 = vunpack.c.h.b16 %v277
    %v2163 = vunpack.c.l.b16 %v278
    %v2164 = vunpack.c.h.b16 %v278
    %v2165 = vunpack.c.l.b16 %v279
    %v2166 = vunpack.c.h.b16 %v279
    %v2167 = vunpack.c.l.b16 %v280
    %v2168 = vunpack.c.h.b16 %v280
    %v2169 = vunpack.c.l.b16 %v281
    %v2170 = vunpack.c.h.b16 %v281
    %v2171 = vunpack.c.l.b16 %v282
    %v2172 = vunpack.c.h.b16 %v282
    %v2173 = vunpack.c.l.b16 %v283
    %v2174 = vunpack.c.h.b16 %v283
    %v2175 = vunpack.c.l.b16 %v284
    %v2176 = vunpack.c.h.b16 %v284
    %v2177 = vunpack.c.l.b16 %v285
    %v2178 = vunpack.c.h.b16 %v285
    %v2179 = vunpack.c.l.b16 %v286
    %v2180 = vunpack.c.h.b16 %v286
    %v2181 = vunpack.c.l.b16 %v287
    %v2182 = vunpack.c.h.b16 %v287
    %v2183 = vunpack.c.l.b16 %v288
    %v2184 = vunpack.c.h.b16 %v288
    %v2185 = vunpack.c.l.b16 %v289
    %v2186 = vunpack.c.h.b16 %v289
    %v2187 = vunpack.c.l.b16 %v290
    %v2188 = vunpack.c.h.b16 %v290
    %v2189 = vunpack.c.l.b16 %v291
    %v2190 = vunpack.c.h.b16 %v291
    %v2191 = vunpack.c.l.b16 %v292
    %v2192 = vunpack.c.h.b16 %v292
    %v2193 = vunpack.c.l.b16 %v293
    %v2194 = vunpack.c.h.b16 %v293
    %v2195 = vunpack.c.l.b16 %v294
    %v2196 = vunpack.c.h.b16 %v294
    %v2197 = vunpack.c.l.b16 %v295
    %v2198 = vunpack.c.h.b16 %v295
    %v2199 = vunpack.c.l.b16 %v296
    %v2200 = vunpack.c.h.b16 %v296
    %v2201 = vunpack.c.l.b16 %v297
    %v2202 = vunpack.c.h.b16 %v297
    %v2203 = vunpack.c.l.b16 %v298
    %v2204 = vunpack.c.h.b16 %v298
    %v2205 = vunpack.c.l.b16 %v299
    %v2206 = vunpack.c.h.b16 %v299
    %v2207 = vunpack.c.l.b16 %v300
    %v2208 = vunpack.c.h.b16 %v300
    %v2209 = vunpack.c.l.b16 %v301
    %v2210 = vunpack.c.h.b16 %v301
    %v2211 = vunpack.c.l.b16 %v302
    %v2212 = vunpack.c.h.b16 %v302
    %v2213 = vunpack.c.l.b16 %v303
    %v2214 = vunpack.c.h.b16 %v303
    %v2215 = vunpack.c.l.b16 %v304
    %v2216 = vunpack.c.h.b16 %v304
    %v2217 = vunpack.c.l.b16 %v305
    %v2218 = vunpack.c.h.b16 %v305
    %v2219 = vunpack.c.l.b16 %v306
    %v2220 = vunpack.c.h.b16 %v306
    %v2221 = vunpack.c.l.b16 %v307
    %v2222 = vunpack.c.h.b16 %v307
    %v2223 = vunpack.c.l.b16 %v308
    %v2224 = vunpack.c.h.b16 %v308
    %v2225 = vunpack.c.l.b16 %v309
    %v2226 = vunpack.c.h.b16 %v309
    %v2227 = vunpack.c.l.b16 %v310
    %v2228 = vunpack.c.h.b16 %v310
    %v2229 = vunpack.c.l.b16 %v311
    %v2230 = vunpack.c.h.b16 %v311
    %v2231 = vunpack.c.l.b16 %v312
    %v2232 = vunpack.c.h.b16 %v312
    %v2233 = vunpack.c.l.b16 %v313
    %v2234 = vunpack.c.h.b16 %v313
    %v2235 = vunpack.c.l.b16 %v314
    %v2236 = vunpack.c.h.b16 %v314
    %v2237 = vunpack.c.l.b16 %v315
    %v2238 = vunpack.c.h.b16 %v315
    %v2239 = vunpack.c.l.b16 %v316
    %v2240 = vunpack.c.h.b16 %v316
    %v2241 = vunpack.c.l.b16 %v317
    %v2242 = vunpack.c.h.b16 %v317
    %v2243 = vunpack.c.l.b16 %v318
    %v2244 = vunpack.c.h.b16 %v318
    %v2245 = vunpack.c.l.b16 %v319
    %v2246 = vunpack.c.h.b16 %v319
    %v2247 = vunpack.c.l.b16 %v320
    %v2248 = vunpack.c.h.b16 %v320
    %v2249 = vunpack.c.l.b16 %v321
    %v2250 = vunpack.c.h.b16 %v321
    %v2251 = vunpack.c.l.b16 %v322
    %v2252 = vunpack.c.h.b16 %v322
    %v2253 = vunpack.c.l.b16 %v323
    %v2254 = vunpack.c.h.b16 %v323
    %v2255 = vunpack.c.l.b16 %v324
    %v2256 = vunpack.c.h.b16 %v324
    %v2257 = vunpack.c.l.b16 %v325
    %v2258 = vunpack.c.h.b16 %v325
    %v2259 = vunpack.c.l.b16 %v326
    %v2260 = vunpack.c.h.b16 %v326
    %v2261 = vunpack.c.l.b16 %v327
    %v2262 = vunpack.c.h.b16 %v327
    %v2263 = vunpack.c.l.b16 %v328
    %v2264 = vunpack.c.h.b16 %v328
    %v2265 = vunpack.c.l.b16 %v329
    %v2266 = vunpack.c.h.b16 %v329
    %v2267 = vunpack.c.l.b16 %v330
    %v2268 = vunpack.c.h.b16 %v330
    %v2269 = vunpack.c.l.b16 %v331
    %v2270 = vunpack.c.h.b16 %v331
    %v2271 = vunpack.c.l.b16 %v332
    %v2272 = vunpack.c.h.b16 %v332
    %v2273 = vunpack.c.l.b16 %v333
    %v2274 = vunpack.c.h.b16 %v333
    %v2275 = vunpack.c.l.b16 %v334
    %v2276 = vunpack.c.h.b16 %v334
    %v2277 = vunpack.c.l.b16 %v335
    %v2278 = vunpack.c.h.b16 %v335
    %v2279 = vunpack.c.l.b16 %v336
    %v2280 = vunpack.c.h.b16 %v336
    %v2281 = vunpack.c.l.b16 %v337
    %v2282 = vunpack.c.h.b16 %v337
    %v2283 = vunpack.c.l.b16 %v338
    %v2284 = vunpack.c.h.b16 %v338
    %v2285 = vunpack.c.l.b16 %v339
    %v2286 = vunpack.c.h.b16 %v339
    %v2287 = vunpack.c.l.b16 %v340
    %v2288 = vunpack.c.h.b16 %v340
    %v2289 = vunpack.c.l.b16 %v341
    %v2290 = vunpack.c.h.b16 %v341
    %v2291 = vunpack.c.l.b16 %v342
    %v2292 = vunpack.c.h.b16 %v342
    %v2293 = vunpack.c.l.b16 %v343
    %v2294 = vunpack.c.h.b16 %v343
    %v2295 = vunpack.c.l.b16 %v344
    %v2296 = vunpack.c.h.b16 %v344
    %v2297 = vunpack.c.l.b16 %v345
    %v2298 = vunpack.c.h.b16 %v345
    %v2299 = vunpack.c.l.b16 %v346
    %v2300 = vunpack.c.h.b16 %v346
    %v2301 = vunpack.c.l.b16 %v347
    %v2302 = vunpack.c.h.b16 %v347
    %v2303 = vunpack.c.l.b16 %v348
    %v2304 = vunpack.c.h.b16 %v348
    %v2305 = vunpack.c.l.b16 %v349
    %v2306 = vunpack.c.h.b16 %v349
    %v2307 = vunpack.c.l.b16 %v350
    %v2308 = vunpack.c.h.b16 %v350
    %v2309 = vunpack.c.l.b16 %v351
    %v2310 = vunpack.c.h.b16 %v351
    %v2311 = vunpack.c.l.b16 %v352
    %v2312 = vunpack.c.h.b16 %v352
    %v2313 = vunpack.c.l.b16 %v353
    %v2314 = vunpack.c.h.b16 %v353
    %v2315 = vunpack.c.l.b16 %v354
    %v2316 = vunpack.c.h.b16 %v354
    %v2317 = vunpack.c.l.b16 %v355
    %v2318 = vunpack.c.h.b16 %v355
    %v2319 = vunpack.c.l.b16 %v356
    %v2320 = vunpack.c.h.b16 %v356
    %v2321 = vunpack.c.l.b16 %v357
    %v2322 = vunpack.c.h.b16 %v357
    %v2323 = vunpack.c.l.b16 %v358
    %v2324 = vunpack.c.h.b16 %v358
    %v2325 = vunpack.c.l.b16 %v359
    %v2326 = vunpack.c.h.b16 %v359
    %v2327 = vunpack.c.l.b16 %v360
    %v2328 = vunpack.c.h.b16 %v360
    %v2329 = vunpack.c.l.b16 %v361
    %v2330 = vunpack.c.h.b16 %v361
    %v2331 = vunpack.c.l.b16 %v362
    %v2332 = vunpack.c.h.b16 %v362
    %v2333 = vunpack.c.l.b16 %v363
    %v2334 = vunpack.c.h.b16 %v363
    %v2335 = vunpack.c.l.b16 %v364
    %v2336 = vunpack.c.h.b16 %v364
    %v2337 = vunpack.c.l.b16 %v365
    %v2338 = vunpack.c.h.b16 %v365
    %v2339 = vunpack.c.l.b16 %v366
    %v2340 = vunpack.c.h.b16 %v366
    %v2341 = vunpack.c.l.b16 %v367
    %v2342 = vunpack.c.h.b16 %v367
    %v2343 = vunpack.c.l.b16 %v368
    %v2344 = vunpack.c.h.b16 %v368
    %v2345 = vunpack.c.l.b16 %v369
    %v2346 = vunpack.c.h.b16 %v369
    %v2347 = vunpack.c.l.b16 %v370
    %v2348 = vunpack.c.h.b16 %v370
    %v2349 = vunpack.c.l.b16 %v371
    %v2350 = vunpack.c.h.b16 %v371
    %v2351 = vunpack.c.l.b16 %v372
    %v2352 = vunpack.c.h.b16 %v372
    %v2353 = vunpack.c.l.b16 %v373
    %v2354 = vunpack.c.h.b16 %v373
    %v2355 = vunpack.c.l.b16 %v374
    %v2356 = vunpack.c.h.b16 %v374
    %v2357 = vunpack.c.l.b16 %v375
    %v2358 = vunpack.c.h.b16 %v375
    %v2359 = vunpack.c.l.b16 %v376
    %v2360 = vunpack.c.h.b16 %v376
    %v2361 = vunpack.c.l.b16 %v377
    %v2362 = vunpack.c.h.b16 %v377
    %v2363 = vunpack.c.l.b16 %v378
    %v2364 = vunpack.c.h.b16 %v378
    %v2365 = vunpack.c.l.b16 %v379
    %v2366 = vunpack.c.h.b16 %v379
    %v2367 = vunpack.c.l.b16 %v380
    %v2368 = vunpack.c.h.b16 %v380
    %v2369 = vunpack.c.l.b16 %v381
    %v2370 = vunpack.c.h.b16 %v381
    %v2371 = vunpack.c.l.b16 %v382
    %v2372 = vunpack.c.h.b16 %v382
    %v2373 = vunpack.c.l.b16 %v383
    %v2374 = vunpack.c.h.b16 %v383
    %v2375 = vunpack.c.l.b16 %v384
    %v2376 = vunpack.c.h.b16 %v384
    %v2377 = vunpack.c.l.b16 %v385
    %v2378 = vunpack.c.h.b16 %v385
    %v2379 = vunpack.c.l.b16 %v386
    %v2380 = vunpack.c.h.b16 %v386
    %v2381 = vunpack.c.l.b16 %v387
    %v2382 = vunpack.c.h.b16 %v387
    %v2383 = vunpack.c.l.b16 %v388
    %v2384 = vunpack.c.h.b16 %v388
    %v2385 = vunpack.c.l.b16 %v389
    %v2386 = vunpack.c.h.b16 %v389
    %v2387 = vunpack.c.l.b16 %v390
    %v2388 = vunpack.c.h.b16 %v390
    %v2389 = vunpack.c.l.b16 %v391
    %v2390 = vunpack.c.h.b16 %v391
    %v2391 = vunpack.c.l.b16 %v392
    %v2392 = vunpack.c.h.b16 %v392
    %v2393 = vunpack.c.l.b16 %v393
    %v2394 = vunpack.c.h.b16 %v393
    %v2395 = vunpack.c.l.b16 %v394
    %v2396 = vunpack.c.h.b16 %v394
    %v2397 = vunpack.c.l.b16 %v395
    %v2398 = vunpack.c.h.b16 %v395
    %v2399 = vunpack.c.l.b16 %v396
    %v2400 = vunpack.c.h.b16 %v396
    %v2401 = vunpack.c.l.b16 %v397
    %v2402 = vunpack.c.h.b16 %v397
    %v2403 = vunpack.c.l.b16 %v398
    %v2404 = vunpack.c.h.b16 %v398
    %v2405 = vunpack.c.l.b16 %v399
    %v2406 = vunpack.c.h.b16 %v399
    %v2407 = vunpack.c.l.b16 %v400
    %v2408 = vunpack.c.h.b16 %v400
    %v2409 = vunpack.c.l.b16 %v401
    %v2410 = vunpack.c.h.b16 %v401
    %v2411 = vunpack.c.l.b16 %v402
    %v2412 = vunpack.c.h.b16 %v402
    %v2413 = vunpack.c.l.b16 %v403
    %v2414 = vunpack.c.h.b16 %v403
    %v2415 = vunpack.c.l.b16 %v404
    %v2416 = vunpack.c.h.b16 %v404
    %v2417 = vunpack.c.l.b16 %v405
    %v2418 = vunpack.c.h.b16 %v405
    %v2419 = vunpack.c.l.b16 %v406
    %v2420 = vunpack.c.h.b16 %v406
    %v2421 = vunpack.c.l.b16 %v407
    %v2422 = vunpack.c.h.b16 %v407
    %v2423 = vunpack.c.l.b16 %v408
    %v2424 = vunpack.c.h.b16 %v408
    %v2425 = vunpack.c.l.b16 %v409
    %v2426 = vunpack.c.h.b16 %v409
    %v2427 = vunpack.c.l.b16 %v410
    %v2428 = vunpack.c.h.b16 %v410
    %v2429 = vunpack.c.l.b16 %v411
    %v2430 = vunpack.c.h.b16 %v411
    %v2431 = vunpack.c.l.b16 %v412
    %v2432 = vunpack.c.h.b16 %v412
    %v2433 = vunpack.c.l.b16 %v413
    %v2434 = vunpack.c.h.b16 %v413
    %v2435 = vunpack.c.l.b16 %v414
    %v2436 = vunpack.c.h.b16 %v414
    %v2437 = vunpack.c.l.b16 %v415
    %v2438 = vunpack.c.h.b16 %v415
    %v2439 = vunpack.c.l.b16 %v416
    %v2440 = vunpack.c.h.b16 %v416
    %v2441 = vunpack.c.l.b16 %v417
    %v2442 = vunpack.c.h.b16 %v417
    %v2443 = vunpack.c.l.b16 %v418
    %v2444 = vunpack.c.h.b16 %v418
    %v2445 = vunpack.c.l.b16 %v419
    %v2446 = vunpack.c.h.b16 %v419
    %v2447 = vunpack.c.l.b16 %v420
    %v2448 = vunpack.c.h.b16 %v420
    %v2449 = vunpack.c.l.b16 %v421
    %v2450 = vunpack.c.h.b16 %v421
    %v2451 = vunpack.c.l.b16 %v422
    %v2452 = vunpack.c.h.b16 %v422
    %v2453 = vunpack.c.l.b16 %v423
    %v2454 = vunpack.c.h.b16 %v423
    %v2455 = vunpack.c.l.b16 %v424
    %v2456 = vunpack.c.h.b16 %v424
    %v2457 = vunpack.c.l.b16 %v425
    %v2458 = vunpack.c.h.b16 %v425
    %v2459 = vunpack.c.l.b16 %v426
    %v2460 = vunpack.c.h.b16 %v426
    %v2461 = vunpack.c.l.b16 %v427
    %v2462 = vunpack.c.h.b16 %v427
    %v2463 = vunpack.c.l.b16 %v428
    %v2464 = vunpack.c.h.b16 %v428
    %v2465 = vunpack.c.l.b16 %v429
    %v2466 = vunpack.c.h.b16 %v429
    %v2467 = vunpack.c.l.b16 %v430
    %v2468 = vunpack.c.h.b16 %v430
    %v2469 = vunpack.c.l.b16 %v431
    %v2470 = vunpack.c.h.b16 %v431
    %v2471 = vunpack.c.l.b16 %v432
    %v2472 = vunpack.c.h.b16 %v432
    %v2473 = vunpack.c.l.b16 %v433
    %v2474 = vunpack.c.h.b16 %v433
    %v2475 = vunpack.c.l.b16 %v434
    %v2476 = vunpack.c.h.b16 %v434
    %v2477 = vunpack.c.l.b16 %v435
    %v2478 = vunpack.c.h.b16 %v435
    %v2479 = vunpack.c.l.b16 %v436
    %v2480 = vunpack.c.h.b16 %v436
    %v2481 = vunpack.c.l.b16 %v437
    %v2482 = vunpack.c.h.b16 %v437
    %v2483 = vunpack.c.l.b16 %v438
    %v2484 = vunpack.c.h.b16 %v438
    %v2485 = vunpack.c.l.b16 %v439
    %v2486 = vunpack.c.h.b16 %v439
    %v2487 = vunpack.c.l.b16 %v440
    %v2488 = vunpack.c.h.b16 %v440
    %v2489 = vunpack.c.l.b16 %v441
    %v2490 = vunpack.c.h.b16 %v441
    %v2491 = vunpack.c.l.b16 %v442
    %v2492 = vunpack.c.h.b16 %v442
    %v2493 = vunpack.c.l.b16 %v443
    %v2494 = vunpack.c.h.b16 %v443
    %v2495 = vunpack.c.l.b16 %v444
    %v2496 = vunpack.c.h.b16 %v444
    %v2497 = vunpack.c.l.b16 %v445
    %v2498 = vunpack.c.h.b16 %v445
    %v2499 = vunpack.c.l.b16 %v446
    %v2500 = vunpack.c.h.b16 %v446
    %v2501 = vunpack.c.l.b16 %v447
    %v2502 = vunpack.c.h.b16 %v447
    %v2503 = vunpack.c.l.b16 %v448
    %v2504 = vunpack.c.h.b16 %v448
    %v2505 = vunpack.c.l.b16 %v449
    %v2506 = vunpack.c.h.b16 %v449
    %v2507 = vunpack.c.l.b16 %v450
    %v2508 = vunpack.c.h.b16 %v450
    %v2509 = vunpack.c.l.b16 %v451
    %v2510 = vunpack.c.h.b16 %v451
    %v2511 = vunpack.c.l.b16 %v452
    %v2512 = vunpack.c.h.b16 %v452
    %v2513 = vunpack.c.l.b16 %v453
    %v2514 = vunpack.c.h.b16 %v453
    %v2515 = vunpack.c.l.b16 %v454
    %v2516 = vunpack.c.h.b16 %v454
    %v2517 = vunpack.c.l.b16 %v455
    %v2518 = vunpack.c.h.b16 %v455
    %v2519 = vunpack.c.l.b16 %v456
    %v2520 = vunpack.c.h.b16 %v456
    %v2521 = vunpack.c.l.b16 %v457
    %v2522 = vunpack.c.h.b16 %v457
    %v2523 = vunpack.c.l.b16 %v458
    %v2524 = vunpack.c.h.b16 %v458
    %v2525 = vunpack.c.l.b16 %v459
    %v2526 = vunpack.c.h.b16 %v459
    %v2527 = vunpack.c.l.b16 %v460
    %v2528 = vunpack.c.h.b16 %v460
    %v2529 = vunpack.c.l.b16 %v461
    %v2530 = vunpack.c.h.b16 %v461
    %v2531 = vunpack.c.l.b16 %v462
    %v2532 = vunpack.c.h.b16 %v462
    %v2533 = vunpack.c.l.b16 %v463
    %v2534 = vunpack.c.h.b16 %v463
    %v2535 = vunpack.c.l.b16 %v464
    %v2536 = vunpack.c.h.b16 %v464
    %v2537 = vunpack.c.l.b16 %v465
    %v2538 = vunpack.c.h.b16 %v465
    %v2539 = vunpack.c.l.b16 %v466
    %v2540 = vunpack.c.h.b16 %v466
    %v2541 = vunpack.c.l.b16 %v467
    %v2542 = vunpack.c.h.b16 %v467
    %v2543 = vunpack.c.l.b16 %v468
    %v2544 = vunpack.c.h.b16 %v468
    %v2545 = vunpack.c.l.b16 %v469
    %v2546 = vunpack.c.h.b16 %v469
    %v2547 = vunpack.c.l.b16 %v470
    %v2548 = vunpack.c.h.b16 %v470
    %v2549 = vunpack.c.l.b16 %v471
    %v2550 = vunpack.c.h.b16 %v471
    %v2551 = vunpack.c.l.b16 %v472
    %v2552 = vunpack.c.h.b16 %v472
    %v2553 = vunpack.c.l.b16 %v473
    %v2554 = vunpack.c.h.b16 %v473
    %v2555 = vunpack.c.l.b16 %v474
    %v2556 = vunpack.c.h.b16 %v474
    %v2557 = vunpack.c.l.b16 %v475
    %v2558 = vunpack.c.h.b16 %v475
    %v2559 = vunpack.c.l.b16 %v476
    %v2560 = vunpack.c.h.b16 %v476
    %v2561 = vunpack.c.l.b16 %v477
    %v2562 = vunpack.c.h.b16 %v477
    %v2563 = vunpack.c.l.b16 %v478
    %v2564 = vunpack.c.h.b16 %v478
    %v2565 = vunpack.c.l.b16 %v479
    %v2566 = vunpack.c.h.b16 %v479
    %v2567 = vunpack.c.l.b16 %v480
    %v2568 = vunpack.c.h.b16 %v480
    %v2569 = vunpack.c.l.b16 %v481
    %v2570 = vunpack.c.h.b16 %v481
    %v2571 = vunpack.c.l.b16 %v482
    %v2572 = vunpack.c.h.b16 %v482
    %v2573 = vunpack.c.l.b16 %v483
    %v2574 = vunpack.c.h.b16 %v483
    %v2575 = vunpack.c.l.b16 %v484
    %v2576 = vunpack.c.h.b16 %v484
    %v2577 = vunpack.c.l.b16 %v485
    %v2578 = vunpack.c.h.b16 %v485
    %v2579 = vunpack.c.l.b16 %v486
    %v2580 = vunpack.c.h.b16 %v486
    %v2581 = vunpack.c.l.b16 %v487
    %v2582 = vunpack.c.h.b16 %v487
    %v2583 = vunpack.c.l.b16 %v488
    %v2584 = vunpack.c.h.b16 %v488
    %v2585 = vunpack.c.l.b16 %v489
    %v2586 = vunpack.c.h.b16 %v489
    %v2587 = vunpack.c.l.b16 %v490
    %v2588 = vunpack.c.h.b16 %v490
    %v2589 = vunpack.c.l.b16 %v491
    %v2590 = vunpack.c.h.b16 %v491
    %v2591 = vunpack.c.l.b16 %v492
    %v2592 = vunpack.c.h.b16 %v492
    %v2593 = vunpack.c.l.b16 %v493
    %v2594 = vunpack.c.h.b16 %v493
    %v2595 = vunpack.c.l.b16 %v494
    %v2596 = vunpack.c.h.b16 %v494
    %v2597 = vunpack.c.l.b16 %v495
    %v2598 = vunpack.c.h.b16 %v495
    %v2599 = vunpack.c.l.b16 %v496
    %v2600 = vunpack.c.h.b16 %v496
    %v2601 = vunpack.c.l.b16 %v497
    %v2602 = vunpack.c.h.b16 %v497
    %v2603 = vunpack.c.l.b16 %v498
    %v2604 = vunpack.c.h.b16 %v498
    %v2605 = vunpack.c.l.b16 %v499
    %v2606 = vunpack.c.h.b16 %v499
    %v2607 = vunpack.c.l.b16 %v500
    %v2608 = vunpack.c.h.b16 %v500
    %v2609 = vunpack.c.l.b16 %v501
    %v2610 = vunpack.c.h.b16 %v501
    %v2611 = vunpack.c.l.b16 %v502
    %v2612 = vunpack.c.h.b16 %v502
    %v2613 = vunpack.c.l.b16 %v503
    %v2614 = vunpack.c.h.b16 %v503
    %v2615 = vunpack.c.l.b16 %v504
    %v2616 = vunpack.c.h.b16 %v504
    %v2617 = vunpack.c.l.b16 %v505
    %v2618 = vunpack.c.h.b16 %v505
    %v2619 = vunpack.c.l.b16 %v506
    %v2620 = vunpack.c.h.b16 %v506
    %v2621 = vunpack.c.l.b16 %v507
    %v2622 = vunpack.c.h.b16 %v507
    %v2623 = vunpack.c.l.b16 %v508
    %v2624 = vunpack.c.h.b16 %v508
    %v2625 = vunpack.c.l.b16 %v509
    %v2626 = vunpack.c.h.b16 %v509
    %v2627 = vunpack.c.l.b16 %v510
    %v2628 = vunpack.c.h.b16 %v510
    %v2629 = vunpack.c.l.b16 %v511
    %v2630 = vunpack.c.h.b16 %v511
    %v2631 = vunpack.c.l.b16 %v512
    %v2632 = vunpack.c.h.b16 %v512
    %v2633 = vunpack.c.l.b16 %v513
    %v2634 = vunpack.c.h.b16 %v513
    %v2635 = vunpack.c.l.b16 %v514
    %v2636 = vunpack.c.h.b16 %v514
    %v2637 = vunpack.c.l.b16 %v515
    %v2638 = vunpack.c.h.b16 %v515
    %v2639 = vunpack.c.l.b16 %v516
    %v2640 = vunpack.c.h.b16 %v516
    %v2641 = vunpack.c.l.b16 %v517
    %v2642 = vunpack.c.h.b16 %v517
    %v2643 = vunpack.c.l.b16 %v518
    %v2644 = vunpack.c.h.b16 %v518
    %v2645 = vunpack.c.l.b16 %v519
    %v2646 = vunpack.c.h.b16 %v519
    %v2647 = vunpack.c.l.b16 %v520
    %v2648 = vunpack.c.h.b16 %v520
    %v2649 = vunpack.c.l.b16 %v521
    %v2650 = vunpack.c.h.b16 %v521
    %v2651 = vunpack.c.l.b16 %v522
    %v2652 = vunpack.c.h.b16 %v522
    %v2653 = vunpack.c.l.b16 %v523
    %v2654 = vunpack.c.h.b16 %v523
    %v2655 = vunpack.c.l.b16 %v524
    %v2656 = vunpack.c.h.b16 %v524
    %v2657 = vunpack.c.l.b16 %v525
    %v2658 = vunpack.c.h.b16 %v525
    %v2659 = vunpack.c.l.b16 %v526
    %v2660 = vunpack.c.h.b16 %v526
    %v2661 = vunpack.c.l.b16 %v527
    %v2662 = vunpack.c.h.b16 %v527
    %v2663 = vunpack.c.l.b16 %v528
    %v2664 = vunpack.c.h.b16 %v528
    %v2665 = vunpack.c.l.b16 %v529
    %v2666 = vunpack.c.h.b16 %v529
    %v2667 = vunpack.c.l.b16 %v530
    %v2668 = vunpack.c.h.b16 %v530
    %v2669 = vunpack.c.l.b16 %v531
    %v2670 = vunpack.c.h.b16 %v531
    %v2671 = vunpack.c.l.b16 %v532
    %v2672 = vunpack.c.h.b16 %v532
    %v2673 = vunpack.c.l.b16 %v533
    %v2674 = vunpack.c.h.b16 %v533
    %v2675 = vunpack.c.l.b16 %v534
    %v2676 = vunpack.c.h.b16 %v534
    %v2677 = vunpack.c.l.b16 %v535
    %v2678 = vunpack.c.h.b16 %v535
    %v2679 = vunpack.c.l.b16 %v536
    %v2680 = vunpack.c.h.b16 %v536
    %v2681 = vunpack.c.l.b16 %v537
    %v2682 = vunpack.c.h.b16 %v537
    %v2683 = vunpack.c.l.b16 %v538
    %v2684 = vunpack.c.h.b16 %v538
    %v2685 = vunpack.c.l.b16 %v539
    %v2686 = vunpack.c.h.b16 %v539
    %v2687 = vunpack.c.l.b16 %v540
    %v2688 = vunpack.c.h.b16 %v540
    %v2689 = vunpack.c.l.b16 %v541
    %v2690 = vunpack.c.h.b16 %v541
    %v2691 = vunpack.c.l.b16 %v542
    %v2692 = vunpack.c.h.b16 %v542
    %v2693 = vunpack.c.l.b16 %v543
    %v2694 = vunpack.c.h.b16 %v543
    %v2695 = vunpack.c.l.b16 %v544
    %v2696 = vunpack.c.h.b16 %v544
    %v2697 = vunpack.c.l.b16 %v545
    %v2698 = vunpack.c.h.b16 %v545
    %v2699 = vunpack.c.l.b16 %v546
    %v2700 = vunpack.c.h.b16 %v546
    %v2701 = vunpack.c.l.b16 %v547
    %v2702 = vunpack.c.h.b16 %v547
    %v2703 = vunpack.c.l.b16 %v548
    %v2704 = vunpack.c.h.b16 %v548
    %v2705 = vunpack.c.l.b16 %v549
    %v2706 = vunpack.c.h.b16 %v549
    %v2707 = vunpack.c.l.b16 %v550
    %v2708 = vunpack.c.h.b16 %v550
    %v2709 = vunpack.c.l.b16 %v551
    %v2710 = vunpack.c.h.b16 %v551
    %v2711 = vunpack.c.l.b16 %v552
    %v2712 = vunpack.c.h.b16 %v552
    %v2713 = vunpack.c.l.b16 %v553
    %v2714 = vunpack.c.h.b16 %v553
    %v2715 = vunpack.c.l.b16 %v554
    %v2716 = vunpack.c.h.b16 %v554
    %v2717 = vunpack.c.l.b16 %v555
    %v2718 = vunpack.c.h.b16 %v555
    %v2719 = vunpack.c.l.b16 %v556
    %v2720 = vunpack.c.h.b16 %v556
    %v2721 = vunpack.c.l.b16 %v557
    %v2722 = vunpack.c.h.b16 %v557
    %v2723 = vunpack.c.l.b16 %v558
    %v2724 = vunpack.c.h.b16 %v558
    %v2725 = vunpack.c.l.b16 %v559
    %v2726 = vunpack.c.h.b16 %v559
    %v2727 = vunpack.c.l.b16 %v560
    %v2728 = vunpack.c.h.b16 %v560
    %v2729 = vunpack.c.l.b16 %v561
    %v2730 = vunpack.c.h.b16 %v561
    %v2731 = vunpack.c.l.b16 %v562
    %v2732 = vunpack.c.h.b16 %v562
    %v2733 = vunpack.c.l.b16 %v563
    %v2734 = vunpack.c.h.b16 %v563
    %v2735 = vunpack.c.l.b16 %v564
    %v2736 = vunpack.c.h.b16 %v564
    %v2737 = vunpack.c.l.b16 %v565
    %v2738 = vunpack.c.h.b16 %v565
    %v2739 = vunpack.c.l.b16 %v566
    %v2740 = vunpack.c.h.b16 %v566
    %v2741 = vunpack.c.l.b16 %v567
    %v2742 = vunpack.c.h.b16 %v567
    %v2743 = vunpack.c.l.b16 %v568
    %v2744 = vunpack.c.h.b16 %v568
    %v2745 = vunpack.c.l.b16 %v569
    %v2746 = vunpack.c.h.b16 %v569
    %v2747 = vunpack.c.l.b16 %v570
    %v2748 = vunpack.c.h.b16 %v570
    %v2749 = vunpack.c.l.b16 %v571
    %v2750 = vunpack.c.h.b16 %v571
    %v2751 = vunpack.c.l.b16 %v572
    %v2752 = vunpack.c.h.b16 %v572
    %v2753 = vunpack.c.l.b16 %v573
    %v2754 = vunpack.c.h.b16 %v573
    %v2755 = vunpack.c.l.b16 %v574
    %v2756 = vunpack.c.h.b16 %v574
    %v2757 = vunpack.c.l.b16 %v575
    %v2758 = vunpack.c.h.b16 %v575
    %v2759 = vunpack.c.l.b16 %v576
    %v2760 = vunpack.c.h.b16 %v576
    %v2761 = vunpack.c.l.b16 %v577
    %v2762 = vunpack.c.h.b16 %v577
    %v2763 = vunpack.c.l.b16 %v578
    %v2764 = vunpack.c.h.b16 %v578
    %v2765 = vunpack.c.l.b16 %v579
    %v2766 = vunpack.c.h.b16 %v579
    %v2767 = vunpack.c.l.b16 %v580
    %v2768 = vunpack.c.h.b16 %v580
    %v2769 = vunpack.c.l.b16 %v581
    %v2770 = vunpack.c.h.b16 %v581
    %v2771 = vunpack.c.l.b16 %v582
    %v2772 = vunpack.c.h.b16 %v582
    %v2773 = vunpack.c.l.b16 %v583
    %v2774 = vunpack.c.h.b16 %v583
    %v2775 = vunpack.c.l.b16 %v584
    %v2776 = vunpack.c.h.b16 %v584
    %v2777 = vunpack.c.l.b16 %v585
    %v2778 = vunpack.c.h.b16 %v585
    %v2779 = vunpack.c.l.b16 %v586
    %v2780 = vunpack.c.h.b16 %v586
    %v2781 = vunpack.c.l.b16 %v587
    %v2782 = vunpack.c.h.b16 %v587
    %v2783 = vunpack.c.l.b16 %v588
    %v2784 = vunpack.c.h.b16 %v588
    %v2785 = vunpack.c.l.b16 %v589
    %v2786 = vunpack.c.h.b16 %v589
    %v2787 = vunpack.c.l.b16 %v590
    %v2788 = vunpack.c.h.b16 %v590
    %v2789 = vunpack.c.l.b16 %v591
    %v2790 = vunpack.c.h.b16 %v591
    %v2791 = vunpack.c.l.b16 %v592
    %v2792 = vunpack.c.h.b16 %v592
    %v2793 = vunpack.c.l.b16 %v593
    %v2794 = vunpack.c.h.b16 %v593
    %v2795 = vunpack.c.l.b16 %v594
    %v2796 = vunpack.c.h.b16 %v594
    %v2797 = vunpack.c.l.b16 %v595
    %v2798 = vunpack.c.h.b16 %v595
    %v2799 = vunpack.c.l.b16 %v596
    %v2800 = vunpack.c.h.b16 %v596
    %v2801 = vunpack.c.l.b16 %v597
    %v2802 = vunpack.c.h.b16 %v597
    %v2803 = vunpack.c.l.b16 %v598
    %v2804 = vunpack.c.h.b16 %v598
    %v2805 = vunpack.c.l.b16 %v599
    %v2806 = vunpack.c.h.b16 %v599
    %v2807 = vunpack.c.l.b16 %v600
    %v2808 = vunpack.c.h.b16 %v600
    %v2809 = vunpack.c.l.b16 %v601
    %v2810 = vunpack.c.h.b16 %v601
    %v2811 = vunpack.c.l.b16 %v602
    %v2812 = vunpack.c.h.b16 %v602
    %v2813 = vunpack.c.l.b16 %v603
    %v2814 = vunpack.c.h.b16 %v603
    %v2815 = vunpack.c.l.b16 %v604
    %v2816 = vunpack.c.h.b16 %v604
    %v2817 = vunpack.c.l.b16 %v605
    %v2818 = vunpack.c.h.b16 %v605
    %v2819 = vunpack.c.l.b16 %v606
    %v2820 = vunpack.c.h.b16 %v606
    %v2821 = vunpack.c.l.b16 %v607
    %v2822 = vunpack.c.h.b16 %v607
    %v2823 = vunpack.c.l.b16 %v608
    %v2824 = vunpack.c.h.b16 %v608
    %v2825 = vunpack.c.l.b16 %v609
    %v2826 = vunpack.c.h.b16 %v609
    %v2827 = vunpack.c.l.b16 %v610
    %v2828 = vunpack.c.h.b16 %v610
    %v2829 = vunpack.c.l.b16 %v611
    %v2830 = vunpack.c.h.b16 %v611
    %v2831 = vunpack.c.l.b16 %v612
    %v2832 = vunpack.c.h.b16 %v612
    %v2833 = vunpack.c.l.b16 %v613
    %v2834 = vunpack.c.h.b16 %v613
    %v2835 = vunpack.c.l.b16 %v614
    %v2836 = vunpack.c.h.b16 %v614
    %v2837 = vunpack.c.l.b16 %v615
    %v2838 = vunpack.c.h.b16 %v615
    %v2839 = vunpack.c.l.b16 %v616
    %v2840 = vunpack.c.h.b16 %v616
    %v2841 = vunpack.c.l.b16 %v617
    %v2842 = vunpack.c.h.b16 %v617
    %v2843 = vunpack.c.l.b16 %v618
    %v2844 = vunpack.c.h.b16 %v618
    %v2845 = vunpack.c.l.b16 %v619
    %v2846 = vunpack.c.h.b16 %v619
    %v2847 = vunpack.c.l.b16 %v620
    %v2848 = vunpack.c.h.b16 %v620
    %v2849 = vunpack.c.l.b16 %v621
    %v2850 = vunpack.c.h.b16 %v621
    %v2851 = vunpack.c.l.b16 %v622
    %v2852 = vunpack.c.h.b16 %v622
    %v2853 = vunpack.c.l.b16 %v623
    %v2854 = vunpack.c.h.b16 %v623
    %v2855 = vunpack.c.l.b16 %v624
    %v2856 = vunpack.c.h.b16 %v624
    %v2857 = vunpack.c.l.b16 %v625
    %v2858 = vunpack.c.h.b16 %v625
    %v2859 = vunpack.c.l.b16 %v626
    %v2860 = vunpack.c.h.b16 %v626
    %v2861 = vunpack.c.l.b16 %v627
    %v2862 = vunpack.c.h.b16 %v627
    %v2863 = vunpack.c.l.b16 %v628
    %v2864 = vunpack.c.h.b16 %v628
    %v2865 = vunpack.c.l.b16 %v629
    %v2866 = vunpack.c.h.b16 %v629
    %v2867 = vunpack.c.l.b16 %v630
    %v2868 = vunpack.c.h.b16 %v630
    %v2869 = vunpack.c.l.b16 %v631
    %v2870 = vunpack.c.h.b16 %v631
    %v2871 = vunpack.c.l.b16 %v632
    %v2872 = vunpack.c.h.b16 %v632
    %v2873 = vunpack.c.l.b16 %v633
    %v2874 = vunpack.c.h.b16 %v633
    %v2875 = vunpack.c.l.b16 %v634
    %v2876 = vunpack.c.h.b16 %v634
    %v2877 = vunpack.c.l.b16 %v635
    %v2878 = vunpack.c.h.b16 %v635
    %v2879 = vunpack.c.l.b16 %v636
    %v2880 = vunpack.c.h.b16 %v636
    %v2881 = vunpack.c.l.b16 %v637
    %v2882 = vunpack.c.h.b16 %v637
    %v2883 = vunpack.c.l.b16 %v638
    %v2884 = vunpack.c.h.b16 %v638
    %v2885 = vunpack.c.l.b16 %v639
    %v2886 = vunpack.c.h.b16 %v639
    %v2887 = vunpack.c.l.b16 %v640
    %v2888 = vunpack.c.h.b16 %v640
    %v2889 = vunpack.c.l.b16 %v641
    %v2890 = vunpack.c.h.b16 %v641
    %v2891 = vunpack.c.l.b16 %v642
    %v2892 = vunpack.c.h.b16 %v642
    %v2893 = vunpack.c.l.b16 %v643
    %v2894 = vunpack.c.h.b16 %v643
    %v2895 = vunpack.c.l.b16 %v644
    %v2896 = vunpack.c.h.b16 %v644
    %v2897 = vunpack.c.l.b16 %v645
    %v2898 = vunpack.c.h.b16 %v645
    %v2899 = vunpack.c.l.b16 %v646
    %v2900 = vunpack.c.h.b16 %v646
    %v2901 = vunpack.c.l.b16 %v647
    %v2902 = vunpack.c.h.b16 %v647
    %v2903 = vunpack.c.l.b16 %v648
    %v2904 = vunpack.c.h.b16 %v648
    %v2905 = vunpack.c.l.b16 %v649
    %v2906 = vunpack.c.h.b16 %v649
    %v2907 = vunpack.c.l.b16 %v650
    %v2908 = vunpack.c.h.b16 %v650
    %v2909 = vunpack.c.l.b16 %v651
    %v2910 = vunpack.c.h.b16 %v651
    %v2911 = vunpack.c.l.b16 %v652
    %v2912 = vunpack.c.h.b16 %v652
    %v2913 = vunpack.c.l.b16 %v653
    %v2914 = vunpack.c.h.b16 %v653
    %v2915 = vunpack.c.l.b16 %v654
    %v2916 = vunpack.c.h.b16 %v654
    %v2917 = vunpack.c.l.b16 %v655
    %v2918 = vunpack.c.h.b16 %v655
    %v2919 = vunpack.c.l.b16 %v656
    %v2920 = vunpack.c.h.b16 %v656
    %v2921 = vunpack.c.l.b16 %v657
    %v2922 = vunpack.c.h.b16 %v657
    %v2923 = vunpack.c.l.b16 %v658
    %v2924 = vunpack.c.h.b16 %v658
    %v2925 = vunpack.c.l.b16 %v659
    %v2926 = vunpack.c.h.b16 %v659
    %v2927 = vunpack.c.l.b16 %v660
    %v2928 = vunpack.c.h.b16 %v660
    %v2929 = vunpack.c.l.b16 %v661
    %v2930 = vunpack.c.h.b16 %v661
    %v2931 = vunpack.c.l.b16 %v662
    %v2932 = vunpack.c.h.b16 %v662
    %v2933 = vunpack.c.l.b16 %v663
    %v2934 = vunpack.c.h.b16 %v663
    %v2935 = vunpack.c.l.b16 %v664
    %v2936 = vunpack.c.h.b16 %v664
    %v2937 = vunpack.c.l.b16 %v665
    %v2938 = vunpack.c.h.b16 %v665
    %v2939 = vunpack.c.l.b16 %v666
    %v2940 = vunpack.c.h.b16 %v666
    %v2941 = vunpack.c.l.b16 %v667
    %v2942 = vunpack.c.h.b16 %v667
    %v2943 = vunpack.c.l.b16 %v668
    %v2944 = vunpack.c.h.b16 %v668
    %v2945 = vunpack.c.l.b16 %v669
    %v2946 = vunpack.c.h.b16 %v669
    %v2947 = vunpack.c.l.b16 %v670
    %v2948 = vunpack.c.h.b16 %v670
    %v2949 = vunpack.c.l.b16 %v671
    %v2950 = vunpack.c.h.b16 %v671
    %v2951 = vunpack.c.l.b16 %v672
    %v2952 = vunpack.c.h.b16 %v672
    %v2953 = vunpack.c.l.b16 %v673
    %v2954 = vunpack.c.h.b16 %v673
    %v2955 = vunpack.c.l.b16 %v674
    %v2956 = vunpack.c.h.b16 %v674
    %v2957 = vunpack.c.l.b16 %v675
    %v2958 = vunpack.c.h.b16 %v675
    %v2959 = vunpack.c.l.b16 %v676
    %v2960 = vunpack.c.h.b16 %v676
    %v2961 = vunpack.c.l.b16 %v677
    %v2962 = vunpack.c.h.b16 %v677
    %v2963 = vunpack.c.l.b16 %v678
    %v2964 = vunpack.c.h.b16 %v678
    %v2965 = vunpack.c.l.b16 %v679
    %v2966 = vunpack.c.h.b16 %v679
    %v2967 = vunpack.c.l.b16 %v680
    %v2968 = vunpack.c.h.b16 %v680
    %v2969 = vunpack.c.l.b16 %v681
    %v2970 = vunpack.c.h.b16 %v681
    %v2971 = vunpack.c.l.b16 %v682
    %v2972 = vunpack.c.h.b16 %v682
    %v2973 = vunpack.c.l.b16 %v683
    %v2974 = vunpack.c.h.b16 %v683
    %v2975 = vunpack.c.l.b16 %v684
    %v2976 = vunpack.c.h.b16 %v684
    %v2977 = vunpack.c.l.b16 %v685
    %v2978 = vunpack.c.h.b16 %v685
    %v2979 = vunpack.c.l.b16 %v686
    %v2980 = vunpack.c.h.b16 %v686
    %v2981 = vunpack.c.l.b16 %v687
    %v2982 = vunpack.c.h.b16 %v687
    %v2983 = vunpack.c.l.b16 %v688
    %v2984 = vunpack.c.h.b16 %v688
    %v2985 = vunpack.c.l.b16 %v689
    %v2986 = vunpack.c.h.b16 %v689
    %v2987 = vunpack.c.l.b16 %v690
    %v2988 = vunpack.c.h.b16 %v690
    %v2989 = vunpack.c.l.b16 %v691
    %v2990 = vunpack.c.h.b16 %v691
    %v2991 = vunpack.c.l.b16 %v692
    %v2992 = vunpack.c.h.b16 %v692
    %v2993 = vunpack.c.l.b16 %v693
    %v2994 = vunpack.c.h.b16 %v693
    %v2995 = vunpack.c.l.b16 %v694
    %v2996 = vunpack.c.h.b16 %v694
    %v2997 = vunpack.c.l.b16 %v695
    %v2998 = vunpack.c.h.b16 %v695
    %v2999 = vunpack.c.l.b16 %v696
    %v3000 = vunpack.c.h.b16 %v696
    %v3001 = vunpack.c.l.b16 %v697
    %v3002 = vunpack.c.h.b16 %v697
    %v3003 = vunpack.c.l.b16 %v698
    %v3004 = vunpack.c.h.b16 %v698
    %v3005 = vunpack.c.l.b16 %v699
    %v3006 = vunpack.c.h.b16 %v699
    %v3007 = vunpack.c.l.b16 %v700
    %v3008 = vunpack.c.h.b16 %v700
    %v3009 = vunpack.c.l.b16 %v701
    %v3010 = vunpack.c.h.b16 %v701
    %v3011 = vunpack.c.l.b16 %v702
    %v3012 = vunpack.c.h.b16 %v702
    %v3013 = vunpack.c.l.b16 %v703
    %v3014 = vunpack.c.h.b16 %v703
    %v3015 = vunpack.c.l.b16 %v704
    %v3016 = vunpack.c.h.b16 %v704
    %v3017 = vunpack.c.l.b16 %v705
    %v3018 = vunpack.c.h.b16 %v705
    %v3019 = vunpack.c.l.b16 %v706
    %v3020 = vunpack.c.h.b16 %v706
    %v3021 = vunpack.c.l.b16 %v707
    %v3022 = vunpack.c.h.b16 %v707
    %v3023 = vunpack.c.l.b16 %v708
    %v3024 = vunpack.c.h.b16 %v708
    %v3025 = vunpack.c.l.b16 %v709
    %v3026 = vunpack.c.h.b16 %v709
    %v3027 = vunpack.c.l.b16 %v710
    %v3028 = vunpack.c.h.b16 %v710
    %v3029 = vunpack.c.l.b16 %v711
    %v3030 = vunpack.c.h.b16 %v711
    %v3031 = vunpack.c.l.b16 %v712
    %v3032 = vunpack.c.h.b16 %v712
    %v3033 = vunpack.c.l.b16 %v713
    %v3034 = vunpack.c.h.b16 %v713
    %v3035 = vunpack.c.l.b16 %v714
    %v3036 = vunpack.c.h.b16 %v714
    %v3037 = vunpack.c.l.b16 %v715
    %v3038 = vunpack.c.h.b16 %v715
    %v3039 = vunpack.c.l.b16 %v716
    %v3040 = vunpack.c.h.b16 %v716
    %v3041 = vunpack.c.l.b16 %v717
    %v3042 = vunpack.c.h.b16 %v717
    %v3043 = vunpack.c.l.b16 %v718
    %v3044 = vunpack.c.h.b16 %v718
    %v3045 = vunpack.c.l.b16 %v719
    %v3046 = vunpack.c.h.b16 %v719
    %v3047 = vunpack.c.l.b16 %v720
    %v3048 = vunpack.c.h.b16 %v720
    %v3049 = vunpack.c.l.b16 %v721
    %v3050 = vunpack.c.h.b16 %v721
    %v3051 = vunpack.c.l.b16 %v722
    %v3052 = vunpack.c.h.b16 %v722
    %v3053 = vunpack.c.l.b16 %v723
    %v3054 = vunpack.c.h.b16 %v723
    %v3055 = vunpack.c.l.b16 %v724
    %v3056 = vunpack.c.h.b16 %v724
    %v3057 = vunpack.c.l.b16 %v725
    %v3058 = vunpack.c.h.b16 %v725
    %v3059 = vunpack.c.l.b16 %v726
    %v3060 = vunpack.c.h.b16 %v726
    %v3061 = vunpack.c.l.b16 %v727
    %v3062 = vunpack.c.h.b16 %v727
    %v3063 = vunpack.c.l.b16 %v728
    %v3064 = vunpack.c.h.b16 %v728
    %v3065 = vunpack.c.l.b16 %v729
    %v3066 = vunpack.c.h.b16 %v729
    %v3067 = vunpack.c.l.b16 %v730
    %v3068 = vunpack.c.h.b16 %v730
    %v3069 = vunpack.c.l.b16 %v731
    %v3070 = vunpack.c.h.b16 %v731
    %v3071 = vunpack.c.l.b16 %v732
    %v3072 = vunpack.c.h.b16 %v732
    %v3073 = vunpack.c.l.b16 %v733
    %v3074 = vunpack.c.h.b16 %v733
    %v3075 = vunpack.c.l.b16 %v734
    %v3076 = vunpack.c.h.b16 %v734
    %v3077 = vunpack.c.l.b16 %v735
    %v3078 = vunpack.c.h.b16 %v735
    %v3079 = vunpack.c.l.b16 %v736
    %v3080 = vunpack.c.h.b16 %v736
    %v3081 = vunpack.c.l.b16 %v737
    %v3082 = vunpack.c.h.b16 %v737
    %v3083 = vunpack.c.l.b16 %v738
    %v3084 = vunpack.c.h.b16 %v738
    %v3085 = vunpack.c.l.b16 %v739
    %v3086 = vunpack.c.h.b16 %v739
    %v3087 = vunpack.c.l.b16 %v740
    %v3088 = vunpack.c.h.b16 %v740
    %v3089 = vunpack.c.l.b16 %v741
    %v3090 = vunpack.c.h.b16 %v741
    %v3091 = vunpack.c.l.b16 %v742
    %v3092 = vunpack.c.h.b16 %v742
    %v3093 = vunpack.c.l.b16 %v743
    %v3094 = vunpack.c.h.b16 %v743
    %v3095 = vunpack.c.l.b16 %v744
    %v3096 = vunpack.c.h.b16 %v744
    %v3097 = vunpack.c.l.b16 %v745
    %v3098 = vunpack.c.h.b16 %v745
    %v3099 = vunpack.c.l.b16 %v746
    %v3100 = vunpack.c.h.b16 %v746
    %v3101 = vunpack.c.l.b16 %v747
    %v3102 = vunpack.c.h.b16 %v747
    %v3103 = vunpack.c.l.b16 %v748
    %v3104 = vunpack.c.h.b16 %v748
    %v3105 = vunpack.c.l.b16 %v749
    %v3106 = vunpack.c.h.b16 %v749
    %v3107 = vunpack.c.l.b16 %v750
    %v3108 = vunpack.c.h.b16 %v750
    %v3109 = vunpack.c.l.b16 %v751
    %v3110 = vunpack.c.h.b16 %v751
    %v3111 = vunpack.c.l.b16 %v752
    %v3112 = vunpack.c.h.b16 %v752
    %v3113 = vunpack.c.l.b16 %v753
    %v3114 = vunpack.c.h.b16 %v753
    %v3115 = vunpack.c.l.b16 %v754
    %v3116 = vunpack.c.h.b16 %v754
    %v3117 = vunpack.c.l.b16 %v755
    %v3118 = vunpack.c.h.b16 %v755
    %v3119 = vunpack.c.l.b16 %v756
    %v3120 = vunpack.c.h.b16 %v756
    %v3121 = vunpack.c.l.b16 %v757
    %v3122 = vunpack.c.h.b16 %v757
    %v3123 = vunpack.c.l.b16 %v758
    %v3124 = vunpack.c.h.b16 %v758
    %v3125 = vunpack.c.l.b16 %v759
    %v3126 = vunpack.c.h.b16 %v759
    %v3127 = vunpack.c.l.b16 %v760
    %v3128 = vunpack.c.h.b16 %v760
    %v3129 = vunpack.c.l.b16 %v761
    %v3130 = vunpack.c.h.b16 %v761
    %v3131 = vunpack.c.l.b16 %v762
    %v3132 = vunpack.c.h.b16 %v762
    %v3133 = vunpack.c.l.b16 %v763
    %v3134 = vunpack.c.h.b16 %v763
    %v3135 = vunpack.c.l.b16 %v764
    %v3136 = vunpack.c.h.b16 %v764
    %v3137 = vunpack.c.l.b16 %v765
    %v3138 = vunpack.c.h.b16 %v765
    %v3139 = vunpack.c.l.b16 %v766
    %v3140 = vunpack.c.h.b16 %v766
    %v3141 = vunpack.c.l.b16 %v767
    %v3142 = vunpack.c.h.b16 %v767
    %v3143 = vunpack.c.l.b16 %v768
    %v3144 = vunpack.c.h.b16 %v768
    %v3145 = vunpack.c.l.b16 %v769
    %v3146 = vunpack.c.h.b16 %v769
    %v3147 = vunpack.c.l.b16 %v770
    %v3148 = vunpack.c.h.b16 %v770
    %v3149 = vunpack.c.l.b16 %v771
    %v3150 = vunpack.c.h.b16 %v771
    %v3151 = vunpack.c.l.b16 %v772
    %v3152 = vunpack.c.h.b16 %v772
    %v3153 = vunpack.c.l.b16 %v773
    %v3154 = vunpack.c.h.b16 %v773
    %v3155 = vunpack.c.l.b16 %v774
    %v3156 = vunpack.c.h.b16 %v774
    %v3157 = vunpack.c.l.b16 %v775
    %v3158 = vunpack.c.h.b16 %v775
    %v3159 = vunpack.c.l.b16 %v776
    %v3160 = vunpack.c.h.b16 %v776
    %v3161 = vunpack.c.l.b16 %v777
    %v3162 = vunpack.c.h.b16 %v777
    %v3163 = vunpack.c.l.b16 %v778
    %v3164 = vunpack.c.h.b16 %v778
    %v3165 = vunpack.c.l.b16 %v779
    %v3166 = vunpack.c.h.b16 %v779
    %v3167 = vunpack.c.l.b16 %v780
    %v3168 = vunpack.c.h.b16 %v780
    %v3169 = vunpack.c.l.b16 %v781
    %v3170 = vunpack.c.h.b16 %v781
    %v3171 = vunpack.c.l.b16 %v782
    %v3172 = vunpack.c.h.b16 %v782
    %v3173 = vunpack.c.l.b16 %v783
    %v3174 = vunpack.c.h.b16 %v783
    %v3175 = vunpack.c.l.b16 %v784
    %v3176 = vunpack.c.h.b16 %v784
    %v3177 = vunpack.c.l.b16 %v785
    %v3178 = vunpack.c.h.b16 %v785
    %v3179 = vunpack.c.l.b16 %v786
    %v3180 = vunpack.c.h.b16 %v786
    %v3181 = vunpack.c.l.b16 %v787
    %v3182 = vunpack.c.h.b16 %v787
    %v3183 = vunpack.c.l.b16 %v788
    %v3184 = vunpack.c.h.b16 %v788
    %v3185 = vunpack.c.l.b16 %v789
    %v3186 = vunpack.c.h.b16 %v789
    %v3187 = vunpack.c.l.b16 %v790
    %v3188 = vunpack.c.h.b16 %v790
    %v3189 = vunpack.c.l.b16 %v791
    %v3190 = vunpack.c.h.b16 %v791
    %v3191 = vunpack.c.l.b16 %v792
    %v3192 = vunpack.c.h.b16 %v792
    %v3193 = vunpack.c.l.b16 %v793
    %v3194 = vunpack.c.h.b16 %v793
    %v3195 = vunpack.c.l.b16 %v794
    %v3196 = vunpack.c.h.b16 %v794
    %v3197 = vunpack.c.l.b16 %v795
    %v3198 = vunpack.c.h.b16 %v795
    %v3199 = vunpack.c.l.b16 %v796
    %v3200 = vunpack.c.h.b16 %v796
    %v3201 = vunpack.c.l.b16 %v797
    %v3202 = vunpack.c.h.b16 %v797
    %v3203 = vunpack.c.l.b16 %v798
    %v3204 = vunpack.c.h.b16 %v798
    %v3205 = vunpack.c.l.b16 %v799
    %v3206 = vunpack.c.h.b16 %v799
    %v3207 = vunpack.c.l.b16 %v800
    %v3208 = vunpack.c.h.b16 %v800
    %v3209 = vunpack.c.l.b16 %v801
    %v3210 = vunpack.c.h.b16 %v801
    %v3211 = vunpack.c.l.b16 %v802
    %v3212 = vunpack.c.h.b16 %v802
    %v3213 = vunpack.c.l.b16 %v803
    %v3214 = vunpack.c.h.b16 %v803
    %v3215 = vunpack.c.l.b16 %v804
    %v3216 = vunpack.c.h.b16 %v804
    %v3217 = vunpack.c.l.b16 %v805
    %v3218 = vunpack.c.h.b16 %v805
    %v3219 = vunpack.c.l.b16 %v806
    %v3220 = vunpack.c.h.b16 %v806
    %v3221 = vunpack.c.l.b16 %v807
    %v3222 = vunpack.c.h.b16 %v807
    %v3223 = vunpack.c.l.b16 %v808
    %v3224 = vunpack.c.h.b16 %v808
    %v3225 = vunpack.c.l.b16 %v809
    %v3226 = vunpack.c.h.b16 %v809
    %v3227 = vunpack.c.l.b16 %v810
    %v3228 = vunpack.c.h.b16 %v810
    %v3229 = vunpack.c.l.b16 %v811
    %v3230 = vunpack.c.h.b16 %v811
    %v3231 = vpack.c.b16 %v1667, %v1663
    %v3232 = vpack.c.b16 %v1668, %v1664
    %v3233 = vpack.c.b16 %v1669, %v1665
    %v3234 = vpack.c.b16 %v1670, %v1666
    %v3235 = vpack.c.b16 %v1675, %v1671
    %v3236 = vpack.c.b16 %v1676, %v1672
    %v3237 = vpack.c.b16 %v1677, %v1673
    %v3238 = vpack.c.b16 %v1678, %v1674
    %v3239 = vpack.c.b16 %v1683, %v1679
    %v3240 = vpack.c.b16 %v1684, %v1680
    %v3241 = vpack.c.b16 %v1685, %v1681
    %v3242 = vpack.c.b16 %v1686, %v1682
    %v3243 = vpack.c.b16 %v1691, %v1687
    %v3244 = vpack.c.b16 %v1692, %v1688
    %v3245 = vpack.c.b16 %v1693, %v1689
    %v3246 = vpack.c.b16 %v1694, %v1690
    %v3247 = vpack.c.b16 %v1699, %v1695
    %v3248 = vpack.c.b16 %v1700, %v1696
    %v3249 = vpack.c.b16 %v1701, %v1697
    %v3250 = vpack.c.b16 %v1702, %v1698
    %v3251 = vpack.c.b16 %v1707, %v1703
    %v3252 = vpack.c.b16 %v1708, %v1704
    %v3253 = vpack.c.b16 %v1709, %v1705
    %v3254 = vpack.c.b16 %v1710, %v1706
    %v3255 = vpack.c.b16 %v1715, %v1711
    %v3256 = vpack.c.b16 %v1716, %v1712
    %v3257 = vpack.c.b16 %v1717, %v1713
    %v3258 = vpack.c.b16 %v1718, %v1714
    %v3259 = vpack.c.b16 %v1723, %v1719
    %v3260 = vpack.c.b16 %v1724, %v1720
    %v3261 = vpack.c.b16 %v1725, %v1721
    %v3262 = vpack.c.b16 %v1726, %v1722
    %v3263 = vpack.c.b16 %v1731, %v1727
    %v3264 = vpack.c.b16 %v1732, %v1728
    %v3265 = vpack.c.b16 %v1733, %v1729
    %v3266 = vpack.c.b16 %v1734, %v1730
    %v3267 = vpack.c.b16 %v1739, %v1735
    %v3268 = vpack.c.b16 %v1740, %v1736
    %v3269 = vpack.c.b16 %v1741, %v1737
    %v3270 = vpack.c.b16 %v1742, %v1738
    %v3271 = vpack.c.b16 %v1747, %v1743
    %v3272 = vpack.c.b16 %v1748, %v1744
    %v3273 = vpack.c.b16 %v1749, %v1745
    %v3274 = vpack.c.b16 %v1750, %v1746
    %v3275 = vpack.c.b16 %v1755, %v1751
    %v3276 = vpack.c.b16 %v1756, %v1752
    %v3277 = vpack.c.b16 %v1757, %v1753
    %v3278 = vpack.c.b16 %v1758, %v1754
    %v3279 = vpack.c.b16 %v1763, %v1759
    %v3280 = vpack.c.b16 %v1764, %v1760
    %v3281 = vpack.c.b16 %v1765, %v1761
    %v3282 = vpack.c.b16 %v1766, %v1762
    %v3283 = vpack.c.b16 %v1771, %v1767
    %v3284 = vpack.c.b16 %v1772, %v1768
    %v3285 = vpack.c.b16 %v1773, %v1769
    %v3286 = vpack.c.b16 %v1774, %v1770
    %v3287 = vpack.c.b16 %v1779, %v1775
    %v3288 = vpack.c.b16 %v1780, %v1776
    %v3289 = vpack.c.b16 %v1781, %v1777
    %v3290 = vpack.c.b16 %v1782, %v1778
    %v3291 = vpack.c.b16 %v1787, %v1783
    %v3292 = vpack.c.b16 %v1788, %v1784
    %v3293 = vpack.c.b16 %v1789, %v1785
    %v3294 = vpack.c.b16 %v1790, %v1786
    %v3295 = vpack.c.b16 %v1795, %v1791
    %v3296 = vpack.c.b16 %v1796, %v1792
    %v3297 = vpack.c.b16 %v1797, %v1793
    %v3298 = vpack.c.b16 %v1798, %v1794
    %v3299 = vpack.c.b16 %v1803, %v1799
    %v3300 = vpack.c.b16 %v1804, %v1800
    %v3301 = vpack.c.b16 %v1805, %v1801
    %v3302 = vpack.c.b16 %v1806, %v1802
    %v3303 = vpack.c.b16 %v1811, %v1807
    %v3304 = vpack.c.b16 %v1812, %v1808
    %v3305 = vpack.c.b16 %v1813, %v1809
    %v3306 = vpack.c.b16 %v1814, %v1810
    %v3307 = vpack.c.b16 %v1819, %v1815
    %v3308 = vpack.c.b16 %v1820, %v1816
    %v3309 = vpack.c.b16 %v1821, %v1817
    %v3310 = vpack.c.b16 %v1822, %v1818
    %v3311 = vpack.c.b16 %v1827, %v1823
    %v3312 = vpack.c.b16 %v1828, %v1824
    %v3313 = vpack.c.b16 %v1829, %v1825
    %v3314 = vpack.c.b16 %v1830, %v1826
    %v3315 = vpack.c.b16 %v1835, %v1831
    %v3316 = vpack.c.b16 %v1836, %v1832
    %v3317 = vpack.c.b16 %v1837, %v1833
    %v3318 = vpack.c.b16 %v1838, %v1834
    %v3319 = vpack.c.b16 %v1843, %v1839
    %v3320 = vpack.c.b16 %v1844, %v1840
    %v3321 = vpack.c.b16 %v1845, %v1841
    %v3322 = vpack.c.b16 %v1846, %v1842
    %v3323 = vpack.c.b16 %v1851, %v1847
    %v3324 = vpack.c.b16 %v1852, %v1848
    %v3325 = vpack.c.b16 %v1853, %v1849
    %v3326 = vpack.c.b16 %v1854, %v1850
    %v3327 = vpack.c.b16 %v1859, %v1855
    %v3328 = vpack.c.b16 %v1860, %v1856
    %v3329 = vpack.c.b16 %v1861, %v1857
    %v3330 = vpack.c.b16 %v1862, %v1858
    %v3331 = vpack.c.b16 %v1867, %v1863
    %v3332 = vpack.c.b16 %v1868, %v1864
    %v3333 = vpack.c.b16 %v1869, %v1865
    %v3334 = vpack.c.b16 %v1870, %v1866
    %v3335 = vpack.c.b16 %v1875, %v1871
    %v3336 = vpack.c.b16 %v1876, %v1872
    %v3337 = vpack.c.b16 %v1877, %v1873
    %v3338 = vpack.c.b16 %v1878, %v1874
    %v3339 = vpack.c.b16 %v1883, %v1879
    %v3340 = vpack.c.b16 %v1884, %v1880
    %v3341 = vpack.c.b16 %v1885, %v1881
    %v3342 = vpack.c.b16 %v1886, %v1882
    %v3343 = vpack.c.b16 %v1891, %v1887
    %v3344 = vpack.c.b16 %v1892, %v1888
    %v3345 = vpack.c.b16 %v1893, %v1889
    %v3346 = vpack.c.b16 %v1894, %v1890
    %v3347 = vpack.c.b16 %v1899, %v1895
    %v3348 = vpack.c.b16 %v1900, %v1896
    %v3349 = vpack.c.b16 %v1901, %v1897
    %v3350 = vpack.c.b16 %v1902, %v1898
    %v3351 = vpack.c.b16 %v1907, %v1903
    %v3352 = vpack.c.b16 %v1908, %v1904
    %v3353 = vpack.c.b16 %v1909, %v1905
    %v3354 = vpack.c.b16 %v1910, %v1906
    %v3355 = vpack.c.b16 %v1915, %v1911
    %v3356 = vpack.c.b16 %v1916, %v1912
    %v3357 = vpack.c.b16 %v1917, %v1913
    %v3358 = vpack.c.b16 %v1918, %v1914
    %v3359 = vpack.c.b16 %v1923, %v1919
    %v3360 = vpack.c.b16 %v1924, %v1920
    %v3361 = vpack.c.b16 %v1925, %v1921
    %v3362 = vpack.c.b16 %v1926, %v1922
    %v3363 = vpack.c.b16 %v1931, %v1927
    %v3364 = vpack.c.b16 %v1932, %v1928
    %v3365 = vpack.c.b16 %v1933, %v1929
    %v3366 = vpack.c.b16 %v1934, %v1930
    %v3367 = vpack.c.b16 %v1939, %v1935
    %v3368 = vpack.c.b16 %v1940, %v1936
    %v3369 = vpack.c.b16 %v1941, %v1937
    %v3370 = vpack.c.b16 %v1942, %v1938
    %v3371 = vpack.c.b16 %v1947, %v1943
    %v3372 = vpack.c.b16 %v1948, %v1944
    %v3373 = vpack.c.b16 %v1949, %v1945
    %v3374 = vpack.c.b16 %v1950, %v1946
    %v3375 = vpack.c.b16 %v1955, %v1951
    %v3376 = vpack.c.b16 %v1956, %v1952
    %v3377 = vpack.c.b16 %v1957, %v1953
    %v3378 = vpack.c.b16 %v1958, %v1954
    %v3379 = vpack.c.b16 %v1963, %v1959
    %v3380 = vpack.c.b16 %v1964, %v1960
    %v3381 = vpack.c.b16 %v1965, %v1961
    %v3382 = vpack.c.b16 %v1966, %v1962
    %v3383 = vpack.c.b16 %v1971, %v1967
    %v3384 = vpack.c.b16 %v1972, %v1968
    %v3385 = vpack.c.b16 %v1973, %v1969
    %v3386 = vpack.c.b16 %v1974, %v1970
    %v3387 = vpack.c.b16 %v1979, %v1975
    %v3388 = vpack.c.b16 %v1980, %v1976
    %v3389 = vpack.c.b16 %v1981, %v1977
    %v3390 = vpack.c.b16 %v1982, %v1978
    %v3391 = vpack.c.b16 %v1987, %v1983
    %v3392 = vpack.c.b16 %v1988, %v1984
    %v3393 = vpack.c.b16 %v1989, %v1985
    %v3394 = vpack.c.b16 %v1990, %v1986
    %v3395 = vpack.c.b16 %v1995, %v1991
    %v3396 = vpack.c.b16 %v1996, %v1992
    %v3397 = vpack.c.b16 %v1997, %v1993
    %v3398 = vpack.c.b16 %v1998, %v1994
    %v3399 = vpack.c.b16 %v2003, %v1999
    %v3400 = vpack.c.b16 %v2004, %v2000
    %v3401 = vpack.c.b16 %v2005, %v2001
    %v3402 = vpack.c.b16 %v2006, %v2002
    %v3403 = vpack.c.b16 %v2011, %v2007
    %v3404 = vpack.c.b16 %v2012, %v2008
    %v3405 = vpack.c.b16 %v2013, %v2009
    %v3406 = vpack.c.b16 %v2014, %v2010
    %v3407 = vpack.c.b16 %v2019, %v2015
    %v3408 = vpack.c.b16 %v2020, %v2016
    %v3409 = vpack.c.b16 %v2021, %v2017
    %v3410 = vpack.c.b16 %v2022, %v2018
    %v3411 = vpack.c.b16 %v2027, %v2023
    %v3412 = vpack.c.b16 %v2028, %v2024
    %v3413 = vpack.c.b16 %v2029, %v2025
    %v3414 = vpack.c.b16 %v2030, %v2026
    %v3415 = vpack.c.b16 %v2035, %v2031
    %v3416 = vpack.c.b16 %v2036, %v2032
    %v3417 = vpack.c.b16 %v2037, %v2033
    %v3418 = vpack.c.b16 %v2038, %v2034
    %v3419 = vpack.c.b16 %v2043, %v2039
    %v3420 = vpack.c.b16 %v2044, %v2040
    %v3421 = vpack.c.b16 %v2045, %v2041
    %v3422 = vpack.c.b16 %v2046, %v2042
    %v3423 = vpack.c.b16 %v2051, %v2047
    %v3424 = vpack.c.b16 %v2052, %v2048
    %v3425 = vpack.c.b16 %v2053, %v2049
    %v3426 = vpack.c.b16 %v2054, %v2050
    %v3427 = vpack.c.b16 %v2059, %v2055
    %v3428 = vpack.c.b16 %v2060, %v2056
    %v3429 = vpack.c.b16 %v2061, %v2057
    %v3430 = vpack.c.b16 %v2062, %v2058
    %v3431 = vpack.c.b16 %v2067, %v2063
    %v3432 = vpack.c.b16 %v2068, %v2064
    %v3433 = vpack.c.b16 %v2069, %v2065
    %v3434 = vpack.c.b16 %v2070, %v2066
    %v3435 = vpack.c.b16 %v2075, %v2071
    %v3436 = vpack.c.b16 %v2076, %v2072
    %v3437 = vpack.c.b16 %v2077, %v2073
    %v3438 = vpack.c.b16 %v2078, %v2074
    %v3439 = vpack.c.b16 %v2083, %v2079
    %v3440 = vpack.c.b16 %v2084, %v2080
    %v3441 = vpack.c.b16 %v2085, %v2081
    %v3442 = vpack.c.b16 %v2086, %v2082
    %v3443 = vpack.c.b16 %v2091, %v2087
    %v3444 = vpack.c.b16 %v2092, %v2088
    %v3445 = vpack.c.b16 %v2093, %v2089
    %v3446 = vpack.c.b16 %v2094, %v2090
    %v3447 = vpack.c.b16 %v2099, %v2095
    %v3448 = vpack.c.b16 %v2100, %v2096
    %v3449 = vpack.c.b16 %v2101, %v2097
    %v3450 = vpack.c.b16 %v2102, %v2098
    %v3451 = vpack.c.b16 %v2107, %v2103
    %v3452 = vpack.c.b16 %v2108, %v2104
    %v3453 = vpack.c.b16 %v2109, %v2105
    %v3454 = vpack.c.b16 %v2110, %v2106
    %v3455 = vpack.c.b16 %v2115, %v2111
    %v3456 = vpack.c.b16 %v2116, %v2112
    %v3457 = vpack.c.b16 %v2117, %v2113
    %v3458 = vpack.c.b16 %v2118, %v2114
    %v3459 = vpack.c.b16 %v2123, %v2119
    %v3460 = vpack.c.b16 %v2124, %v2120
    %v3461 = vpack.c.b16 %v2125, %v2121
    %v3462 = vpack.c.b16 %v2126, %v2122
    %v3463 = vpack.c.b16 %v2131, %v2127
    %v3464 = vpack.c.b16 %v2132, %v2128
    %v3465 = vpack.c.b16 %v2133, %v2129
    %v3466 = vpack.c.b16 %v2134, %v2130
    %v3467 = vpack.c.b16 %v2139, %v2135
    %v3468 = vpack.c.b16 %v2140, %v2136
    %v3469 = vpack.c.b16 %v2141, %v2137
    %v3470 = vpack.c.b16 %v2142, %v2138
    %v3471 = vpack.c.b16 %v2147, %v2143
    %v3472 = vpack.c.b16 %v2148, %v2144
    %v3473 = vpack.c.b16 %v2149, %v2145
    %v3474 = vpack.c.b16 %v2150, %v2146
    %v3475 = vpack.c.b16 %v2155, %v2151
    %v3476 = vpack.c.b16 %v2156, %v2152
    %v3477 = vpack.c.b16 %v2157, %v2153
    %v3478 = vpack.c.b16 %v2158, %v2154
    %v3479 = vpack.c.b16 %v2163, %v2159
    %v3480 = vpack.c.b16 %v2164, %v2160
    %v3481 = vpack.c.b16 %v2165, %v2161
    %v3482 = vpack.c.b16 %v2166, %v2162
    %v3483 = vpack.c.b16 %v2171, %v2167
    %v3484 = vpack.c.b16 %v2172, %v2168
    %v3485 = vpack.c.b16 %v2173, %v2169
    %v3486 = vpack.c.b16 %v2174, %v2170
    %v3487 = vpack.c.b16 %v2179, %v2175
    %v3488 = vpack.c.b16 %v2180, %v2176
    %v3489 = vpack.c.b16 %v2181, %v2177
    %v3490 = vpack.c.b16 %v2182, %v2178
    %v3491 = vpack.c.b16 %v2187, %v2183
    %v3492 = vpack.c.b16 %v2188, %v2184
    %v3493 = vpack.c.b16 %v2189, %v2185
    %v3494 = vpack.c.b16 %v2190, %v2186
    %v3495 = vpack.c.b16 %v2195, %v2191
    %v3496 = vpack.c.b16 %v2196, %v2192
    %v3497 = vpack.c.b16 %v2197, %v2193
    %v3498 = vpack.c.b16 %v2198, %v2194
    %v3499 = vpack.c.b16 %v2203, %v2199
    %v3500 = vpack.c.b16 %v2204, %v2200
    %v3501 = vpack.c.b16 %v2205, %v2201
    %v3502 = vpack.c.b16 %v2206, %v2202
    %v3503 = vpack.c.b16 %v2211, %v2207
    %v3504 = vpack.c.b16 %v2212, %v2208
    %v3505 = vpack.c.b16 %v2213, %v2209
    %v3506 = vpack.c.b16 %v2214, %v2210
    %v3507 = vpack.c.b16 %v2219, %v2215
    %v3508 = vpack.c.b16 %v2220, %v2216
    %v3509 = vpack.c.b16 %v2221, %v2217
    %v3510 = vpack.c.b16 %v2222, %v2218
    %v3511 = vpack.c.b16 %v2227, %v2223
    %v3512 = vpack.c.b16 %v2228, %v2224
    %v3513 = vpack.c.b16 %v2229, %v2225
    %v3514 = vpack.c.b16 %v2230, %v2226
    %v3515 = vpack.c.b16 %v2235, %v2231
    %v3516 = vpack.c.b16 %v2236, %v2232
    %v3517 = vpack.c.b16 %v2237, %v2233
    %v3518 = vpack.c.b16 %v2238, %v2234
    %v3519 = vpack.c.b16 %v2243, %v2239
    %v3520 = vpack.c.b16 %v2244, %v2240
    %v3521 = vpack.c.b16 %v2245, %v2241
    %v3522 = vpack.c.b16 %v2246, %v2242
    %v3523 = vpack.c.b16 %v2251, %v2247
    %v3524 = vpack.c.b16 %v2252, %v2248
    %v3525 = vpack.c.b16 %v2253, %v2249
    %v3526 = vpack.c.b16 %v2254, %v2250
    %v3527 = vpack.c.b16 %v2259, %v2255
    %v3528 = vpack.c.b16 %v2260, %v2256
    %v3529 = vpack.c.b16 %v2261, %v2257
    %v3530 = vpack.c.b16 %v2262, %v2258
    %v3531 = vpack.c.b16 %v2267, %v2263
    %v3532 = vpack.c.b16 %v2268, %v2264
    %v3533 = vpack.c.b16 %v2269, %v2265
    %v3534 = vpack.c.b16 %v2270, %v2266
    %v3535 = vpack.c.b16 %v2275, %v2271
    %v3536 = vpack.c.b16 %v2276, %v2272
    %v3537 = vpack.c.b16 %v2277, %v2273
    %v3538 = vpack.c.b16 %v2278, %v2274
    %v3539 = vpack.c.b16 %v2283, %v2279
    %v3540 = vpack.c.b16 %v2284, %v2280
    %v3541 = vpack.c.b16 %v2285, %v2281
    %v3542 = vpack.c.b16 %v2286, %v2282
    %v3543 = vpack.c.b16 %v2291, %v2287
    %v3544 = vpack.c.b16 %v2292, %v2288
    %v3545 = vpack.c.b16 %v2293, %v2289
    %v3546 = vpack.c.b16 %v2294, %v2290
    %v3547 = vpack.c.b16 %v2299, %v2295
    %v3548 = vpack.c.b16 %v2300, %v2296
    %v3549 = vpack.c.b16 %v2301, %v2297
    %v3550 = vpack.c.b16 %v2302, %v2298
    %v3551 = vpack.c.b16 %v2307, %v2303
    %v3552 = vpack.c.b16 %v2308, %v2304
    %v3553 = vpack.c.b16 %v2309, %v2305
    %v3554 = vpack.c.b16 %v2310, %v2306
    %v3555 = vpack.c.b16 %v2315, %v2311
    %v3556 = vpack.c.b16 %v2316, %v2312
    %v3557 = vpack.c.b16 %v2317, %v2313
    %v3558 = vpack.c.b16 %v2318, %v2314
    %v3559 = vpack.c.b16 %v2323, %v2319
    %v3560 = vpack.c.b16 %v2324, %v2320
    %v3561 = vpack.c.b16 %v2325, %v2321
    %v3562 = vpack.c.b16 %v2326, %v2322
    %v3563 = vpack.c.b16 %v2331, %v2327
    %v3564 = vpack.c.b16 %v2332, %v2328
    %v3565 = vpack.c.b16 %v2333, %v2329
    %v3566 = vpack.c.b16 %v2334, %v2330
    %v3567 = vpack.c.b16 %v2339, %v2335
    %v3568 = vpack.c.b16 %v2340, %v2336
    %v3569 = vpack.c.b16 %v2341, %v2337
    %v3570 = vpack.c.b16 %v2342, %v2338
    %v3571 = vpack.c.b16 %v2347, %v2343
    %v3572 = vpack.c.b16 %v2348, %v2344
    %v3573 = vpack.c.b16 %v2349, %v2345
    %v3574 = vpack.c.b16 %v2350, %v2346
    %v3575 = vpack.c.b16 %v2355, %v2351
    %v3576 = vpack.c.b16 %v2356, %v2352
    %v3577 = vpack.c.b16 %v2357, %v2353
    %v3578 = vpack.c.b16 %v2358, %v2354
    %v3579 = vpack.c.b16 %v2363, %v2359
    %v3580 = vpack.c.b16 %v2364, %v2360
    %v3581 = vpack.c.b16 %v2365, %v2361
    %v3582 = vpack.c.b16 %v2366, %v2362
    %v3583 = vpack.c.b16 %v2371, %v2367
    %v3584 = vpack.c.b16 %v2372, %v2368
    %v3585 = vpack.c.b16 %v2373, %v2369
    %v3586 = vpack.c.b16 %v2374, %v2370
    %v3587 = vpack.c.b16 %v2379, %v2375
    %v3588 = vpack.c.b16 %v2380, %v2376
    %v3589 = vpack.c.b16 %v2381, %v2377
    %v3590 = vpack.c.b16 %v2382, %v2378
    %v3591 = vpack.c.b16 %v2387, %v2383
    %v3592 = vpack.c.b16 %v2388, %v2384
    %v3593 = vpack.c.b16 %v2389, %v2385
    %v3594 = vpack.c.b16 %v2390, %v2386
    %v3595 = vpack.c.b16 %v2395, %v2391
    %v3596 = vpack.c.b16 %v2396, %v2392
    %v3597 = vpack.c.b16 %v2397, %v2393
    %v3598 = vpack.c.b16 %v2398, %v2394
    %v3599 = vpack.c.b16 %v2403, %v2399
    %v3600 = vpack.c.b16 %v2404, %v2400
    %v3601 = vpack.c.b16 %v2405, %v2401
    %v3602 = vpack.c.b16 %v2406, %v2402
    %v3603 = vpack.c.b16 %v2411, %v2407
    %v3604 = vpack.c.b16 %v2412, %v2408
    %v3605 = vpack.c.b16 %v2413, %v2409
    %v3606 = vpack.c.b16 %v2414, %v2410
    %v3607 = vpack.c.b16 %v2419, %v2415
    %v3608 = vpack.c.b16 %v2420, %v2416
    %v3609 = vpack.c.b16 %v2421, %v2417
    %v3610 = vpack.c.b16 %v2422, %v2418
    %v3611 = vpack.c.b16 %v2427, %v2423
    %v3612 = vpack.c.b16 %v2428, %v2424
    %v3613 = vpack.c.b16 %v2429, %v2425
    %v3614 = vpack.c.b16 %v2430, %v2426
    %v3615 = vpack.c.b16 %v2435, %v2431
    %v3616 = vpack.c.b16 %v2436, %v2432
    %v3617 = vpack.c.b16 %v2437, %v2433
    %v3618 = vpack.c.b16 %v2438, %v2434
    %v3619 = vpack.c.b16 %v2443, %v2439
    %v3620 = vpack.c.b16 %v2444, %v2440
    %v3621 = vpack.c.b16 %v2445, %v2441
    %v3622 = vpack.c.b16 %v2446, %v2442
    %v3623 = vpack.c.b16 %v2451, %v2447
    %v3624 = vpack.c.b16 %v2452, %v2448
    %v3625 = vpack.c.b16 %v2453, %v2449
    %v3626 = vpack.c.b16 %v2454, %v2450
    %v3627 = vpack.c.b16 %v2459, %v2455
    %v3628 = vpack.c.b16 %v2460, %v2456
    %v3629 = vpack.c.b16 %v2461, %v2457
    %v3630 = vpack.c.b16 %v2462, %v2458
    %v3631 = vpack.c.b16 %v2467, %v2463
    %v3632 = vpack.c.b16 %v2468, %v2464
    %v3633 = vpack.c.b16 %v2469, %v2465
    %v3634 = vpack.c.b16 %v2470, %v2466
    %v3635 = vpack.c.b16 %v2475, %v2471
    %v3636 = vpack.c.b16 %v2476, %v2472
    %v3637 = vpack.c.b16 %v2477, %v2473
    %v3638 = vpack.c.b16 %v2478, %v2474
    %v3639 = vpack.c.b16 %v2483, %v2479
    %v3640 = vpack.c.b16 %v2484, %v2480
    %v3641 = vpack.c.b16 %v2485, %v2481
    %v3642 = vpack.c.b16 %v2486, %v2482
    %v3643 = vpack.c.b16 %v2491, %v2487
    %v3644 = vpack.c.b16 %v2492, %v2488
    %v3645 = vpack.c.b16 %v2493, %v2489
    %v3646 = vpack.c.b16 %v2494, %v2490
    %v3647 = vpack.c.b16 %v2499, %v2495
    %v3648 = vpack.c.b16 %v2500, %v2496
    %v3649 = vpack.c.b16 %v2501, %v2497
    %v3650 = vpack.c.b16 %v2502, %v2498
    %v3651 = vpack.c.b16 %v2507, %v2503
    %v3652 = vpack.c.b16 %v2508, %v2504
    %v3653 = vpack.c.b16 %v2509, %v2505
    %v3654 = vpack.c.b16 %v2510, %v2506
    %v3655 = vpack.c.b16 %v2515, %v2511
    %v3656 = vpack.c.b16 %v2516, %v2512
    %v3657 = vpack.c.b16 %v2517, %v2513
    %v3658 = vpack.c.b16 %v2518, %v2514
    %v3659 = vpack.c.b16 %v2523, %v2519
    %v3660 = vpack.c.b16 %v2524, %v2520
    %v3661 = vpack.c.b16 %v2525, %v2521
    %v3662 = vpack.c.b16 %v2526, %v2522
    %v3663 = vpack.c.b16 %v2531, %v2527
    %v3664 = vpack.c.b16 %v2532, %v2528
    %v3665 = vpack.c.b16 %v2533, %v2529
    %v3666 = vpack.c.b16 %v2534, %v2530
    %v3667 = vpack.c.b16 %v2539, %v2535
    %v3668 = vpack.c.b16 %v2540, %v2536
    %v3669 = vpack.c.b16 %v2541, %v2537
    %v3670 = vpack.c.b16 %v2542, %v2538
    %v3671 = vpack.c.b16 %v2547, %v2543
    %v3672 = vpack.c.b16 %v2548, %v2544
    %v3673 = vpack.c.b16 %v2549, %v2545
    %v3674 = vpack.c.b16 %v2550, %v2546
    %v3675 = vpack.c.b16 %v2555, %v2551
    %v3676 = vpack.c.b16 %v2556, %v2552
    %v3677 = vpack.c.b16 %v2557, %v2553
    %v3678 = vpack.c.b16 %v2558, %v2554
    %v3679 = vpack.c.b16 %v2563, %v2559
    %v3680 = vpack.c.b16 %v2564, %v2560
    %v3681 = vpack.c.b16 %v2565, %v2561
    %v3682 = vpack.c.b16 %v2566, %v2562
    %v3683 = vpack.c.b16 %v2571, %v2567
    %v3684 = vpack.c.b16 %v2572, %v2568
    %v3685 = vpack.c.b16 %v2573, %v2569
    %v3686 = vpack.c.b16 %v2574, %v2570
    %v3687 = vpack.c.b16 %v2579, %v2575
    %v3688 = vpack.c.b16 %v2580, %v2576
    %v3689 = vpack.c.b16 %v2581, %v2577
    %v3690 = vpack.c.b16 %v2582, %v2578
    %v3691 = vpack.c.b16 %v2587, %v2583
    %v3692 = vpack.c.b16 %v2588, %v2584
    %v3693 = vpack.c.b16 %v2589, %v2585
    %v3694 = vpack.c.b16 %v2590, %v2586
    %v3695 = vpack.c.b16 %v2595, %v2591
    %v3696 = vpack.c.b16 %v2596, %v2592
    %v3697 = vpack.c.b16 %v2597, %v2593
    %v3698 = vpack.c.b16 %v2598, %v2594
    %v3699 = vpack.c.b16 %v2603, %v2599
    %v3700 = vpack.c.b16 %v2604, %v2600
    %v3701 = vpack.c.b16 %v2605, %v2601
    %v3702 = vpack.c.b16 %v2606, %v2602
    %v3703 = vpack.c.b16 %v2611, %v2607
    %v3704 = vpack.c.b16 %v2612, %v2608
    %v3705 = vpack.c.b16 %v2613, %v2609
    %v3706 = vpack.c.b16 %v2614, %v2610
    %v3707 = vpack.c.b16 %v2619, %v2615
    %v3708 = vpack.c.b16 %v2620, %v2616
    %v3709 = vpack.c.b16 %v2621, %v2617
    %v3710 = vpack.c.b16 %v2622, %v2618
    %v3711 = vpack.c.b16 %v2627, %v2623
    %v3712 = vpack.c.b16 %v2628, %v2624
    %v3713 = vpack.c.b16 %v2629, %v2625
    %v3714 = vpack.c.b16 %v2630, %v2626
    %v3715 = vpack.c.b16 %v2635, %v2631
    %v3716 = vpack.c.b16 %v2636, %v2632
    %v3717 = vpack.c.b16 %v2637, %v2633
    %v3718 = vpack.c.b16 %v2638, %v2634
    %v3719 = vpack.c.b16 %v2643, %v2639
    %v3720 = vpack.c.b16 %v2644, %v2640
    %v3721 = vpack.c.b16 %v2645, %v2641
    %v3722 = vpack.c.b16 %v2646, %v2642
    %v3723 = vpack.c.b16 %v2651, %v2647
    %v3724 = vpack.c.b16 %v2652, %v2648
    %v3725 = vpack.c.b16 %v2653, %v2649
    %v3726 = vpack.c.b16 %v2654, %v2650
    %v3727 = vpack.c.b16 %v2659, %v2655
    %v3728 = vpack.c.b16 %v2660, %v2656
    %v3729 = vpack.c.b16 %v2661, %v2657
    %v3730 = vpack.c.b16 %v2662, %v2658
    %v3731 = vpack.c.b16 %v2667, %v2663
    %v3732 = vpack.c.b16 %v2668, %v2664
    %v3733 = vpack.c.b16 %v2669, %v2665
    %v3734 = vpack.c.b16 %v2670, %v2666
    %v3735 = vpack.c.b16 %v2675, %v2671
    %v3736 = vpack.c.b16 %v2676, %v2672
    %v3737 = vpack.c.b16 %v2677, %v2673
    %v3738 = vpack.c.b16 %v2678, %v2674
    %v3739 = vpack.c.b16 %v2683, %v2679
    %v3740 = vpack.c.b16 %v2684, %v2680
    %v3741 = vpack.c.b16 %v2685, %v2681
    %v3742 = vpack.c.b16 %v2686, %v2682
    %v3743 = vpack.c.b16 %v2691, %v2687
    %v3744 = vpack.c.b16 %v2692, %v2688
    %v3745 = vpack.c.b16 %v2693, %v2689
    %v3746 = vpack.c.b16 %v2694, %v2690
    %v3747 = vpack.c.b16 %v2699, %v2695
    %v3748 = vpack.c.b16 %v2700, %v2696
    %v3749 = vpack.c.b16 %v2701, %v2697
    %v3750 = vpack.c.b16 %v2702, %v2698
    %v3751 = vpack.c.b16 %v2707, %v2703
    %v3752 = vpack.c.b16 %v2708, %v2704
    %v3753 = vpack.c.b16 %v2709, %v2705
    %v3754 = vpack.c.b16 %v2710, %v2706
    %v3755 = vpack.c.b16 %v2715, %v2711
    %v3756 = vpack.c.b16 %v2716, %v2712
    %v3757 = vpack.c.b16 %v2717, %v2713
    %v3758 = vpack.c.b16 %v2718, %v2714
    %v3759 = vpack.c.b16 %v2723, %v2719
    %v3760 = vpack.c.b16 %v2724, %v2720
    %v3761 = vpack.c.b16 %v2725, %v2721
    %v3762 = vpack.c.b16 %v2726, %v2722
    %v3763 = vpack.c.b16 %v2731, %v2727
    %v3764 = vpack.c.b16 %v2732, %v2728
    %v3765 = vpack.c.b16 %v2733, %v2729
    %v3766 = vpack.c.b16 %v2734, %v2730
    %v3767 = vpack.c.b16 %v2739, %v2735
    %v3768 = vpack.c.b16 %v2740, %v2736
    %v3769 = vpack.c.b16 %v2741, %v2737
    %v3770 = vpack.c.b16 %v2742, %v2738
    %v3771 = vpack.c.b16 %v2747, %v2743
    %v3772 = vpack.c.b16 %v2748, %v2744
    %v3773 = vpack.c.b16 %v2749, %v2745
    %v3774 = vpack.c.b16 %v2750, %v2746
    %v3775 = vpack.c.b16 %v2755, %v2751
    %v3776 = vpack.c.b16 %v2756, %v2752
    %v3777 = vpack.c.b16 %v2757, %v2753
    %v3778 = vpack.c.b16 %v2758, %v2754
    %v3779 = vpack.c.b16 %v2763, %v2759
    %v3780 = vpack.c.b16 %v2764, %v2760
    %v3781 = vpack.c.b16 %v2765, %v2761
    %v3782 = vpack.c.b16 %v2766, %v2762
    %v3783 = vpack.c.b16 %v2771, %v2767
    %v3784 = vpack.c.b16 %v2772, %v2768
    %v3785 = vpack.c.b16 %v2773, %v2769
    %v3786 = vpack.c.b16 %v2774, %v2770
    %v3787 = vpack.c.b16 %v2779, %v2775
    %v3788 = vpack.c.b16 %v2780, %v2776
    %v3789 = vpack.c.b16 %v2781, %v2777
    %v3790 = vpack.c.b16 %v2782, %v2778
    %v3791 = vpack.c.b16 %v2787, %v2783
    %v3792 = vpack.c.b16 %v2788, %v2784
    %v3793 = vpack.c.b16 %v2789, %v2785
    %v3794 = vpack.c.b16 %v2790, %v2786
    %v3795 = vpack.c.b16 %v2795, %v2791
    %v3796 = vpack.c.b16 %v2796, %v2792
    %v3797 = vpack.c.b16 %v2797, %v2793
    %v3798 = vpack.c.b16 %v2798, %v2794
    %v3799 = vpack.c.b16 %v2803, %v2799
    %v3800 = vpack.c.b16 %v2804, %v2800
    %v3801 = vpack.c.b16 %v2805, %v2801
    %v3802 = vpack.c.b16 %v2806, %v2802
    %v3803 = vpack.c.b16 %v2811, %v2807
    %v3804 = vpack.c.b16 %v2812, %v2808
    %v3805 = vpack.c.b16 %v2813, %v2809
    %v3806 = vpack.c.b16 %v2814, %v2810
    %v3807 = vpack.c.b16 %v2819, %v2815
    %v3808 = vpack.c.b16 %v2820, %v2816
    %v3809 = vpack.c.b16 %v2821, %v2817
    %v3810 = vpack.c.b16 %v2822, %v2818
    %v3811 = vpack.c.b16 %v2827, %v2823
    %v3812 = vpack.c.b16 %v2828, %v2824
    %v3813 = vpack.c.b16 %v2829, %v2825
    %v3814 = vpack.c.b16 %v2830, %v2826
    %v3815 = vpack.c.b16 %v2835, %v2831
    %v3816 = vpack.c.b16 %v2836, %v2832
    %v3817 = vpack.c.b16 %v2837, %v2833
    %v3818 = vpack.c.b16 %v2838, %v2834
    %v3819 = vpack.c.b16 %v2843, %v2839
    %v3820 = vpack.c.b16 %v2844, %v2840
    %v3821 = vpack.c.b16 %v2845, %v2841
    %v3822 = vpack.c.b16 %v2846, %v2842
    %v3823 = vpack.c.b16 %v2851, %v2847
    %v3824 = vpack.c.b16 %v2852, %v2848
    %v3825 = vpack.c.b16 %v2853, %v2849
    %v3826 = vpack.c.b16 %v2854, %v2850
    %v3827 = vpack.c.b16 %v2859, %v2855
    %v3828 = vpack.c.b16 %v2860, %v2856
    %v3829 = vpack.c.b16 %v2861, %v2857
    %v3830 = vpack.c.b16 %v2862, %v2858
    %v3831 = vpack.c.b16 %v2867, %v2863
    %v3832 = vpack.c.b16 %v2868, %v2864
    %v3833 = vpack.c.b16 %v2869, %v2865
    %v3834 = vpack.c.b16 %v2870, %v2866
    %v3835 = vpack.c.b16 %v2875, %v2871
    %v3836 = vpack.c.b16 %v2876, %v2872
    %v3837 = vpack.c.b16 %v2877, %v2873
    %v3838 = vpack.c.b16 %v2878, %v2874
    %v3839 = vpack.c.b16 %v2883, %v2879
    %v3840 = vpack.c.b16 %v2884, %v2880
    %v3841 = vpack.c.b16 %v2885, %v2881
    %v3842 = vpack.c.b16 %v2886, %v2882
    %v3843 = vpack.c.b16 %v2891, %v2887
    %v3844 = vpack.c.b16 %v2892, %v2888
    %v3845 = vpack.c.b16 %v2893, %v2889
    %v3846 = vpack.c.b16 %v2894, %v2890
    %v3847 = vpack.c.b16 %v2899, %v2895
    %v3848 = vpack.c.b16 %v2900, %v2896
    %v3849 = vpack.c.b16 %v2901, %v2897
    %v3850 = vpack.c.b16 %v2902, %v2898
    %v3851 = vpack.c.b16 %v2907, %v2903
    %v3852 = vpack.c.b16 %v2908, %v2904
    %v3853 = vpack.c.b16 %v2909, %v2905
    %v3854 = vpack.c.b16 %v2910, %v2906
    %v3855 = vpack.c.b16 %v2915, %v2911
    %v3856 = vpack.c.b16 %v2916, %v2912
    %v3857 = vpack.c.b16 %v2917, %v2913
    %v3858 = vpack.c.b16 %v2918, %v2914
    %v3859 = vpack.c.b16 %v2923, %v2919
    %v3860 = vpack.c.b16 %v2924, %v2920
    %v3861 = vpack.c.b16 %v2925, %v2921
    %v3862 = vpack.c.b16 %v2926, %v2922
    %v3863 = vpack.c.b16 %v2931, %v2927
    %v3864 = vpack.c.b16 %v2932, %v2928
    %v3865 = vpack.c.b16 %v2933, %v2929
    %v3866 = vpack.c.b16 %v2934, %v2930
    %v3867 = vpack.c.b16 %v2939, %v2935
    %v3868 = vpack.c.b16 %v2940, %v2936
    %v3869 = vpack.c.b16 %v2941, %v2937
    %v3870 = vpack.c.b16 %v2942, %v2938
    %v3871 = vpack.c.b16 %v2947, %v2943
    %v3872 = vpack.c.b16 %v2948, %v2944
    %v3873 = vpack.c.b16 %v2949, %v2945
    %v3874 = vpack.c.b16 %v2950, %v2946
    %v3875 = vpack.c.b16 %v2955, %v2951
    %v3876 = vpack.c.b16 %v2956, %v2952
    %v3877 = vpack.c.b16 %v2957, %v2953
    %v3878 = vpack.c.b16 %v2958, %v2954
    %v3879 = vpack.c.b16 %v2963, %v2959
    %v3880 = vpack.c.b16 %v2964, %v2960
    %v3881 = vpack.c.b16 %v2965, %v2961
    %v3882 = vpack.c.b16 %v2966, %v2962
    %v3883 = vpack.c.b16 %v2971, %v2967
    %v3884 = vpack.c.b16 %v2972, %v2968
    %v3885 = vpack.c.b16 %v2973, %v2969
    %v3886 = vpack.c.b16 %v2974, %v2970
    %v3887 = vpack.c.b16 %v2979, %v2975
    %v3888 = vpack.c.b16 %v2980, %v2976
    %v3889 = vpack.c.b16 %v2981, %v2977
    %v3890 = vpack.c.b16 %v2982, %v2978
    %v3891 = vpack.c.b16 %v2987, %v2983
    %v3892 = vpack.c.b16 %v2988, %v2984
    %v3893 = vpack.c.b16 %v2989, %v2985
    %v3894 = vpack.c.b16 %v2990, %v2986
    %v3895 = vpack.c.b16 %v2995, %v2991
    %v3896 = vpack.c.b16 %v2996, %v2992
    %v3897 = vpack.c.b16 %v2997, %v2993
    %v3898 = vpack.c.b16 %v2998, %v2994
    %v3899 = vpack.c.b16 %v3003, %v2999
    %v3900 = vpack.c.b16 %v3004, %v3000
    %v3901 = vpack.c.b16 %v3005, %v3001
    %v3902 = vpack.c.b16 %v3006, %v3002
    %v3903 = vpack.c.b16 %v3011, %v3007
    %v3904 = vpack.c.b16 %v3012, %v3008
    %v3905 = vpack.c.b16 %v3013, %v3009
    %v3906 = vpack.c.b16 %v3014, %v3010
    %v3907 = vpack.c.b16 %v3019, %v3015
    %v3908 = vpack.c.b16 %v3020, %v3016
    %v3909 = vpack.c.b16 %v3021, %v3017
    %v3910 = vpack.c.b16 %v3022, %v3018
    %v3911 = vpack.c.b16 %v3027, %v3023
    %v3912 = vpack.c.b16 %v3028, %v3024
    %v3913 = vpack.c.b16 %v3029, %v3025
    %v3914 = vpack.c.b16 %v3030, %v3026
    %v3915 = vpack.c.b16 %v3035, %v3031
    %v3916 = vpack.c.b16 %v3036, %v3032
    %v3917 = vpack.c.b16 %v3037, %v3033
    %v3918 = vpack.c.b16 %v3038, %v3034
    %v3919 = vpack.c.b16 %v3043, %v3039
    %v3920 = vpack.c.b16 %v3044, %v3040
    %v3921 = vpack.c.b16 %v3045, %v3041
    %v3922 = vpack.c.b16 %v3046, %v3042
    %v3923 = vpack.c.b16 %v3051, %v3047
    %v3924 = vpack.c.b16 %v3052, %v3048
    %v3925 = vpack.c.b16 %v3053, %v3049
    %v3926 = vpack.c.b16 %v3054, %v3050
    %v3927 = vpack.c.b16 %v3059, %v3055
    %v3928 = vpack.c.b16 %v3060, %v3056
    %v3929 = vpack.c.b16 %v3061, %v3057
    %v3930 = vpack.c.b16 %v3062, %v3058
    %v3931 = vpack.c.b16 %v3067, %v3063
    %v3932 = vpack.c.b16 %v3068, %v3064
    %v3933 = vpack.c.b16 %v3069, %v3065
    %v3934 = vpack.c.b16 %v3070, %v3066
    %v3935 = vpack.c.b16 %v3075, %v3071
    %v3936 = vpack.c.b16 %v3076, %v3072
    %v3937 = vpack.c.b16 %v3077, %v3073
    %v3938 = vpack.c.b16 %v3078, %v3074
    %v3939 = vpack.c.b16 %v3083, %v3079
    %v3940 = vpack.c.b16 %v3084, %v3080
    %v3941 = vpack.c.b16 %v3085, %v3081
    %v3942 = vpack.c.b16 %v3086, %v3082
    %v3943 = vpack.c.b16 %v3091, %v3087
    %v3944 = vpack.c.b16 %v3092, %v3088
    %v3945 = vpack.c.b16 %v3093, %v3089
    %v3946 = vpack.c.b16 %v3094, %v3090
    %v3947 = vpack.c.b16 %v3099, %v3095
    %v3948 = vpack.c.b16 %v3100, %v3096
    %v3949 = vpack.c.b16 %v3101, %v3097
    %v3950 = vpack.c.b16 %v3102, %v3098
    %v3951 = vpack.c.b16 %v3107, %v3103
    %v3952 = vpack.c.b16 %v3108, %v3104
    %v3953 = vpack.c.b16 %v3109, %v3105
    %v3954 = vpack.c.b16 %v3110, %v3106
    %v3955 = vpack.c.b16 %v3115, %v3111
    %v3956 = vpack.c.b16 %v3116, %v3112
    %v3957 = vpack.c.b16 %v3117, %v3113
    %v3958 = vpack.c.b16 %v3118, %v3114
    %v3959 = vpack.c.b16 %v3123, %v3119
    %v3960 = vpack.c.b16 %v3124, %v3120
    %v3961 = vpack.c.b16 %v3125, %v3121
    %v3962 = vpack.c.b16 %v3126, %v3122
    %v3963 = vpack.c.b16 %v3131, %v3127
    %v3964 = vpack.c.b16 %v3132, %v3128
    %v3965 = vpack.c.b16 %v3133, %v3129
    %v3966 = vpack.c.b16 %v3134, %v3130
    %v3967 = vpack.c.b16 %v3139, %v3135
    %v3968 = vpack.c.b16 %v3140, %v3136
    %v3969 = vpack.c.b16 %v3141, %v3137
    %v3970 = vpack.c.b16 %v3142, %v3138
    %v3971 = vpack.c.b16 %v3147, %v3143
    %v3972 = vpack.c.b16 %v3148, %v3144
    %v3973 = vpack.c.b16 %v3149, %v3145
    %v3974 = vpack.c.b16 %v3150, %v3146
    %v3975 = vpack.c.b16 %v3155, %v3151
    %v3976 = vpack.c.b16 %v3156, %v3152
    %v3977 = vpack.c.b16 %v3157, %v3153
    %v3978 = vpack.c.b16 %v3158, %v3154
    %v3979 = vpack.c.b16 %v3163, %v3159
    %v3980 = vpack.c.b16 %v3164, %v3160
    %v3981 = vpack.c.b16 %v3165, %v3161
    %v3982 = vpack.c.b16 %v3166, %v3162
    %v3983 = vpack.c.b16 %v3171, %v3167
    %v3984 = vpack.c.b16 %v3172, %v3168
    %v3985 = vpack.c.b16 %v3173, %v3169
    %v3986 = vpack.c.b16 %v3174, %v3170
    %v3987 = vpack.c.b16 %v3179, %v3175
    %v3988 = vpack.c.b16 %v3180, %v3176
    %v3989 = vpack.c.b16 %v3181, %v3177
    %v3990 = vpack.c.b16 %v3182, %v3178
    %v3991 = vpack.c.b16 %v3187, %v3183
    %v3992 = vpack.c.b16 %v3188, %v3184
    %v3993 = vpack.c.b16 %v3189, %v3185
    %v3994 = vpack.c.b16 %v3190, %v3186
    %v3995 = vpack.c.b16 %v3195, %v3191
    %v3996 = vpack.c.b16 %v3196, %v3192
    %v3997 = vpack.c.b16 %v3197, %v3193
    %v3998 = vpack.c.b16 %v3198, %v3194
    %v3999 = vpack.c.b16 %v3203, %v3199
    %v4000 = vpack.c.b16 %v3204, %v3200
    %v4001 = vpack.c.b16 %v3205, %v3201
    %v4002 = vpack.c.b16 %v3206, %v3202
    %v4003 = vpack.c.b16 %v3211, %v3207
    %v4004 = vpack.c.b16 %v3212, %v3208
    %v4005 = vpack.c.b16 %v3213, %v3209
    %v4006 = vpack.c.b16 %v3214, %v3210
    %v4007 = vpack.c.b16 %v3219, %v3215
    %v4008 = vpack.c.b16 %v3220, %v3216
    %v4009 = vpack.c.b16 %v3221, %v3217
    %v4010 = vpack.c.b16 %v3222, %v3218
    %v4011 = vpack.c.b16 %v3227, %v3223
    %v4012 = vpack.c.b16 %v3228, %v3224
    %v4013 = vpack.c.b16 %v3229, %v3225
    %v4014 = vpack.c.b16 %v3230, %v3226
    %vm4799 = vcmask 523264
    %v4800 = vsel %vm4799, %v854, 0
    %4802 = vmatpush.bf16.msra.mxu0 %v3259
    %4803 = vmatpush.bf16.msra.mxu0 %v3255
    %4804 = vmatpush.bf16.msra.mxu0 %v3251
    %4805 = vmatpush.bf16.msra.mxu0 %v3247
    %4806 = vmatpush.bf16.msra.mxu0 %v3243
    %4807 = vmatpush.bf16.msra.mxu0 %v3239
    %4808 = vmatpush.bf16.msra.mxu0 %v3235
    %4809 = vmatpush.bf16.msra.mxu0 %v3231
    %4810 = vmatmul.bf16.gmra.mxu0 %v824
    %v4811 = vpop.f32.mrf.mxu0
    %v4812 = vadd.f32 %v814, %v4811
    %v4813 = vpop.f32.mrf.mxu0
    %4814 = vdwg.mxu0
    %4815 = vmatpush.bf16.msra.mxu0 %v3291
    %4816 = vmatpush.bf16.msra.mxu0 %v3287
    %4817 = vmatpush.bf16.msra.mxu0 %v3283
    %4818 = vmatpush.bf16.msra.mxu0 %v3279
    %4819 = vmatpush.bf16.msra.mxu0 %v3275
    %4820 = vmatpush.bf16.msra.mxu0 %v3271
    %4821 = vmatpush.bf16.msra.mxu0 %v3267
    %4822 = vmatpush.bf16.msra.mxu0 %v3263
    %4823 = vmatmul.bf16.gmra.mxu0 %v825
    %v4824 = vpop.f32.mrf.mxu0
    %v4825 = vadd.f32 %v4812, %v4824
    %v4826 = vpop.f32.mrf.mxu0
    %4827 = vdwg.mxu0
    %4828 = vmatpush.bf16.msra.mxu0 %v3323
    %4829 = vmatpush.bf16.msra.mxu0 %v3319
    %4830 = vmatpush.bf16.msra.mxu0 %v3315
    %4831 = vmatpush.bf16.msra.mxu0 %v3311
    %4832 = vmatpush.bf16.msra.mxu0 %v3307
    %4833 = vmatpush.bf16.msra.mxu0 %v3303
    %4834 = vmatpush.bf16.msra.mxu0 %v3299
    %4835 = vmatpush.bf16.msra.mxu0 %v3295
    %4836 = vmatmul.bf16.gmra.mxu0 %v826
    %v4837 = vpop.f32.mrf.mxu0
    %v4838 = vadd.f32 %v4825, %v4837
    %v4839 = vpop.f32.mrf.mxu0
    %4840 = vdwg.mxu0
    %4841 = vmatpush.bf16.msra.mxu0 %v3355
    %4842 = vmatpush.bf16.msra.mxu0 %v3351
    %4843 = vmatpush.bf16.msra.mxu0 %v3347
    %4844 = vmatpush.bf16.msra.mxu0 %v3343
    %4845 = vmatpush.bf16.msra.mxu0 %v3339
    %4846 = vmatpush.bf16.msra.mxu0 %v3335
    %4847 = vmatpush.bf16.msra.mxu0 %v3331
    %4848 = vmatpush.bf16.msra.mxu0 %v3327
    %4849 = vmatmul.bf16.gmra.mxu0 %v827
    %v4850 = vpop.f32.mrf.mxu0
    %v4851 = vadd.f32 %v4838, %v4850
    %v4852 = vpop.f32.mrf.mxu0
    %4853 = vdwg.mxu0
    %4854 = vmatpush.bf16.msra.mxu0 %v3387
    %4855 = vmatpush.bf16.msra.mxu0 %v3383
    %4856 = vmatpush.bf16.msra.mxu0 %v3379
    %4857 = vmatpush.bf16.msra.mxu0 %v3375
    %4858 = vmatpush.bf16.msra.mxu0 %v3371
    %4859 = vmatpush.bf16.msra.mxu0 %v3367
    %4860 = vmatpush.bf16.msra.mxu0 %v3363
    %4861 = vmatpush.bf16.msra.mxu0 %v3359
    %4862 = vmatmul.bf16.gmra.mxu0 %v828
    %v4863 = vpop.f32.mrf.mxu0
    %v4864 = vadd.f32 %v4851, %v4863
    %v4865 = vpop.f32.mrf.mxu0
    %4866 = vdwg.mxu0
    %4867 = vmatpush.bf16.msra.mxu0 %v3419
    %4868 = vmatpush.bf16.msra.mxu0 %v3415
    %4869 = vmatpush.bf16.msra.mxu0 %v3411
    %4870 = vmatpush.bf16.msra.mxu0 %v3407
    %4871 = vmatpush.bf16.msra.mxu0 %v3403
    %4872 = vmatpush.bf16.msra.mxu0 %v3399
    %4873 = vmatpush.bf16.msra.mxu0 %v3395
    %4874 = vmatpush.bf16.msra.mxu0 %v3391
    %4875 = vmatmul.bf16.gmra.mxu0 %v829
    %v4876 = vpop.f32.mrf.mxu0
    %v4877 = vadd.f32 %v4864, %v4876
    %v4878 = vpop.f32.mrf.mxu0
    %4879 = vdwg.mxu0
    %4880 = vmatpush.bf16.msra.mxu0 %v3451
    %4881 = vmatpush.bf16.msra.mxu0 %v3447
    %4882 = vmatpush.bf16.msra.mxu0 %v3443
    %4883 = vmatpush.bf16.msra.mxu0 %v3439
    %4884 = vmatpush.bf16.msra.mxu0 %v3435
    %4885 = vmatpush.bf16.msra.mxu0 %v3431
    %4886 = vmatpush.bf16.msra.mxu0 %v3427
    %4887 = vmatpush.bf16.msra.mxu0 %v3423
    %4888 = vmatmul.bf16.gmra.mxu0 %v830
    %v4889 = vpop.f32.mrf.mxu0
    %v4890 = vadd.f32 %v4877, %v4889
    %v4891 = vpop.f32.mrf.mxu0
    %4892 = vdwg.mxu0
    %4893 = vmatpush.bf16.msra.mxu0 %v3483
    %4894 = vmatpush.bf16.msra.mxu0 %v3479
    %4895 = vmatpush.bf16.msra.mxu0 %v3475
    %4896 = vmatpush.bf16.msra.mxu0 %v3471
    %4897 = vmatpush.bf16.msra.mxu0 %v3467
    %4898 = vmatpush.bf16.msra.mxu0 %v3463
    %4899 = vmatpush.bf16.msra.mxu0 %v3459
    %4900 = vmatpush.bf16.msra.mxu0 %v3455
    %4901 = vmatmul.bf16.gmra.mxu0 %v831
    %v4902 = vpop.f32.mrf.mxu0
    %v4903 = vadd.f32 %v4890, %v4902
    %v4904 = vpop.f32.mrf.mxu0
    %4905 = vdwg.mxu0
    %4906 = vmatpush.bf16.msra.mxu0 %v3515
    %4907 = vmatpush.bf16.msra.mxu0 %v3511
    %4908 = vmatpush.bf16.msra.mxu0 %v3507
    %4909 = vmatpush.bf16.msra.mxu0 %v3503
    %4910 = vmatpush.bf16.msra.mxu0 %v3499
    %4911 = vmatpush.bf16.msra.mxu0 %v3495
    %4912 = vmatpush.bf16.msra.mxu0 %v3491
    %4913 = vmatpush.bf16.msra.mxu0 %v3487
    %4914 = vmatmul.bf16.gmra.mxu0 %v834
    %v4915 = vpop.f32.mrf.mxu0
    %v4916 = vadd.f32 %v4903, %v4915
    %v4917 = vpop.f32.mrf.mxu0
    %4918 = vdwg.mxu0
    %4919 = vmatpush.bf16.msra.mxu0 %v3547
    %4920 = vmatpush.bf16.msra.mxu0 %v3543
    %4921 = vmatpush.bf16.msra.mxu0 %v3539
    %4922 = vmatpush.bf16.msra.mxu0 %v3535
    %4923 = vmatpush.bf16.msra.mxu0 %v3531
    %4924 = vmatpush.bf16.msra.mxu0 %v3527
    %4925 = vmatpush.bf16.msra.mxu0 %v3523
    %4926 = vmatpush.bf16.msra.mxu0 %v3519
    %4927 = vmatmul.bf16.gmra.mxu0 %v835
    %v4928 = vpop.f32.mrf.mxu0
    %v4929 = vadd.f32 %v4916, %v4928
    %v4930 = vpop.f32.mrf.mxu0
    %4931 = vdwg.mxu0
    %4932 = vmatpush.bf16.msra.mxu0 %v3579
    %4933 = vmatpush.bf16.msra.mxu0 %v3575
    %4934 = vmatpush.bf16.msra.mxu0 %v3571
    %4935 = vmatpush.bf16.msra.mxu0 %v3567
    %4936 = vmatpush.bf16.msra.mxu0 %v3563
    %4937 = vmatpush.bf16.msra.mxu0 %v3559
    %4938 = vmatpush.bf16.msra.mxu0 %v3555
    %4939 = vmatpush.bf16.msra.mxu0 %v3551
    %4940 = vmatmul.bf16.gmra.mxu0 %v836
    %v4941 = vpop.f32.mrf.mxu0
    %v4942 = vadd.f32 %v4929, %v4941
    %v4943 = vpop.f32.mrf.mxu0
    %4944 = vdwg.mxu0
    %4945 = vmatpush.bf16.msra.mxu0 %v3611
    %4946 = vmatpush.bf16.msra.mxu0 %v3607
    %4947 = vmatpush.bf16.msra.mxu0 %v3603
    %4948 = vmatpush.bf16.msra.mxu0 %v3599
    %4949 = vmatpush.bf16.msra.mxu0 %v3595
    %4950 = vmatpush.bf16.msra.mxu0 %v3591
    %4951 = vmatpush.bf16.msra.mxu0 %v3587
    %4952 = vmatpush.bf16.msra.mxu0 %v3583
    %4953 = vmatmul.bf16.gmra.mxu0 %v837
    %v4954 = vpop.f32.mrf.mxu0
    %v4955 = vadd.f32 %v4942, %v4954
    %v4956 = vpop.f32.mrf.mxu0
    %4957 = vdwg.mxu0
    %4958 = vmatpush.bf16.msra.mxu0 %v3643
    %4959 = vmatpush.bf16.msra.mxu0 %v3639
    %4960 = vmatpush.bf16.msra.mxu0 %v3635
    %4961 = vmatpush.bf16.msra.mxu0 %v3631
    %4962 = vmatpush.bf16.msra.mxu0 %v3627
    %4963 = vmatpush.bf16.msra.mxu0 %v3623
    %4964 = vmatpush.bf16.msra.mxu0 %v3619
    %4965 = vmatpush.bf16.msra.mxu0 %v3615
    %4966 = vmatmul.bf16.gmra.mxu0 %v838
    %v4967 = vpop.f32.mrf.mxu0
    %v4968 = vadd.f32 %v4955, %v4967
    %v4969 = vpop.f32.mrf.mxu0
    %4970 = vdwg.mxu0
    %4971 = vmatpush.bf16.msra.mxu0 %v3675
    %4972 = vmatpush.bf16.msra.mxu0 %v3671
    %4973 = vmatpush.bf16.msra.mxu0 %v3667
    %4974 = vmatpush.bf16.msra.mxu0 %v3663
    %4975 = vmatpush.bf16.msra.mxu0 %v3659
    %4976 = vmatpush.bf16.msra.mxu0 %v3655
    %4977 = vmatpush.bf16.msra.mxu0 %v3651
    %4978 = vmatpush.bf16.msra.mxu0 %v3647
    %4979 = vmatmul.bf16.gmra.mxu0 %v839
    %v4980 = vpop.f32.mrf.mxu0
    %v4981 = vadd.f32 %v4968, %v4980
    %v4982 = vpop.f32.mrf.mxu0
    %4983 = vdwg.mxu0
    %4984 = vmatpush.bf16.msra.mxu0 %v3707
    %4985 = vmatpush.bf16.msra.mxu0 %v3703
    %4986 = vmatpush.bf16.msra.mxu0 %v3699
    %4987 = vmatpush.bf16.msra.mxu0 %v3695
    %4988 = vmatpush.bf16.msra.mxu0 %v3691
    %4989 = vmatpush.bf16.msra.mxu0 %v3687
    %4990 = vmatpush.bf16.msra.mxu0 %v3683
    %4991 = vmatpush.bf16.msra.mxu0 %v3679
    %4992 = vmatmul.bf16.gmra.mxu0 %v840
    %v4993 = vpop.f32.mrf.mxu0
    %v4994 = vadd.f32 %v4981, %v4993
    %v4995 = vpop.f32.mrf.mxu0
    %4996 = vdwg.mxu0
    %4997 = vmatpush.bf16.msra.mxu0 %v3739
    %4998 = vmatpush.bf16.msra.mxu0 %v3735
    %4999 = vmatpush.bf16.msra.mxu0 %v3731
    %5000 = vmatpush.bf16.msra.mxu0 %v3727
    %5001 = vmatpush.bf16.msra.mxu0 %v3723
    %5002 = vmatpush.bf16.msra.mxu0 %v3719
    %5003 = vmatpush.bf16.msra.mxu0 %v3715
    %5004 = vmatpush.bf16.msra.mxu0 %v3711
    %5005 = vmatmul.bf16.gmra.mxu0 %v841
    %v5006 = vpop.f32.mrf.mxu0
    %v5007 = vadd.f32 %v4994, %v5006
    %v5008 = vpop.f32.mrf.mxu0
    %5009 = vdwg.mxu0
    %5010 = vmatpush.bf16.msra.mxu0 %v3771
    %5011 = vmatpush.bf16.msra.mxu0 %v3767
    %5012 = vmatpush.bf16.msra.mxu0 %v3763
    %5013 = vmatpush.bf16.msra.mxu0 %v3759
    %5014 = vmatpush.bf16.msra.mxu0 %v3755
    %5015 = vmatpush.bf16.msra.mxu0 %v3751
    %5016 = vmatpush.bf16.msra.mxu0 %v3747
    %5017 = vmatpush.bf16.msra.mxu0 %v3743
    %5018 = vmatmul.bf16.gmra.mxu0 %v844
    %v5019 = vpop.f32.mrf.mxu0
    %v5020 = vadd.f32 %v5007, %v5019
    %v5021 = vpop.f32.mrf.mxu0
    %5022 = vdwg.mxu0
    %5023 = vmatpush.bf16.msra.mxu0 %v3803
    %5024 = vmatpush.bf16.msra.mxu0 %v3799
    %5025 = vmatpush.bf16.msra.mxu0 %v3795
    %5026 = vmatpush.bf16.msra.mxu0 %v3791
    %5027 = vmatpush.bf16.msra.mxu0 %v3787
    %5028 = vmatpush.bf16.msra.mxu0 %v3783
    %5029 = vmatpush.bf16.msra.mxu0 %v3779
    %5030 = vmatpush.bf16.msra.mxu0 %v3775
    %5031 = vmatmul.bf16.gmra.mxu0 %v845
    %v5032 = vpop.f32.mrf.mxu0
    %v5033 = vadd.f32 %v5020, %v5032
    %v5034 = vpop.f32.mrf.mxu0
    %5035 = vdwg.mxu0
    %5036 = vmatpush.bf16.msra.mxu0 %v3835
    %5037 = vmatpush.bf16.msra.mxu0 %v3831
    %5038 = vmatpush.bf16.msra.mxu0 %v3827
    %5039 = vmatpush.bf16.msra.mxu0 %v3823
    %5040 = vmatpush.bf16.msra.mxu0 %v3819
    %5041 = vmatpush.bf16.msra.mxu0 %v3815
    %5042 = vmatpush.bf16.msra.mxu0 %v3811
    %5043 = vmatpush.bf16.msra.mxu0 %v3807
    %5044 = vmatmul.bf16.gmra.mxu0 %v846
    %v5045 = vpop.f32.mrf.mxu0
    %v5046 = vadd.f32 %v5033, %v5045
    %v5047 = vpop.f32.mrf.mxu0
    %5048 = vdwg.mxu0
    %5049 = vmatpush.bf16.msra.mxu0 %v3867
    %5050 = vmatpush.bf16.msra.mxu0 %v3863
    %5051 = vmatpush.bf16.msra.mxu0 %v3859
    %5052 = vmatpush.bf16.msra.mxu0 %v3855
    %5053 = vmatpush.bf16.msra.mxu0 %v3851
    %5054 = vmatpush.bf16.msra.mxu0 %v3847
    %5055 = vmatpush.bf16.msra.mxu0 %v3843
    %5056 = vmatpush.bf16.msra.mxu0 %v3839
    %5057 = vmatmul.bf16.gmra.mxu0 %v847
    %v5058 = vpop.f32.mrf.mxu0
    %v5059 = vadd.f32 %v5046, %v5058
    %v5060 = vpop.f32.mrf.mxu0
    %5061 = vdwg.mxu0
    %5062 = vmatpush.bf16.msra.mxu0 %v3899
    %5063 = vmatpush.bf16.msra.mxu0 %v3895
    %5064 = vmatpush.bf16.msra.mxu0 %v3891
    %5065 = vmatpush.bf16.msra.mxu0 %v3887
    %5066 = vmatpush.bf16.msra.mxu0 %v3883
    %5067 = vmatpush.bf16.msra.mxu0 %v3879
    %5068 = vmatpush.bf16.msra.mxu0 %v3875
    %5069 = vmatpush.bf16.msra.mxu0 %v3871
    %5070 = vmatmul.bf16.gmra.mxu0 %v848
    %v5071 = vpop.f32.mrf.mxu0
    %v5072 = vadd.f32 %v5059, %v5071
    %v5073 = vpop.f32.mrf.mxu0
    %5074 = vdwg.mxu0
    %5075 = vmatpush.bf16.msra.mxu0 %v3931
    %5076 = vmatpush.bf16.msra.mxu0 %v3927
    %5077 = vmatpush.bf16.msra.mxu0 %v3923
    %5078 = vmatpush.bf16.msra.mxu0 %v3919
    %5079 = vmatpush.bf16.msra.mxu0 %v3915
    %5080 = vmatpush.bf16.msra.mxu0 %v3911
    %5081 = vmatpush.bf16.msra.mxu0 %v3907
    %5082 = vmatpush.bf16.msra.mxu0 %v3903
    %5083 = vmatmul.bf16.gmra.mxu0 %v849
    %v5084 = vpop.f32.mrf.mxu0
    %v5085 = vadd.f32 %v5072, %v5084
    %v5086 = vpop.f32.mrf.mxu0
    %5087 = vdwg.mxu0
    %5088 = vmatpush.bf16.msra.mxu0 %v3963
    %5089 = vmatpush.bf16.msra.mxu0 %v3959
    %5090 = vmatpush.bf16.msra.mxu0 %v3955
    %5091 = vmatpush.bf16.msra.mxu0 %v3951
    %5092 = vmatpush.bf16.msra.mxu0 %v3947
    %5093 = vmatpush.bf16.msra.mxu0 %v3943
    %5094 = vmatpush.bf16.msra.mxu0 %v3939
    %5095 = vmatpush.bf16.msra.mxu0 %v3935
    %5096 = vmatmul.bf16.gmra.mxu0 %v850
    %v5097 = vpop.f32.mrf.mxu0
    %v5098 = vadd.f32 %v5085, %v5097
    %v5099 = vpop.f32.mrf.mxu0
    %5100 = vdwg.mxu0
    %5101 = vmatpush.bf16.msra.mxu0 %v3995
    %5102 = vmatpush.bf16.msra.mxu0 %v3991
    %5103 = vmatpush.bf16.msra.mxu0 %v3987
    %5104 = vmatpush.bf16.msra.mxu0 %v3983
    %5105 = vmatpush.bf16.msra.mxu0 %v3979
    %5106 = vmatpush.bf16.msra.mxu0 %v3975
    %5107 = vmatpush.bf16.msra.mxu0 %v3971
    %5108 = vmatpush.bf16.msra.mxu0 %v3967
    %5109 = vmatmul.bf16.gmra.mxu0 %v851
    %v5110 = vpop.f32.mrf.mxu0
    %v5111 = vadd.f32 %v5098, %v5110
    %v5112 = vpop.f32.mrf.mxu0
    %5113 = vdwg.mxu0
    %5114 = vmatpush.bf16.msra.mxu0 0
    %5115 = vmatpush.bf16.msra.mxu0 0
    %5116 = vmatpush.bf16.msra.mxu0 0
    %5117 = vmatpush.bf16.msra.mxu0 0
    %5118 = vmatpush.bf16.msra.mxu0 %v4011
    %5119 = vmatpush.bf16.msra.mxu0 %v4007
    %5120 = vmatpush.bf16.msra.mxu0 %v4003
    %5121 = vmatpush.bf16.msra.mxu0 %v3999
    %5122 = vmatmul.bf16.gmra.mxu0 %v4800
    %v5123 = vpop.f32.mrf.mxu0
    %v5124 = vadd.f32 %v5111, %v5123
    %v5125 = vpop.f32.mrf.mxu0
    %5126 = vdwg.mxu0
    %5127 = vmatpush.bf16.msra.mxu0 %v3260
    %5128 = vmatpush.bf16.msra.mxu0 %v3256
    %5129 = vmatpush.bf16.msra.mxu0 %v3252
    %5130 = vmatpush.bf16.msra.mxu0 %v3248
    %5131 = vmatpush.bf16.msra.mxu0 %v3244
    %5132 = vmatpush.bf16.msra.mxu0 %v3240
    %5133 = vmatpush.bf16.msra.mxu0 %v3236
    %5134 = vmatpush.bf16.msra.mxu0 %v3232
    %5135 = vmatmul.bf16.gmra.mxu0 %v824
    %v5136 = vpop.f32.mrf.mxu0
    %v5137 = vadd.f32 %v815, %v5136
    %v5138 = vpop.f32.mrf.mxu0
    %5139 = vdwg.mxu0
    %5140 = vmatpush.bf16.msra.mxu0 %v3292
    %5141 = vmatpush.bf16.msra.mxu0 %v3288
    %5142 = vmatpush.bf16.msra.mxu0 %v3284
    %5143 = vmatpush.bf16.msra.mxu0 %v3280
    %5144 = vmatpush.bf16.msra.mxu0 %v3276
    %5145 = vmatpush.bf16.msra.mxu0 %v3272
    %5146 = vmatpush.bf16.msra.mxu0 %v3268
    %5147 = vmatpush.bf16.msra.mxu0 %v3264
    %5148 = vmatmul.bf16.gmra.mxu0 %v825
    %v5149 = vpop.f32.mrf.mxu0
    %v5150 = vadd.f32 %v5137, %v5149
    %v5151 = vpop.f32.mrf.mxu0
    %5152 = vdwg.mxu0
    %5153 = vmatpush.bf16.msra.mxu0 %v3324
    %5154 = vmatpush.bf16.msra.mxu0 %v3320
    %5155 = vmatpush.bf16.msra.mxu0 %v3316
    %5156 = vmatpush.bf16.msra.mxu0 %v3312
    %5157 = vmatpush.bf16.msra.mxu0 %v3308
    %5158 = vmatpush.bf16.msra.mxu0 %v3304
    %5159 = vmatpush.bf16.msra.mxu0 %v3300
    %5160 = vmatpush.bf16.msra.mxu0 %v3296
    %5161 = vmatmul.bf16.gmra.mxu0 %v826
    %v5162 = vpop.f32.mrf.mxu0
    %v5163 = vadd.f32 %v5150, %v5162
    %v5164 = vpop.f32.mrf.mxu0
    %5165 = vdwg.mxu0
    %5166 = vmatpush.bf16.msra.mxu0 %v3356
    %5167 = vmatpush.bf16.msra.mxu0 %v3352
    %5168 = vmatpush.bf16.msra.mxu0 %v3348
    %5169 = vmatpush.bf16.msra.mxu0 %v3344
    %5170 = vmatpush.bf16.msra.mxu0 %v3340
    %5171 = vmatpush.bf16.msra.mxu0 %v3336
    %5172 = vmatpush.bf16.msra.mxu0 %v3332
    %5173 = vmatpush.bf16.msra.mxu0 %v3328
    %5174 = vmatmul.bf16.gmra.mxu0 %v827
    %v5175 = vpop.f32.mrf.mxu0
    %v5176 = vadd.f32 %v5163, %v5175
    %v5177 = vpop.f32.mrf.mxu0
    %5178 = vdwg.mxu0
    %5179 = vmatpush.bf16.msra.mxu0 %v3388
    %5180 = vmatpush.bf16.msra.mxu0 %v3384
    %5181 = vmatpush.bf16.msra.mxu0 %v3380
    %5182 = vmatpush.bf16.msra.mxu0 %v3376
    %5183 = vmatpush.bf16.msra.mxu0 %v3372
    %5184 = vmatpush.bf16.msra.mxu0 %v3368
    %5185 = vmatpush.bf16.msra.mxu0 %v3364
    %5186 = vmatpush.bf16.msra.mxu0 %v3360
    %5187 = vmatmul.bf16.gmra.mxu0 %v828
    %v5188 = vpop.f32.mrf.mxu0
    %v5189 = vadd.f32 %v5176, %v5188
    %v5190 = vpop.f32.mrf.mxu0
    %5191 = vdwg.mxu0
    %5192 = vmatpush.bf16.msra.mxu0 %v3420
    %5193 = vmatpush.bf16.msra.mxu0 %v3416
    %5194 = vmatpush.bf16.msra.mxu0 %v3412
    %5195 = vmatpush.bf16.msra.mxu0 %v3408
    %5196 = vmatpush.bf16.msra.mxu0 %v3404
    %5197 = vmatpush.bf16.msra.mxu0 %v3400
    %5198 = vmatpush.bf16.msra.mxu0 %v3396
    %5199 = vmatpush.bf16.msra.mxu0 %v3392
    %5200 = vmatmul.bf16.gmra.mxu0 %v829
    %v5201 = vpop.f32.mrf.mxu0
    %v5202 = vadd.f32 %v5189, %v5201
    %v5203 = vpop.f32.mrf.mxu0
    %5204 = vdwg.mxu0
    %5205 = vmatpush.bf16.msra.mxu0 %v3452
    %5206 = vmatpush.bf16.msra.mxu0 %v3448
    %5207 = vmatpush.bf16.msra.mxu0 %v3444
    %5208 = vmatpush.bf16.msra.mxu0 %v3440
    %5209 = vmatpush.bf16.msra.mxu0 %v3436
    %5210 = vmatpush.bf16.msra.mxu0 %v3432
    %5211 = vmatpush.bf16.msra.mxu0 %v3428
    %5212 = vmatpush.bf16.msra.mxu0 %v3424
    %5213 = vmatmul.bf16.gmra.mxu0 %v830
    %v5214 = vpop.f32.mrf.mxu0
    %v5215 = vadd.f32 %v5202, %v5214
    %v5216 = vpop.f32.mrf.mxu0
    %5217 = vdwg.mxu0
    %5218 = vmatpush.bf16.msra.mxu0 %v3484
    %5219 = vmatpush.bf16.msra.mxu0 %v3480
    %5220 = vmatpush.bf16.msra.mxu0 %v3476
    %5221 = vmatpush.bf16.msra.mxu0 %v3472
    %5222 = vmatpush.bf16.msra.mxu0 %v3468
    %5223 = vmatpush.bf16.msra.mxu0 %v3464
    %5224 = vmatpush.bf16.msra.mxu0 %v3460
    %5225 = vmatpush.bf16.msra.mxu0 %v3456
    %5226 = vmatmul.bf16.gmra.mxu0 %v831
    %v5227 = vpop.f32.mrf.mxu0
    %v5228 = vadd.f32 %v5215, %v5227
    %v5229 = vpop.f32.mrf.mxu0
    %5230 = vdwg.mxu0
    %5231 = vmatpush.bf16.msra.mxu0 %v3516
    %5232 = vmatpush.bf16.msra.mxu0 %v3512
    %5233 = vmatpush.bf16.msra.mxu0 %v3508
    %5234 = vmatpush.bf16.msra.mxu0 %v3504
    %5235 = vmatpush.bf16.msra.mxu0 %v3500
    %5236 = vmatpush.bf16.msra.mxu0 %v3496
    %5237 = vmatpush.bf16.msra.mxu0 %v3492
    %5238 = vmatpush.bf16.msra.mxu0 %v3488
    %5239 = vmatmul.bf16.gmra.mxu0 %v834
    %v5240 = vpop.f32.mrf.mxu0
    %v5241 = vadd.f32 %v5228, %v5240
    %v5242 = vpop.f32.mrf.mxu0
    %5243 = vdwg.mxu0
    %5244 = vmatpush.bf16.msra.mxu0 %v3548
    %5245 = vmatpush.bf16.msra.mxu0 %v3544
    %5246 = vmatpush.bf16.msra.mxu0 %v3540
    %5247 = vmatpush.bf16.msra.mxu0 %v3536
    %5248 = vmatpush.bf16.msra.mxu0 %v3532
    %5249 = vmatpush.bf16.msra.mxu0 %v3528
    %5250 = vmatpush.bf16.msra.mxu0 %v3524
    %5251 = vmatpush.bf16.msra.mxu0 %v3520
    %5252 = vmatmul.bf16.gmra.mxu0 %v835
    %v5253 = vpop.f32.mrf.mxu0
    %v5254 = vadd.f32 %v5241, %v5253
    %v5255 = vpop.f32.mrf.mxu0
    %5256 = vdwg.mxu0
    %5257 = vmatpush.bf16.msra.mxu0 %v3580
    %5258 = vmatpush.bf16.msra.mxu0 %v3576
    %5259 = vmatpush.bf16.msra.mxu0 %v3572
    %5260 = vmatpush.bf16.msra.mxu0 %v3568
    %5261 = vmatpush.bf16.msra.mxu0 %v3564
    %5262 = vmatpush.bf16.msra.mxu0 %v3560
    %5263 = vmatpush.bf16.msra.mxu0 %v3556
    %5264 = vmatpush.bf16.msra.mxu0 %v3552
    %5265 = vmatmul.bf16.gmra.mxu0 %v836
    %v5266 = vpop.f32.mrf.mxu0
    %v5267 = vadd.f32 %v5254, %v5266
    %v5268 = vpop.f32.mrf.mxu0
    %5269 = vdwg.mxu0
    %5270 = vmatpush.bf16.msra.mxu0 %v3612
    %5271 = vmatpush.bf16.msra.mxu0 %v3608
    %5272 = vmatpush.bf16.msra.mxu0 %v3604
    %5273 = vmatpush.bf16.msra.mxu0 %v3600
    %5274 = vmatpush.bf16.msra.mxu0 %v3596
    %5275 = vmatpush.bf16.msra.mxu0 %v3592
    %5276 = vmatpush.bf16.msra.mxu0 %v3588
    %5277 = vmatpush.bf16.msra.mxu0 %v3584
    %5278 = vmatmul.bf16.gmra.mxu0 %v837
    %v5279 = vpop.f32.mrf.mxu0
    %v5280 = vadd.f32 %v5267, %v5279
    %v5281 = vpop.f32.mrf.mxu0
    %5282 = vdwg.mxu0
    %5283 = vmatpush.bf16.msra.mxu0 %v3644
    %5284 = vmatpush.bf16.msra.mxu0 %v3640
    %5285 = vmatpush.bf16.msra.mxu0 %v3636
    %5286 = vmatpush.bf16.msra.mxu0 %v3632
    %5287 = vmatpush.bf16.msra.mxu0 %v3628
    %5288 = vmatpush.bf16.msra.mxu0 %v3624
    %5289 = vmatpush.bf16.msra.mxu0 %v3620
    %5290 = vmatpush.bf16.msra.mxu0 %v3616
    %5291 = vmatmul.bf16.gmra.mxu0 %v838
    %v5292 = vpop.f32.mrf.mxu0
    %v5293 = vadd.f32 %v5280, %v5292
    %v5294 = vpop.f32.mrf.mxu0
    %5295 = vdwg.mxu0
    %5296 = vmatpush.bf16.msra.mxu0 %v3676
    %5297 = vmatpush.bf16.msra.mxu0 %v3672
    %5298 = vmatpush.bf16.msra.mxu0 %v3668
    %5299 = vmatpush.bf16.msra.mxu0 %v3664
    %5300 = vmatpush.bf16.msra.mxu0 %v3660
    %5301 = vmatpush.bf16.msra.mxu0 %v3656
    %5302 = vmatpush.bf16.msra.mxu0 %v3652
    %5303 = vmatpush.bf16.msra.mxu0 %v3648
    %5304 = vmatmul.bf16.gmra.mxu0 %v839
    %v5305 = vpop.f32.mrf.mxu0
    %v5306 = vadd.f32 %v5293, %v5305
    %v5307 = vpop.f32.mrf.mxu0
    %5308 = vdwg.mxu0
    %5309 = vmatpush.bf16.msra.mxu0 %v3708
    %5310 = vmatpush.bf16.msra.mxu0 %v3704
    %5311 = vmatpush.bf16.msra.mxu0 %v3700
    %5312 = vmatpush.bf16.msra.mxu0 %v3696
    %5313 = vmatpush.bf16.msra.mxu0 %v3692
    %5314 = vmatpush.bf16.msra.mxu0 %v3688
    %5315 = vmatpush.bf16.msra.mxu0 %v3684
    %5316 = vmatpush.bf16.msra.mxu0 %v3680
    %5317 = vmatmul.bf16.gmra.mxu0 %v840
    %v5318 = vpop.f32.mrf.mxu0
    %v5319 = vadd.f32 %v5306, %v5318
    %v5320 = vpop.f32.mrf.mxu0
    %5321 = vdwg.mxu0
    %5322 = vmatpush.bf16.msra.mxu0 %v3740
    %5323 = vmatpush.bf16.msra.mxu0 %v3736
    %5324 = vmatpush.bf16.msra.mxu0 %v3732
    %5325 = vmatpush.bf16.msra.mxu0 %v3728
    %5326 = vmatpush.bf16.msra.mxu0 %v3724
    %5327 = vmatpush.bf16.msra.mxu0 %v3720
    %5328 = vmatpush.bf16.msra.mxu0 %v3716
    %5329 = vmatpush.bf16.msra.mxu0 %v3712
    %5330 = vmatmul.bf16.gmra.mxu0 %v841
    %v5331 = vpop.f32.mrf.mxu0
    %v5332 = vadd.f32 %v5319, %v5331
    %v5333 = vpop.f32.mrf.mxu0
    %5334 = vdwg.mxu0
    %5335 = vmatpush.bf16.msra.mxu0 %v3772
    %5336 = vmatpush.bf16.msra.mxu0 %v3768
    %5337 = vmatpush.bf16.msra.mxu0 %v3764
    %5338 = vmatpush.bf16.msra.mxu0 %v3760
    %5339 = vmatpush.bf16.msra.mxu0 %v3756
    %5340 = vmatpush.bf16.msra.mxu0 %v3752
    %5341 = vmatpush.bf16.msra.mxu0 %v3748
    %5342 = vmatpush.bf16.msra.mxu0 %v3744
    %5343 = vmatmul.bf16.gmra.mxu0 %v844
    %v5344 = vpop.f32.mrf.mxu0
    %v5345 = vadd.f32 %v5332, %v5344
    %v5346 = vpop.f32.mrf.mxu0
    %5347 = vdwg.mxu0
    %5348 = vmatpush.bf16.msra.mxu0 %v3804
    %5349 = vmatpush.bf16.msra.mxu0 %v3800
    %5350 = vmatpush.bf16.msra.mxu0 %v3796
    %5351 = vmatpush.bf16.msra.mxu0 %v3792
    %5352 = vmatpush.bf16.msra.mxu0 %v3788
    %5353 = vmatpush.bf16.msra.mxu0 %v3784
    %5354 = vmatpush.bf16.msra.mxu0 %v3780
    %5355 = vmatpush.bf16.msra.mxu0 %v3776
    %5356 = vmatmul.bf16.gmra.mxu0 %v845
    %v5357 = vpop.f32.mrf.mxu0
    %v5358 = vadd.f32 %v5345, %v5357
    %v5359 = vpop.f32.mrf.mxu0
    %5360 = vdwg.mxu0
    %5361 = vmatpush.bf16.msra.mxu0 %v3836
    %5362 = vmatpush.bf16.msra.mxu0 %v3832
    %5363 = vmatpush.bf16.msra.mxu0 %v3828
    %5364 = vmatpush.bf16.msra.mxu0 %v3824
    %5365 = vmatpush.bf16.msra.mxu0 %v3820
    %5366 = vmatpush.bf16.msra.mxu0 %v3816
    %5367 = vmatpush.bf16.msra.mxu0 %v3812
    %5368 = vmatpush.bf16.msra.mxu0 %v3808
    %5369 = vmatmul.bf16.gmra.mxu0 %v846
    %v5370 = vpop.f32.mrf.mxu0
    %v5371 = vadd.f32 %v5358, %v5370
    %v5372 = vpop.f32.mrf.mxu0
    %5373 = vdwg.mxu0
    %5374 = vmatpush.bf16.msra.mxu0 %v3868
    %5375 = vmatpush.bf16.msra.mxu0 %v3864
    %5376 = vmatpush.bf16.msra.mxu0 %v3860
    %5377 = vmatpush.bf16.msra.mxu0 %v3856
    %5378 = vmatpush.bf16.msra.mxu0 %v3852
    %5379 = vmatpush.bf16.msra.mxu0 %v3848
    %5380 = vmatpush.bf16.msra.mxu0 %v3844
    %5381 = vmatpush.bf16.msra.mxu0 %v3840
    %5382 = vmatmul.bf16.gmra.mxu0 %v847
    %v5383 = vpop.f32.mrf.mxu0
    %v5384 = vadd.f32 %v5371, %v5383
    %v5385 = vpop.f32.mrf.mxu0
    %5386 = vdwg.mxu0
    %5387 = vmatpush.bf16.msra.mxu0 %v3900
    %5388 = vmatpush.bf16.msra.mxu0 %v3896
    %5389 = vmatpush.bf16.msra.mxu0 %v3892
    %5390 = vmatpush.bf16.msra.mxu0 %v3888
    %5391 = vmatpush.bf16.msra.mxu0 %v3884
    %5392 = vmatpush.bf16.msra.mxu0 %v3880
    %5393 = vmatpush.bf16.msra.mxu0 %v3876
    %5394 = vmatpush.bf16.msra.mxu0 %v3872
    %5395 = vmatmul.bf16.gmra.mxu0 %v848
    %v5396 = vpop.f32.mrf.mxu0
    %v5397 = vadd.f32 %v5384, %v5396
    %v5398 = vpop.f32.mrf.mxu0
    %5399 = vdwg.mxu0
    %5400 = vmatpush.bf16.msra.mxu0 %v3932
    %5401 = vmatpush.bf16.msra.mxu0 %v3928
    %5402 = vmatpush.bf16.msra.mxu0 %v3924
    %5403 = vmatpush.bf16.msra.mxu0 %v3920
    %5404 = vmatpush.bf16.msra.mxu0 %v3916
    %5405 = vmatpush.bf16.msra.mxu0 %v3912
    %5406 = vmatpush.bf16.msra.mxu0 %v3908
    %5407 = vmatpush.bf16.msra.mxu0 %v3904
    %5408 = vmatmul.bf16.gmra.mxu0 %v849
    %v5409 = vpop.f32.mrf.mxu0
    %v5410 = vadd.f32 %v5397, %v5409
    %v5411 = vpop.f32.mrf.mxu0
    %5412 = vdwg.mxu0
    %5413 = vmatpush.bf16.msra.mxu0 %v3964
    %5414 = vmatpush.bf16.msra.mxu0 %v3960
    %5415 = vmatpush.bf16.msra.mxu0 %v3956
    %5416 = vmatpush.bf16.msra.mxu0 %v3952
    %5417 = vmatpush.bf16.msra.mxu0 %v3948
    %5418 = vmatpush.bf16.msra.mxu0 %v3944
    %5419 = vmatpush.bf16.msra.mxu0 %v3940
    %5420 = vmatpush.bf16.msra.mxu0 %v3936
    %5421 = vmatmul.bf16.gmra.mxu0 %v850
    %v5422 = vpop.f32.mrf.mxu0
    %v5423 = vadd.f32 %v5410, %v5422
    %v5424 = vpop.f32.mrf.mxu0
    %5425 = vdwg.mxu0
    %5426 = vmatpush.bf16.msra.mxu0 %v3996
    %5427 = vmatpush.bf16.msra.mxu0 %v3992
    %5428 = vmatpush.bf16.msra.mxu0 %v3988
    %5429 = vmatpush.bf16.msra.mxu0 %v3984
    %5430 = vmatpush.bf16.msra.mxu0 %v3980
    %5431 = vmatpush.bf16.msra.mxu0 %v3976
    %5432 = vmatpush.bf16.msra.mxu0 %v3972
    %5433 = vmatpush.bf16.msra.mxu0 %v3968
    %5434 = vmatmul.bf16.gmra.mxu0 %v851
    %v5435 = vpop.f32.mrf.mxu0
    %v5436 = vadd.f32 %v5423, %v5435
    %v5437 = vpop.f32.mrf.mxu0
    %5438 = vdwg.mxu0
    %5439 = vmatpush.bf16.msra.mxu0 0
    %5440 = vmatpush.bf16.msra.mxu0 0
    %5441 = vmatpush.bf16.msra.mxu0 0
    %5442 = vmatpush.bf16.msra.mxu0 0
    %5443 = vmatpush.bf16.msra.mxu0 %v4012
    %5444 = vmatpush.bf16.msra.mxu0 %v4008
    %5445 = vmatpush.bf16.msra.mxu0 %v4004
    %5446 = vmatpush.bf16.msra.mxu0 %v4000
    %5447 = vmatmul.bf16.gmra.mxu0 %v4800
    %v5448 = vpop.f32.mrf.mxu0
    %v5449 = vadd.f32 %v5436, %v5448
    %v5450 = vpop.f32.mrf.mxu0
    %5451 = vdwg.mxu0
    %5452 = vmatpush.bf16.msra.mxu0 %v3261
    %5453 = vmatpush.bf16.msra.mxu0 %v3257
    %5454 = vmatpush.bf16.msra.mxu0 %v3253
    %5455 = vmatpush.bf16.msra.mxu0 %v3249
    %5456 = vmatpush.bf16.msra.mxu0 %v3245
    %5457 = vmatpush.bf16.msra.mxu0 %v3241
    %5458 = vmatpush.bf16.msra.mxu0 %v3237
    %5459 = vmatpush.bf16.msra.mxu0 %v3233
    %5460 = vmatmul.bf16.gmra.mxu0 %v824
    %v5461 = vpop.f32.mrf.mxu0
    %v5462 = vadd.f32 %v816, %v5461
    %v5463 = vpop.f32.mrf.mxu0
    %5464 = vdwg.mxu0
    %5465 = vmatpush.bf16.msra.mxu0 %v3293
    %5466 = vmatpush.bf16.msra.mxu0 %v3289
    %5467 = vmatpush.bf16.msra.mxu0 %v3285
    %5468 = vmatpush.bf16.msra.mxu0 %v3281
    %5469 = vmatpush.bf16.msra.mxu0 %v3277
    %5470 = vmatpush.bf16.msra.mxu0 %v3273
    %5471 = vmatpush.bf16.msra.mxu0 %v3269
    %5472 = vmatpush.bf16.msra.mxu0 %v3265
    %5473 = vmatmul.bf16.gmra.mxu0 %v825
    %v5474 = vpop.f32.mrf.mxu0
    %v5475 = vadd.f32 %v5462, %v5474
    %v5476 = vpop.f32.mrf.mxu0
    %5477 = vdwg.mxu0
    %5478 = vmatpush.bf16.msra.mxu0 %v3325
    %5479 = vmatpush.bf16.msra.mxu0 %v3321
    %5480 = vmatpush.bf16.msra.mxu0 %v3317
    %5481 = vmatpush.bf16.msra.mxu0 %v3313
    %5482 = vmatpush.bf16.msra.mxu0 %v3309
    %5483 = vmatpush.bf16.msra.mxu0 %v3305
    %5484 = vmatpush.bf16.msra.mxu0 %v3301
    %5485 = vmatpush.bf16.msra.mxu0 %v3297
    %5486 = vmatmul.bf16.gmra.mxu0 %v826
    %v5487 = vpop.f32.mrf.mxu0
    %v5488 = vadd.f32 %v5475, %v5487
    %v5489 = vpop.f32.mrf.mxu0
    %5490 = vdwg.mxu0
    %5491 = vmatpush.bf16.msra.mxu0 %v3357
    %5492 = vmatpush.bf16.msra.mxu0 %v3353
    %5493 = vmatpush.bf16.msra.mxu0 %v3349
    %5494 = vmatpush.bf16.msra.mxu0 %v3345
    %5495 = vmatpush.bf16.msra.mxu0 %v3341
    %5496 = vmatpush.bf16.msra.mxu0 %v3337
    %5497 = vmatpush.bf16.msra.mxu0 %v3333
    %5498 = vmatpush.bf16.msra.mxu0 %v3329
    %5499 = vmatmul.bf16.gmra.mxu0 %v827
    %v5500 = vpop.f32.mrf.mxu0
    %v5501 = vadd.f32 %v5488, %v5500
    %v5502 = vpop.f32.mrf.mxu0
    %5503 = vdwg.mxu0
    %5504 = vmatpush.bf16.msra.mxu0 %v3389
    %5505 = vmatpush.bf16.msra.mxu0 %v3385
    %5506 = vmatpush.bf16.msra.mxu0 %v3381
    %5507 = vmatpush.bf16.msra.mxu0 %v3377
    %5508 = vmatpush.bf16.msra.mxu0 %v3373
    %5509 = vmatpush.bf16.msra.mxu0 %v3369
    %5510 = vmatpush.bf16.msra.mxu0 %v3365
    %5511 = vmatpush.bf16.msra.mxu0 %v3361
    %5512 = vmatmul.bf16.gmra.mxu0 %v828
    %v5513 = vpop.f32.mrf.mxu0
    %v5514 = vadd.f32 %v5501, %v5513
    %v5515 = vpop.f32.mrf.mxu0
    %5516 = vdwg.mxu0
    %5517 = vmatpush.bf16.msra.mxu0 %v3421
    %5518 = vmatpush.bf16.msra.mxu0 %v3417
    %5519 = vmatpush.bf16.msra.mxu0 %v3413
    %5520 = vmatpush.bf16.msra.mxu0 %v3409
    %5521 = vmatpush.bf16.msra.mxu0 %v3405
    %5522 = vmatpush.bf16.msra.mxu0 %v3401
    %5523 = vmatpush.bf16.msra.mxu0 %v3397
    %5524 = vmatpush.bf16.msra.mxu0 %v3393
    %5525 = vmatmul.bf16.gmra.mxu0 %v829
    %v5526 = vpop.f32.mrf.mxu0
    %v5527 = vadd.f32 %v5514, %v5526
    %v5528 = vpop.f32.mrf.mxu0
    %5529 = vdwg.mxu0
    %5530 = vmatpush.bf16.msra.mxu0 %v3453
    %5531 = vmatpush.bf16.msra.mxu0 %v3449
    %5532 = vmatpush.bf16.msra.mxu0 %v3445
    %5533 = vmatpush.bf16.msra.mxu0 %v3441
    %5534 = vmatpush.bf16.msra.mxu0 %v3437
    %5535 = vmatpush.bf16.msra.mxu0 %v3433
    %5536 = vmatpush.bf16.msra.mxu0 %v3429
    %5537 = vmatpush.bf16.msra.mxu0 %v3425
    %5538 = vmatmul.bf16.gmra.mxu0 %v830
    %v5539 = vpop.f32.mrf.mxu0
    %v5540 = vadd.f32 %v5527, %v5539
    %v5541 = vpop.f32.mrf.mxu0
    %5542 = vdwg.mxu0
    %5543 = vmatpush.bf16.msra.mxu0 %v3485
    %5544 = vmatpush.bf16.msra.mxu0 %v3481
    %5545 = vmatpush.bf16.msra.mxu0 %v3477
    %5546 = vmatpush.bf16.msra.mxu0 %v3473
    %5547 = vmatpush.bf16.msra.mxu0 %v3469
    %5548 = vmatpush.bf16.msra.mxu0 %v3465
    %5549 = vmatpush.bf16.msra.mxu0 %v3461
    %5550 = vmatpush.bf16.msra.mxu0 %v3457
    %5551 = vmatmul.bf16.gmra.mxu0 %v831
    %v5552 = vpop.f32.mrf.mxu0
    %v5553 = vadd.f32 %v5540, %v5552
    %v5554 = vpop.f32.mrf.mxu0
    %5555 = vdwg.mxu0
    %5556 = vmatpush.bf16.msra.mxu0 %v3517
    %5557 = vmatpush.bf16.msra.mxu0 %v3513
    %5558 = vmatpush.bf16.msra.mxu0 %v3509
    %5559 = vmatpush.bf16.msra.mxu0 %v3505
    %5560 = vmatpush.bf16.msra.mxu0 %v3501
    %5561 = vmatpush.bf16.msra.mxu0 %v3497
    %5562 = vmatpush.bf16.msra.mxu0 %v3493
    %5563 = vmatpush.bf16.msra.mxu0 %v3489
    %5564 = vmatmul.bf16.gmra.mxu0 %v834
    %v5565 = vpop.f32.mrf.mxu0
    %v5566 = vadd.f32 %v5553, %v5565
    %v5567 = vpop.f32.mrf.mxu0
    %5568 = vdwg.mxu0
    %5569 = vmatpush.bf16.msra.mxu0 %v3549
    %5570 = vmatpush.bf16.msra.mxu0 %v3545
    %5571 = vmatpush.bf16.msra.mxu0 %v3541
    %5572 = vmatpush.bf16.msra.mxu0 %v3537
    %5573 = vmatpush.bf16.msra.mxu0 %v3533
    %5574 = vmatpush.bf16.msra.mxu0 %v3529
    %5575 = vmatpush.bf16.msra.mxu0 %v3525
    %5576 = vmatpush.bf16.msra.mxu0 %v3521
    %5577 = vmatmul.bf16.gmra.mxu0 %v835
    %v5578 = vpop.f32.mrf.mxu0
    %v5579 = vadd.f32 %v5566, %v5578
    %v5580 = vpop.f32.mrf.mxu0
    %5581 = vdwg.mxu0
    %5582 = vmatpush.bf16.msra.mxu0 %v3581
    %5583 = vmatpush.bf16.msra.mxu0 %v3577
    %5584 = vmatpush.bf16.msra.mxu0 %v3573
    %5585 = vmatpush.bf16.msra.mxu0 %v3569
    %5586 = vmatpush.bf16.msra.mxu0 %v3565
    %5587 = vmatpush.bf16.msra.mxu0 %v3561
    %5588 = vmatpush.bf16.msra.mxu0 %v3557
    %5589 = vmatpush.bf16.msra.mxu0 %v3553
    %5590 = vmatmul.bf16.gmra.mxu0 %v836
    %v5591 = vpop.f32.mrf.mxu0
    %v5592 = vadd.f32 %v5579, %v5591
    %v5593 = vpop.f32.mrf.mxu0
    %5594 = vdwg.mxu0
    %5595 = vmatpush.bf16.msra.mxu0 %v3613
    %5596 = vmatpush.bf16.msra.mxu0 %v3609
    %5597 = vmatpush.bf16.msra.mxu0 %v3605
    %5598 = vmatpush.bf16.msra.mxu0 %v3601
    %5599 = vmatpush.bf16.msra.mxu0 %v3597
    %5600 = vmatpush.bf16.msra.mxu0 %v3593
    %5601 = vmatpush.bf16.msra.mxu0 %v3589
    %5602 = vmatpush.bf16.msra.mxu0 %v3585
    %5603 = vmatmul.bf16.gmra.mxu0 %v837
    %v5604 = vpop.f32.mrf.mxu0
    %v5605 = vadd.f32 %v5592, %v5604
    %v5606 = vpop.f32.mrf.mxu0
    %5607 = vdwg.mxu0
    %5608 = vmatpush.bf16.msra.mxu0 %v3645
    %5609 = vmatpush.bf16.msra.mxu0 %v3641
    %5610 = vmatpush.bf16.msra.mxu0 %v3637
    %5611 = vmatpush.bf16.msra.mxu0 %v3633
    %5612 = vmatpush.bf16.msra.mxu0 %v3629
    %5613 = vmatpush.bf16.msra.mxu0 %v3625
    %5614 = vmatpush.bf16.msra.mxu0 %v3621
    %5615 = vmatpush.bf16.msra.mxu0 %v3617
    %5616 = vmatmul.bf16.gmra.mxu0 %v838
    %v5617 = vpop.f32.mrf.mxu0
    %v5618 = vadd.f32 %v5605, %v5617
    %v5619 = vpop.f32.mrf.mxu0
    %5620 = vdwg.mxu0
    %5621 = vmatpush.bf16.msra.mxu0 %v3677
    %5622 = vmatpush.bf16.msra.mxu0 %v3673
    %5623 = vmatpush.bf16.msra.mxu0 %v3669
    %5624 = vmatpush.bf16.msra.mxu0 %v3665
    %5625 = vmatpush.bf16.msra.mxu0 %v3661
    %5626 = vmatpush.bf16.msra.mxu0 %v3657
    %5627 = vmatpush.bf16.msra.mxu0 %v3653
    %5628 = vmatpush.bf16.msra.mxu0 %v3649
    %5629 = vmatmul.bf16.gmra.mxu0 %v839
    %v5630 = vpop.f32.mrf.mxu0
    %v5631 = vadd.f32 %v5618, %v5630
    %v5632 = vpop.f32.mrf.mxu0
    %5633 = vdwg.mxu0
    %5634 = vmatpush.bf16.msra.mxu0 %v3709
    %5635 = vmatpush.bf16.msra.mxu0 %v3705
    %5636 = vmatpush.bf16.msra.mxu0 %v3701
    %5637 = vmatpush.bf16.msra.mxu0 %v3697
    %5638 = vmatpush.bf16.msra.mxu0 %v3693
    %5639 = vmatpush.bf16.msra.mxu0 %v3689
    %5640 = vmatpush.bf16.msra.mxu0 %v3685
    %5641 = vmatpush.bf16.msra.mxu0 %v3681
    %5642 = vmatmul.bf16.gmra.mxu0 %v840
    %v5643 = vpop.f32.mrf.mxu0
    %v5644 = vadd.f32 %v5631, %v5643
    %v5645 = vpop.f32.mrf.mxu0
    %5646 = vdwg.mxu0
    %5647 = vmatpush.bf16.msra.mxu0 %v3741
    %5648 = vmatpush.bf16.msra.mxu0 %v3737
    %5649 = vmatpush.bf16.msra.mxu0 %v3733
    %5650 = vmatpush.bf16.msra.mxu0 %v3729
    %5651 = vmatpush.bf16.msra.mxu0 %v3725
    %5652 = vmatpush.bf16.msra.mxu0 %v3721
    %5653 = vmatpush.bf16.msra.mxu0 %v3717
    %5654 = vmatpush.bf16.msra.mxu0 %v3713
    %5655 = vmatmul.bf16.gmra.mxu0 %v841
    %v5656 = vpop.f32.mrf.mxu0
    %v5657 = vadd.f32 %v5644, %v5656
    %v5658 = vpop.f32.mrf.mxu0
    %5659 = vdwg.mxu0
    %5660 = vmatpush.bf16.msra.mxu0 %v3773
    %5661 = vmatpush.bf16.msra.mxu0 %v3769
    %5662 = vmatpush.bf16.msra.mxu0 %v3765
    %5663 = vmatpush.bf16.msra.mxu0 %v3761
    %5664 = vmatpush.bf16.msra.mxu0 %v3757
    %5665 = vmatpush.bf16.msra.mxu0 %v3753
    %5666 = vmatpush.bf16.msra.mxu0 %v3749
    %5667 = vmatpush.bf16.msra.mxu0 %v3745
    %5668 = vmatmul.bf16.gmra.mxu0 %v844
    %v5669 = vpop.f32.mrf.mxu0
    %v5670 = vadd.f32 %v5657, %v5669
    %v5671 = vpop.f32.mrf.mxu0
    %5672 = vdwg.mxu0
    %5673 = vmatpush.bf16.msra.mxu0 %v3805
    %5674 = vmatpush.bf16.msra.mxu0 %v3801
    %5675 = vmatpush.bf16.msra.mxu0 %v3797
    %5676 = vmatpush.bf16.msra.mxu0 %v3793
    %5677 = vmatpush.bf16.msra.mxu0 %v3789
    %5678 = vmatpush.bf16.msra.mxu0 %v3785
    %5679 = vmatpush.bf16.msra.mxu0 %v3781
    %5680 = vmatpush.bf16.msra.mxu0 %v3777
    %5681 = vmatmul.bf16.gmra.mxu0 %v845
    %v5682 = vpop.f32.mrf.mxu0
    %v5683 = vadd.f32 %v5670, %v5682
    %v5684 = vpop.f32.mrf.mxu0
    %5685 = vdwg.mxu0
    %5686 = vmatpush.bf16.msra.mxu0 %v3837
    %5687 = vmatpush.bf16.msra.mxu0 %v3833
    %5688 = vmatpush.bf16.msra.mxu0 %v3829
    %5689 = vmatpush.bf16.msra.mxu0 %v3825
    %5690 = vmatpush.bf16.msra.mxu0 %v3821
    %5691 = vmatpush.bf16.msra.mxu0 %v3817
    %5692 = vmatpush.bf16.msra.mxu0 %v3813
    %5693 = vmatpush.bf16.msra.mxu0 %v3809
    %5694 = vmatmul.bf16.gmra.mxu0 %v846
    %v5695 = vpop.f32.mrf.mxu0
    %v5696 = vadd.f32 %v5683, %v5695
    %v5697 = vpop.f32.mrf.mxu0
    %5698 = vdwg.mxu0
    %5699 = vmatpush.bf16.msra.mxu0 %v3869
    %5700 = vmatpush.bf16.msra.mxu0 %v3865
    %5701 = vmatpush.bf16.msra.mxu0 %v3861
    %5702 = vmatpush.bf16.msra.mxu0 %v3857
    %5703 = vmatpush.bf16.msra.mxu0 %v3853
    %5704 = vmatpush.bf16.msra.mxu0 %v3849
    %5705 = vmatpush.bf16.msra.mxu0 %v3845
    %5706 = vmatpush.bf16.msra.mxu0 %v3841
    %5707 = vmatmul.bf16.gmra.mxu0 %v847
    %v5708 = vpop.f32.mrf.mxu0
    %v5709 = vadd.f32 %v5696, %v5708
    %v5710 = vpop.f32.mrf.mxu0
    %5711 = vdwg.mxu0
    %5712 = vmatpush.bf16.msra.mxu0 %v3901
    %5713 = vmatpush.bf16.msra.mxu0 %v3897
    %5714 = vmatpush.bf16.msra.mxu0 %v3893
    %5715 = vmatpush.bf16.msra.mxu0 %v3889
    %5716 = vmatpush.bf16.msra.mxu0 %v3885
    %5717 = vmatpush.bf16.msra.mxu0 %v3881
    %5718 = vmatpush.bf16.msra.mxu0 %v3877
    %5719 = vmatpush.bf16.msra.mxu0 %v3873
    %5720 = vmatmul.bf16.gmra.mxu0 %v848
    %v5721 = vpop.f32.mrf.mxu0
    %v5722 = vadd.f32 %v5709, %v5721
    %v5723 = vpop.f32.mrf.mxu0
    %5724 = vdwg.mxu0
    %5725 = vmatpush.bf16.msra.mxu0 %v3933
    %5726 = vmatpush.bf16.msra.mxu0 %v3929
    %5727 = vmatpush.bf16.msra.mxu0 %v3925
    %5728 = vmatpush.bf16.msra.mxu0 %v3921
    %5729 = vmatpush.bf16.msra.mxu0 %v3917
    %5730 = vmatpush.bf16.msra.mxu0 %v3913
    %5731 = vmatpush.bf16.msra.mxu0 %v3909
    %5732 = vmatpush.bf16.msra.mxu0 %v3905
    %5733 = vmatmul.bf16.gmra.mxu0 %v849
    %v5734 = vpop.f32.mrf.mxu0
    %v5735 = vadd.f32 %v5722, %v5734
    %v5736 = vpop.f32.mrf.mxu0
    %5737 = vdwg.mxu0
    %5738 = vmatpush.bf16.msra.mxu0 %v3965
    %5739 = vmatpush.bf16.msra.mxu0 %v3961
    %5740 = vmatpush.bf16.msra.mxu0 %v3957
    %5741 = vmatpush.bf16.msra.mxu0 %v3953
    %5742 = vmatpush.bf16.msra.mxu0 %v3949
    %5743 = vmatpush.bf16.msra.mxu0 %v3945
    %5744 = vmatpush.bf16.msra.mxu0 %v3941
    %5745 = vmatpush.bf16.msra.mxu0 %v3937
    %5746 = vmatmul.bf16.gmra.mxu0 %v850
    %v5747 = vpop.f32.mrf.mxu0
    %v5748 = vadd.f32 %v5735, %v5747
    %v5749 = vpop.f32.mrf.mxu0
    %5750 = vdwg.mxu0
    %5751 = vmatpush.bf16.msra.mxu0 %v3997
    %5752 = vmatpush.bf16.msra.mxu0 %v3993
    %5753 = vmatpush.bf16.msra.mxu0 %v3989
    %5754 = vmatpush.bf16.msra.mxu0 %v3985
    %5755 = vmatpush.bf16.msra.mxu0 %v3981
    %5756 = vmatpush.bf16.msra.mxu0 %v3977
    %5757 = vmatpush.bf16.msra.mxu0 %v3973
    %5758 = vmatpush.bf16.msra.mxu0 %v3969
    %5759 = vmatmul.bf16.gmra.mxu0 %v851
    %v5760 = vpop.f32.mrf.mxu0
    %v5761 = vadd.f32 %v5748, %v5760
    %v5762 = vpop.f32.mrf.mxu0
    %5763 = vdwg.mxu0
    %5764 = vmatpush.bf16.msra.mxu0 0
    %5765 = vmatpush.bf16.msra.mxu0 0
    %5766 = vmatpush.bf16.msra.mxu0 0
    %5767 = vmatpush.bf16.msra.mxu0 0
    %5768 = vmatpush.bf16.msra.mxu0 %v4013
    %5769 = vmatpush.bf16.msra.mxu0 %v4009
    %5770 = vmatpush.bf16.msra.mxu0 %v4005
    %5771 = vmatpush.bf16.msra.mxu0 %v4001
    %5772 = vmatmul.bf16.gmra.mxu0 %v4800
    %v5773 = vpop.f32.mrf.mxu0
    %v5774 = vadd.f32 %v5761, %v5773
    %v5775 = vpop.f32.mrf.mxu0
    %5776 = vdwg.mxu0
    %5777 = vmatpush.bf16.msra.mxu0 %v3262
    %5778 = vmatpush.bf16.msra.mxu0 %v3258
    %5779 = vmatpush.bf16.msra.mxu0 %v3254
    %5780 = vmatpush.bf16.msra.mxu0 %v3250
    %5781 = vmatpush.bf16.msra.mxu0 %v3246
    %5782 = vmatpush.bf16.msra.mxu0 %v3242
    %5783 = vmatpush.bf16.msra.mxu0 %v3238
    %5784 = vmatpush.bf16.msra.mxu0 %v3234
    %5785 = vmatmul.bf16.gmra.mxu0 %v824
    %v5786 = vpop.f32.mrf.mxu0
    %v5787 = vadd.f32 %v817, %v5786
    %v5788 = vpop.f32.mrf.mxu0
    %5789 = vdwg.mxu0
    %5790 = vmatpush.bf16.msra.mxu0 %v3294
    %5791 = vmatpush.bf16.msra.mxu0 %v3290
    %5792 = vmatpush.bf16.msra.mxu0 %v3286
    %5793 = vmatpush.bf16.msra.mxu0 %v3282
    %5794 = vmatpush.bf16.msra.mxu0 %v3278
    %5795 = vmatpush.bf16.msra.mxu0 %v3274
    %5796 = vmatpush.bf16.msra.mxu0 %v3270
    %5797 = vmatpush.bf16.msra.mxu0 %v3266
    %5798 = vmatmul.bf16.gmra.mxu0 %v825
    %v5799 = vpop.f32.mrf.mxu0
    %v5800 = vadd.f32 %v5787, %v5799
    %v5801 = vpop.f32.mrf.mxu0
    %5802 = vdwg.mxu0
    %5803 = vmatpush.bf16.msra.mxu0 %v3326
    %5804 = vmatpush.bf16.msra.mxu0 %v3322
    %5805 = vmatpush.bf16.msra.mxu0 %v3318
    %5806 = vmatpush.bf16.msra.mxu0 %v3314
    %5807 = vmatpush.bf16.msra.mxu0 %v3310
    %5808 = vmatpush.bf16.msra.mxu0 %v3306
    %5809 = vmatpush.bf16.msra.mxu0 %v3302
    %5810 = vmatpush.bf16.msra.mxu0 %v3298
    %5811 = vmatmul.bf16.gmra.mxu0 %v826
    %v5812 = vpop.f32.mrf.mxu0
    %v5813 = vadd.f32 %v5800, %v5812
    %v5814 = vpop.f32.mrf.mxu0
    %5815 = vdwg.mxu0
    %5816 = vmatpush.bf16.msra.mxu0 %v3358
    %5817 = vmatpush.bf16.msra.mxu0 %v3354
    %5818 = vmatpush.bf16.msra.mxu0 %v3350
    %5819 = vmatpush.bf16.msra.mxu0 %v3346
    %5820 = vmatpush.bf16.msra.mxu0 %v3342
    %5821 = vmatpush.bf16.msra.mxu0 %v3338
    %5822 = vmatpush.bf16.msra.mxu0 %v3334
    %5823 = vmatpush.bf16.msra.mxu0 %v3330
    %5824 = vmatmul.bf16.gmra.mxu0 %v827
    %v5825 = vpop.f32.mrf.mxu0
    %v5826 = vadd.f32 %v5813, %v5825
    %v5827 = vpop.f32.mrf.mxu0
    %5828 = vdwg.mxu0
    %5829 = vmatpush.bf16.msra.mxu0 %v3390
    %5830 = vmatpush.bf16.msra.mxu0 %v3386
    %5831 = vmatpush.bf16.msra.mxu0 %v3382
    %5832 = vmatpush.bf16.msra.mxu0 %v3378
    %5833 = vmatpush.bf16.msra.mxu0 %v3374
    %5834 = vmatpush.bf16.msra.mxu0 %v3370
    %5835 = vmatpush.bf16.msra.mxu0 %v3366
    %5836 = vmatpush.bf16.msra.mxu0 %v3362
    %5837 = vmatmul.bf16.gmra.mxu0 %v828
    %v5838 = vpop.f32.mrf.mxu0
    %v5839 = vadd.f32 %v5826, %v5838
    %v5840 = vpop.f32.mrf.mxu0
    %5841 = vdwg.mxu0
    %5842 = vmatpush.bf16.msra.mxu0 %v3422
    %5843 = vmatpush.bf16.msra.mxu0 %v3418
    %5844 = vmatpush.bf16.msra.mxu0 %v3414
    %5845 = vmatpush.bf16.msra.mxu0 %v3410
    %5846 = vmatpush.bf16.msra.mxu0 %v3406
    %5847 = vmatpush.bf16.msra.mxu0 %v3402
    %5848 = vmatpush.bf16.msra.mxu0 %v3398
    %5849 = vmatpush.bf16.msra.mxu0 %v3394
    %5850 = vmatmul.bf16.gmra.mxu0 %v829
    %v5851 = vpop.f32.mrf.mxu0
    %v5852 = vadd.f32 %v5839, %v5851
    %v5853 = vpop.f32.mrf.mxu0
    %5854 = vdwg.mxu0
    %5855 = vmatpush.bf16.msra.mxu0 %v3454
    %5856 = vmatpush.bf16.msra.mxu0 %v3450
    %5857 = vmatpush.bf16.msra.mxu0 %v3446
    %5858 = vmatpush.bf16.msra.mxu0 %v3442
    %5859 = vmatpush.bf16.msra.mxu0 %v3438
    %5860 = vmatpush.bf16.msra.mxu0 %v3434
    %5861 = vmatpush.bf16.msra.mxu0 %v3430
    %5862 = vmatpush.bf16.msra.mxu0 %v3426
    %5863 = vmatmul.bf16.gmra.mxu0 %v830
    %v5864 = vpop.f32.mrf.mxu0
    %v5865 = vadd.f32 %v5852, %v5864
    %v5866 = vpop.f32.mrf.mxu0
    %5867 = vdwg.mxu0
    %5868 = vmatpush.bf16.msra.mxu0 %v3486
    %5869 = vmatpush.bf16.msra.mxu0 %v3482
    %5870 = vmatpush.bf16.msra.mxu0 %v3478
    %5871 = vmatpush.bf16.msra.mxu0 %v3474
    %5872 = vmatpush.bf16.msra.mxu0 %v3470
    %5873 = vmatpush.bf16.msra.mxu0 %v3466
    %5874 = vmatpush.bf16.msra.mxu0 %v3462
    %5875 = vmatpush.bf16.msra.mxu0 %v3458
    %5876 = vmatmul.bf16.gmra.mxu0 %v831
    %v5877 = vpop.f32.mrf.mxu0
    %v5878 = vadd.f32 %v5865, %v5877
    %v5879 = vpop.f32.mrf.mxu0
    %5880 = vdwg.mxu0
    %5881 = vmatpush.bf16.msra.mxu0 %v3518
    %5882 = vmatpush.bf16.msra.mxu0 %v3514
    %5883 = vmatpush.bf16.msra.mxu0 %v3510
    %5884 = vmatpush.bf16.msra.mxu0 %v3506
    %5885 = vmatpush.bf16.msra.mxu0 %v3502
    %5886 = vmatpush.bf16.msra.mxu0 %v3498
    %5887 = vmatpush.bf16.msra.mxu0 %v3494
    %5888 = vmatpush.bf16.msra.mxu0 %v3490
    %5889 = vmatmul.bf16.gmra.mxu0 %v834
    %v5890 = vpop.f32.mrf.mxu0
    %v5891 = vadd.f32 %v5878, %v5890
    %v5892 = vpop.f32.mrf.mxu0
    %5893 = vdwg.mxu0
    %5894 = vmatpush.bf16.msra.mxu0 %v3550
    %5895 = vmatpush.bf16.msra.mxu0 %v3546
    %5896 = vmatpush.bf16.msra.mxu0 %v3542
    %5897 = vmatpush.bf16.msra.mxu0 %v3538
    %5898 = vmatpush.bf16.msra.mxu0 %v3534
    %5899 = vmatpush.bf16.msra.mxu0 %v3530
    %5900 = vmatpush.bf16.msra.mxu0 %v3526
    %5901 = vmatpush.bf16.msra.mxu0 %v3522
    %5902 = vmatmul.bf16.gmra.mxu0 %v835
    %v5903 = vpop.f32.mrf.mxu0
    %v5904 = vadd.f32 %v5891, %v5903
    %v5905 = vpop.f32.mrf.mxu0
    %5906 = vdwg.mxu0
    %5907 = vmatpush.bf16.msra.mxu0 %v3582
    %5908 = vmatpush.bf16.msra.mxu0 %v3578
    %5909 = vmatpush.bf16.msra.mxu0 %v3574
    %5910 = vmatpush.bf16.msra.mxu0 %v3570
    %5911 = vmatpush.bf16.msra.mxu0 %v3566
    %5912 = vmatpush.bf16.msra.mxu0 %v3562
    %5913 = vmatpush.bf16.msra.mxu0 %v3558
    %5914 = vmatpush.bf16.msra.mxu0 %v3554
    %5915 = vmatmul.bf16.gmra.mxu0 %v836
    %v5916 = vpop.f32.mrf.mxu0
    %v5917 = vadd.f32 %v5904, %v5916
    %v5918 = vpop.f32.mrf.mxu0
    %5919 = vdwg.mxu0
    %5920 = vmatpush.bf16.msra.mxu0 %v3614
    %5921 = vmatpush.bf16.msra.mxu0 %v3610
    %5922 = vmatpush.bf16.msra.mxu0 %v3606
    %5923 = vmatpush.bf16.msra.mxu0 %v3602
    %5924 = vmatpush.bf16.msra.mxu0 %v3598
    %5925 = vmatpush.bf16.msra.mxu0 %v3594
    %5926 = vmatpush.bf16.msra.mxu0 %v3590
    %5927 = vmatpush.bf16.msra.mxu0 %v3586
    %5928 = vmatmul.bf16.gmra.mxu0 %v837
    %v5929 = vpop.f32.mrf.mxu0
    %v5930 = vadd.f32 %v5917, %v5929
    %v5931 = vpop.f32.mrf.mxu0
    %5932 = vdwg.mxu0
    %5933 = vmatpush.bf16.msra.mxu0 %v3646
    %5934 = vmatpush.bf16.msra.mxu0 %v3642
    %5935 = vmatpush.bf16.msra.mxu0 %v3638
    %5936 = vmatpush.bf16.msra.mxu0 %v3634
    %5937 = vmatpush.bf16.msra.mxu0 %v3630
    %5938 = vmatpush.bf16.msra.mxu0 %v3626
    %5939 = vmatpush.bf16.msra.mxu0 %v3622
    %5940 = vmatpush.bf16.msra.mxu0 %v3618
    %5941 = vmatmul.bf16.gmra.mxu0 %v838
    %v5942 = vpop.f32.mrf.mxu0
    %v5943 = vadd.f32 %v5930, %v5942
    %v5944 = vpop.f32.mrf.mxu0
    %5945 = vdwg.mxu0
    %5946 = vmatpush.bf16.msra.mxu0 %v3678
    %5947 = vmatpush.bf16.msra.mxu0 %v3674
    %5948 = vmatpush.bf16.msra.mxu0 %v3670
    %5949 = vmatpush.bf16.msra.mxu0 %v3666
    %5950 = vmatpush.bf16.msra.mxu0 %v3662
    %5951 = vmatpush.bf16.msra.mxu0 %v3658
    %5952 = vmatpush.bf16.msra.mxu0 %v3654
    %5953 = vmatpush.bf16.msra.mxu0 %v3650
    %5954 = vmatmul.bf16.gmra.mxu0 %v839
    %v5955 = vpop.f32.mrf.mxu0
    %v5956 = vadd.f32 %v5943, %v5955
    %v5957 = vpop.f32.mrf.mxu0
    %5958 = vdwg.mxu0
    %5959 = vmatpush.bf16.msra.mxu0 %v3710
    %5960 = vmatpush.bf16.msra.mxu0 %v3706
    %5961 = vmatpush.bf16.msra.mxu0 %v3702
    %5962 = vmatpush.bf16.msra.mxu0 %v3698
    %5963 = vmatpush.bf16.msra.mxu0 %v3694
    %5964 = vmatpush.bf16.msra.mxu0 %v3690
    %5965 = vmatpush.bf16.msra.mxu0 %v3686
    %5966 = vmatpush.bf16.msra.mxu0 %v3682
    %5967 = vmatmul.bf16.gmra.mxu0 %v840
    %v5968 = vpop.f32.mrf.mxu0
    %v5969 = vadd.f32 %v5956, %v5968
    %v5970 = vpop.f32.mrf.mxu0
    %5971 = vdwg.mxu0
    %5972 = vmatpush.bf16.msra.mxu0 %v3742
    %5973 = vmatpush.bf16.msra.mxu0 %v3738
    %5974 = vmatpush.bf16.msra.mxu0 %v3734
    %5975 = vmatpush.bf16.msra.mxu0 %v3730
    %5976 = vmatpush.bf16.msra.mxu0 %v3726
    %5977 = vmatpush.bf16.msra.mxu0 %v3722
    %5978 = vmatpush.bf16.msra.mxu0 %v3718
    %5979 = vmatpush.bf16.msra.mxu0 %v3714
    %5980 = vmatmul.bf16.gmra.mxu0 %v841
    %v5981 = vpop.f32.mrf.mxu0
    %v5982 = vadd.f32 %v5969, %v5981
    %v5983 = vpop.f32.mrf.mxu0
    %5984 = vdwg.mxu0
    %5985 = vmatpush.bf16.msra.mxu0 %v3774
    %5986 = vmatpush.bf16.msra.mxu0 %v3770
    %5987 = vmatpush.bf16.msra.mxu0 %v3766
    %5988 = vmatpush.bf16.msra.mxu0 %v3762
    %5989 = vmatpush.bf16.msra.mxu0 %v3758
    %5990 = vmatpush.bf16.msra.mxu0 %v3754
    %5991 = vmatpush.bf16.msra.mxu0 %v3750
    %5992 = vmatpush.bf16.msra.mxu0 %v3746
    %5993 = vmatmul.bf16.gmra.mxu0 %v844
    %v5994 = vpop.f32.mrf.mxu0
    %v5995 = vadd.f32 %v5982, %v5994
    %v5996 = vpop.f32.mrf.mxu0
    %5997 = vdwg.mxu0
    %5998 = vmatpush.bf16.msra.mxu0 %v3806
    %5999 = vmatpush.bf16.msra.mxu0 %v3802
    %6000 = vmatpush.bf16.msra.mxu0 %v3798
    %6001 = vmatpush.bf16.msra.mxu0 %v3794
    %6002 = vmatpush.bf16.msra.mxu0 %v3790
    %6003 = vmatpush.bf16.msra.mxu0 %v3786
    %6004 = vmatpush.bf16.msra.mxu0 %v3782
    %6005 = vmatpush.bf16.msra.mxu0 %v3778
    %6006 = vmatmul.bf16.gmra.mxu0 %v845
    %v6007 = vpop.f32.mrf.mxu0
    %v6008 = vadd.f32 %v5995, %v6007
    %v6009 = vpop.f32.mrf.mxu0
    %6010 = vdwg.mxu0
    %6011 = vmatpush.bf16.msra.mxu0 %v3838
    %6012 = vmatpush.bf16.msra.mxu0 %v3834
    %6013 = vmatpush.bf16.msra.mxu0 %v3830
    %6014 = vmatpush.bf16.msra.mxu0 %v3826
    %6015 = vmatpush.bf16.msra.mxu0 %v3822
    %6016 = vmatpush.bf16.msra.mxu0 %v3818
    %6017 = vmatpush.bf16.msra.mxu0 %v3814
    %6018 = vmatpush.bf16.msra.mxu0 %v3810
    %6019 = vmatmul.bf16.gmra.mxu0 %v846
    %v6020 = vpop.f32.mrf.mxu0
    %v6021 = vadd.f32 %v6008, %v6020
    %v6022 = vpop.f32.mrf.mxu0
    %6023 = vdwg.mxu0
    %6024 = vmatpush.bf16.msra.mxu0 %v3870
    %6025 = vmatpush.bf16.msra.mxu0 %v3866
    %6026 = vmatpush.bf16.msra.mxu0 %v3862
    %6027 = vmatpush.bf16.msra.mxu0 %v3858
    %6028 = vmatpush.bf16.msra.mxu0 %v3854
    %6029 = vmatpush.bf16.msra.mxu0 %v3850
    %6030 = vmatpush.bf16.msra.mxu0 %v3846
    %6031 = vmatpush.bf16.msra.mxu0 %v3842
    %6032 = vmatmul.bf16.gmra.mxu0 %v847
    %v6033 = vpop.f32.mrf.mxu0
    %v6034 = vadd.f32 %v6021, %v6033
    %v6035 = vpop.f32.mrf.mxu0
    %6036 = vdwg.mxu0
    %6037 = vmatpush.bf16.msra.mxu0 %v3902
    %6038 = vmatpush.bf16.msra.mxu0 %v3898
    %6039 = vmatpush.bf16.msra.mxu0 %v3894
    %6040 = vmatpush.bf16.msra.mxu0 %v3890
    %6041 = vmatpush.bf16.msra.mxu0 %v3886
    %6042 = vmatpush.bf16.msra.mxu0 %v3882
    %6043 = vmatpush.bf16.msra.mxu0 %v3878
    %6044 = vmatpush.bf16.msra.mxu0 %v3874
    %6045 = vmatmul.bf16.gmra.mxu0 %v848
    %v6046 = vpop.f32.mrf.mxu0
    %v6047 = vadd.f32 %v6034, %v6046
    %v6048 = vpop.f32.mrf.mxu0
    %6049 = vdwg.mxu0
    %6050 = vmatpush.bf16.msra.mxu0 %v3934
    %6051 = vmatpush.bf16.msra.mxu0 %v3930
    %6052 = vmatpush.bf16.msra.mxu0 %v3926
    %6053 = vmatpush.bf16.msra.mxu0 %v3922
    %6054 = vmatpush.bf16.msra.mxu0 %v3918
    %6055 = vmatpush.bf16.msra.mxu0 %v3914
    %6056 = vmatpush.bf16.msra.mxu0 %v3910
    %6057 = vmatpush.bf16.msra.mxu0 %v3906
    %6058 = vmatmul.bf16.gmra.mxu0 %v849
    %v6059 = vpop.f32.mrf.mxu0
    %v6060 = vadd.f32 %v6047, %v6059
    %v6061 = vpop.f32.mrf.mxu0
    %6062 = vdwg.mxu0
    %6063 = vmatpush.bf16.msra.mxu0 %v3966
    %6064 = vmatpush.bf16.msra.mxu0 %v3962
    %6065 = vmatpush.bf16.msra.mxu0 %v3958
    %6066 = vmatpush.bf16.msra.mxu0 %v3954
    %6067 = vmatpush.bf16.msra.mxu0 %v3950
    %6068 = vmatpush.bf16.msra.mxu0 %v3946
    %6069 = vmatpush.bf16.msra.mxu0 %v3942
    %6070 = vmatpush.bf16.msra.mxu0 %v3938
    %6071 = vmatmul.bf16.gmra.mxu0 %v850
    %v6072 = vpop.f32.mrf.mxu0
    %v6073 = vadd.f32 %v6060, %v6072
    %v6074 = vpop.f32.mrf.mxu0
    %6075 = vdwg.mxu0
    %6076 = vmatpush.bf16.msra.mxu0 %v3998
    %6077 = vmatpush.bf16.msra.mxu0 %v3994
    %6078 = vmatpush.bf16.msra.mxu0 %v3990
    %6079 = vmatpush.bf16.msra.mxu0 %v3986
    %6080 = vmatpush.bf16.msra.mxu0 %v3982
    %6081 = vmatpush.bf16.msra.mxu0 %v3978
    %6082 = vmatpush.bf16.msra.mxu0 %v3974
    %6083 = vmatpush.bf16.msra.mxu0 %v3970
    %6084 = vmatmul.bf16.gmra.mxu0 %v851
    %v6085 = vpop.f32.mrf.mxu0
    %v6086 = vadd.f32 %v6073, %v6085
    %v6087 = vpop.f32.mrf.mxu0
    %6088 = vdwg.mxu0
    %6089 = vmatpush.bf16.msra.mxu0 0
    %6090 = vmatpush.bf16.msra.mxu0 0
    %6091 = vmatpush.bf16.msra.mxu0 0
    %6092 = vmatpush.bf16.msra.mxu0 0
    %6093 = vmatpush.bf16.msra.mxu0 %v4014
    %6094 = vmatpush.bf16.msra.mxu0 %v4010
    %6095 = vmatpush.bf16.msra.mxu0 %v4006
    %6096 = vmatpush.bf16.msra.mxu0 %v4002
    %6097 = vmatmul.bf16.gmra.mxu0 %v4800
    %v6098 = vpop.f32.mrf.mxu0
    %v6099 = vadd.f32 %v6086, %v6098
    %v6100 = vpop.f32.mrf.mxu0
    %6101 = vdwg.mxu0
    %v6102 = vmax.f32 %v5124, 0.0
    %v6103 = vmax.f32 %v5449, 0.0
    %v6104 = vmax.f32 %v5774, 0.0
    %v6105 = vmax.f32 %v6099, 0.0
    %v6106 = vpack.c.bf16 %v6102, %v6102
    %v6107 = vpack.c.bf16 %v6103, %v6103
    %v6108 = vpack.c.bf16 %v6104, %v6104
    %v6109 = vpack.c.bf16 %v6105, %v6105
    %v6110 = vld [vmem:[%s3] sm:$0xf]
    %v6111 = vld [vmem:[%s3 + $0x4] sm:$0xf]
    %v6112 = vld [vmem:[%s3 + $0x8] sm:$0xf]
    %v6113 = vld [vmem:[%s3 + $0xc] sm:$0xf]
    %v6114 = vld [vmem:[%s3 + $0x10] sm:$0xf]
    %v6115 = vld [vmem:[%s3 + $0x14] sm:$0xf]
    %v6116 = vld [vmem:[%s3 + $0x18] sm:$0xf]
    %v6117 = vld [vmem:[%s3 + $0x1c] sm:$0xf]
    %v6118 = vld [vmem:[%s3 + $0x20] sm:$0xf]
    %v6119 = vld [vmem:[%s3 + $0x24] sm:$0xf]
    %v6120 = vld [vmem:[%s3 + $0x28] sm:$0xf]
    %v6121 = vld [vmem:[%s3 + $0x2c] sm:$0xf]
    %v6122 = vld [vmem:[%s3 + $0x30] sm:$0xf]
    %v6123 = vld [vmem:[%s3 + $0x34] sm:$0xf]
    %v6124 = vld [vmem:[%s3 + $0x38] sm:$0xf]
    %v6125 = vld [vmem:[%s3 + $0x3c] sm:$0xf]
    %v6126 = vld [vmem:[%s3 + $0x40] sm:$0xf]
    %v6127 = vld [vmem:[%s3 + $0x44] sm:$0xf]
    %v6128 = vld [vmem:[%s3 + $0x48] sm:$0xf]
    %v6129 = vld [vmem:[%s3 + $0x4c] sm:$0xf]
    %v6130 = vld [vmem:[%s3 + $0x50] sm:$0xf]
    %v6131 = vld [vmem:[%s3 + $0x54] sm:$0xf]
    %v6132 = vld [vmem:[%s3 + $0x58] sm:$0xf]
    %v6133 = vld [vmem:[%s3 + $0x5c] sm:$0xf]
    %v6134 = vld [vmem:[%s3 + $0x60] sm:$0xf]
    %v6135 = vld [vmem:[%s3 + $0x64] sm:$0xf]
    %v6136 = vld [vmem:[%s3 + $0x68] sm:$0xf]
    %v6137 = vld [vmem:[%s3 + $0x6c] sm:$0xf]
    %v6138 = vld [vmem:[%s3 + $0x70] sm:$0xf]
    %v6139 = vld [vmem:[%s3 + $0x74] sm:$0xf]
    %v6140 = vld [vmem:[%s3 + $0x78] sm:$0xf]
    %v6141 = vld [vmem:[%s3 + $0x7c] sm:$0xf]
    %v6142 = vld [vmem:[%s3 + $0x80] sm:$0xf]
    %v6143 = vld [vmem:[%s3 + $0x84] sm:$0xf]
    %v6144 = vld [vmem:[%s3 + $0x88] sm:$0xf]
    %v6145 = vld [vmem:[%s3 + $0x8c] sm:$0xf]
    %v6146 = vld [vmem:[%s3 + $0x90] sm:$0xf]
    %v6147 = vld [vmem:[%s3 + $0x94] sm:$0xf]
    %v6148 = vld [vmem:[%s3 + $0x98] sm:$0xf]
    %v6149 = vld [vmem:[%s3 + $0x9c] sm:$0xf]
    %v6150 = vld [vmem:[%s3 + $0xa0] sm:$0xf]
    %v6151 = vld [vmem:[%s3 + $0xa4] sm:$0xf]
    %v6152 = vld [vmem:[%s3 + $0xa8] sm:$0xf]
    %v6153 = vld [vmem:[%s3 + $0xac] sm:$0xf]
    %v6154 = vld [vmem:[%s3 + $0xb0] sm:$0xf]
    %v6155 = vld [vmem:[%s3 + $0xb4] sm:$0xf]
    %v6156 = vld [vmem:[%s3 + $0xb8] sm:$0xf]
    %v6157 = vld [vmem:[%s3 + $0xbc] sm:$0xf]
    %v6158 = vld [vmem:[%s3 + $0xc0] sm:$0xf]
    %v6159 = vld [vmem:[%s3 + $0xc4] sm:$0xf]
    %v6160 = vld [vmem:[%s3 + $0xc8] sm:$0xf]
    %v6161 = vld [vmem:[%s3 + $0xcc] sm:$0xf]
    %v6162 = vld [vmem:[%s3 + $0xd0] sm:$0xf]
    %v6163 = vld [vmem:[%s3 + $0xd4] sm:$0xf]
    %v6164 = vld [vmem:[%s3 + $0xd8] sm:$0xf]
    %v6165 = vld [vmem:[%s3 + $0xdc] sm:$0xf]
    %v6166 = vld [vmem:[%s3 + $0xe0] sm:$0xf]
    %v6167 = vld [vmem:[%s3 + $0xe4] sm:$0xf]
    %v6168 = vld [vmem:[%s3 + $0xe8] sm:$0xf]
    %v6169 = vld [vmem:[%s3 + $0xec] sm:$0xf]
    %v6170 = vld [vmem:[%s3 + $0xf0] sm:$0xf]
    %v6171 = vld [vmem:[%s3 + $0xf4] sm:$0xf]
    %v6172 = vld [vmem:[%s3 + $0xf8] sm:$0xf]
    %v6173 = vld [vmem:[%s3 + $0xfc] sm:$0xf]
    %v6174 = vld [vmem:[%s4] sm:$0x1]
    %v6176 = vperm.slane %v6174, 0
    %v6242 = vunpack.c.l.b16 %v6110
    %v6243 = vunpack.c.l.b16 %v6111
    %v6244 = vunpack.c.l.b16 %v6112
    %v6245 = vunpack.c.l.b16 %v6113
    %v6246 = vunpack.c.l.b16 %v6114
    %v6247 = vunpack.c.l.b16 %v6115
    %v6248 = vunpack.c.l.b16 %v6116
    %v6249 = vunpack.c.l.b16 %v6117
    %v6250 = vunpack.c.l.b16 %v6118
    %v6251 = vunpack.c.l.b16 %v6119
    %v6252 = vunpack.c.l.b16 %v6120
    %v6253 = vunpack.c.l.b16 %v6121
    %v6254 = vunpack.c.l.b16 %v6122
    %v6255 = vunpack.c.l.b16 %v6123
    %v6256 = vunpack.c.l.b16 %v6124
    %v6257 = vunpack.c.l.b16 %v6125
    %v6258 = vunpack.c.l.b16 %v6126
    %v6259 = vunpack.c.l.b16 %v6127
    %v6260 = vunpack.c.l.b16 %v6128
    %v6261 = vunpack.c.l.b16 %v6129
    %v6262 = vunpack.c.l.b16 %v6130
    %v6263 = vunpack.c.l.b16 %v6131
    %v6264 = vunpack.c.l.b16 %v6132
    %v6265 = vunpack.c.l.b16 %v6133
    %v6266 = vunpack.c.l.b16 %v6134
    %v6267 = vunpack.c.l.b16 %v6135
    %v6268 = vunpack.c.l.b16 %v6136
    %v6269 = vunpack.c.l.b16 %v6137
    %v6270 = vunpack.c.l.b16 %v6138
    %v6271 = vunpack.c.l.b16 %v6139
    %v6272 = vunpack.c.l.b16 %v6140
    %v6273 = vunpack.c.l.b16 %v6141
    %v6274 = vunpack.c.l.b16 %v6142
    %v6275 = vunpack.c.l.b16 %v6143
    %v6276 = vunpack.c.l.b16 %v6144
    %v6277 = vunpack.c.l.b16 %v6145
    %v6278 = vunpack.c.l.b16 %v6146
    %v6279 = vunpack.c.l.b16 %v6147
    %v6280 = vunpack.c.l.b16 %v6148
    %v6281 = vunpack.c.l.b16 %v6149
    %v6282 = vunpack.c.l.b16 %v6150
    %v6283 = vunpack.c.l.b16 %v6151
    %v6284 = vunpack.c.l.b16 %v6152
    %v6285 = vunpack.c.l.b16 %v6153
    %v6286 = vunpack.c.l.b16 %v6154
    %v6287 = vunpack.c.l.b16 %v6155
    %v6288 = vunpack.c.l.b16 %v6156
    %v6289 = vunpack.c.l.b16 %v6157
    %v6290 = vunpack.c.l.b16 %v6158
    %v6291 = vunpack.c.l.b16 %v6159
    %v6292 = vunpack.c.l.b16 %v6160
    %v6293 = vunpack.c.l.b16 %v6161
    %v6294 = vunpack.c.l.b16 %v6162
    %v6295 = vunpack.c.l.b16 %v6163
    %v6296 = vunpack.c.l.b16 %v6164
    %v6297 = vunpack.c.l.b16 %v6165
    %v6298 = vunpack.c.l.b16 %v6166
    %v6299 = vunpack.c.l.b16 %v6167
    %v6300 = vunpack.c.l.b16 %v6168
    %v6301 = vunpack.c.l.b16 %v6169
    %v6302 = vunpack.c.l.b16 %v6170
    %v6303 = vunpack.c.l.b16 %v6171
    %v6304 = vunpack.c.l.b16 %v6172
    %v6305 = vunpack.c.l.b16 %v6173
    %v6306 = vpack.c.b16 %v6243, %v6242
    %v6307 = vpack.c.b16 %v6245, %v6244
    %v6308 = vpack.c.b16 %v6247, %v6246
    %v6309 = vpack.c.b16 %v6249, %v6248
    %v6310 = vpack.c.b16 %v6251, %v6250
    %v6311 = vpack.c.b16 %v6253, %v6252
    %v6312 = vpack.c.b16 %v6255, %v6254
    %v6313 = vpack.c.b16 %v6257, %v6256
    %v6314 = vpack.c.b16 %v6259, %v6258
    %v6315 = vpack.c.b16 %v6261, %v6260
    %v6316 = vpack.c.b16 %v6263, %v6262
    %v6317 = vpack.c.b16 %v6265, %v6264
    %v6318 = vpack.c.b16 %v6267, %v6266
    %v6319 = vpack.c.b16 %v6269, %v6268
    %v6320 = vpack.c.b16 %v6271, %v6270
    %v6321 = vpack.c.b16 %v6273, %v6272
    %v6322 = vpack.c.b16 %v6275, %v6274
    %v6323 = vpack.c.b16 %v6277, %v6276
    %v6324 = vpack.c.b16 %v6279, %v6278
    %v6325 = vpack.c.b16 %v6281, %v6280
    %v6326 = vpack.c.b16 %v6283, %v6282
    %v6327 = vpack.c.b16 %v6285, %v6284
    %v6328 = vpack.c.b16 %v6287, %v6286
    %v6329 = vpack.c.b16 %v6289, %v6288
    %v6330 = vpack.c.b16 %v6291, %v6290
    %v6331 = vpack.c.b16 %v6293, %v6292
    %v6332 = vpack.c.b16 %v6295, %v6294
    %v6333 = vpack.c.b16 %v6297, %v6296
    %v6334 = vpack.c.b16 %v6299, %v6298
    %v6335 = vpack.c.b16 %v6301, %v6300
    %v6336 = vpack.c.b16 %v6303, %v6302
    %v6337 = vpack.c.b16 %v6305, %v6304
    %6370 = vmatpush.bf16.msra.mxu0 %v6313
    %6371 = vmatpush.bf16.msra.mxu0 %v6312
    %6372 = vmatpush.bf16.msra.mxu0 %v6311
    %6373 = vmatpush.bf16.msra.mxu0 %v6310
    %6374 = vmatpush.bf16.msra.mxu0 %v6309
    %6375 = vmatpush.bf16.msra.mxu0 %v6308
    %6376 = vmatpush.bf16.msra.mxu0 %v6307
    %6377 = vmatpush.bf16.msra.mxu0 %v6306
    %6378 = vmatmul.bf16.gmra.mxu0 %v6106
    %v6379 = vpop.f32.mrf.mxu0
    %v6380 = vadd.f32 %v6176, %v6379
    %v6381 = vpop.f32.mrf.mxu0
    %6382 = vdwg.mxu0
    %6383 = vmatpush.bf16.msra.mxu0 %v6321
    %6384 = vmatpush.bf16.msra.mxu0 %v6320
    %6385 = vmatpush.bf16.msra.mxu0 %v6319
    %6386 = vmatpush.bf16.msra.mxu0 %v6318
    %6387 = vmatpush.bf16.msra.mxu0 %v6317
    %6388 = vmatpush.bf16.msra.mxu0 %v6316
    %6389 = vmatpush.bf16.msra.mxu0 %v6315
    %6390 = vmatpush.bf16.msra.mxu0 %v6314
    %6391 = vmatmul.bf16.gmra.mxu0 %v6107
    %v6392 = vpop.f32.mrf.mxu0
    %v6393 = vadd.f32 %v6380, %v6392
    %v6394 = vpop.f32.mrf.mxu0
    %6395 = vdwg.mxu0
    %6396 = vmatpush.bf16.msra.mxu0 %v6329
    %6397 = vmatpush.bf16.msra.mxu0 %v6328
    %6398 = vmatpush.bf16.msra.mxu0 %v6327
    %6399 = vmatpush.bf16.msra.mxu0 %v6326
    %6400 = vmatpush.bf16.msra.mxu0 %v6325
    %6401 = vmatpush.bf16.msra.mxu0 %v6324
    %6402 = vmatpush.bf16.msra.mxu0 %v6323
    %6403 = vmatpush.bf16.msra.mxu0 %v6322
    %6404 = vmatmul.bf16.gmra.mxu0 %v6108
    %v6405 = vpop.f32.mrf.mxu0
    %v6406 = vadd.f32 %v6393, %v6405
    %v6407 = vpop.f32.mrf.mxu0
    %6408 = vdwg.mxu0
    %6409 = vmatpush.bf16.msra.mxu0 %v6337
    %6410 = vmatpush.bf16.msra.mxu0 %v6336
    %6411 = vmatpush.bf16.msra.mxu0 %v6335
    %6412 = vmatpush.bf16.msra.mxu0 %v6334
    %6413 = vmatpush.bf16.msra.mxu0 %v6333
    %6414 = vmatpush.bf16.msra.mxu0 %v6332
    %6415 = vmatpush.bf16.msra.mxu0 %v6331
    %6416 = vmatpush.bf16.msra.mxu0 %v6330
    %6417 = vmatmul.bf16.gmra.mxu0 %v6109
    %v6418 = vpop.f32.mrf.mxu0
    %v6419 = vadd.f32 %v6406, %v6418
    %v6420 = vpop.f32.mrf.mxu0
    %6421 = vdwg.mxu0
    %vm6422 = vcmask 1024
    %6423 = vst.msk [vmem:[%s6] sm:$0x3] %vm6422, %v6419
    %vm6424 = vcmask 50184
    %v6425 = vsel %vm6424, %v6419, -inf
    %6426 = vmax.xlane.f32.xlu0 %v6425
    %v6427 = vpop.xlane.xlu0 %6426
    %v6428 = vsub.f32 %v6419, %v6427
    %v6429 = vmul.f32 %v6428, 1.442695
    %v6430 = vpow.pop %v6429
    %6432 = vrot.lane.b32.xlu0 %v6430, 127
    %v6433 = vpop.permute.xlu0 %6432
    %vm6435 = vcmask 41984
    %v6436 = vsel %vm6435, %v6433, 0.0
    %6437 = vadd.xlane.f32.xlu0 %v6436
    %v6438 = vpop.xlane.xlu0 %6437
    %v6439 = vrcp.pop %v6438
    %v6440 = vmul.f32 %v6438, %v6439
    %v6441 = vsub.f32 1.0, %v6440
    %v6442 = vmul.f32 %v6439, %v6441
    %v6443 = vadd.f32 %v6439, %v6442
    %vm6444 = vweird.f32 %v6438
    %vm6445 = vweird.f32 %v6439
    %vm6446 = vmor %vm6444, %vm6445
    %v6447 = vsel %vm6446, %v6439, %v6443
    %v6448 = vand.u32 2147483647, %v6438
    %vm6449 = vcmp.eq.f32.partialorder %v6448, 8.507059e+37
    %v6450 = vand.u32 %v6438, 2147483648
    %v6451 = vor.u32 1.1754944e-38, %v6450
    %v6452 = vsel %vm6449, %v6451, %v6447
    %v6453 = vmul.f32 %v6430, %v6452
    %6455 = vrot.lane.b32.xlu0 %v6453, 127
    %v6456 = vpop.permute.xlu0 %6455
    %6458 = vst.msk [vmem:[#allocation2] sm:$0x3] %vm6435, %v6456
    // Predicated region
    $region22: #{nature_cnn_forward.7} parent=1 // pred_check
      _
    $region23: #{nature_cnn_forward.7} parent=1 // pred_check_branch
      %6460 = sbr.rel (0) target = $region25
    $region24: #{nature_cnn_forward.7} parent=1 // pred_region
      %6462 = vsyncadd [#allocation3], 0
      %s6464 = sshll.u32 [#allocation2], 4
      %s6465 = int_to_ptr.vmem [resolvable:$true] %s6464
      %s6466 = sshll.u32 %s5, 4
      %s6467 = int_to_ptr.hbm [resolvable:$true] %s6466
      %6469 = dma.vmem_to_hbm [thread:$0]  %s6465, 32, %s6467, [#allocation3]
    $region25: #{nature_cnn_forward.7} parent=1 // pred_fallthru
      _
    // Predicated region
    $region26: #{nature_cnn_forward.7} parent=1 // pred_check
      _
    $region27: #{nature_cnn_forward.7} parent=1 // pred_check_branch
      %6471 = sbr.rel (0) target = $region29
    $region28: #{nature_cnn_forward.7} parent=1 // pred_region
      _
    $region29: #{nature_cnn_forward.7} parent=1 // pred_fallthru
      _
    // Predicated region
    $region30: #{nature_cnn_forward.7} parent=1 // pred_check
      _
    $region31: #{nature_cnn_forward.7} parent=1 // pred_check_branch
      %6473 = sbr.rel (0) target = $region33
    $region32: #{nature_cnn_forward.7} parent=1 // pred_region
      %6475 = dma.done [#allocation3], 32
    $region33: #{nature_cnn_forward.7} parent=1 // pred_fallthru
      _
    // Predicated region
    $region34: #{nature_cnn_forward.7} parent=1 // pred_check
      _
    $region35: #{nature_cnn_forward.7} parent=1 // pred_check_branch
      %6477 = sbr.rel (0) target = $region37
    $region36: #{nature_cnn_forward.7} parent=1 // pred_region
      _
    $region37: #{nature_cnn_forward.7} parent=1 // pred_fallthru
      _
    %6478 = vsyncpa [#allocation3], 1

</llo_original>
